<compile_context>
chip_gen: v6e
topology: v6e:2x2x1
jax: 0.10.0
libtpu: 0.0.40
codegen_flags: <defaults>
</compile_context>

<pallas_src>
import functools

import jax
import jax.numpy as jnp
from jax.experimental import pallas as pl
from jax.experimental.pallas import tpu as pltpu

# ---------------------------------------------------------------------------
# Small synthetic config (shapes consistent with the module's forward)
# ---------------------------------------------------------------------------
D_MODEL = 128           # d_model of MemoryAttention
NUM_HEADS = 1           # SAM2 memory attention uses a single head
HEAD_DIM = D_MODEL // NUM_HEADS
KV_DIM = 64             # memory (kv_in_dim) channel dim
D_FF = 256              # dim_feedforward
NUM_LAYERS = 2
FEAT_H = FEAT_W = 8     # feature map side -> L_q = 64
L_Q = FEAT_H * FEAT_W
NUM_MASKMEM = 2
NUM_OBJ_PTR = 4         # object-pointer tokens (excluded from RoPE on keys)
L_MEM = NUM_MASKMEM * L_Q + NUM_OBJ_PTR   # 132
BATCH = 2
ROPE_THETA = 10000.0
LN_EPS = 1e-5
MXU_DTYPE = jnp.bfloat16   # matmul operand dtype (f32 accumulation always)

# Stacked weight-matrix operands (order fed to the fused kernel).
_MAT_KEYS = ("sa_wqkv", "sa_wo", "ca_wq", "ca_wkv", "ca_wo", "ff_w1", "ff_w2")

# Packed small-vector operand layout: one row per bias / LN vector.
VEC_W = 3 * D_MODEL          # widest packed row (fused qkv bias)
ROWS_PER_LAYER = 13
(R_SA_BQKV, R_SA_BO, R_CA_BQ, R_CA_BKV, R_CA_BO, R_FF_B1, R_FF_B2,
 R_LN1_G, R_LN1_B, R_LN2_G, R_LN2_B, R_LN3_G, R_LN3_B) = range(13)


# ---------------------------------------------------------------------------
# Fused Pallas kernel: whole MemoryAttention stack, all batches, one step.
# ---------------------------------------------------------------------------
def _build_fused_kernel(num_layers, d_model, dff):
    half = d_model // 2
    mdt = MXU_DTYPE

    def layer_norm(x, g, b):
        mu = jnp.mean(x, axis=-1, keepdims=True)
        xc = x - mu
        var = jnp.mean(xc * xc, axis=-1, keepdims=True)
        return xc * jax.lax.rsqrt(var + LN_EPS) * g + b

    def matmul(a, w, bias):
        return jnp.dot(a.astype(mdt), w.astype(mdt),
                       preferred_element_type=jnp.float32) + bias

    def kernel(curr_ref, cpos_ref, memcat_ref, qrope_ref, krope_ref,
               mself_ref, mcross_ref,
               sa_wqkv_ref, sa_wo_ref, ca_wq_ref, ca_wkv_ref, ca_wo_ref,
               ff_w1_ref, ff_w2_ref, vecs_ref, out_ref):

        def vrow(r, w=d_model):
            # [1, w] static slice of the packed bias / LN-vector operand
            return vecs_ref[r:r + 1, :w]

        def rope(t, tab_ref):
            # rotate-half RoPE on full 128-lane vregs; roll uses the XLU slot.
            # tables are packed [cos, cos | -sin, sin] of width 2*d.
            return (t * tab_ref[:, :d_model]
                    + pltpu.roll(t, half, axis=1) * tab_ref[:, d_model:])

        def attention(q, k, v, mask_ref):
            # q already carries 1/sqrt(head_dim) (folded into its projection).
            # NT-form dot_general (contract dim 1 of both) -> no explicit k.T.
            s = jax.lax.dot_general(q.astype(mdt), k.astype(mdt),
                                    (((1,), (1,)), ((), ())),
                                    preferred_element_type=jnp.float32)
            s = s + mask_ref[...]          # batch-block + key-padding mask
            m = jnp.max(s, axis=-1, keepdims=True)
            p = jnp.exp(s - m)
            denom = jnp.sum(p, axis=-1, keepdims=True)
            o = jnp.dot(p.astype(mdt), v.astype(mdt),
                        preferred_element_type=jnp.float32)
            return o * pl.reciprocal(denom, approx=True)

        # residual stream [B*Lq, D] (interleaved rows), pos-add fused in-kernel
        x = (curr_ref[...] + 0.1 * cpos_ref[...]).astype(jnp.float32)

        for li in range(num_layers):
            r0 = li * ROWS_PER_LAYER

            # ---- self-attention (RoPE on q and k, pos_enc_at_attn=False) ----
            t2 = layer_norm(x, vrow(r0 + R_LN1_G), vrow(r0 + R_LN1_B))
            qkv = matmul(t2, sa_wqkv_ref[li], vrow(r0 + R_SA_BQKV, 3 * d_model))
            q = rope(qkv[:, :d_model], qrope_ref)
            k = rope(qkv[:, d_model:2 * d_model], qrope_ref)
            v = qkv[:, 2 * d_model:]
            a = attention(q, k, v, mself_ref)
            x = x + matmul(a, sa_wo_ref[li], vrow(r0 + R_SA_BO))

            # ---- cross-attention to memory (RoPE on q; repeated RoPE on the
            #      spatial keys; identity on obj-ptr keys; padded keys masked).
            #      K and V projections fused: kv = memcat @ [[Wk,Wv],[Wk,0]] --
            t2 = layer_norm(x, vrow(r0 + R_LN2_G), vrow(r0 + R_LN2_B))
            q = rope(matmul(t2, ca_wq_ref[li], vrow(r0 + R_CA_BQ)), qrope_ref)
            kv = matmul(memcat_ref[...], ca_wkv_ref[li],
                        vrow(r0 + R_CA_BKV, 2 * d_model))
            k = rope(kv[:, :d_model], krope_ref)
            v = kv[:, d_model:]
            a = attention(q, k, v, mcross_ref)
            x = x + matmul(a, ca_wo_ref[li], vrow(r0 + R_CA_BO))

            # ---- feed-forward (ReLU) ----
            t2 = layer_norm(x, vrow(r0 + R_LN3_G), vrow(r0 + R_LN3_B))
            h = jnp.maximum(matmul(t2, ff_w1_ref[li], vrow(r0 + R_FF_B1, dff)),
                            0.0)
            x = x + matmul(h, ff_w2_ref[li], vrow(r0 + R_FF_B2))

        y = layer_norm(x, vrow(num_layers * ROWS_PER_LAYER),
                       vrow(num_layers * ROWS_PER_LAYER + 1))
        out_ref[...] = y.astype(out_ref.dtype)

    return kernel


# ---------------------------------------------------------------------------
# RoPE tables & parameter setup (plain JAX glue / compile-time constants)
# ---------------------------------------------------------------------------
def _axial_rope_tables(head_dim, end_x, end_y, theta):
    """cos/sin angle tables matching sam2 compute_axial_cis, [L, head_dim//2]."""
    n_freq = head_dim // 4
    exps = jnp.arange(0, head_dim, 4)[:n_freq].astype(jnp.float32) / head_dim
    freqs = 1.0 / (theta ** exps)
    t = jnp.arange(end_x * end_y, dtype=jnp.float32)
    t_x = t % end_x
    t_y = jnp.floor(t / end_x)
    ang = jnp.concatenate([jnp.outer(t_x, freqs), jnp.outer(t_y, freqs)], axis=-1)
    return jnp.cos(ang), jnp.sin(ang)


def _deinterleave_perm(num_heads, head_dim):
    per_head = jnp.concatenate([jnp.arange(0, head_dim, 2),
                                jnp.arange(1, head_dim, 2)])
    return jnp.concatenate([h * head_dim + per_head for h in range(num_heads)])


def init_params(key):
    perm = _deinterleave_perm(NUM_HEADS, HEAD_DIM)
    scale = 1.0 / (HEAD_DIM ** 0.5)

    def lin_init(k, dout, din, w_scale=0.06):
        kw, kb = jax.random.split(k)
        w = jax.random.normal(kw, (dout, din), jnp.float32) * w_scale
        b = jax.random.normal(kb, (dout,), jnp.float32) * 0.01
        return w, b

    def ln_init(k, d):
        kg, kb = jax.random.split(k)
        return (1.0 + 0.05 * jax.random.normal(kg, (d,), jnp.float32),
                0.05 * jax.random.normal(kb, (d,), jnp.float32))

    def padrow(v):
        return jnp.zeros((VEC_W,), jnp.float32).at[:v.shape[0]].set(v)

    keys = jax.random.split(key, NUM_LAYERS + 1)
    mats = {k: [] for k in _MAT_KEYS}
    vec_rows = []
    for li in range(NUM_LAYERS):
        ks = jax.random.split(keys[li], 13)
        sa_wq, sa_bq = lin_init(ks[0], D_MODEL, D_MODEL)
        sa_wk, sa_bk = lin_init(ks[1], D_MODEL, D_MODEL)
        sa_wv, sa_bv = lin_init(ks[2], D_MODEL, D_MODEL)
        sa_wo, sa_bo = lin_init(ks[3], D_MODEL, D_MODEL)
        ca_wq, ca_bq = lin_init(ks[4], D_MODEL, D_MODEL)
        ca_wk, ca_bk = lin_init(ks[5], D_MODEL, KV_DIM)
        ca_wv, ca_bv = lin_init(ks[6], D_MODEL, KV_DIM)
        ca_wo, ca_bo = lin_init(ks[7], D_MODEL, D_MODEL)
        l1_w, l1_b = lin_init(ks[8], D_FF, D_MODEL)
        l2_w, l2_b = lin_init(ks[9], D_MODEL, D_FF)
        n1_g, n1_b = ln_init(ks[10], D_MODEL)
        n2_g, n2_b = ln_init(ks[11], D_MODEL)
        n3_g, n3_b = ln_init(ks[12], D_MODEL)

        # de-interleave perm folded into q/k projection output columns (exact
        # reparametrization; rotate-half RoPE then matches interleaved RoPE),
        # 1/sqrt(head_dim) folded into q. Self-attn Q/K/V fused to [D, 3D].
        mats["sa_wqkv"].append(jnp.concatenate(
            [(sa_wq[perm] * scale).T, sa_wk[perm].T, sa_wv.T], axis=1))
        mats["sa_wo"].append(sa_wo.T)
        mats["ca_wq"].append((ca_wq[perm] * scale).T)
        wk_eff = ca_wk[perm].T                     # [KV, D]
        wv_eff = ca_wv.T                           # [KV, D]
        # memcat columns = [mem | mem_pos]; Wkv = [[Wk, Wv], [Wk, 0]] so that
        # K = (mem + mem_pos) @ Wk   and   V = mem @ Wv.
        mats["ca_wkv"].append(jnp.concatenate(
            [jnp.concatenate([wk_eff, wv_eff], axis=1),
             jnp.concatenate([wk_eff, jnp.zeros_like(wv_eff)], axis=1)],
            axis=0))                               # [2*KV, 2*D]
        mats["ca_wo"].append(ca_wo.T)
        mats["ff_w1"].append(l1_w.T)
        mats["ff_w2"].append(l2_w.T)

        vec_rows += [
            padrow(jnp.concatenate([sa_bq[perm] * scale, sa_bk[perm], sa_bv])),
            padrow(sa_bo),
            padrow(ca_bq[perm] * scale),
            padrow(jnp.concatenate([ca_bk[perm], ca_bv])),
            padrow(ca_bo),
            padrow(l1_b),
            padrow(l2_b),
            padrow(n1_g), padrow(n1_b),
            padrow(n2_g), padrow(n2_b),
            padrow(n3_g), padrow(n3_b),
        ]

    kg, kb = jax.random.split(keys[-1])
    lnf_g = 1.0 + 0.05 * jax.random.normal(kg, (D_MODEL,), jnp.float32)
    lnf_b = 0.05 * jax.random.normal(kb, (D_MODEL,), jnp.float32)
    vec_rows += [padrow(lnf_g), padrow(lnf_b)]

    params = {k: jnp.stack(v, 0).astype(MXU_DTYPE) for k, v in mats.items()}
    params["vecs"] = jnp.stack(vec_rows, 0)        # [NL*13 + 2, 384] f32
    return params


# ---------------------------------------------------------------------------
# Forward pass: one fused pallas_call for the whole stack
# ---------------------------------------------------------------------------
def memory_attention_forward(params, curr, memory, curr_pos, memory_pos,
                             num_obj_ptr_tokens=0):
    lq, bsz, d = curr.shape
    lk, _, kv = memory.shape
    assert NUM_HEADS == 1          # SAM2 memory attention: single attention head
    dh = d // NUM_HEADS
    nl = params["sa_wqkv"].shape[0]
    dff = params["ff_w1"].shape[-1]

    bm = bsz * lq                              # fused (batch * query) rows
    nk = bsz * lk                              # total key rows
    nk_pad = ((nk + 127) // 128) * 128         # lane-dense score width

    # ---- traced glue (reshapes are free row-major bitcasts) ----------------
    curr2 = curr.reshape(bm, d)                # row = l*B + b  (interleaved)
    cpos2 = curr_pos.reshape(bm, d)
    memcat = jnp.concatenate([memory, memory_pos], axis=-1).reshape(nk, 2 * kv)
    memcat = jnp.pad(memcat, ((0, nk_pad - nk), (0, 0)))    # [NK_pad, 2*KV]

    # ---- compile-time constants: RoPE tables + additive attention masks ----
    side = int(round(lq ** 0.5))
    assert side * side == lq
    cos_h, sin_h = _axial_rope_tables(dh, side, side, ROPE_THETA)   # [lq, dh/2]
    qrope = jnp.concatenate([cos_h, cos_h, -sin_h, sin_h], axis=-1)  # [lq, 2dh]
    qrope = jnp.repeat(qrope, bsz, axis=0)                           # interleave

    num_k_rope = lk - num_obj_ptr_tokens
    assert num_k_rope % lq == 0    # rope_k_repeat supported-shape restriction
    rep = num_k_rope // lq
    kc = jnp.concatenate([jnp.tile(cos_h, (rep, 1)),
                          jnp.ones((lk - num_k_rope, dh // 2), jnp.float32)], 0)
    ks = jnp.concatenate([jnp.tile(sin_h, (rep, 1)),
                          jnp.zeros((lk - num_k_rope, dh // 2), jnp.float32)], 0)
    krope = jnp.concatenate([kc, kc, -ks, ks], axis=-1)              # [lk, 2dh]
    krope = jnp.repeat(krope, bsz, axis=0)                           # interleave
    krope = jnp.pad(krope, ((0, nk_pad - nk), (0, 0)))               # padded rows masked

    qi = jnp.arange(bm) % bsz                          # query row -> batch
    kj_s = jnp.arange(bm) % bsz                        # self-attn key -> batch
    mask_self = jnp.where(qi[:, None] == kj_s[None, :], 0.0,
                          -1e30).astype(jnp.float32)                 # [bm, bm]
    kj = jnp.arange(nk_pad)
    mask_cross = jnp.where((kj[None, :] < nk) &
                           (qi[:, None] == (kj[None, :] % bsz)),
                           0.0, -1e30).astype(jnp.float32)           # [bm, nk_pad]

    kernel = _build_fused_kernel(nl, d, dff)

    def _full(a):
        nd = a.ndim
        return pl.BlockSpec(a.shape, lambda i, _n=nd: (0,) * _n)

    ops = ([curr2, cpos2, memcat, qrope, krope, mask_self, mask_cross]
           + [params[k] for k in _MAT_KEYS] + [params["vecs"]])

    out = pl.pallas_call(
        kernel,
        grid=(1,),                     # single step: whole batch in the M dim
        in_specs=[_full(a) for a in ops],
        out_specs=pl.BlockSpec((bm, d), lambda i: (0, 0)),
        out_shape=jax.ShapeDtypeStruct((bm, d), curr.dtype),
        compiler_params=pltpu.CompilerParams(
            dimension_semantics=("arbitrary",)),
    )(*ops)

    # interleaved rows -> sequence-first [Lq, B, D] (free reshape, no transpose)
    return out.reshape(lq, bsz, d)


# ---------------------------------------------------------------------------
if __name__ == "__main__":
    key = jax.random.PRNGKey(0)
    kp, kc, kcp, km, kmp = jax.random.split(key, 5)
    params = init_params(kp)

    curr = jax.random.normal(kc, (L_Q, BATCH, D_MODEL), jnp.float32)
    curr_pos = jax.random.normal(kcp, (L_Q, BATCH, D_MODEL), jnp.float32)
    memory = jax.random.normal(km, (L_MEM, BATCH, KV_DIM), jnp.float32)
    memory_pos = jax.random.normal(kmp, (L_MEM, BATCH, KV_DIM), jnp.float32)

    fwd = jax.jit(functools.partial(memory_attention_forward,
                                    num_obj_ptr_tokens=NUM_OBJ_PTR))
    out = fwd(params, curr, memory, curr_pos, memory_pos)
    jax.block_until_ready(out)
    assert out.shape == (L_Q, BATCH, D_MODEL)
    assert bool(jnp.all(jnp.isfinite(out)))
    print("KERNEL_OK")
</pallas_src>

<mosaic_0001>
module attributes {stable_mosaic.version = 11 : i64} {
  func.func @kernel(%arg0: i32, %arg1: memref<128x128xf32, #tpu.memory_space<vmem>>, %arg2: memref<128x128xf32, #tpu.memory_space<vmem>>, %arg3: memref<384x128xf32, #tpu.memory_space<vmem>>, %arg4: memref<128x256xf32, #tpu.memory_space<vmem>>, %arg5: memref<384x256xf32, #tpu.memory_space<vmem>>, %arg6: memref<128x128xf32, #tpu.memory_space<vmem>>, %arg7: memref<128x384xf32, #tpu.memory_space<vmem>>, %arg8: memref<2x128x384xbf16, #tpu.memory_space<vmem>>, %arg9: memref<2x128x128xbf16, #tpu.memory_space<vmem>>, %arg10: memref<2x128x128xbf16, #tpu.memory_space<vmem>>, %arg11: memref<2x128x256xbf16, #tpu.memory_space<vmem>>, %arg12: memref<2x128x128xbf16, #tpu.memory_space<vmem>>, %arg13: memref<2x128x256xbf16, #tpu.memory_space<vmem>>, %arg14: memref<2x256x128xbf16, #tpu.memory_space<vmem>>, %arg15: memref<28x384xf32, #tpu.memory_space<vmem>>, %arg16: memref<128x128xf32, #tpu.memory_space<vmem>>) attributes {dimension_semantics = [#tpu.dimension_semantics<arbitrary>], iteration_bounds = array<i64: 1>, scalar_prefetch = 0 : i64, scratch_operands = 0 : i64, tpu.core_type = #tpu.core_type<tc>, window_params = [{pipeline_mode = #tpu.pipeline_mode<synchronous>, transform_indices = @transform_0, window_bounds = array<i64: 128, 128>}, {pipeline_mode = #tpu.pipeline_mode<synchronous>, transform_indices = @transform_1, window_bounds = array<i64: 128, 128>}, {pipeline_mode = #tpu.pipeline_mode<synchronous>, transform_indices = @transform_2, window_bounds = array<i64: 384, 128>}, {pipeline_mode = #tpu.pipeline_mode<synchronous>, transform_indices = @transform_3, window_bounds = array<i64: 128, 256>}, {pipeline_mode = #tpu.pipeline_mode<synchronous>, transform_indices = @transform_4, window_bounds = array<i64: 384, 256>}, {pipeline_mode = #tpu.pipeline_mode<synchronous>, transform_indices = @transform_5, window_bounds = array<i64: 128, 128>}, {pipeline_mode = #tpu.pipeline_mode<synchronous>, transform_indices = @transform_6, window_bounds = array<i64: 128, 384>}, {pipeline_mode = #tpu.pipeline_mode<synchronous>, transform_indices = @transform_7, window_bounds = array<i64: 2, 128, 384>}, {pipeline_mode = #tpu.pipeline_mode<synchronous>, transform_indices = @transform_8, window_bounds = array<i64: 2, 128, 128>}, {pipeline_mode = #tpu.pipeline_mode<synchronous>, transform_indices = @transform_9, window_bounds = array<i64: 2, 128, 128>}, {pipeline_mode = #tpu.pipeline_mode<synchronous>, transform_indices = @transform_10, window_bounds = array<i64: 2, 128, 256>}, {pipeline_mode = #tpu.pipeline_mode<synchronous>, transform_indices = @transform_11, window_bounds = array<i64: 2, 128, 128>}, {pipeline_mode = #tpu.pipeline_mode<synchronous>, transform_indices = @transform_12, window_bounds = array<i64: 2, 128, 256>}, {pipeline_mode = #tpu.pipeline_mode<synchronous>, transform_indices = @transform_13, window_bounds = array<i64: 2, 256, 128>}, {pipeline_mode = #tpu.pipeline_mode<synchronous>, transform_indices = @transform_14, window_bounds = array<i64: 28, 384>}, {pipeline_mode = #tpu.pipeline_mode<synchronous>, transform_indices = @transform_15, window_bounds = array<i64: 128, 128>}]} {
    %c0 = arith.constant 0 : index
    %c0_0 = arith.constant 0 : index
    %0 = vector.load %arg1[%c0, %c0_0] : memref<128x128xf32, #tpu.memory_space<vmem>>, vector<128x128xf32>
    %c0_1 = arith.constant 0 : index
    %c0_2 = arith.constant 0 : index
    %1 = vector.load %arg2[%c0_1, %c0_2] : memref<128x128xf32, #tpu.memory_space<vmem>>, vector<128x128xf32>
    %cst = arith.constant 1.000000e-01 : f32
    %2 = vector.broadcast %cst : f32 to vector<128x128xf32>
    %3 = arith.mulf %2, %1 : vector<128x128xf32>
    %4 = arith.addf %0, %3 : vector<128x128xf32>
    %c7 = arith.constant 7 : index
    %c0_3 = arith.constant 0 : index
    %5 = vector.load %arg15[%c7, %c0_3] : memref<28x384xf32, #tpu.memory_space<vmem>>, vector<1x128xf32>
    %c8 = arith.constant 8 : index
    %c0_4 = arith.constant 0 : index
    %6 = vector.load %arg15[%c8, %c0_4] : memref<28x384xf32, #tpu.memory_space<vmem>>, vector<1x128xf32>
    %cst_5 = arith.constant dense<0.000000e+00> : vector<128xf32>
    %7 = vector.multi_reduction <add>, %4, %cst_5 [1] : vector<128x128xf32> to vector<128xf32>
    %8 = vector.shape_cast %7 : vector<128xf32> to vector<128x1xf32>
    %cst_6 = arith.constant 1.280000e+02 : f32
    %9 = vector.broadcast %cst_6 : f32 to vector<128x1xf32>
    %10 = arith.divf %8, %9 : vector<128x1xf32>
    %11 = vector.broadcast %10 : vector<128x1xf32> to vector<128x128xf32>
    %12 = arith.subf %4, %11 : vector<128x128xf32>
    %13 = arith.mulf %12, %12 : vector<128x128xf32>
    %cst_7 = arith.constant dense<0.000000e+00> : vector<128xf32>
    %14 = vector.multi_reduction <add>, %13, %cst_7 [1] : vector<128x128xf32> to vector<128xf32>
    %15 = vector.shape_cast %14 : vector<128xf32> to vector<128x1xf32>
    %cst_8 = arith.constant 1.280000e+02 : f32
    %16 = vector.broadcast %cst_8 : f32 to vector<128x1xf32>
    %17 = arith.divf %15, %16 : vector<128x1xf32>
    %cst_9 = arith.constant 9.99999974E-6 : f32
    %18 = vector.broadcast %cst_9 : f32 to vector<128x1xf32>
    %19 = arith.addf %17, %18 : vector<128x1xf32>
    %20 = math.rsqrt %19 : vector<128x1xf32>
    %21 = vector.broadcast %20 : vector<128x1xf32> to vector<128x128xf32>
    %22 = arith.mulf %12, %21 : vector<128x128xf32>
    %23 = vector.broadcast %5 : vector<1x128xf32> to vector<128x128xf32>
    %24 = arith.mulf %22, %23 : vector<128x128xf32>
    %25 = vector.broadcast %6 : vector<1x128xf32> to vector<128x128xf32>
    %26 = arith.addf %24, %25 : vector<128x128xf32>
    %c0_10 = arith.constant 0 : index
    %c0_11 = arith.constant 0 : index
    %c0_12 = arith.constant 0 : index
    %27 = vector.load %arg8[%c0_10, %c0_11, %c0_12] : memref<2x128x384xbf16, #tpu.memory_space<vmem>>, vector<1x128x384xbf16>
    %28 = vector.shape_cast %27 : vector<1x128x384xbf16> to vector<128x384xbf16>
    %c0_13 = arith.constant 0 : index
    %c0_14 = arith.constant 0 : index
    %29 = vector.load %arg15[%c0_13, %c0_14] : memref<28x384xf32, #tpu.memory_space<vmem>>, vector<1x384xf32>
    %30 = arith.truncf %26 : vector<128x128xf32> to vector<128x128xbf16>
    %cst_15 = arith.constant dense<0.000000e+00> : vector<128x384xf32>
    %31 = tpu.matmul %30, %28, %cst_15 {dimension_numbers = #tpu.dot_dimension_numbers<[1], [0], [0], [1], [0, 0, 1, 1], [], []>} : vector<128x128xbf16>, vector<128x384xbf16>, vector<128x384xf32> -> vector<128x384xf32>
    %32 = vector.broadcast %29 : vector<1x384xf32> to vector<128x384xf32>
    %33 = arith.addf %31, %32 : vector<128x384xf32>
    %34 = vector.extract_strided_slice %33 {offsets = [0, 0], sizes = [128, 128], strides = [1, 1]} : vector<128x384xf32> to vector<128x128xf32>
    %c0_16 = arith.constant 0 : index
    %c0_17 = arith.constant 0 : index
    %35 = vector.load %arg4[%c0_16, %c0_17] : memref<128x256xf32, #tpu.memory_space<vmem>>, vector<128x128xf32>
    %36 = arith.mulf %34, %35 : vector<128x128xf32>
    %c64_i32 = arith.constant 64 : i32
    %37 = tpu.dynamic_rotate %34 by %c64_i32 dim 1 : vector<128x128xf32>, i32 -> vector<128x128xf32>
    %c0_18 = arith.constant 0 : index
    %c128 = arith.constant 128 : index
    %38 = vector.load %arg4[%c0_18, %c128] : memref<128x256xf32, #tpu.memory_space<vmem>>, vector<128x128xf32>
    %39 = arith.mulf %37, %38 : vector<128x128xf32>
    %40 = arith.addf %36, %39 : vector<128x128xf32>
    %41 = vector.extract_strided_slice %33 {offsets = [0, 128], sizes = [128, 128], strides = [1, 1]} : vector<128x384xf32> to vector<128x128xf32>
    %c0_19 = arith.constant 0 : index
    %c0_20 = arith.constant 0 : index
    %42 = vector.load %arg4[%c0_19, %c0_20] : memref<128x256xf32, #tpu.memory_space<vmem>>, vector<128x128xf32>
    %43 = arith.mulf %41, %42 : vector<128x128xf32>
    %c64_i32_21 = arith.constant 64 : i32
    %44 = tpu.dynamic_rotate %41 by %c64_i32_21 dim 1 : vector<128x128xf32>, i32 -> vector<128x128xf32>
    %c0_22 = arith.constant 0 : index
    %c128_23 = arith.constant 128 : index
    %45 = vector.load %arg4[%c0_22, %c128_23] : memref<128x256xf32, #tpu.memory_space<vmem>>, vector<128x128xf32>
    %46 = arith.mulf %44, %45 : vector<128x128xf32>
    %47 = arith.addf %43, %46 : vector<128x128xf32>
    %48 = vector.extract_strided_slice %33 {offsets = [0, 256], sizes = [128, 128], strides = [1, 1]} : vector<128x384xf32> to vector<128x128xf32>
    %49 = arith.truncf %40 : vector<128x128xf32> to vector<128x128xbf16>
    %50 = arith.truncf %47 : vector<128x128xf32> to vector<128x128xbf16>
    %cst_24 = arith.constant dense<0.000000e+00> : vector<128x128xf32>
    %51 = tpu.matmul %49, %50, %cst_24 {dimension_numbers = #tpu.dot_dimension_numbers<[1], [1], [0], [0], [0, 0, 1, 0], [], []>} : vector<128x128xbf16>, vector<128x128xbf16>, vector<128x128xf32> -> vector<128x128xf32>
    %c0_25 = arith.constant 0 : index
    %c0_26 = arith.constant 0 : index
    %52 = vector.load %arg6[%c0_25, %c0_26] : memref<128x128xf32, #tpu.memory_space<vmem>>, vector<128x128xf32>
    %53 = arith.addf %51, %52 : vector<128x128xf32>
    %cst_27 = arith.constant dense<0xFF800000> : vector<128xf32>
    %54 = vector.multi_reduction <maximumf>, %53, %cst_27 [1] : vector<128x128xf32> to vector<128xf32>
    %55 = vector.shape_cast %54 : vector<128xf32> to vector<128x1xf32>
    %56 = vector.broadcast %55 : vector<128x1xf32> to vector<128x128xf32>
    %57 = arith.subf %53, %56 : vector<128x128xf32>
    %58 = math.exp %57 : vector<128x128xf32>
    %cst_28 = arith.constant dense<0.000000e+00> : vector<128xf32>
    %59 = vector.multi_reduction <add>, %58, %cst_28 [1] : vector<128x128xf32> to vector<128xf32>
    %60 = vector.shape_cast %59 : vector<128xf32> to vector<128x1xf32>
    %61 = arith.truncf %58 : vector<128x128xf32> to vector<128x128xbf16>
    %62 = arith.truncf %48 : vector<128x128xf32> to vector<128x128xbf16>
    %cst_29 = arith.constant dense<0.000000e+00> : vector<128x128xf32>
    %63 = tpu.matmul %61, %62, %cst_29 {dimension_numbers = #tpu.dot_dimension_numbers<[1], [0], [0], [1], [0, 0, 1, 1], [], []>} : vector<128x128xbf16>, vector<128x128xbf16>, vector<128x128xf32> -> vector<128x128xf32>
    %64 = tpu.reciprocal %60 {approx = true} : vector<128x1xf32> -> vector<128x1xf32>
    %65 = vector.broadcast %64 : vector<128x1xf32> to vector<128x128xf32>
    %66 = arith.mulf %63, %65 : vector<128x128xf32>
    %c0_30 = arith.constant 0 : index
    %c0_31 = arith.constant 0 : index
    %c0_32 = arith.constant 0 : index
    %67 = vector.load %arg9[%c0_30, %c0_31, %c0_32] : memref<2x128x128xbf16, #tpu.memory_space<vmem>>, vector<1x128x128xbf16>
    %68 = vector.shape_cast %67 : vector<1x128x128xbf16> to vector<128x128xbf16>
    %c1 = arith.constant 1 : index
    %c0_33 = arith.constant 0 : index
    %69 = vector.load %arg15[%c1, %c0_33] : memref<28x384xf32, #tpu.memory_space<vmem>>, vector<1x128xf32>
    %70 = arith.truncf %66 : vector<128x128xf32> to vector<128x128xbf16>
    %cst_34 = arith.constant dense<0.000000e+00> : vector<128x128xf32>
    %71 = tpu.matmul %70, %68, %cst_34 {dimension_numbers = #tpu.dot_dimension_numbers<[1], [0], [0], [1], [0, 0, 1, 1], [], []>} : vector<128x128xbf16>, vector<128x128xbf16>, vector<128x128xf32> -> vector<128x128xf32>
    %72 = vector.broadcast %69 : vector<1x128xf32> to vector<128x128xf32>
    %73 = arith.addf %71, %72 : vector<128x128xf32>
    %74 = arith.addf %4, %73 : vector<128x128xf32>
    %c9 = arith.constant 9 : index
    %c0_35 = arith.constant 0 : index
    %75 = vector.load %arg15[%c9, %c0_35] : memref<28x384xf32, #tpu.memory_space<vmem>>, vector<1x128xf32>
    %c10 = arith.constant 10 : index
    %c0_36 = arith.constant 0 : index
    %76 = vector.load %arg15[%c10, %c0_36] : memref<28x384xf32, #tpu.memory_space<vmem>>, vector<1x128xf32>
    %cst_37 = arith.constant dense<0.000000e+00> : vector<128xf32>
    %77 = vector.multi_reduction <add>, %74, %cst_37 [1] : vector<128x128xf32> to vector<128xf32>
    %78 = vector.shape_cast %77 : vector<128xf32> to vector<128x1xf32>
    %cst_38 = arith.constant 1.280000e+02 : f32
    %79 = vector.broadcast %cst_38 : f32 to vector<128x1xf32>
    %80 = arith.divf %78, %79 : vector<128x1xf32>
    %81 = vector.broadcast %80 : vector<128x1xf32> to vector<128x128xf32>
    %82 = arith.subf %74, %81 : vector<128x128xf32>
    %83 = arith.mulf %82, %82 : vector<128x128xf32>
    %cst_39 = arith.constant dense<0.000000e+00> : vector<128xf32>
    %84 = vector.multi_reduction <add>, %83, %cst_39 [1] : vector<128x128xf32> to vector<128xf32>
    %85 = vector.shape_cast %84 : vector<128xf32> to vector<128x1xf32>
    %cst_40 = arith.constant 1.280000e+02 : f32
    %86 = vector.broadcast %cst_40 : f32 to vector<128x1xf32>
    %87 = arith.divf %85, %86 : vector<128x1xf32>
    %cst_41 = arith.constant 9.99999974E-6 : f32
    %88 = vector.broadcast %cst_41 : f32 to vector<128x1xf32>
    %89 = arith.addf %87, %88 : vector<128x1xf32>
    %90 = math.rsqrt %89 : vector<128x1xf32>
    %91 = vector.broadcast %90 : vector<128x1xf32> to vector<128x128xf32>
    %92 = arith.mulf %82, %91 : vector<128x128xf32>
    %93 = vector.broadcast %75 : vector<1x128xf32> to vector<128x128xf32>
    %94 = arith.mulf %92, %93 : vector<128x128xf32>
    %95 = vector.broadcast %76 : vector<1x128xf32> to vector<128x128xf32>
    %96 = arith.addf %94, %95 : vector<128x128xf32>
    %c0_42 = arith.constant 0 : index
    %c0_43 = arith.constant 0 : index
    %c0_44 = arith.constant 0 : index
    %97 = vector.load %arg10[%c0_42, %c0_43, %c0_44] : memref<2x128x128xbf16, #tpu.memory_space<vmem>>, vector<1x128x128xbf16>
    %98 = vector.shape_cast %97 : vector<1x128x128xbf16> to vector<128x128xbf16>
    %c2 = arith.constant 2 : index
    %c0_45 = arith.constant 0 : index
    %99 = vector.load %arg15[%c2, %c0_45] : memref<28x384xf32, #tpu.memory_space<vmem>>, vector<1x128xf32>
    %100 = arith.truncf %96 : vector<128x128xf32> to vector<128x128xbf16>
    %cst_46 = arith.constant dense<0.000000e+00> : vector<128x128xf32>
    %101 = tpu.matmul %100, %98, %cst_46 {dimension_numbers = #tpu.dot_dimension_numbers<[1], [0], [0], [1], [0, 0, 1, 1], [], []>} : vector<128x128xbf16>, vector<128x128xbf16>, vector<128x128xf32> -> vector<128x128xf32>
    %102 = vector.broadcast %99 : vector<1x128xf32> to vector<128x128xf32>
    %103 = arith.addf %101, %102 : vector<128x128xf32>
    %c0_47 = arith.constant 0 : index
    %c0_48 = arith.constant 0 : index
    %104 = vector.load %arg4[%c0_47, %c0_48] : memref<128x256xf32, #tpu.memory_space<vmem>>, vector<128x128xf32>
    %105 = arith.mulf %103, %104 : vector<128x128xf32>
    %c64_i32_49 = arith.constant 64 : i32
    %106 = tpu.dynamic_rotate %103 by %c64_i32_49 dim 1 : vector<128x128xf32>, i32 -> vector<128x128xf32>
    %c0_50 = arith.constant 0 : index
    %c128_51 = arith.constant 128 : index
    %107 = vector.load %arg4[%c0_50, %c128_51] : memref<128x256xf32, #tpu.memory_space<vmem>>, vector<128x128xf32>
    %108 = arith.mulf %106, %107 : vector<128x128xf32>
    %109 = arith.addf %105, %108 : vector<128x128xf32>
    %c0_52 = arith.constant 0 : index
    %c0_53 = arith.constant 0 : index
    %110 = vector.load %arg3[%c0_52, %c0_53] : memref<384x128xf32, #tpu.memory_space<vmem>>, vector<384x128xf32>
    %c0_54 = arith.constant 0 : index
    %c0_55 = arith.constant 0 : index
    %c0_56 = arith.constant 0 : index
    %111 = vector.load %arg11[%c0_54, %c0_55, %c0_56] : memref<2x128x256xbf16, #tpu.memory_space<vmem>>, vector<1x128x256xbf16>
    %112 = vector.shape_cast %111 : vector<1x128x256xbf16> to vector<128x256xbf16>
    %c3 = arith.constant 3 : index
    %c0_57 = arith.constant 0 : index
    %113 = vector.load %arg15[%c3, %c0_57] : memref<28x384xf32, #tpu.memory_space<vmem>>, vector<1x256xf32>
    %114 = arith.truncf %110 : vector<384x128xf32> to vector<384x128xbf16>
    %cst_58 = arith.constant dense<0.000000e+00> : vector<384x256xf32>
    %115 = tpu.matmul %114, %112, %cst_58 {dimension_numbers = #tpu.dot_dimension_numbers<[1], [0], [0], [1], [0, 0, 1, 1], [], []>} : vector<384x128xbf16>, vector<128x256xbf16>, vector<384x256xf32> -> vector<384x256xf32>
    %116 = vector.broadcast %113 : vector<1x256xf32> to vector<384x256xf32>
    %117 = arith.addf %115, %116 : vector<384x256xf32>
    %118 = vector.extract_strided_slice %117 {offsets = [0, 0], sizes = [384, 128], strides = [1, 1]} : vector<384x256xf32> to vector<384x128xf32>
    %c0_59 = arith.constant 0 : index
    %c0_60 = arith.constant 0 : index
    %119 = vector.load %arg5[%c0_59, %c0_60] : memref<384x256xf32, #tpu.memory_space<vmem>>, vector<384x128xf32>
    %120 = arith.mulf %118, %119 : vector<384x128xf32>
    %c64_i32_61 = arith.constant 64 : i32
    %121 = tpu.dynamic_rotate %118 by %c64_i32_61 dim 1 : vector<384x128xf32>, i32 -> vector<384x128xf32>
    %c0_62 = arith.constant 0 : index
    %c128_63 = arith.constant 128 : index
    %122 = vector.load %arg5[%c0_62, %c128_63] : memref<384x256xf32, #tpu.memory_space<vmem>>, vector<384x128xf32>
    %123 = arith.mulf %121, %122 : vector<384x128xf32>
    %124 = arith.addf %120, %123 : vector<384x128xf32>
    %125 = vector.extract_strided_slice %117 {offsets = [0, 128], sizes = [384, 128], strides = [1, 1]} : vector<384x256xf32> to vector<384x128xf32>
    %126 = arith.truncf %109 : vector<128x128xf32> to vector<128x128xbf16>
    %127 = arith.truncf %124 : vector<384x128xf32> to vector<384x128xbf16>
    %cst_64 = arith.constant dense<0.000000e+00> : vector<128x384xf32>
    %128 = tpu.matmul %126, %127, %cst_64 {dimension_numbers = #tpu.dot_dimension_numbers<[1], [1], [0], [0], [0, 0, 1, 0], [], []>} : vector<128x128xbf16>, vector<384x128xbf16>, vector<128x384xf32> -> vector<128x384xf32>
    %c0_65 = arith.constant 0 : index
    %c0_66 = arith.constant 0 : index
    %129 = vector.load %arg7[%c0_65, %c0_66] : memref<128x384xf32, #tpu.memory_space<vmem>>, vector<128x384xf32>
    %130 = arith.addf %128, %129 : vector<128x384xf32>
    %cst_67 = arith.constant dense<0xFF800000> : vector<128xf32>
    %131 = vector.multi_reduction <maximumf>, %130, %cst_67 [1] : vector<128x384xf32> to vector<128xf32>
    %132 = vector.shape_cast %131 : vector<128xf32> to vector<128x1xf32>
    %133 = vector.broadcast %132 : vector<128x1xf32> to vector<128x384xf32>
    %134 = arith.subf %130, %133 : vector<128x384xf32>
    %135 = math.exp %134 : vector<128x384xf32>
    %cst_68 = arith.constant dense<0.000000e+00> : vector<128xf32>
    %136 = vector.multi_reduction <add>, %135, %cst_68 [1] : vector<128x384xf32> to vector<128xf32>
    %137 = vector.shape_cast %136 : vector<128xf32> to vector<128x1xf32>
    %138 = arith.truncf %135 : vector<128x384xf32> to vector<128x384xbf16>
    %139 = arith.truncf %125 : vector<384x128xf32> to vector<384x128xbf16>
    %cst_69 = arith.constant dense<0.000000e+00> : vector<128x128xf32>
    %140 = tpu.matmul %138, %139, %cst_69 {dimension_numbers = #tpu.dot_dimension_numbers<[1], [0], [0], [1], [0, 0, 1, 1], [], []>} : vector<128x384xbf16>, vector<384x128xbf16>, vector<128x128xf32> -> vector<128x128xf32>
    %141 = tpu.reciprocal %137 {approx = true} : vector<128x1xf32> -> vector<128x1xf32>
    %142 = vector.broadcast %141 : vector<128x1xf32> to vector<128x128xf32>
    %143 = arith.mulf %140, %142 : vector<128x128xf32>
    %c0_70 = arith.constant 0 : index
    %c0_71 = arith.constant 0 : index
    %c0_72 = arith.constant 0 : index
    %144 = vector.load %arg12[%c0_70, %c0_71, %c0_72] : memref<2x128x128xbf16, #tpu.memory_space<vmem>>, vector<1x128x128xbf16>
    %145 = vector.shape_cast %144 : vector<1x128x128xbf16> to vector<128x128xbf16>
    %c4 = arith.constant 4 : index
    %c0_73 = arith.constant 0 : index
    %146 = vector.load %arg15[%c4, %c0_73] : memref<28x384xf32, #tpu.memory_space<vmem>>, vector<1x128xf32>
    %147 = arith.truncf %143 : vector<128x128xf32> to vector<128x128xbf16>
    %cst_74 = arith.constant dense<0.000000e+00> : vector<128x128xf32>
    %148 = tpu.matmul %147, %145, %cst_74 {dimension_numbers = #tpu.dot_dimension_numbers<[1], [0], [0], [1], [0, 0, 1, 1], [], []>} : vector<128x128xbf16>, vector<128x128xbf16>, vector<128x128xf32> -> vector<128x128xf32>
    %149 = vector.broadcast %146 : vector<1x128xf32> to vector<128x128xf32>
    %150 = arith.addf %148, %149 : vector<128x128xf32>
    %151 = arith.addf %74, %150 : vector<128x128xf32>
    %c11 = arith.constant 11 : index
    %c0_75 = arith.constant 0 : index
    %152 = vector.load %arg15[%c11, %c0_75] : memref<28x384xf32, #tpu.memory_space<vmem>>, vector<1x128xf32>
    %c12 = arith.constant 12 : index
    %c0_76 = arith.constant 0 : index
    %153 = vector.load %arg15[%c12, %c0_76] : memref<28x384xf32, #tpu.memory_space<vmem>>, vector<1x128xf32>
    %cst_77 = arith.constant dense<0.000000e+00> : vector<128xf32>
    %154 = vector.multi_reduction <add>, %151, %cst_77 [1] : vector<128x128xf32> to vector<128xf32>
    %155 = vector.shape_cast %154 : vector<128xf32> to vector<128x1xf32>
    %cst_78 = arith.constant 1.280000e+02 : f32
    %156 = vector.broadcast %cst_78 : f32 to vector<128x1xf32>
    %157 = arith.divf %155, %156 : vector<128x1xf32>
    %158 = vector.broadcast %157 : vector<128x1xf32> to vector<128x128xf32>
    %159 = arith.subf %151, %158 : vector<128x128xf32>
    %160 = arith.mulf %159, %159 : vector<128x128xf32>
    %cst_79 = arith.constant dense<0.000000e+00> : vector<128xf32>
    %161 = vector.multi_reduction <add>, %160, %cst_79 [1] : vector<128x128xf32> to vector<128xf32>
    %162 = vector.shape_cast %161 : vector<128xf32> to vector<128x1xf32>
    %cst_80 = arith.constant 1.280000e+02 : f32
    %163 = vector.broadcast %cst_80 : f32 to vector<128x1xf32>
    %164 = arith.divf %162, %163 : vector<128x1xf32>
    %cst_81 = arith.constant 9.99999974E-6 : f32
    %165 = vector.broadcast %cst_81 : f32 to vector<128x1xf32>
    %166 = arith.addf %164, %165 : vector<128x1xf32>
    %167 = math.rsqrt %166 : vector<128x1xf32>
    %168 = vector.broadcast %167 : vector<128x1xf32> to vector<128x128xf32>
    %169 = arith.mulf %159, %168 : vector<128x128xf32>
    %170 = vector.broadcast %152 : vector<1x128xf32> to vector<128x128xf32>
    %171 = arith.mulf %169, %170 : vector<128x128xf32>
    %172 = vector.broadcast %153 : vector<1x128xf32> to vector<128x128xf32>
    %173 = arith.addf %171, %172 : vector<128x128xf32>
    %c0_82 = arith.constant 0 : index
    %c0_83 = arith.constant 0 : index
    %c0_84 = arith.constant 0 : index
    %174 = vector.load %arg13[%c0_82, %c0_83, %c0_84] : memref<2x128x256xbf16, #tpu.memory_space<vmem>>, vector<1x128x256xbf16>
    %175 = vector.shape_cast %174 : vector<1x128x256xbf16> to vector<128x256xbf16>
    %c5 = arith.constant 5 : index
    %c0_85 = arith.constant 0 : index
    %176 = vector.load %arg15[%c5, %c0_85] : memref<28x384xf32, #tpu.memory_space<vmem>>, vector<1x256xf32>
    %177 = arith.truncf %173 : vector<128x128xf32> to vector<128x128xbf16>
    %cst_86 = arith.constant dense<0.000000e+00> : vector<128x256xf32>
    %178 = tpu.matmul %177, %175, %cst_86 {dimension_numbers = #tpu.dot_dimension_numbers<[1], [0], [0], [1], [0, 0, 1, 1], [], []>} : vector<128x128xbf16>, vector<128x256xbf16>, vector<128x256xf32> -> vector<128x256xf32>
    %179 = vector.broadcast %176 : vector<1x256xf32> to vector<128x256xf32>
    %180 = arith.addf %178, %179 : vector<128x256xf32>
    %cst_87 = arith.constant 0.000000e+00 : f32
    %181 = vector.broadcast %cst_87 : f32 to vector<128x256xf32>
    %182 = arith.maximumf %180, %181 : vector<128x256xf32>
    %c0_88 = arith.constant 0 : index
    %c0_89 = arith.constant 0 : index
    %c0_90 = arith.constant 0 : index
    %183 = vector.load %arg14[%c0_88, %c0_89, %c0_90] : memref<2x256x128xbf16, #tpu.memory_space<vmem>>, vector<1x256x128xbf16>
    %184 = vector.shape_cast %183 : vector<1x256x128xbf16> to vector<256x128xbf16>
    %c6 = arith.constant 6 : index
    %c0_91 = arith.constant 0 : index
    %185 = vector.load %arg15[%c6, %c0_91] : memref<28x384xf32, #tpu.memory_space<vmem>>, vector<1x128xf32>
    %186 = arith.truncf %182 : vector<128x256xf32> to vector<128x256xbf16>
    %cst_92 = arith.constant dense<0.000000e+00> : vector<128x128xf32>
    %187 = tpu.matmul %186, %184, %cst_92 {dimension_numbers = #tpu.dot_dimension_numbers<[1], [0], [0], [1], [0, 0, 1, 1], [], []>} : vector<128x256xbf16>, vector<256x128xbf16>, vector<128x128xf32> -> vector<128x128xf32>
    %188 = vector.broadcast %185 : vector<1x128xf32> to vector<128x128xf32>
    %189 = arith.addf %187, %188 : vector<128x128xf32>
    %190 = arith.addf %151, %189 : vector<128x128xf32>
    %c20 = arith.constant 20 : index
    %c0_93 = arith.constant 0 : index
    %191 = vector.load %arg15[%c20, %c0_93] : memref<28x384xf32, #tpu.memory_space<vmem>>, vector<1x128xf32>
    %c21 = arith.constant 21 : index
    %c0_94 = arith.constant 0 : index
    %192 = vector.load %arg15[%c21, %c0_94] : memref<28x384xf32, #tpu.memory_space<vmem>>, vector<1x128xf32>
    %cst_95 = arith.constant dense<0.000000e+00> : vector<128xf32>
    %193 = vector.multi_reduction <add>, %190, %cst_95 [1] : vector<128x128xf32> to vector<128xf32>
    %194 = vector.shape_cast %193 : vector<128xf32> to vector<128x1xf32>
    %cst_96 = arith.constant 1.280000e+02 : f32
    %195 = vector.broadcast %cst_96 : f32 to vector<128x1xf32>
    %196 = arith.divf %194, %195 : vector<128x1xf32>
    %197 = vector.broadcast %196 : vector<128x1xf32> to vector<128x128xf32>
    %198 = arith.subf %190, %197 : vector<128x128xf32>
    %199 = arith.mulf %198, %198 : vector<128x128xf32>
    %cst_97 = arith.constant dense<0.000000e+00> : vector<128xf32>
    %200 = vector.multi_reduction <add>, %199, %cst_97 [1] : vector<128x128xf32> to vector<128xf32>
    %201 = vector.shape_cast %200 : vector<128xf32> to vector<128x1xf32>
    %cst_98 = arith.constant 1.280000e+02 : f32
    %202 = vector.broadcast %cst_98 : f32 to vector<128x1xf32>
    %203 = arith.divf %201, %202 : vector<128x1xf32>
    %cst_99 = arith.constant 9.99999974E-6 : f32
    %204 = vector.broadcast %cst_99 : f32 to vector<128x1xf32>
    %205 = arith.addf %203, %204 : vector<128x1xf32>
    %206 = math.rsqrt %205 : vector<128x1xf32>
    %207 = vector.broadcast %206 : vector<128x1xf32> to vector<128x128xf32>
    %208 = arith.mulf %198, %207 : vector<128x128xf32>
    %209 = vector.broadcast %191 : vector<1x128xf32> to vector<128x128xf32>
    %210 = arith.mulf %208, %209 : vector<128x128xf32>
    %211 = vector.broadcast %192 : vector<1x128xf32> to vector<128x128xf32>
    %212 = arith.addf %210, %211 : vector<128x128xf32>
    %c1_100 = arith.constant 1 : index
    %c0_101 = arith.constant 0 : index
    %c0_102 = arith.constant 0 : index
    %213 = vector.load %arg8[%c1_100, %c0_101, %c0_102] : memref<2x128x384xbf16, #tpu.memory_space<vmem>>, vector<1x128x384xbf16>
    %214 = vector.shape_cast %213 : vector<1x128x384xbf16> to vector<128x384xbf16>
    %c13 = arith.constant 13 : index
    %c0_103 = arith.constant 0 : index
    %215 = vector.load %arg15[%c13, %c0_103] : memref<28x384xf32, #tpu.memory_space<vmem>>, vector<1x384xf32>
    %216 = arith.truncf %212 : vector<128x128xf32> to vector<128x128xbf16>
    %cst_104 = arith.constant dense<0.000000e+00> : vector<128x384xf32>
    %217 = tpu.matmul %216, %214, %cst_104 {dimension_numbers = #tpu.dot_dimension_numbers<[1], [0], [0], [1], [0, 0, 1, 1], [], []>} : vector<128x128xbf16>, vector<128x384xbf16>, vector<128x384xf32> -> vector<128x384xf32>
    %218 = vector.broadcast %215 : vector<1x384xf32> to vector<128x384xf32>
    %219 = arith.addf %217, %218 : vector<128x384xf32>
    %220 = vector.extract_strided_slice %219 {offsets = [0, 0], sizes = [128, 128], strides = [1, 1]} : vector<128x384xf32> to vector<128x128xf32>
    %c0_105 = arith.constant 0 : index
    %c0_106 = arith.constant 0 : index
    %221 = vector.load %arg4[%c0_105, %c0_106] : memref<128x256xf32, #tpu.memory_space<vmem>>, vector<128x128xf32>
    %222 = arith.mulf %220, %221 : vector<128x128xf32>
    %c64_i32_107 = arith.constant 64 : i32
    %223 = tpu.dynamic_rotate %220 by %c64_i32_107 dim 1 : vector<128x128xf32>, i32 -> vector<128x128xf32>
    %c0_108 = arith.constant 0 : index
    %c128_109 = arith.constant 128 : index
    %224 = vector.load %arg4[%c0_108, %c128_109] : memref<128x256xf32, #tpu.memory_space<vmem>>, vector<128x128xf32>
    %225 = arith.mulf %223, %224 : vector<128x128xf32>
    %226 = arith.addf %222, %225 : vector<128x128xf32>
    %227 = vector.extract_strided_slice %219 {offsets = [0, 128], sizes = [128, 128], strides = [1, 1]} : vector<128x384xf32> to vector<128x128xf32>
    %c0_110 = arith.constant 0 : index
    %c0_111 = arith.constant 0 : index
    %228 = vector.load %arg4[%c0_110, %c0_111] : memref<128x256xf32, #tpu.memory_space<vmem>>, vector<128x128xf32>
    %229 = arith.mulf %227, %228 : vector<128x128xf32>
    %c64_i32_112 = arith.constant 64 : i32
    %230 = tpu.dynamic_rotate %227 by %c64_i32_112 dim 1 : vector<128x128xf32>, i32 -> vector<128x128xf32>
    %c0_113 = arith.constant 0 : index
    %c128_114 = arith.constant 128 : index
    %231 = vector.load %arg4[%c0_113, %c128_114] : memref<128x256xf32, #tpu.memory_space<vmem>>, vector<128x128xf32>
    %232 = arith.mulf %230, %231 : vector<128x128xf32>
    %233 = arith.addf %229, %232 : vector<128x128xf32>
    %234 = vector.extract_strided_slice %219 {offsets = [0, 256], sizes = [128, 128], strides = [1, 1]} : vector<128x384xf32> to vector<128x128xf32>
    %235 = arith.truncf %226 : vector<128x128xf32> to vector<128x128xbf16>
    %236 = arith.truncf %233 : vector<128x128xf32> to vector<128x128xbf16>
    %cst_115 = arith.constant dense<0.000000e+00> : vector<128x128xf32>
    %237 = tpu.matmul %235, %236, %cst_115 {dimension_numbers = #tpu.dot_dimension_numbers<[1], [1], [0], [0], [0, 0, 1, 0], [], []>} : vector<128x128xbf16>, vector<128x128xbf16>, vector<128x128xf32> -> vector<128x128xf32>
    %c0_116 = arith.constant 0 : index
    %c0_117 = arith.constant 0 : index
    %238 = vector.load %arg6[%c0_116, %c0_117] : memref<128x128xf32, #tpu.memory_space<vmem>>, vector<128x128xf32>
    %239 = arith.addf %237, %238 : vector<128x128xf32>
    %cst_118 = arith.constant dense<0xFF800000> : vector<128xf32>
    %240 = vector.multi_reduction <maximumf>, %239, %cst_118 [1] : vector<128x128xf32> to vector<128xf32>
    %241 = vector.shape_cast %240 : vector<128xf32> to vector<128x1xf32>
    %242 = vector.broadcast %241 : vector<128x1xf32> to vector<128x128xf32>
    %243 = arith.subf %239, %242 : vector<128x128xf32>
    %244 = math.exp %243 : vector<128x128xf32>
    %cst_119 = arith.constant dense<0.000000e+00> : vector<128xf32>
    %245 = vector.multi_reduction <add>, %244, %cst_119 [1] : vector<128x128xf32> to vector<128xf32>
    %246 = vector.shape_cast %245 : vector<128xf32> to vector<128x1xf32>
    %247 = arith.truncf %244 : vector<128x128xf32> to vector<128x128xbf16>
    %248 = arith.truncf %234 : vector<128x128xf32> to vector<128x128xbf16>
    %cst_120 = arith.constant dense<0.000000e+00> : vector<128x128xf32>
    %249 = tpu.matmul %247, %248, %cst_120 {dimension_numbers = #tpu.dot_dimension_numbers<[1], [0], [0], [1], [0, 0, 1, 1], [], []>} : vector<128x128xbf16>, vector<128x128xbf16>, vector<128x128xf32> -> vector<128x128xf32>
    %250 = tpu.reciprocal %246 {approx = true} : vector<128x1xf32> -> vector<128x1xf32>
    %251 = vector.broadcast %250 : vector<128x1xf32> to vector<128x128xf32>
    %252 = arith.mulf %249, %251 : vector<128x128xf32>
    %c1_121 = arith.constant 1 : index
    %c0_122 = arith.constant 0 : index
    %c0_123 = arith.constant 0 : index
    %253 = vector.load %arg9[%c1_121, %c0_122, %c0_123] : memref<2x128x128xbf16, #tpu.memory_space<vmem>>, vector<1x128x128xbf16>
    %254 = vector.shape_cast %253 : vector<1x128x128xbf16> to vector<128x128xbf16>
    %c14 = arith.constant 14 : index
    %c0_124 = arith.constant 0 : index
    %255 = vector.load %arg15[%c14, %c0_124] : memref<28x384xf32, #tpu.memory_space<vmem>>, vector<1x128xf32>
    %256 = arith.truncf %252 : vector<128x128xf32> to vector<128x128xbf16>
    %cst_125 = arith.constant dense<0.000000e+00> : vector<128x128xf32>
    %257 = tpu.matmul %256, %254, %cst_125 {dimension_numbers = #tpu.dot_dimension_numbers<[1], [0], [0], [1], [0, 0, 1, 1], [], []>} : vector<128x128xbf16>, vector<128x128xbf16>, vector<128x128xf32> -> vector<128x128xf32>
    %258 = vector.broadcast %255 : vector<1x128xf32> to vector<128x128xf32>
    %259 = arith.addf %257, %258 : vector<128x128xf32>
    %260 = arith.addf %190, %259 : vector<128x128xf32>
    %c22 = arith.constant 22 : index
    %c0_126 = arith.constant 0 : index
    %261 = vector.load %arg15[%c22, %c0_126] : memref<28x384xf32, #tpu.memory_space<vmem>>, vector<1x128xf32>
    %c23 = arith.constant 23 : index
    %c0_127 = arith.constant 0 : index
    %262 = vector.load %arg15[%c23, %c0_127] : memref<28x384xf32, #tpu.memory_space<vmem>>, vector<1x128xf32>
    %cst_128 = arith.constant dense<0.000000e+00> : vector<128xf32>
    %263 = vector.multi_reduction <add>, %260, %cst_128 [1] : vector<128x128xf32> to vector<128xf32>
    %264 = vector.shape_cast %263 : vector<128xf32> to vector<128x1xf32>
    %cst_129 = arith.constant 1.280000e+02 : f32
    %265 = vector.broadcast %cst_129 : f32 to vector<128x1xf32>
    %266 = arith.divf %264, %265 : vector<128x1xf32>
    %267 = vector.broadcast %266 : vector<128x1xf32> to vector<128x128xf32>
    %268 = arith.subf %260, %267 : vector<128x128xf32>
    %269 = arith.mulf %268, %268 : vector<128x128xf32>
    %cst_130 = arith.constant dense<0.000000e+00> : vector<128xf32>
    %270 = vector.multi_reduction <add>, %269, %cst_130 [1] : vector<128x128xf32> to vector<128xf32>
    %271 = vector.shape_cast %270 : vector<128xf32> to vector<128x1xf32>
    %cst_131 = arith.constant 1.280000e+02 : f32
    %272 = vector.broadcast %cst_131 : f32 to vector<128x1xf32>
    %273 = arith.divf %271, %272 : vector<128x1xf32>
    %cst_132 = arith.constant 9.99999974E-6 : f32
    %274 = vector.broadcast %cst_132 : f32 to vector<128x1xf32>
    %275 = arith.addf %273, %274 : vector<128x1xf32>
    %276 = math.rsqrt %275 : vector<128x1xf32>
    %277 = vector.broadcast %276 : vector<128x1xf32> to vector<128x128xf32>
    %278 = arith.mulf %268, %277 : vector<128x128xf32>
    %279 = vector.broadcast %261 : vector<1x128xf32> to vector<128x128xf32>
    %280 = arith.mulf %278, %279 : vector<128x128xf32>
    %281 = vector.broadcast %262 : vector<1x128xf32> to vector<128x128xf32>
    %282 = arith.addf %280, %281 : vector<128x128xf32>
    %c1_133 = arith.constant 1 : index
    %c0_134 = arith.constant 0 : index
    %c0_135 = arith.constant 0 : index
    %283 = vector.load %arg10[%c1_133, %c0_134, %c0_135] : memref<2x128x128xbf16, #tpu.memory_space<vmem>>, vector<1x128x128xbf16>
    %284 = vector.shape_cast %283 : vector<1x128x128xbf16> to vector<128x128xbf16>
    %c15 = arith.constant 15 : index
    %c0_136 = arith.constant 0 : index
    %285 = vector.load %arg15[%c15, %c0_136] : memref<28x384xf32, #tpu.memory_space<vmem>>, vector<1x128xf32>
    %286 = arith.truncf %282 : vector<128x128xf32> to vector<128x128xbf16>
    %cst_137 = arith.constant dense<0.000000e+00> : vector<128x128xf32>
    %287 = tpu.matmul %286, %284, %cst_137 {dimension_numbers = #tpu.dot_dimension_numbers<[1], [0], [0], [1], [0, 0, 1, 1], [], []>} : vector<128x128xbf16>, vector<128x128xbf16>, vector<128x128xf32> -> vector<128x128xf32>
    %288 = vector.broadcast %285 : vector<1x128xf32> to vector<128x128xf32>
    %289 = arith.addf %287, %288 : vector<128x128xf32>
    %c0_138 = arith.constant 0 : index
    %c0_139 = arith.constant 0 : index
    %290 = vector.load %arg4[%c0_138, %c0_139] : memref<128x256xf32, #tpu.memory_space<vmem>>, vector<128x128xf32>
    %291 = arith.mulf %289, %290 : vector<128x128xf32>
    %c64_i32_140 = arith.constant 64 : i32
    %292 = tpu.dynamic_rotate %289 by %c64_i32_140 dim 1 : vector<128x128xf32>, i32 -> vector<128x128xf32>
    %c0_141 = arith.constant 0 : index
    %c128_142 = arith.constant 128 : index
    %293 = vector.load %arg4[%c0_141, %c128_142] : memref<128x256xf32, #tpu.memory_space<vmem>>, vector<128x128xf32>
    %294 = arith.mulf %292, %293 : vector<128x128xf32>
    %295 = arith.addf %291, %294 : vector<128x128xf32>
    %c0_143 = arith.constant 0 : index
    %c0_144 = arith.constant 0 : index
    %296 = vector.load %arg3[%c0_143, %c0_144] : memref<384x128xf32, #tpu.memory_space<vmem>>, vector<384x128xf32>
    %c1_145 = arith.constant 1 : index
    %c0_146 = arith.constant 0 : index
    %c0_147 = arith.constant 0 : index
    %297 = vector.load %arg11[%c1_145, %c0_146, %c0_147] : memref<2x128x256xbf16, #tpu.memory_space<vmem>>, vector<1x128x256xbf16>
    %298 = vector.shape_cast %297 : vector<1x128x256xbf16> to vector<128x256xbf16>
    %c16 = arith.constant 16 : index
    %c0_148 = arith.constant 0 : index
    %299 = vector.load %arg15[%c16, %c0_148] : memref<28x384xf32, #tpu.memory_space<vmem>>, vector<1x256xf32>
    %300 = arith.truncf %296 : vector<384x128xf32> to vector<384x128xbf16>
    %cst_149 = arith.constant dense<0.000000e+00> : vector<384x256xf32>
    %301 = tpu.matmul %300, %298, %cst_149 {dimension_numbers = #tpu.dot_dimension_numbers<[1], [0], [0], [1], [0, 0, 1, 1], [], []>} : vector<384x128xbf16>, vector<128x256xbf16>, vector<384x256xf32> -> vector<384x256xf32>
    %302 = vector.broadcast %299 : vector<1x256xf32> to vector<384x256xf32>
    %303 = arith.addf %301, %302 : vector<384x256xf32>
    %304 = vector.extract_strided_slice %303 {offsets = [0, 0], sizes = [384, 128], strides = [1, 1]} : vector<384x256xf32> to vector<384x128xf32>
    %c0_150 = arith.constant 0 : index
    %c0_151 = arith.constant 0 : index
    %305 = vector.load %arg5[%c0_150, %c0_151] : memref<384x256xf32, #tpu.memory_space<vmem>>, vector<384x128xf32>
    %306 = arith.mulf %304, %305 : vector<384x128xf32>
    %c64_i32_152 = arith.constant 64 : i32
    %307 = tpu.dynamic_rotate %304 by %c64_i32_152 dim 1 : vector<384x128xf32>, i32 -> vector<384x128xf32>
    %c0_153 = arith.constant 0 : index
    %c128_154 = arith.constant 128 : index
    %308 = vector.load %arg5[%c0_153, %c128_154] : memref<384x256xf32, #tpu.memory_space<vmem>>, vector<384x128xf32>
    %309 = arith.mulf %307, %308 : vector<384x128xf32>
    %310 = arith.addf %306, %309 : vector<384x128xf32>
    %311 = vector.extract_strided_slice %303 {offsets = [0, 128], sizes = [384, 128], strides = [1, 1]} : vector<384x256xf32> to vector<384x128xf32>
    %312 = arith.truncf %295 : vector<128x128xf32> to vector<128x128xbf16>
    %313 = arith.truncf %310 : vector<384x128xf32> to vector<384x128xbf16>
    %cst_155 = arith.constant dense<0.000000e+00> : vector<128x384xf32>
    %314 = tpu.matmul %312, %313, %cst_155 {dimension_numbers = #tpu.dot_dimension_numbers<[1], [1], [0], [0], [0, 0, 1, 0], [], []>} : vector<128x128xbf16>, vector<384x128xbf16>, vector<128x384xf32> -> vector<128x384xf32>
    %c0_156 = arith.constant 0 : index
    %c0_157 = arith.constant 0 : index
    %315 = vector.load %arg7[%c0_156, %c0_157] : memref<128x384xf32, #tpu.memory_space<vmem>>, vector<128x384xf32>
    %316 = arith.addf %314, %315 : vector<128x384xf32>
    %cst_158 = arith.constant dense<0xFF800000> : vector<128xf32>
    %317 = vector.multi_reduction <maximumf>, %316, %cst_158 [1] : vector<128x384xf32> to vector<128xf32>
    %318 = vector.shape_cast %317 : vector<128xf32> to vector<128x1xf32>
    %319 = vector.broadcast %318 : vector<128x1xf32> to vector<128x384xf32>
    %320 = arith.subf %316, %319 : vector<128x384xf32>
    %321 = math.exp %320 : vector<128x384xf32>
    %cst_159 = arith.constant dense<0.000000e+00> : vector<128xf32>
    %322 = vector.multi_reduction <add>, %321, %cst_159 [1] : vector<128x384xf32> to vector<128xf32>
    %323 = vector.shape_cast %322 : vector<128xf32> to vector<128x1xf32>
    %324 = arith.truncf %321 : vector<128x384xf32> to vector<128x384xbf16>
    %325 = arith.truncf %311 : vector<384x128xf32> to vector<384x128xbf16>
    %cst_160 = arith.constant dense<0.000000e+00> : vector<128x128xf32>
    %326 = tpu.matmul %324, %325, %cst_160 {dimension_numbers = #tpu.dot_dimension_numbers<[1], [0], [0], [1], [0, 0, 1, 1], [], []>} : vector<128x384xbf16>, vector<384x128xbf16>, vector<128x128xf32> -> vector<128x128xf32>
    %327 = tpu.reciprocal %323 {approx = true} : vector<128x1xf32> -> vector<128x1xf32>
    %328 = vector.broadcast %327 : vector<128x1xf32> to vector<128x128xf32>
    %329 = arith.mulf %326, %328 : vector<128x128xf32>
    %c1_161 = arith.constant 1 : index
    %c0_162 = arith.constant 0 : index
    %c0_163 = arith.constant 0 : index
    %330 = vector.load %arg12[%c1_161, %c0_162, %c0_163] : memref<2x128x128xbf16, #tpu.memory_space<vmem>>, vector<1x128x128xbf16>
    %331 = vector.shape_cast %330 : vector<1x128x128xbf16> to vector<128x128xbf16>
    %c17 = arith.constant 17 : index
    %c0_164 = arith.constant 0 : index
    %332 = vector.load %arg15[%c17, %c0_164] : memref<28x384xf32, #tpu.memory_space<vmem>>, vector<1x128xf32>
    %333 = arith.truncf %329 : vector<128x128xf32> to vector<128x128xbf16>
    %cst_165 = arith.constant dense<0.000000e+00> : vector<128x128xf32>
    %334 = tpu.matmul %333, %331, %cst_165 {dimension_numbers = #tpu.dot_dimension_numbers<[1], [0], [0], [1], [0, 0, 1, 1], [], []>} : vector<128x128xbf16>, vector<128x128xbf16>, vector<128x128xf32> -> vector<128x128xf32>
    %335 = vector.broadcast %332 : vector<1x128xf32> to vector<128x128xf32>
    %336 = arith.addf %334, %335 : vector<128x128xf32>
    %337 = arith.addf %260, %336 : vector<128x128xf32>
    %c24 = arith.constant 24 : index
    %c0_166 = arith.constant 0 : index
    %338 = vector.load %arg15[%c24, %c0_166] : memref<28x384xf32, #tpu.memory_space<vmem>>, vector<1x128xf32>
    %c25 = arith.constant 25 : index
    %c0_167 = arith.constant 0 : index
    %339 = vector.load %arg15[%c25, %c0_167] : memref<28x384xf32, #tpu.memory_space<vmem>>, vector<1x128xf32>
    %cst_168 = arith.constant dense<0.000000e+00> : vector<128xf32>
    %340 = vector.multi_reduction <add>, %337, %cst_168 [1] : vector<128x128xf32> to vector<128xf32>
    %341 = vector.shape_cast %340 : vector<128xf32> to vector<128x1xf32>
    %cst_169 = arith.constant 1.280000e+02 : f32
    %342 = vector.broadcast %cst_169 : f32 to vector<128x1xf32>
    %343 = arith.divf %341, %342 : vector<128x1xf32>
    %344 = vector.broadcast %343 : vector<128x1xf32> to vector<128x128xf32>
    %345 = arith.subf %337, %344 : vector<128x128xf32>
    %346 = arith.mulf %345, %345 : vector<128x128xf32>
    %cst_170 = arith.constant dense<0.000000e+00> : vector<128xf32>
    %347 = vector.multi_reduction <add>, %346, %cst_170 [1] : vector<128x128xf32> to vector<128xf32>
    %348 = vector.shape_cast %347 : vector<128xf32> to vector<128x1xf32>
    %cst_171 = arith.constant 1.280000e+02 : f32
    %349 = vector.broadcast %cst_171 : f32 to vector<128x1xf32>
    %350 = arith.divf %348, %349 : vector<128x1xf32>
    %cst_172 = arith.constant 9.99999974E-6 : f32
    %351 = vector.broadcast %cst_172 : f32 to vector<128x1xf32>
    %352 = arith.addf %350, %351 : vector<128x1xf32>
    %353 = math.rsqrt %352 : vector<128x1xf32>
    %354 = vector.broadcast %353 : vector<128x1xf32> to vector<128x128xf32>
    %355 = arith.mulf %345, %354 : vector<128x128xf32>
    %356 = vector.broadcast %338 : vector<1x128xf32> to vector<128x128xf32>
    %357 = arith.mulf %355, %356 : vector<128x128xf32>
    %358 = vector.broadcast %339 : vector<1x128xf32> to vector<128x128xf32>
    %359 = arith.addf %357, %358 : vector<128x128xf32>
    %c1_173 = arith.constant 1 : index
    %c0_174 = arith.constant 0 : index
    %c0_175 = arith.constant 0 : index
    %360 = vector.load %arg13[%c1_173, %c0_174, %c0_175] : memref<2x128x256xbf16, #tpu.memory_space<vmem>>, vector<1x128x256xbf16>
    %361 = vector.shape_cast %360 : vector<1x128x256xbf16> to vector<128x256xbf16>
    %c18 = arith.constant 18 : index
    %c0_176 = arith.constant 0 : index
    %362 = vector.load %arg15[%c18, %c0_176] : memref<28x384xf32, #tpu.memory_space<vmem>>, vector<1x256xf32>
    %363 = arith.truncf %359 : vector<128x128xf32> to vector<128x128xbf16>
    %cst_177 = arith.constant dense<0.000000e+00> : vector<128x256xf32>
    %364 = tpu.matmul %363, %361, %cst_177 {dimension_numbers = #tpu.dot_dimension_numbers<[1], [0], [0], [1], [0, 0, 1, 1], [], []>} : vector<128x128xbf16>, vector<128x256xbf16>, vector<128x256xf32> -> vector<128x256xf32>
    %365 = vector.broadcast %362 : vector<1x256xf32> to vector<128x256xf32>
    %366 = arith.addf %364, %365 : vector<128x256xf32>
    %cst_178 = arith.constant 0.000000e+00 : f32
    %367 = vector.broadcast %cst_178 : f32 to vector<128x256xf32>
    %368 = arith.maximumf %366, %367 : vector<128x256xf32>
    %c1_179 = arith.constant 1 : index
    %c0_180 = arith.constant 0 : index
    %c0_181 = arith.constant 0 : index
    %369 = vector.load %arg14[%c1_179, %c0_180, %c0_181] : memref<2x256x128xbf16, #tpu.memory_space<vmem>>, vector<1x256x128xbf16>
    %370 = vector.shape_cast %369 : vector<1x256x128xbf16> to vector<256x128xbf16>
    %c19 = arith.constant 19 : index
    %c0_182 = arith.constant 0 : index
    %371 = vector.load %arg15[%c19, %c0_182] : memref<28x384xf32, #tpu.memory_space<vmem>>, vector<1x128xf32>
    %372 = arith.truncf %368 : vector<128x256xf32> to vector<128x256xbf16>
    %cst_183 = arith.constant dense<0.000000e+00> : vector<128x128xf32>
    %373 = tpu.matmul %372, %370, %cst_183 {dimension_numbers = #tpu.dot_dimension_numbers<[1], [0], [0], [1], [0, 0, 1, 1], [], []>} : vector<128x256xbf16>, vector<256x128xbf16>, vector<128x128xf32> -> vector<128x128xf32>
    %374 = vector.broadcast %371 : vector<1x128xf32> to vector<128x128xf32>
    %375 = arith.addf %373, %374 : vector<128x128xf32>
    %376 = arith.addf %337, %375 : vector<128x128xf32>
    %c26 = arith.constant 26 : index
    %c0_184 = arith.constant 0 : index
    %377 = vector.load %arg15[%c26, %c0_184] : memref<28x384xf32, #tpu.memory_space<vmem>>, vector<1x128xf32>
    %c27 = arith.constant 27 : index
    %c0_185 = arith.constant 0 : index
    %378 = vector.load %arg15[%c27, %c0_185] : memref<28x384xf32, #tpu.memory_space<vmem>>, vector<1x128xf32>
    %cst_186 = arith.constant dense<0.000000e+00> : vector<128xf32>
    %379 = vector.multi_reduction <add>, %376, %cst_186 [1] : vector<128x128xf32> to vector<128xf32>
    %380 = vector.shape_cast %379 : vector<128xf32> to vector<128x1xf32>
    %cst_187 = arith.constant 1.280000e+02 : f32
    %381 = vector.broadcast %cst_187 : f32 to vector<128x1xf32>
    %382 = arith.divf %380, %381 : vector<128x1xf32>
    %383 = vector.broadcast %382 : vector<128x1xf32> to vector<128x128xf32>
    %384 = arith.subf %376, %383 : vector<128x128xf32>
    %385 = arith.mulf %384, %384 : vector<128x128xf32>
    %cst_188 = arith.constant dense<0.000000e+00> : vector<128xf32>
    %386 = vector.multi_reduction <add>, %385, %cst_188 [1] : vector<128x128xf32> to vector<128xf32>
    %387 = vector.shape_cast %386 : vector<128xf32> to vector<128x1xf32>
    %cst_189 = arith.constant 1.280000e+02 : f32
    %388 = vector.broadcast %cst_189 : f32 to vector<128x1xf32>
    %389 = arith.divf %387, %388 : vector<128x1xf32>
    %cst_190 = arith.constant 9.99999974E-6 : f32
    %390 = vector.broadcast %cst_190 : f32 to vector<128x1xf32>
    %391 = arith.addf %389, %390 : vector<128x1xf32>
    %392 = math.rsqrt %391 : vector<128x1xf32>
    %393 = vector.broadcast %392 : vector<128x1xf32> to vector<128x128xf32>
    %394 = arith.mulf %384, %393 : vector<128x128xf32>
    %395 = vector.broadcast %377 : vector<1x128xf32> to vector<128x128xf32>
    %396 = arith.mulf %394, %395 : vector<128x128xf32>
    %397 = vector.broadcast %378 : vector<1x128xf32> to vector<128x128xf32>
    %398 = arith.addf %396, %397 : vector<128x128xf32>
    %c0_191 = arith.constant 0 : index
    %c0_192 = arith.constant 0 : index
    %399 = vector.load %arg16[%c0_191, %c0_192] : memref<128x128xf32, #tpu.memory_space<vmem>>, vector<128x128xf32>
    tpu.vector_store %arg16[%c0_191, %c0_192], %398 {strides = array<i32>} : memref<128x128xf32, #tpu.memory_space<vmem>>, vector<128x128xf32>,
    return
  }
  func.func @transform_0(%arg0: i32) -> (i32, i32) {
    %c0_i32 = arith.constant 0 : i32
    %c0_i32_0 = arith.constant 0 : i32
    %c0_i32_1 = arith.constant 0 : i32
    return %c0_i32, %c0_i32_0 : i32, i32
  }
  func.func @transform_1(%arg0: i32) -> (i32, i32) {
    %c0_i32 = arith.constant 0 : i32
    %c0_i32_0 = arith.constant 0 : i32
    %c0_i32_1 = arith.constant 0 : i32
    return %c0_i32, %c0_i32_0 : i32, i32
  }
  func.func @transform_2(%arg0: i32) -> (i32, i32) {
    %c0_i32 = arith.constant 0 : i32
    %c0_i32_0 = arith.constant 0 : i32
    %c0_i32_1 = arith.constant 0 : i32
    return %c0_i32, %c0_i32_0 : i32, i32
  }
  func.func @transform_3(%arg0: i32) -> (i32, i32) {
    %c0_i32 = arith.constant 0 : i32
    %c0_i32_0 = arith.constant 0 : i32
    %c0_i32_1 = arith.constant 0 : i32
    return %c0_i32, %c0_i32_0 : i32, i32
  }
  func.func @transform_4(%arg0: i32) -> (i32, i32) {
    %c0_i32 = arith.constant 0 : i32
    %c0_i32_0 = arith.constant 0 : i32
    %c0_i32_1 = arith.constant 0 : i32
    return %c0_i32, %c0_i32_0 : i32, i32
  }
  func.func @transform_5(%arg0: i32) -> (i32, i32) {
    %c0_i32 = arith.constant 0 : i32
    %c0_i32_0 = arith.constant 0 : i32
    %c0_i32_1 = arith.constant 0 : i32
    return %c0_i32, %c0_i32_0 : i32, i32
  }
  func.func @transform_6(%arg0: i32) -> (i32, i32) {
    %c0_i32 = arith.constant 0 : i32
    %c0_i32_0 = arith.constant 0 : i32
    %c0_i32_1 = arith.constant 0 : i32
    return %c0_i32, %c0_i32_0 : i32, i32
  }
  func.func @transform_7(%arg0: i32) -> (i32, i32, i32) {
    %c0_i32 = arith.constant 0 : i32
    %c0_i32_0 = arith.constant 0 : i32
    %c0_i32_1 = arith.constant 0 : i32
    %c0_i32_2 = arith.constant 0 : i32
    return %c0_i32, %c0_i32_0, %c0_i32_1 : i32, i32, i32
  }
  func.func @transform_8(%arg0: i32) -> (i32, i32, i32) {
    %c0_i32 = arith.constant 0 : i32
    %c0_i32_0 = arith.constant 0 : i32
    %c0_i32_1 = arith.constant 0 : i32
    %c0_i32_2 = arith.constant 0 : i32
    return %c0_i32, %c0_i32_0, %c0_i32_1 : i32, i32, i32
  }
  func.func @transform_9(%arg0: i32) -> (i32, i32, i32) {
    %c0_i32 = arith.constant 0 : i32
    %c0_i32_0 = arith.constant 0 : i32
    %c0_i32_1 = arith.constant 0 : i32
    %c0_i32_2 = arith.constant 0 : i32
    return %c0_i32, %c0_i32_0, %c0_i32_1 : i32, i32, i32
  }
  func.func @transform_10(%arg0: i32) -> (i32, i32, i32) {
    %c0_i32 = arith.constant 0 : i32
    %c0_i32_0 = arith.constant 0 : i32
    %c0_i32_1 = arith.constant 0 : i32
    %c0_i32_2 = arith.constant 0 : i32
    return %c0_i32, %c0_i32_0, %c0_i32_1 : i32, i32, i32
  }
  func.func @transform_11(%arg0: i32) -> (i32, i32, i32) {
    %c0_i32 = arith.constant 0 : i32
    %c0_i32_0 = arith.constant 0 : i32
    %c0_i32_1 = arith.constant 0 : i32
    %c0_i32_2 = arith.constant 0 : i32
    return %c0_i32, %c0_i32_0, %c0_i32_1 : i32, i32, i32
  }
  func.func @transform_12(%arg0: i32) -> (i32, i32, i32) {
    %c0_i32 = arith.constant 0 : i32
    %c0_i32_0 = arith.constant 0 : i32
    %c0_i32_1 = arith.constant 0 : i32
    %c0_i32_2 = arith.constant 0 : i32
    return %c0_i32, %c0_i32_0, %c0_i32_1 : i32, i32, i32
  }
  func.func @transform_13(%arg0: i32) -> (i32, i32, i32) {
    %c0_i32 = arith.constant 0 : i32
    %c0_i32_0 = arith.constant 0 : i32
    %c0_i32_1 = arith.constant 0 : i32
    %c0_i32_2 = arith.constant 0 : i32
    return %c0_i32, %c0_i32_0, %c0_i32_1 : i32, i32, i32
  }
  func.func @transform_14(%arg0: i32) -> (i32, i32) {
    %c0_i32 = arith.constant 0 : i32
    %c0_i32_0 = arith.constant 0 : i32
    %c0_i32_1 = arith.constant 0 : i32
    return %c0_i32, %c0_i32_0 : i32, i32
  }
  func.func @transform_15(%arg0: i32) -> (i32, i32) {
    %c0_i32 = arith.constant 0 : i32
    %c0_i32_0 = arith.constant 0 : i32
    %c0_i32_1 = arith.constant 0 : i32
    return %c0_i32, %c0_i32_0 : i32, i32
  }
}

</mosaic_0001>

<llo_original>
// kernel: memory_attention_forward.1
$region0: #{memory_attention_forward.1}
  #allocation0 [shape = 'u32[]', space=smem, size = 0x4, offset = 0x4, fixed_abs, tag = 'smem constant byte address 0x4 - core index']
  #allocation1 [shape = 'u32[144,128]{1,0:T(1,128)}', space=vmem, size = 0x12000, scoped, tag = 'internal scratch']
  %s0 = inlined_call_operand.vmem [shape: f32[128,128], index: 0, kind: input, shape index: {}]
  %s1 = inlined_call_operand.vmem [shape: f32[128,128], index: 1, kind: input, shape index: {}]
  %s2 = inlined_call_operand.vmem [shape: f32[384,128], index: 2, kind: input, shape index: {}]
  %s3 = inlined_call_operand.vmem [shape: f32[128,256], index: 3, kind: input, shape index: {}]
  %s4 = inlined_call_operand.vmem [shape: f32[384,256], index: 4, kind: input, shape index: {}]
  %s5 = inlined_call_operand.vmem [shape: f32[128,128], index: 5, kind: input, shape index: {}]
  %s6 = inlined_call_operand.vmem [shape: f32[128,384], index: 6, kind: input, shape index: {}]
  %s7 = inlined_call_operand.vmem [shape: bf16[2,128,384], index: 7, kind: input, shape index: {}]
  %s8 = inlined_call_operand.vmem [shape: bf16[2,128,128], index: 8, kind: input, shape index: {}]
  %s9 = inlined_call_operand.vmem [shape: bf16[2,128,128], index: 9, kind: input, shape index: {}]
  %s10 = inlined_call_operand.vmem [shape: bf16[2,128,256], index: 10, kind: input, shape index: {}]
  %s11 = inlined_call_operand.vmem [shape: bf16[2,128,128], index: 11, kind: input, shape index: {}]
  %s12 = inlined_call_operand.vmem [shape: bf16[2,128,256], index: 12, kind: input, shape index: {}]
  %s13 = inlined_call_operand.vmem [shape: bf16[2,256,128], index: 13, kind: input, shape index: {}]
  %s14 = inlined_call_operand.vmem [shape: f32[28,384], index: 14, kind: input, shape index: {}]
  %s15 = inlined_call_operand.hbm [shape: f32[128,128], index: 15, kind: output, shape index: {}]
  %s16 = sld [smem:[#allocation0]]
  $region70: #{memory_attention_forward.1} parent=0
    _
  %s18 = ssub.s32 1, %s16
  %s19 = scalar_select 0, %s18, %s16
  $region1: #{memory_attention_forward.1} parent=0
    #allocation2 [shape = 'u8[65536]{0}', space=vmem, size = 0x10000, scoped, tag = 'output window, operand 0, single buffered']
    #allocation3 [shape = 's32[1]{0}', space=sflag, size = 0x4, scoped, tag = 'scoped memory for memory_attention_forward.1']
    %20 = vsyncpa [#allocation3], 0
    // Predicated region
    $region2: #{memory_attention_forward.1} parent=1 // pred_check
      _
    $region3: #{memory_attention_forward.1} parent=1 // pred_check_branch
      %22 = sbr.rel (0) target = $region5
    $region4: #{memory_attention_forward.1} parent=1 // pred_region
      _
    $region5: #{memory_attention_forward.1} parent=1 // pred_fallthru
      _
    // Predicated region
    $region6: #{memory_attention_forward.1} parent=1 // pred_check
      _
    $region7: #{memory_attention_forward.1} parent=1 // pred_check_branch
      %24 = sbr.rel (0) target = $region9
    $region8: #{memory_attention_forward.1} parent=1 // pred_region
      _
    $region9: #{memory_attention_forward.1} parent=1 // pred_fallthru
      _
    // Predicated region
    $region10: #{memory_attention_forward.1} parent=1 // pred_check
      _
    $region11: #{memory_attention_forward.1} parent=1 // pred_check_branch
      %26 = sbr.rel (0) target = $region13
    $region12: #{memory_attention_forward.1} parent=1 // pred_region
      _
    $region13: #{memory_attention_forward.1} parent=1 // pred_fallthru
      _
    // Predicated region
    $region14: #{memory_attention_forward.1} parent=1 // pred_check
      _
    $region15: #{memory_attention_forward.1} parent=1 // pred_check_branch
      %28 = sbr.rel (0) target = $region17
    $region16: #{memory_attention_forward.1} parent=1 // pred_region
      _
    $region17: #{memory_attention_forward.1} parent=1 // pred_fallthru
      _
    // Predicated region
    $region18: #{memory_attention_forward.1} parent=1 // pred_check
      _
    $region19: #{memory_attention_forward.1} parent=1 // pred_check_branch
      %30 = sbr.rel (0) target = $region21
    $region20: #{memory_attention_forward.1} parent=1 // pred_region
      _
    $region21: #{memory_attention_forward.1} parent=1 // pred_fallthru
      _
    // Predicated region
    $region22: #{memory_attention_forward.1} parent=1 // pred_check
      _
    $region23: #{memory_attention_forward.1} parent=1 // pred_check_branch
      %32 = sbr.rel (0) target = $region25
    $region24: #{memory_attention_forward.1} parent=1 // pred_region
      _
    $region25: #{memory_attention_forward.1} parent=1 // pred_fallthru
      _
    // Predicated region
    $region26: #{memory_attention_forward.1} parent=1 // pred_check
      _
    $region27: #{memory_attention_forward.1} parent=1 // pred_check_branch
      %34 = sbr.rel (0) target = $region29
    $region28: #{memory_attention_forward.1} parent=1 // pred_region
      _
    $region29: #{memory_attention_forward.1} parent=1 // pred_fallthru
      _
    // Predicated region
    $region30: #{memory_attention_forward.1} parent=1 // pred_check
      _
    $region31: #{memory_attention_forward.1} parent=1 // pred_check_branch
      %36 = sbr.rel (0) target = $region33
    $region32: #{memory_attention_forward.1} parent=1 // pred_region
      _
    $region33: #{memory_attention_forward.1} parent=1 // pred_fallthru
      _
    // Predicated region
    $region34: #{memory_attention_forward.1} parent=1 // pred_check
      _
    $region35: #{memory_attention_forward.1} parent=1 // pred_check_branch
      %38 = sbr.rel (0) target = $region37
    $region36: #{memory_attention_forward.1} parent=1 // pred_region
      _
    $region37: #{memory_attention_forward.1} parent=1 // pred_fallthru
      _
    // Predicated region
    $region38: #{memory_attention_forward.1} parent=1 // pred_check
      _
    $region39: #{memory_attention_forward.1} parent=1 // pred_check_branch
      %40 = sbr.rel (0) target = $region41
    $region40: #{memory_attention_forward.1} parent=1 // pred_region
      _
    $region41: #{memory_attention_forward.1} parent=1 // pred_fallthru
      _
    // Predicated region
    $region42: #{memory_attention_forward.1} parent=1 // pred_check
      _
    $region43: #{memory_attention_forward.1} parent=1 // pred_check_branch
      %42 = sbr.rel (0) target = $region45
    $region44: #{memory_attention_forward.1} parent=1 // pred_region
      _
    $region45: #{memory_attention_forward.1} parent=1 // pred_fallthru
      _
    // Predicated region
    $region46: #{memory_attention_forward.1} parent=1 // pred_check
      _
    $region47: #{memory_attention_forward.1} parent=1 // pred_check_branch
      %44 = sbr.rel (0) target = $region49
    $region48: #{memory_attention_forward.1} parent=1 // pred_region
      _
    $region49: #{memory_attention_forward.1} parent=1 // pred_fallthru
      _
    // Predicated region
    $region50: #{memory_attention_forward.1} parent=1 // pred_check
      _
    $region51: #{memory_attention_forward.1} parent=1 // pred_check_branch
      %46 = sbr.rel (0) target = $region53
    $region52: #{memory_attention_forward.1} parent=1 // pred_region
      _
    $region53: #{memory_attention_forward.1} parent=1 // pred_fallthru
      _
    // Predicated region
    $region54: #{memory_attention_forward.1} parent=1 // pred_check
      _
    $region55: #{memory_attention_forward.1} parent=1 // pred_check_branch
      %48 = sbr.rel (0) target = $region57
    $region56: #{memory_attention_forward.1} parent=1 // pred_region
      _
    $region57: #{memory_attention_forward.1} parent=1 // pred_fallthru
      _
    // Predicated region
    $region58: #{memory_attention_forward.1} parent=1 // pred_check
      _
    $region59: #{memory_attention_forward.1} parent=1 // pred_check_branch
      %50 = sbr.rel (0) target = $region61
    $region60: #{memory_attention_forward.1} parent=1 // pred_region
      _
    $region61: #{memory_attention_forward.1} parent=1 // pred_fallthru
      _
    %v52 = vld [vmem:[%s0] sm:$0xff]
    %v53 = vld [vmem:[%s0 + $0x8] sm:$0xff]
    %v54 = vld [vmem:[%s0 + $0x10] sm:$0xff]
    %v55 = vld [vmem:[%s0 + $0x18] sm:$0xff]
    %v56 = vld [vmem:[%s0 + $0x20] sm:$0xff]
    %v57 = vld [vmem:[%s0 + $0x28] sm:$0xff]
    %v58 = vld [vmem:[%s0 + $0x30] sm:$0xff]
    %v59 = vld [vmem:[%s0 + $0x38] sm:$0xff]
    %v60 = vld [vmem:[%s0 + $0x40] sm:$0xff]
    %v61 = vld [vmem:[%s0 + $0x48] sm:$0xff]
    %v62 = vld [vmem:[%s0 + $0x50] sm:$0xff]
    %v63 = vld [vmem:[%s0 + $0x58] sm:$0xff]
    %v64 = vld [vmem:[%s0 + $0x60] sm:$0xff]
    %v65 = vld [vmem:[%s0 + $0x68] sm:$0xff]
    %v66 = vld [vmem:[%s0 + $0x70] sm:$0xff]
    %v67 = vld [vmem:[%s0 + $0x78] sm:$0xff]
    %v68 = vld [vmem:[%s1] sm:$0xff]
    %v69 = vld [vmem:[%s1 + $0x8] sm:$0xff]
    %v70 = vld [vmem:[%s1 + $0x10] sm:$0xff]
    %v71 = vld [vmem:[%s1 + $0x18] sm:$0xff]
    %v72 = vld [vmem:[%s1 + $0x20] sm:$0xff]
    %v73 = vld [vmem:[%s1 + $0x28] sm:$0xff]
    %v74 = vld [vmem:[%s1 + $0x30] sm:$0xff]
    %v75 = vld [vmem:[%s1 + $0x38] sm:$0xff]
    %v76 = vld [vmem:[%s1 + $0x40] sm:$0xff]
    %v77 = vld [vmem:[%s1 + $0x48] sm:$0xff]
    %v78 = vld [vmem:[%s1 + $0x50] sm:$0xff]
    %v79 = vld [vmem:[%s1 + $0x58] sm:$0xff]
    %v80 = vld [vmem:[%s1 + $0x60] sm:$0xff]
    %v81 = vld [vmem:[%s1 + $0x68] sm:$0xff]
    %v82 = vld [vmem:[%s1 + $0x70] sm:$0xff]
    %v83 = vld [vmem:[%s1 + $0x78] sm:$0xff]
    %v84 = vmul.f32 %v68, 0.1
    %v85 = vmul.f32 %v69, 0.1
    %v86 = vmul.f32 %v70, 0.1
    %v87 = vmul.f32 %v71, 0.1
    %v88 = vmul.f32 %v72, 0.1
    %v89 = vmul.f32 %v73, 0.1
    %v90 = vmul.f32 %v74, 0.1
    %v91 = vmul.f32 %v75, 0.1
    %v92 = vmul.f32 %v76, 0.1
    %v93 = vmul.f32 %v77, 0.1
    %v94 = vmul.f32 %v78, 0.1
    %v95 = vmul.f32 %v79, 0.1
    %v96 = vmul.f32 %v80, 0.1
    %v97 = vmul.f32 %v81, 0.1
    %v98 = vmul.f32 %v82, 0.1
    %v99 = vmul.f32 %v83, 0.1
    %v100 = vadd.f32 %v52, %v84
    %v101 = vadd.f32 %v53, %v85
    %v102 = vadd.f32 %v54, %v86
    %v103 = vadd.f32 %v55, %v87
    %v104 = vadd.f32 %v56, %v88
    %v105 = vadd.f32 %v57, %v89
    %v106 = vadd.f32 %v58, %v90
    %v107 = vadd.f32 %v59, %v91
    %v108 = vadd.f32 %v60, %v92
    %v109 = vadd.f32 %v61, %v93
    %v110 = vadd.f32 %v62, %v94
    %v111 = vadd.f32 %v63, %v95
    %v112 = vadd.f32 %v64, %v96
    %v113 = vadd.f32 %v65, %v97
    %v114 = vadd.f32 %v66, %v98
    %v115 = vadd.f32 %v67, %v99
    %v116 = vld [vmem:[%s14 + $0x7] ss:$0 sm:$0xff]
    %v117 = vld [vmem:[%s14 + $0x18] ss:$0 sm:$0xff]
    %118 = vadd.xlane.f32.xlu0 %v100
    %v119 = vpop.xlane.xlu0 %118
    %120 = vadd.xlane.f32.xlu0 %v101
    %v121 = vpop.xlane.xlu0 %120
    %122 = vadd.xlane.f32.xlu0 %v102
    %v123 = vpop.xlane.xlu0 %122
    %124 = vadd.xlane.f32.xlu0 %v103
    %v125 = vpop.xlane.xlu0 %124
    %126 = vadd.xlane.f32.xlu0 %v104
    %v127 = vpop.xlane.xlu0 %126
    %128 = vadd.xlane.f32.xlu0 %v105
    %v129 = vpop.xlane.xlu0 %128
    %130 = vadd.xlane.f32.xlu0 %v106
    %v131 = vpop.xlane.xlu0 %130
    %132 = vadd.xlane.f32.xlu0 %v107
    %v133 = vpop.xlane.xlu0 %132
    %134 = vadd.xlane.f32.xlu0 %v108
    %v135 = vpop.xlane.xlu0 %134
    %136 = vadd.xlane.f32.xlu0 %v109
    %v137 = vpop.xlane.xlu0 %136
    %138 = vadd.xlane.f32.xlu0 %v110
    %v139 = vpop.xlane.xlu0 %138
    %140 = vadd.xlane.f32.xlu0 %v111
    %v141 = vpop.xlane.xlu0 %140
    %142 = vadd.xlane.f32.xlu0 %v112
    %v143 = vpop.xlane.xlu0 %142
    %144 = vadd.xlane.f32.xlu0 %v113
    %v145 = vpop.xlane.xlu0 %144
    %146 = vadd.xlane.f32.xlu0 %v114
    %v147 = vpop.xlane.xlu0 %146
    %148 = vadd.xlane.f32.xlu0 %v115
    %v149 = vpop.xlane.xlu0 %148
    %v150 = vrcp.pop 128.0
    %v151 = vmul.f32 %v119, %v150
    %v152 = vmul.f32 %v121, %v150
    %v153 = vmul.f32 %v123, %v150
    %v154 = vmul.f32 %v125, %v150
    %v155 = vmul.f32 %v127, %v150
    %v156 = vmul.f32 %v129, %v150
    %v157 = vmul.f32 %v131, %v150
    %v158 = vmul.f32 %v133, %v150
    %v159 = vmul.f32 %v135, %v150
    %v160 = vmul.f32 %v137, %v150
    %v161 = vmul.f32 %v139, %v150
    %v162 = vmul.f32 %v141, %v150
    %v163 = vmul.f32 %v143, %v150
    %v164 = vmul.f32 %v145, %v150
    %v165 = vmul.f32 %v147, %v150
    %v166 = vmul.f32 %v149, %v150
    %v167 = vsub.f32 %v100, %v151
    %v168 = vsub.f32 %v101, %v152
    %v169 = vsub.f32 %v102, %v153
    %v170 = vsub.f32 %v103, %v154
    %v171 = vsub.f32 %v104, %v155
    %v172 = vsub.f32 %v105, %v156
    %v173 = vsub.f32 %v106, %v157
    %v174 = vsub.f32 %v107, %v158
    %v175 = vsub.f32 %v108, %v159
    %v176 = vsub.f32 %v109, %v160
    %v177 = vsub.f32 %v110, %v161
    %v178 = vsub.f32 %v111, %v162
    %v179 = vsub.f32 %v112, %v163
    %v180 = vsub.f32 %v113, %v164
    %v181 = vsub.f32 %v114, %v165
    %v182 = vsub.f32 %v115, %v166
    %v183 = vmul.f32 %v167, %v167
    %v184 = vmul.f32 %v168, %v168
    %v185 = vmul.f32 %v169, %v169
    %v186 = vmul.f32 %v170, %v170
    %v187 = vmul.f32 %v171, %v171
    %v188 = vmul.f32 %v172, %v172
    %v189 = vmul.f32 %v173, %v173
    %v190 = vmul.f32 %v174, %v174
    %v191 = vmul.f32 %v175, %v175
    %v192 = vmul.f32 %v176, %v176
    %v193 = vmul.f32 %v177, %v177
    %v194 = vmul.f32 %v178, %v178
    %v195 = vmul.f32 %v179, %v179
    %v196 = vmul.f32 %v180, %v180
    %v197 = vmul.f32 %v181, %v181
    %v198 = vmul.f32 %v182, %v182
    %199 = vadd.xlane.f32.xlu0 %v183
    %v200 = vpop.xlane.xlu0 %199
    %201 = vadd.xlane.f32.xlu0 %v184
    %v202 = vpop.xlane.xlu0 %201
    %203 = vadd.xlane.f32.xlu0 %v185
    %v204 = vpop.xlane.xlu0 %203
    %205 = vadd.xlane.f32.xlu0 %v186
    %v206 = vpop.xlane.xlu0 %205
    %207 = vadd.xlane.f32.xlu0 %v187
    %v208 = vpop.xlane.xlu0 %207
    %209 = vadd.xlane.f32.xlu0 %v188
    %v210 = vpop.xlane.xlu0 %209
    %211 = vadd.xlane.f32.xlu0 %v189
    %v212 = vpop.xlane.xlu0 %211
    %213 = vadd.xlane.f32.xlu0 %v190
    %v214 = vpop.xlane.xlu0 %213
    %215 = vadd.xlane.f32.xlu0 %v191
    %v216 = vpop.xlane.xlu0 %215
    %217 = vadd.xlane.f32.xlu0 %v192
    %v218 = vpop.xlane.xlu0 %217
    %219 = vadd.xlane.f32.xlu0 %v193
    %v220 = vpop.xlane.xlu0 %219
    %221 = vadd.xlane.f32.xlu0 %v194
    %v222 = vpop.xlane.xlu0 %221
    %223 = vadd.xlane.f32.xlu0 %v195
    %v224 = vpop.xlane.xlu0 %223
    %225 = vadd.xlane.f32.xlu0 %v196
    %v226 = vpop.xlane.xlu0 %225
    %227 = vadd.xlane.f32.xlu0 %v197
    %v228 = vpop.xlane.xlu0 %227
    %229 = vadd.xlane.f32.xlu0 %v198
    %v230 = vpop.xlane.xlu0 %229
    %v231 = vmul.f32 %v200, %v150
    %v232 = vmul.f32 %v202, %v150
    %v233 = vmul.f32 %v204, %v150
    %v234 = vmul.f32 %v206, %v150
    %v235 = vmul.f32 %v208, %v150
    %v236 = vmul.f32 %v210, %v150
    %v237 = vmul.f32 %v212, %v150
    %v238 = vmul.f32 %v214, %v150
    %v239 = vmul.f32 %v216, %v150
    %v240 = vmul.f32 %v218, %v150
    %v241 = vmul.f32 %v220, %v150
    %v242 = vmul.f32 %v222, %v150
    %v243 = vmul.f32 %v224, %v150
    %v244 = vmul.f32 %v226, %v150
    %v245 = vmul.f32 %v228, %v150
    %v246 = vmul.f32 %v230, %v150
    %v247 = vadd.f32 %v231, 1e-05
    %v248 = vadd.f32 %v232, 1e-05
    %v249 = vadd.f32 %v233, 1e-05
    %v250 = vadd.f32 %v234, 1e-05
    %v251 = vadd.f32 %v235, 1e-05
    %v252 = vadd.f32 %v236, 1e-05
    %v253 = vadd.f32 %v237, 1e-05
    %v254 = vadd.f32 %v238, 1e-05
    %v255 = vadd.f32 %v239, 1e-05
    %v256 = vadd.f32 %v240, 1e-05
    %v257 = vadd.f32 %v241, 1e-05
    %v258 = vadd.f32 %v242, 1e-05
    %v259 = vadd.f32 %v243, 1e-05
    %v260 = vadd.f32 %v244, 1e-05
    %v261 = vadd.f32 %v245, 1e-05
    %v262 = vadd.f32 %v246, 1e-05
    %v263 = vrsqrt.pop %v247
    %v264 = vrsqrt.pop %v248
    %v265 = vrsqrt.pop %v249
    %v266 = vrsqrt.pop %v250
    %v267 = vrsqrt.pop %v251
    %v268 = vrsqrt.pop %v252
    %v269 = vrsqrt.pop %v253
    %v270 = vrsqrt.pop %v254
    %v271 = vrsqrt.pop %v255
    %v272 = vrsqrt.pop %v256
    %v273 = vrsqrt.pop %v257
    %v274 = vrsqrt.pop %v258
    %v275 = vrsqrt.pop %v259
    %v276 = vrsqrt.pop %v260
    %v277 = vrsqrt.pop %v261
    %v278 = vrsqrt.pop %v262
    %v279 = vmul.f32 %v167, %v263
    %v280 = vmul.f32 %v168, %v264
    %v281 = vmul.f32 %v169, %v265
    %v282 = vmul.f32 %v170, %v266
    %v283 = vmul.f32 %v171, %v267
    %v284 = vmul.f32 %v172, %v268
    %v285 = vmul.f32 %v173, %v269
    %v286 = vmul.f32 %v174, %v270
    %v287 = vmul.f32 %v175, %v271
    %v288 = vmul.f32 %v176, %v272
    %v289 = vmul.f32 %v177, %v273
    %v290 = vmul.f32 %v178, %v274
    %v291 = vmul.f32 %v179, %v275
    %v292 = vmul.f32 %v180, %v276
    %v293 = vmul.f32 %v181, %v277
    %v294 = vmul.f32 %v182, %v278
    %v295 = vmul.f32 %v279, %v116
    %v296 = vmul.f32 %v280, %v116
    %v297 = vmul.f32 %v281, %v116
    %v298 = vmul.f32 %v282, %v116
    %v299 = vmul.f32 %v283, %v116
    %v300 = vmul.f32 %v284, %v116
    %v301 = vmul.f32 %v285, %v116
    %v302 = vmul.f32 %v286, %v116
    %v303 = vmul.f32 %v287, %v116
    %v304 = vmul.f32 %v288, %v116
    %v305 = vmul.f32 %v289, %v116
    %v306 = vmul.f32 %v290, %v116
    %v307 = vmul.f32 %v291, %v116
    %v308 = vmul.f32 %v292, %v116
    %v309 = vmul.f32 %v293, %v116
    %v310 = vmul.f32 %v294, %v116
    %v311 = vadd.f32 %v295, %v117
    %v312 = vadd.f32 %v296, %v117
    %v313 = vadd.f32 %v297, %v117
    %v314 = vadd.f32 %v298, %v117
    %v315 = vadd.f32 %v299, %v117
    %v316 = vadd.f32 %v300, %v117
    %v317 = vadd.f32 %v301, %v117
    %v318 = vadd.f32 %v302, %v117
    %v319 = vadd.f32 %v303, %v117
    %v320 = vadd.f32 %v304, %v117
    %v321 = vadd.f32 %v305, %v117
    %v322 = vadd.f32 %v306, %v117
    %v323 = vadd.f32 %v307, %v117
    %v324 = vadd.f32 %v308, %v117
    %v325 = vadd.f32 %v309, %v117
    %v326 = vadd.f32 %v310, %v117
    %v327 = vld [vmem:[%s7] sm:$0xff]
    %v328 = vld [vmem:[%s7 + $0x8] sm:$0xf]
    %v329 = vld [vmem:[%s7 + $0xc] sm:$0xff]
    %v330 = vld [vmem:[%s7 + $0x14] sm:$0xf]
    %v331 = vld [vmem:[%s7 + $0x18] sm:$0xff]
    %v332 = vld [vmem:[%s7 + $0x20] sm:$0xf]
    %v333 = vld [vmem:[%s7 + $0x24] sm:$0xff]
    %v334 = vld [vmem:[%s7 + $0x2c] sm:$0xf]
    %v335 = vld [vmem:[%s7 + $0x30] sm:$0xff]
    %v336 = vld [vmem:[%s7 + $0x38] sm:$0xf]
    %v337 = vld [vmem:[%s7 + $0x3c] sm:$0xff]
    %v338 = vld [vmem:[%s7 + $0x44] sm:$0xf]
    %v339 = vld [vmem:[%s7 + $0x48] sm:$0xff]
    %v340 = vld [vmem:[%s7 + $0x50] sm:$0xf]
    %v341 = vld [vmem:[%s7 + $0x54] sm:$0xff]
    %v342 = vld [vmem:[%s7 + $0x5c] sm:$0xf]
    %v343 = vld [vmem:[%s7 + $0x60] sm:$0xff]
    %v344 = vld [vmem:[%s7 + $0x68] sm:$0xf]
    %v345 = vld [vmem:[%s7 + $0x6c] sm:$0xff]
    %v346 = vld [vmem:[%s7 + $0x74] sm:$0xf]
    %v347 = vld [vmem:[%s7 + $0x78] sm:$0xff]
    %v348 = vld [vmem:[%s7 + $0x80] sm:$0xf]
    %v349 = vld [vmem:[%s7 + $0x84] sm:$0xff]
    %v350 = vld [vmem:[%s7 + $0x8c] sm:$0xf]
    %v351 = vld [vmem:[%s7 + $0x90] sm:$0xff]
    %v352 = vld [vmem:[%s7 + $0x98] sm:$0xf]
    %v353 = vld [vmem:[%s7 + $0x9c] sm:$0xff]
    %v354 = vld [vmem:[%s7 + $0xa4] sm:$0xf]
    %v355 = vld [vmem:[%s7 + $0xa8] sm:$0xff]
    %v356 = vld [vmem:[%s7 + $0xb0] sm:$0xf]
    %v357 = vld [vmem:[%s7 + $0xb4] sm:$0xff]
    %v358 = vld [vmem:[%s7 + $0xbc] sm:$0xf]
    %v359 = vld [vmem:[%s14] ss:$8 sm:$0x7]
    %v360 = vpack.c.bf16 %v312, %v311
    %v361 = vpack.c.bf16 %v314, %v313
    %v362 = vpack.c.bf16 %v316, %v315
    %v363 = vpack.c.bf16 %v318, %v317
    %v364 = vpack.c.bf16 %v320, %v319
    %v365 = vpack.c.bf16 %v322, %v321
    %v366 = vpack.c.bf16 %v324, %v323
    %v367 = vpack.c.bf16 %v326, %v325
    %v369 = vlaneseq
    %v370 = vshrl.u32 %v369, 7
    %v371 = vsub.s32 0, %v370
    %v372 = vrot.slane %v359, %v371
    %v373 = vlaneseq
    %v374 = vshrl.u32 %v373, 7
    %v375 = vsub.s32 1, %v374
    %v376 = vrot.slane %v359, %v375
    %v377 = vlaneseq
    %v378 = vshrl.u32 %v377, 7
    %v379 = vsub.s32 2, %v378
    %v380 = vrot.slane %v359, %v379
    %v416 = vunpack.c.l.b16 %v327
    %v417 = vunpack.c.h.b16 %v327
    %v418 = vunpack.c.l.b16 %v328
    %v419 = vunpack.c.l.b16 %v329
    %v420 = vunpack.c.h.b16 %v329
    %v421 = vunpack.c.l.b16 %v330
    %v422 = vunpack.c.l.b16 %v331
    %v423 = vunpack.c.h.b16 %v331
    %v424 = vunpack.c.l.b16 %v332
    %v425 = vunpack.c.l.b16 %v333
    %v426 = vunpack.c.h.b16 %v333
    %v427 = vunpack.c.l.b16 %v334
    %v428 = vunpack.c.l.b16 %v335
    %v429 = vunpack.c.h.b16 %v335
    %v430 = vunpack.c.l.b16 %v336
    %v431 = vunpack.c.l.b16 %v337
    %v432 = vunpack.c.h.b16 %v337
    %v433 = vunpack.c.l.b16 %v338
    %v434 = vunpack.c.l.b16 %v339
    %v435 = vunpack.c.h.b16 %v339
    %v436 = vunpack.c.l.b16 %v340
    %v437 = vunpack.c.l.b16 %v341
    %v438 = vunpack.c.h.b16 %v341
    %v439 = vunpack.c.l.b16 %v342
    %v440 = vunpack.c.l.b16 %v343
    %v441 = vunpack.c.h.b16 %v343
    %v442 = vunpack.c.l.b16 %v344
    %v443 = vunpack.c.l.b16 %v345
    %v444 = vunpack.c.h.b16 %v345
    %v445 = vunpack.c.l.b16 %v346
    %v446 = vunpack.c.l.b16 %v347
    %v447 = vunpack.c.h.b16 %v347
    %v448 = vunpack.c.l.b16 %v348
    %v449 = vunpack.c.l.b16 %v349
    %v450 = vunpack.c.h.b16 %v349
    %v451 = vunpack.c.l.b16 %v350
    %v452 = vunpack.c.l.b16 %v351
    %v453 = vunpack.c.h.b16 %v351
    %v454 = vunpack.c.l.b16 %v352
    %v455 = vunpack.c.l.b16 %v353
    %v456 = vunpack.c.h.b16 %v353
    %v457 = vunpack.c.l.b16 %v354
    %v458 = vunpack.c.l.b16 %v355
    %v459 = vunpack.c.h.b16 %v355
    %v460 = vunpack.c.l.b16 %v356
    %v461 = vunpack.c.l.b16 %v357
    %v462 = vunpack.c.h.b16 %v357
    %v463 = vunpack.c.l.b16 %v358
    %v464 = vpack.c.b16 %v419, %v416
    %v465 = vpack.c.b16 %v420, %v417
    %v466 = vpack.c.b16 %v421, %v418
    %v467 = vpack.c.b16 %v425, %v422
    %v468 = vpack.c.b16 %v426, %v423
    %v469 = vpack.c.b16 %v427, %v424
    %v470 = vpack.c.b16 %v431, %v428
    %v471 = vpack.c.b16 %v432, %v429
    %v472 = vpack.c.b16 %v433, %v430
    %v473 = vpack.c.b16 %v437, %v434
    %v474 = vpack.c.b16 %v438, %v435
    %v475 = vpack.c.b16 %v439, %v436
    %v476 = vpack.c.b16 %v443, %v440
    %v477 = vpack.c.b16 %v444, %v441
    %v478 = vpack.c.b16 %v445, %v442
    %v479 = vpack.c.b16 %v449, %v446
    %v480 = vpack.c.b16 %v450, %v447
    %v481 = vpack.c.b16 %v451, %v448
    %v482 = vpack.c.b16 %v455, %v452
    %v483 = vpack.c.b16 %v456, %v453
    %v484 = vpack.c.b16 %v457, %v454
    %v485 = vpack.c.b16 %v461, %v458
    %v486 = vpack.c.b16 %v462, %v459
    %v487 = vpack.c.b16 %v463, %v460
    %512 = vmatprep.subr.bf16.mxu0 %v486
    %513 = vmatpush1.bf16.msra.mxu0 %v485
    %514 = vmatprep.subr.bf16.mxu0 %v483
    %515 = vmatpush1.bf16.msra.mxu0 %v482
    %516 = vmatprep.subr.bf16.mxu0 %v480
    %517 = vmatpush1.bf16.msra.mxu0 %v479
    %518 = vmatprep.subr.bf16.mxu0 %v477
    %519 = vmatpush1.bf16.msra.mxu0 %v476
    %520 = vmatprep.subr.bf16.mxu0 %v474
    %521 = vmatpush1.bf16.msra.mxu0 %v473
    %522 = vmatprep.subr.bf16.mxu0 %v471
    %523 = vmatpush1.bf16.msra.mxu0 %v470
    %524 = vmatprep.subr.bf16.mxu0 %v468
    %525 = vmatpush1.bf16.msra.mxu0 %v467
    %526 = vmatprep.subr.bf16.mxu0 %v465
    %527 = vmatpush1.bf16.msra.mxu0 %v464
    %528 = vmatprep.subr.bf16.mxu0 0
    %529 = vmatpush2.bf16.msra.mxu0 0
    %530 = vmatprep.subr.bf16.mxu0 0
    %531 = vmatpush2.bf16.msra.mxu0 0
    %532 = vmatprep.subr.bf16.mxu0 0
    %533 = vmatpush2.bf16.msra.mxu0 0
    %534 = vmatprep.subr.bf16.mxu0 0
    %535 = vmatpush2.bf16.msra.mxu0 0
    %536 = vmatprep.subr.bf16.mxu0 0
    %537 = vmatpush2.bf16.msra.mxu0 0
    %538 = vmatprep.subr.bf16.mxu0 0
    %539 = vmatpush2.bf16.msra.mxu0 0
    %540 = vmatprep.subr.bf16.mxu0 0
    %541 = vmatpush2.bf16.msra.mxu0 0
    %542 = vmatprep.subr.bf16.mxu0 0
    %543 = vmatpush2.bf16.msra.mxu0 0
    %544 = vmatprep.mubr.bf16.mxu0 0
    %545 = vmatmul.mubr.bf16.gmra.mxu0 %v360
    %v546 = vpop.f32.mrf.mxu0
    %v547 = vadd.f32 %v372, %v546
    %v548 = vpop.f32.mrf.mxu0
    %v549 = vadd.f32 %v376, %v548
    %v550 = vpop.f32.mrf.mxu0
    %v551 = vadd.f32 %v372, %v550
    %v552 = vpop.f32.mrf.mxu0
    %v553 = vadd.f32 %v376, %v552
    %554 = vmatprep.mubr.bf16.mxu0 0
    %555 = vmatmul.mubr.bf16.gmra.mxu0 %v361
    %v556 = vpop.f32.mrf.mxu0
    %v557 = vadd.f32 %v372, %v556
    %v558 = vpop.f32.mrf.mxu0
    %v559 = vadd.f32 %v376, %v558
    %v560 = vpop.f32.mrf.mxu0
    %v561 = vadd.f32 %v372, %v560
    %v562 = vpop.f32.mrf.mxu0
    %v563 = vadd.f32 %v376, %v562
    %564 = vmatprep.mubr.bf16.mxu0 0
    %565 = vmatmul.mubr.bf16.gmra.mxu0 %v362
    %v566 = vpop.f32.mrf.mxu0
    %v567 = vadd.f32 %v372, %v566
    %v568 = vpop.f32.mrf.mxu0
    %v569 = vadd.f32 %v376, %v568
    %v570 = vpop.f32.mrf.mxu0
    %v571 = vadd.f32 %v372, %v570
    %v572 = vpop.f32.mrf.mxu0
    %v573 = vadd.f32 %v376, %v572
    %574 = vmatprep.mubr.bf16.mxu0 0
    %575 = vmatmul.mubr.bf16.gmra.mxu0 %v363
    %v576 = vpop.f32.mrf.mxu0
    %v577 = vadd.f32 %v372, %v576
    %v578 = vpop.f32.mrf.mxu0
    %v579 = vadd.f32 %v376, %v578
    %v580 = vpop.f32.mrf.mxu0
    %v581 = vadd.f32 %v372, %v580
    %v582 = vpop.f32.mrf.mxu0
    %v583 = vadd.f32 %v376, %v582
    %584 = vmatprep.mubr.bf16.mxu0 0
    %585 = vmatmul.mubr.bf16.gmra.mxu0 %v364
    %v586 = vpop.f32.mrf.mxu0
    %v587 = vadd.f32 %v372, %v586
    %v588 = vpop.f32.mrf.mxu0
    %v589 = vadd.f32 %v376, %v588
    %v590 = vpop.f32.mrf.mxu0
    %v591 = vadd.f32 %v372, %v590
    %v592 = vpop.f32.mrf.mxu0
    %v593 = vadd.f32 %v376, %v592
    %594 = vmatprep.mubr.bf16.mxu0 0
    %595 = vmatmul.mubr.bf16.gmra.mxu0 %v365
    %v596 = vpop.f32.mrf.mxu0
    %v597 = vadd.f32 %v372, %v596
    %v598 = vpop.f32.mrf.mxu0
    %v599 = vadd.f32 %v376, %v598
    %v600 = vpop.f32.mrf.mxu0
    %v601 = vadd.f32 %v372, %v600
    %v602 = vpop.f32.mrf.mxu0
    %v603 = vadd.f32 %v376, %v602
    %604 = vmatprep.mubr.bf16.mxu0 0
    %605 = vmatmul.mubr.bf16.gmra.mxu0 %v366
    %v606 = vpop.f32.mrf.mxu0
    %v607 = vadd.f32 %v372, %v606
    %v608 = vpop.f32.mrf.mxu0
    %v609 = vadd.f32 %v376, %v608
    %v610 = vpop.f32.mrf.mxu0
    %v611 = vadd.f32 %v372, %v610
    %v612 = vpop.f32.mrf.mxu0
    %v613 = vadd.f32 %v376, %v612
    %614 = vmatprep.mubr.bf16.mxu0 0
    %615 = vmatmul.mubr.bf16.gmra.mxu0 %v367
    %v616 = vpop.f32.mrf.mxu0
    %v617 = vadd.f32 %v372, %v616
    %v618 = vpop.f32.mrf.mxu0
    %v619 = vadd.f32 %v376, %v618
    %v620 = vpop.f32.mrf.mxu0
    %v621 = vadd.f32 %v372, %v620
    %v622 = vpop.f32.mrf.mxu0
    %v623 = vadd.f32 %v376, %v622
    %624 = vdwg.mxu0
    %625 = vmatprep.subr.bf16.mxu0 0
    %626 = vmatpush1.bf16.msra.mxu0 %v487
    %627 = vmatprep.subr.bf16.mxu0 0
    %628 = vmatpush1.bf16.msra.mxu0 %v484
    %629 = vmatprep.subr.bf16.mxu0 0
    %630 = vmatpush1.bf16.msra.mxu0 %v481
    %631 = vmatprep.subr.bf16.mxu0 0
    %632 = vmatpush1.bf16.msra.mxu0 %v478
    %633 = vmatprep.subr.bf16.mxu0 0
    %634 = vmatpush1.bf16.msra.mxu0 %v475
    %635 = vmatprep.subr.bf16.mxu0 0
    %636 = vmatpush1.bf16.msra.mxu0 %v472
    %637 = vmatprep.subr.bf16.mxu0 0
    %638 = vmatpush1.bf16.msra.mxu0 %v469
    %639 = vmatprep.subr.bf16.mxu0 0
    %640 = vmatpush1.bf16.msra.mxu0 %v466
    %641 = vmatprep.subr.bf16.mxu0 0
    %642 = vmatpush2.bf16.msra.mxu0 0
    %643 = vmatprep.subr.bf16.mxu0 0
    %644 = vmatpush2.bf16.msra.mxu0 0
    %645 = vmatprep.subr.bf16.mxu0 0
    %646 = vmatpush2.bf16.msra.mxu0 0
    %647 = vmatprep.subr.bf16.mxu0 0
    %648 = vmatpush2.bf16.msra.mxu0 0
    %649 = vmatprep.subr.bf16.mxu0 0
    %650 = vmatpush2.bf16.msra.mxu0 0
    %651 = vmatprep.subr.bf16.mxu0 0
    %652 = vmatpush2.bf16.msra.mxu0 0
    %653 = vmatprep.subr.bf16.mxu0 0
    %654 = vmatpush2.bf16.msra.mxu0 0
    %655 = vmatprep.subr.bf16.mxu0 0
    %656 = vmatpush2.bf16.msra.mxu0 0
    %657 = vmatprep.mubr.bf16.mxu0 0
    %658 = vmatmul.mubr.bf16.gmra.mxu0 %v360
    %v659 = vpop.f32.mrf.mxu0
    %v660 = vadd.f32 %v380, %v659
    %v661 = vpop.f32.mrf.mxu0
    %v662 = vpop.f32.mrf.mxu0
    %v663 = vadd.f32 %v380, %v662
    %v664 = vpop.f32.mrf.mxu0
    %665 = vmatprep.mubr.bf16.mxu0 0
    %666 = vmatmul.mubr.bf16.gmra.mxu0 %v361
    %v667 = vpop.f32.mrf.mxu0
    %v668 = vadd.f32 %v380, %v667
    %v669 = vpop.f32.mrf.mxu0
    %v670 = vpop.f32.mrf.mxu0
    %v671 = vadd.f32 %v380, %v670
    %v672 = vpop.f32.mrf.mxu0
    %673 = vmatprep.mubr.bf16.mxu0 0
    %674 = vmatmul.mubr.bf16.gmra.mxu0 %v362
    %v675 = vpop.f32.mrf.mxu0
    %v676 = vadd.f32 %v380, %v675
    %v677 = vpop.f32.mrf.mxu0
    %v678 = vpop.f32.mrf.mxu0
    %v679 = vadd.f32 %v380, %v678
    %v680 = vpop.f32.mrf.mxu0
    %681 = vmatprep.mubr.bf16.mxu0 0
    %682 = vmatmul.mubr.bf16.gmra.mxu0 %v363
    %v683 = vpop.f32.mrf.mxu0
    %v684 = vadd.f32 %v380, %v683
    %v685 = vpop.f32.mrf.mxu0
    %v686 = vpop.f32.mrf.mxu0
    %v687 = vadd.f32 %v380, %v686
    %v688 = vpop.f32.mrf.mxu0
    %689 = vmatprep.mubr.bf16.mxu0 0
    %690 = vmatmul.mubr.bf16.gmra.mxu0 %v364
    %v691 = vpop.f32.mrf.mxu0
    %v692 = vadd.f32 %v380, %v691
    %v693 = vpop.f32.mrf.mxu0
    %v694 = vpop.f32.mrf.mxu0
    %v695 = vadd.f32 %v380, %v694
    %v696 = vpop.f32.mrf.mxu0
    %697 = vmatprep.mubr.bf16.mxu0 0
    %698 = vmatmul.mubr.bf16.gmra.mxu0 %v365
    %v699 = vpop.f32.mrf.mxu0
    %v700 = vadd.f32 %v380, %v699
    %v701 = vpop.f32.mrf.mxu0
    %v702 = vpop.f32.mrf.mxu0
    %v703 = vadd.f32 %v380, %v702
    %v704 = vpop.f32.mrf.mxu0
    %705 = vmatprep.mubr.bf16.mxu0 0
    %706 = vmatmul.mubr.bf16.gmra.mxu0 %v366
    %v707 = vpop.f32.mrf.mxu0
    %v708 = vadd.f32 %v380, %v707
    %v709 = vpop.f32.mrf.mxu0
    %v710 = vpop.f32.mrf.mxu0
    %v711 = vadd.f32 %v380, %v710
    %v712 = vpop.f32.mrf.mxu0
    %713 = vmatprep.mubr.bf16.mxu0 0
    %714 = vmatmul.mubr.bf16.gmra.mxu0 %v367
    %v715 = vpop.f32.mrf.mxu0
    %v716 = vadd.f32 %v380, %v715
    %v717 = vpop.f32.mrf.mxu0
    %v718 = vpop.f32.mrf.mxu0
    %v719 = vadd.f32 %v380, %v718
    %v720 = vpop.f32.mrf.mxu0
    %721 = vdwg.mxu0
    %v722 = vld [vmem:[%s3] sm:$0xff]
    %v723 = vld [vmem:[%s3 + $0x10] sm:$0xff]
    %v724 = vld [vmem:[%s3 + $0x20] sm:$0xff]
    %v725 = vld [vmem:[%s3 + $0x30] sm:$0xff]
    %v726 = vld [vmem:[%s3 + $0x40] sm:$0xff]
    %v727 = vld [vmem:[%s3 + $0x50] sm:$0xff]
    %v728 = vld [vmem:[%s3 + $0x60] sm:$0xff]
    %v729 = vld [vmem:[%s3 + $0x70] sm:$0xff]
    %v730 = vld [vmem:[%s3 + $0x80] sm:$0xff]
    %v731 = vld [vmem:[%s3 + $0x90] sm:$0xff]
    %v732 = vld [vmem:[%s3 + $0xa0] sm:$0xff]
    %v733 = vld [vmem:[%s3 + $0xb0] sm:$0xff]
    %v734 = vld [vmem:[%s3 + $0xc0] sm:$0xff]
    %v735 = vld [vmem:[%s3 + $0xd0] sm:$0xff]
    %v736 = vld [vmem:[%s3 + $0xe0] sm:$0xff]
    %v737 = vld [vmem:[%s3 + $0xf0] sm:$0xff]
    %v738 = vmul.f32 %v547, %v722
    %v739 = vmul.f32 %v551, %v723
    %v740 = vmul.f32 %v557, %v724
    %v741 = vmul.f32 %v561, %v725
    %v742 = vmul.f32 %v567, %v726
    %v743 = vmul.f32 %v571, %v727
    %v744 = vmul.f32 %v577, %v728
    %v745 = vmul.f32 %v581, %v729
    %v746 = vmul.f32 %v587, %v730
    %v747 = vmul.f32 %v591, %v731
    %v748 = vmul.f32 %v597, %v732
    %v749 = vmul.f32 %v601, %v733
    %v750 = vmul.f32 %v607, %v734
    %v751 = vmul.f32 %v611, %v735
    %v752 = vmul.f32 %v617, %v736
    %v753 = vmul.f32 %v621, %v737
    %754 = vrot.lane.b32.xlu0 %v547, 64
    %v755 = vpop.permute.xlu0 %754
    %756 = vrot.lane.b32.xlu0 %v551, 64
    %v757 = vpop.permute.xlu0 %756
    %758 = vrot.lane.b32.xlu0 %v557, 64
    %v759 = vpop.permute.xlu0 %758
    %760 = vrot.lane.b32.xlu0 %v561, 64
    %v761 = vpop.permute.xlu0 %760
    %762 = vrot.lane.b32.xlu0 %v567, 64
    %v763 = vpop.permute.xlu0 %762
    %764 = vrot.lane.b32.xlu0 %v571, 64
    %v765 = vpop.permute.xlu0 %764
    %766 = vrot.lane.b32.xlu0 %v577, 64
    %v767 = vpop.permute.xlu0 %766
    %768 = vrot.lane.b32.xlu0 %v581, 64
    %v769 = vpop.permute.xlu0 %768
    %770 = vrot.lane.b32.xlu0 %v587, 64
    %v771 = vpop.permute.xlu0 %770
    %772 = vrot.lane.b32.xlu0 %v591, 64
    %v773 = vpop.permute.xlu0 %772
    %774 = vrot.lane.b32.xlu0 %v597, 64
    %v775 = vpop.permute.xlu0 %774
    %776 = vrot.lane.b32.xlu0 %v601, 64
    %v777 = vpop.permute.xlu0 %776
    %778 = vrot.lane.b32.xlu0 %v607, 64
    %v779 = vpop.permute.xlu0 %778
    %780 = vrot.lane.b32.xlu0 %v611, 64
    %v781 = vpop.permute.xlu0 %780
    %782 = vrot.lane.b32.xlu0 %v617, 64
    %v783 = vpop.permute.xlu0 %782
    %784 = vrot.lane.b32.xlu0 %v621, 64
    %v785 = vpop.permute.xlu0 %784
    %v786 = vld [vmem:[%s3 + $0x8] sm:$0xff]
    %v787 = vld [vmem:[%s3 + $0x18] sm:$0xff]
    %v788 = vld [vmem:[%s3 + $0x28] sm:$0xff]
    %v789 = vld [vmem:[%s3 + $0x38] sm:$0xff]
    %v790 = vld [vmem:[%s3 + $0x48] sm:$0xff]
    %v791 = vld [vmem:[%s3 + $0x58] sm:$0xff]
    %v792 = vld [vmem:[%s3 + $0x68] sm:$0xff]
    %v793 = vld [vmem:[%s3 + $0x78] sm:$0xff]
    %v794 = vld [vmem:[%s3 + $0x88] sm:$0xff]
    %v795 = vld [vmem:[%s3 + $0x98] sm:$0xff]
    %v796 = vld [vmem:[%s3 + $0xa8] sm:$0xff]
    %v797 = vld [vmem:[%s3 + $0xb8] sm:$0xff]
    %v798 = vld [vmem:[%s3 + $0xc8] sm:$0xff]
    %v799 = vld [vmem:[%s3 + $0xd8] sm:$0xff]
    %v800 = vld [vmem:[%s3 + $0xe8] sm:$0xff]
    %v801 = vld [vmem:[%s3 + $0xf8] sm:$0xff]
    %v802 = vmul.f32 %v755, %v786
    %v803 = vmul.f32 %v757, %v787
    %v804 = vmul.f32 %v759, %v788
    %v805 = vmul.f32 %v761, %v789
    %v806 = vmul.f32 %v763, %v790
    %v807 = vmul.f32 %v765, %v791
    %v808 = vmul.f32 %v767, %v792
    %v809 = vmul.f32 %v769, %v793
    %v810 = vmul.f32 %v771, %v794
    %v811 = vmul.f32 %v773, %v795
    %v812 = vmul.f32 %v775, %v796
    %v813 = vmul.f32 %v777, %v797
    %v814 = vmul.f32 %v779, %v798
    %v815 = vmul.f32 %v781, %v799
    %v816 = vmul.f32 %v783, %v800
    %v817 = vmul.f32 %v785, %v801
    %v818 = vadd.f32 %v738, %v802
    %v819 = vadd.f32 %v739, %v803
    %v820 = vadd.f32 %v740, %v804
    %v821 = vadd.f32 %v741, %v805
    %v822 = vadd.f32 %v742, %v806
    %v823 = vadd.f32 %v743, %v807
    %v824 = vadd.f32 %v744, %v808
    %v825 = vadd.f32 %v745, %v809
    %v826 = vadd.f32 %v746, %v810
    %v827 = vadd.f32 %v747, %v811
    %v828 = vadd.f32 %v748, %v812
    %v829 = vadd.f32 %v749, %v813
    %v830 = vadd.f32 %v750, %v814
    %v831 = vadd.f32 %v751, %v815
    %v832 = vadd.f32 %v752, %v816
    %v833 = vadd.f32 %v753, %v817
    %v834 = vmul.f32 %v549, %v722
    %v835 = vmul.f32 %v553, %v723
    %v836 = vmul.f32 %v559, %v724
    %v837 = vmul.f32 %v563, %v725
    %v838 = vmul.f32 %v569, %v726
    %v839 = vmul.f32 %v573, %v727
    %v840 = vmul.f32 %v579, %v728
    %v841 = vmul.f32 %v583, %v729
    %v842 = vmul.f32 %v589, %v730
    %v843 = vmul.f32 %v593, %v731
    %v844 = vmul.f32 %v599, %v732
    %v845 = vmul.f32 %v603, %v733
    %v846 = vmul.f32 %v609, %v734
    %v847 = vmul.f32 %v613, %v735
    %v848 = vmul.f32 %v619, %v736
    %v849 = vmul.f32 %v623, %v737
    %850 = vrot.lane.b32.xlu0 %v549, 64
    %v851 = vpop.permute.xlu0 %850
    %852 = vrot.lane.b32.xlu0 %v553, 64
    %v853 = vpop.permute.xlu0 %852
    %854 = vrot.lane.b32.xlu0 %v559, 64
    %v855 = vpop.permute.xlu0 %854
    %856 = vrot.lane.b32.xlu0 %v563, 64
    %v857 = vpop.permute.xlu0 %856
    %858 = vrot.lane.b32.xlu0 %v569, 64
    %v859 = vpop.permute.xlu0 %858
    %860 = vrot.lane.b32.xlu0 %v573, 64
    %v861 = vpop.permute.xlu0 %860
    %862 = vrot.lane.b32.xlu0 %v579, 64
    %v863 = vpop.permute.xlu0 %862
    %864 = vrot.lane.b32.xlu0 %v583, 64
    %v865 = vpop.permute.xlu0 %864
    %866 = vrot.lane.b32.xlu0 %v589, 64
    %v867 = vpop.permute.xlu0 %866
    %868 = vrot.lane.b32.xlu0 %v593, 64
    %v869 = vpop.permute.xlu0 %868
    %870 = vrot.lane.b32.xlu0 %v599, 64
    %v871 = vpop.permute.xlu0 %870
    %872 = vrot.lane.b32.xlu0 %v603, 64
    %v873 = vpop.permute.xlu0 %872
    %874 = vrot.lane.b32.xlu0 %v609, 64
    %v875 = vpop.permute.xlu0 %874
    %876 = vrot.lane.b32.xlu0 %v613, 64
    %v877 = vpop.permute.xlu0 %876
    %878 = vrot.lane.b32.xlu0 %v619, 64
    %v879 = vpop.permute.xlu0 %878
    %880 = vrot.lane.b32.xlu0 %v623, 64
    %v881 = vpop.permute.xlu0 %880
    %v882 = vmul.f32 %v851, %v786
    %v883 = vmul.f32 %v853, %v787
    %v884 = vmul.f32 %v855, %v788
    %v885 = vmul.f32 %v857, %v789
    %v886 = vmul.f32 %v859, %v790
    %v887 = vmul.f32 %v861, %v791
    %v888 = vmul.f32 %v863, %v792
    %v889 = vmul.f32 %v865, %v793
    %v890 = vmul.f32 %v867, %v794
    %v891 = vmul.f32 %v869, %v795
    %v892 = vmul.f32 %v871, %v796
    %v893 = vmul.f32 %v873, %v797
    %v894 = vmul.f32 %v875, %v798
    %v895 = vmul.f32 %v877, %v799
    %v896 = vmul.f32 %v879, %v800
    %v897 = vmul.f32 %v881, %v801
    %v898 = vadd.f32 %v834, %v882
    %v899 = vadd.f32 %v835, %v883
    %v900 = vadd.f32 %v836, %v884
    %v901 = vadd.f32 %v837, %v885
    %v902 = vadd.f32 %v838, %v886
    %v903 = vadd.f32 %v839, %v887
    %v904 = vadd.f32 %v840, %v888
    %v905 = vadd.f32 %v841, %v889
    %v906 = vadd.f32 %v842, %v890
    %v907 = vadd.f32 %v843, %v891
    %v908 = vadd.f32 %v844, %v892
    %v909 = vadd.f32 %v845, %v893
    %v910 = vadd.f32 %v846, %v894
    %v911 = vadd.f32 %v847, %v895
    %v912 = vadd.f32 %v848, %v896
    %v913 = vadd.f32 %v849, %v897
    %v914 = vpack.c.bf16 %v819, %v818
    %v915 = vpack.c.bf16 %v821, %v820
    %v916 = vpack.c.bf16 %v823, %v822
    %v917 = vpack.c.bf16 %v825, %v824
    %v918 = vpack.c.bf16 %v827, %v826
    %v919 = vpack.c.bf16 %v829, %v828
    %v920 = vpack.c.bf16 %v831, %v830
    %v921 = vpack.c.bf16 %v833, %v832
    %v922 = vpack.c.bf16 %v899, %v898
    %v923 = vpack.c.bf16 %v901, %v900
    %v924 = vpack.c.bf16 %v903, %v902
    %v925 = vpack.c.bf16 %v905, %v904
    %v926 = vpack.c.bf16 %v907, %v906
    %v927 = vpack.c.bf16 %v909, %v908
    %v928 = vpack.c.bf16 %v911, %v910
    %v929 = vpack.c.bf16 %v913, %v912
    %v930 = vld [vmem:[%s5] sm:$0xff]
    %v931 = vld [vmem:[%s5 + $0x8] sm:$0xff]
    %v932 = vld [vmem:[%s5 + $0x10] sm:$0xff]
    %v933 = vld [vmem:[%s5 + $0x18] sm:$0xff]
    %v934 = vld [vmem:[%s5 + $0x20] sm:$0xff]
    %v935 = vld [vmem:[%s5 + $0x28] sm:$0xff]
    %v936 = vld [vmem:[%s5 + $0x30] sm:$0xff]
    %v937 = vld [vmem:[%s5 + $0x38] sm:$0xff]
    %v938 = vld [vmem:[%s5 + $0x40] sm:$0xff]
    %v939 = vld [vmem:[%s5 + $0x48] sm:$0xff]
    %v940 = vld [vmem:[%s5 + $0x50] sm:$0xff]
    %v941 = vld [vmem:[%s5 + $0x58] sm:$0xff]
    %v942 = vld [vmem:[%s5 + $0x60] sm:$0xff]
    %v943 = vld [vmem:[%s5 + $0x68] sm:$0xff]
    %v944 = vld [vmem:[%s5 + $0x70] sm:$0xff]
    %v945 = vld [vmem:[%s5 + $0x78] sm:$0xff]
    %946 = vmatprep.subr.bf16.mxu0 0
    %947 = vmatpush1.bf16.xpose.msra.mxu0 %v929
    %948 = vmatprep.subr.bf16.mxu0 0
    %949 = vmatpush1.bf16.xpose.msra.mxu0 %v928
    %950 = vmatprep.subr.bf16.mxu0 0
    %951 = vmatpush1.bf16.xpose.msra.mxu0 %v927
    %952 = vmatprep.subr.bf16.mxu0 0
    %953 = vmatpush1.bf16.xpose.msra.mxu0 %v926
    %954 = vmatprep.subr.bf16.mxu0 0
    %955 = vmatpush1.bf16.xpose.msra.mxu0 %v925
    %956 = vmatprep.subr.bf16.mxu0 0
    %957 = vmatpush1.bf16.xpose.msra.mxu0 %v924
    %958 = vmatprep.subr.bf16.mxu0 0
    %959 = vmatpush1.bf16.xpose.msra.mxu0 %v923
    %960 = vmatprep.subr.bf16.mxu0 0
    %961 = vmatpush1.bf16.xpose.msra.mxu0 %v922
    %962 = vmatprep.subr.bf16.mxu0 0
    %963 = vmatpush2.bf16.xpose.msra.mxu0 0
    %964 = vmatprep.subr.bf16.mxu0 0
    %965 = vmatpush2.bf16.xpose.msra.mxu0 0
    %966 = vmatprep.subr.bf16.mxu0 0
    %967 = vmatpush2.bf16.xpose.msra.mxu0 0
    %968 = vmatprep.subr.bf16.mxu0 0
    %969 = vmatpush2.bf16.xpose.msra.mxu0 0
    %970 = vmatprep.subr.bf16.mxu0 0
    %971 = vmatpush2.bf16.xpose.msra.mxu0 0
    %972 = vmatprep.subr.bf16.mxu0 0
    %973 = vmatpush2.bf16.xpose.msra.mxu0 0
    %974 = vmatprep.subr.bf16.mxu0 0
    %975 = vmatpush2.bf16.xpose.msra.mxu0 0
    %976 = vmatprep.subr.bf16.mxu0 0
    %977 = vmatpush2.bf16.xpose.msra.mxu0 0
    %978 = vmatprep.mubr.bf16.mxu0 0
    %979 = vmatmul.mubr.bf16.gmra.mxu0 %v914
    %v980 = vpop.f32.mrf.mxu0
    %v981 = vadd.f32 %v930, %v980
    %v982 = vpop.f32.mrf.mxu0
    %v983 = vpop.f32.mrf.mxu0
    %v984 = vadd.f32 %v931, %v983
    %v985 = vpop.f32.mrf.mxu0
    %986 = vmatprep.mubr.bf16.mxu0 0
    %987 = vmatmul.mubr.bf16.gmra.mxu0 %v915
    %v988 = vpop.f32.mrf.mxu0
    %v989 = vadd.f32 %v932, %v988
    %v990 = vpop.f32.mrf.mxu0
    %v991 = vpop.f32.mrf.mxu0
    %v992 = vadd.f32 %v933, %v991
    %v993 = vpop.f32.mrf.mxu0
    %994 = vmatprep.mubr.bf16.mxu0 0
    %995 = vmatmul.mubr.bf16.gmra.mxu0 %v916
    %v996 = vpop.f32.mrf.mxu0
    %v997 = vadd.f32 %v934, %v996
    %v998 = vpop.f32.mrf.mxu0
    %v999 = vpop.f32.mrf.mxu0
    %v1000 = vadd.f32 %v935, %v999
    %v1001 = vpop.f32.mrf.mxu0
    %1002 = vmatprep.mubr.bf16.mxu0 0
    %1003 = vmatmul.mubr.bf16.gmra.mxu0 %v917
    %v1004 = vpop.f32.mrf.mxu0
    %v1005 = vadd.f32 %v936, %v1004
    %v1006 = vpop.f32.mrf.mxu0
    %v1007 = vpop.f32.mrf.mxu0
    %v1008 = vadd.f32 %v937, %v1007
    %v1009 = vpop.f32.mrf.mxu0
    %1010 = vmatprep.mubr.bf16.mxu0 0
    %1011 = vmatmul.mubr.bf16.gmra.mxu0 %v918
    %v1012 = vpop.f32.mrf.mxu0
    %v1013 = vadd.f32 %v938, %v1012
    %v1014 = vpop.f32.mrf.mxu0
    %v1015 = vpop.f32.mrf.mxu0
    %v1016 = vadd.f32 %v939, %v1015
    %v1017 = vpop.f32.mrf.mxu0
    %1018 = vmatprep.mubr.bf16.mxu0 0
    %1019 = vmatmul.mubr.bf16.gmra.mxu0 %v919
    %v1020 = vpop.f32.mrf.mxu0
    %v1021 = vadd.f32 %v940, %v1020
    %v1022 = vpop.f32.mrf.mxu0
    %v1023 = vpop.f32.mrf.mxu0
    %v1024 = vadd.f32 %v941, %v1023
    %v1025 = vpop.f32.mrf.mxu0
    %1026 = vmatprep.mubr.bf16.mxu0 0
    %1027 = vmatmul.mubr.bf16.gmra.mxu0 %v920
    %v1028 = vpop.f32.mrf.mxu0
    %v1029 = vadd.f32 %v942, %v1028
    %v1030 = vpop.f32.mrf.mxu0
    %v1031 = vpop.f32.mrf.mxu0
    %v1032 = vadd.f32 %v943, %v1031
    %v1033 = vpop.f32.mrf.mxu0
    %1034 = vmatprep.mubr.bf16.mxu0 0
    %1035 = vmatmul.mubr.bf16.gmra.mxu0 %v921
    %v1036 = vpop.f32.mrf.mxu0
    %v1037 = vadd.f32 %v944, %v1036
    %v1038 = vpop.f32.mrf.mxu0
    %v1039 = vpop.f32.mrf.mxu0
    %v1040 = vadd.f32 %v945, %v1039
    %v1041 = vpop.f32.mrf.mxu0
    %1042 = vdwg.mxu0
    %1043 = vmax.xlane.f32.xlu0 %v981
    %v1044 = vpop.xlane.xlu0 %1043
    %1045 = vmax.xlane.f32.xlu0 %v984
    %v1046 = vpop.xlane.xlu0 %1045
    %1047 = vmax.xlane.f32.xlu0 %v989
    %v1048 = vpop.xlane.xlu0 %1047
    %1049 = vmax.xlane.f32.xlu0 %v992
    %v1050 = vpop.xlane.xlu0 %1049
    %1051 = vmax.xlane.f32.xlu0 %v997
    %v1052 = vpop.xlane.xlu0 %1051
    %1053 = vmax.xlane.f32.xlu0 %v1000
    %v1054 = vpop.xlane.xlu0 %1053
    %1055 = vmax.xlane.f32.xlu0 %v1005
    %v1056 = vpop.xlane.xlu0 %1055
    %1057 = vmax.xlane.f32.xlu0 %v1008
    %v1058 = vpop.xlane.xlu0 %1057
    %1059 = vmax.xlane.f32.xlu0 %v1013
    %v1060 = vpop.xlane.xlu0 %1059
    %1061 = vmax.xlane.f32.xlu0 %v1016
    %v1062 = vpop.xlane.xlu0 %1061
    %1063 = vmax.xlane.f32.xlu0 %v1021
    %v1064 = vpop.xlane.xlu0 %1063
    %1065 = vmax.xlane.f32.xlu0 %v1024
    %v1066 = vpop.xlane.xlu0 %1065
    %1067 = vmax.xlane.f32.xlu0 %v1029
    %v1068 = vpop.xlane.xlu0 %1067
    %1069 = vmax.xlane.f32.xlu0 %v1032
    %v1070 = vpop.xlane.xlu0 %1069
    %1071 = vmax.xlane.f32.xlu0 %v1037
    %v1072 = vpop.xlane.xlu0 %1071
    %1073 = vmax.xlane.f32.xlu0 %v1040
    %v1074 = vpop.xlane.xlu0 %1073
    %v1075 = vsub.f32 %v981, %v1044
    %v1076 = vsub.f32 %v984, %v1046
    %v1077 = vsub.f32 %v989, %v1048
    %v1078 = vsub.f32 %v992, %v1050
    %v1079 = vsub.f32 %v997, %v1052
    %v1080 = vsub.f32 %v1000, %v1054
    %v1081 = vsub.f32 %v1005, %v1056
    %v1082 = vsub.f32 %v1008, %v1058
    %v1083 = vsub.f32 %v1013, %v1060
    %v1084 = vsub.f32 %v1016, %v1062
    %v1085 = vsub.f32 %v1021, %v1064
    %v1086 = vsub.f32 %v1024, %v1066
    %v1087 = vsub.f32 %v1029, %v1068
    %v1088 = vsub.f32 %v1032, %v1070
    %v1089 = vsub.f32 %v1037, %v1072
    %v1090 = vsub.f32 %v1040, %v1074
    %v1091 = vmul.f32 %v1075, 1.442695
    %v1092 = vpow.pop %v1091
    %v1093 = vmul.f32 %v1076, 1.442695
    %v1094 = vpow.pop %v1093
    %v1095 = vmul.f32 %v1077, 1.442695
    %v1096 = vpow.pop %v1095
    %v1097 = vmul.f32 %v1078, 1.442695
    %v1098 = vpow.pop %v1097
    %v1099 = vmul.f32 %v1079, 1.442695
    %v1100 = vpow.pop %v1099
    %v1101 = vmul.f32 %v1080, 1.442695
    %v1102 = vpow.pop %v1101
    %v1103 = vmul.f32 %v1081, 1.442695
    %v1104 = vpow.pop %v1103
    %v1105 = vmul.f32 %v1082, 1.442695
    %v1106 = vpow.pop %v1105
    %v1107 = vmul.f32 %v1083, 1.442695
    %v1108 = vpow.pop %v1107
    %v1109 = vmul.f32 %v1084, 1.442695
    %v1110 = vpow.pop %v1109
    %v1111 = vmul.f32 %v1085, 1.442695
    %v1112 = vpow.pop %v1111
    %v1113 = vmul.f32 %v1086, 1.442695
    %v1114 = vpow.pop %v1113
    %v1115 = vmul.f32 %v1087, 1.442695
    %v1116 = vpow.pop %v1115
    %v1117 = vmul.f32 %v1088, 1.442695
    %v1118 = vpow.pop %v1117
    %v1119 = vmul.f32 %v1089, 1.442695
    %v1120 = vpow.pop %v1119
    %v1121 = vmul.f32 %v1090, 1.442695
    %v1122 = vpow.pop %v1121
    %1123 = vadd.xlane.f32.xlu0 %v1092
    %v1124 = vpop.xlane.xlu0 %1123
    %1125 = vadd.xlane.f32.xlu0 %v1094
    %v1126 = vpop.xlane.xlu0 %1125
    %1127 = vadd.xlane.f32.xlu0 %v1096
    %v1128 = vpop.xlane.xlu0 %1127
    %1129 = vadd.xlane.f32.xlu0 %v1098
    %v1130 = vpop.xlane.xlu0 %1129
    %1131 = vadd.xlane.f32.xlu0 %v1100
    %v1132 = vpop.xlane.xlu0 %1131
    %1133 = vadd.xlane.f32.xlu0 %v1102
    %v1134 = vpop.xlane.xlu0 %1133
    %1135 = vadd.xlane.f32.xlu0 %v1104
    %v1136 = vpop.xlane.xlu0 %1135
    %1137 = vadd.xlane.f32.xlu0 %v1106
    %v1138 = vpop.xlane.xlu0 %1137
    %1139 = vadd.xlane.f32.xlu0 %v1108
    %v1140 = vpop.xlane.xlu0 %1139
    %1141 = vadd.xlane.f32.xlu0 %v1110
    %v1142 = vpop.xlane.xlu0 %1141
    %1143 = vadd.xlane.f32.xlu0 %v1112
    %v1144 = vpop.xlane.xlu0 %1143
    %1145 = vadd.xlane.f32.xlu0 %v1114
    %v1146 = vpop.xlane.xlu0 %1145
    %1147 = vadd.xlane.f32.xlu0 %v1116
    %v1148 = vpop.xlane.xlu0 %1147
    %1149 = vadd.xlane.f32.xlu0 %v1118
    %v1150 = vpop.xlane.xlu0 %1149
    %1151 = vadd.xlane.f32.xlu0 %v1120
    %v1152 = vpop.xlane.xlu0 %1151
    %1153 = vadd.xlane.f32.xlu0 %v1122
    %v1154 = vpop.xlane.xlu0 %1153
    %v1155 = vpack.c.bf16 %v1094, %v1092
    %v1156 = vpack.c.bf16 %v1098, %v1096
    %v1157 = vpack.c.bf16 %v1102, %v1100
    %v1158 = vpack.c.bf16 %v1106, %v1104
    %v1159 = vpack.c.bf16 %v1110, %v1108
    %v1160 = vpack.c.bf16 %v1114, %v1112
    %v1161 = vpack.c.bf16 %v1118, %v1116
    %v1162 = vpack.c.bf16 %v1122, %v1120
    %v1163 = vpack.c.bf16 %v663, %v660
    %v1164 = vpack.c.bf16 %v671, %v668
    %v1165 = vpack.c.bf16 %v679, %v676
    %v1166 = vpack.c.bf16 %v687, %v684
    %v1167 = vpack.c.bf16 %v695, %v692
    %v1168 = vpack.c.bf16 %v703, %v700
    %v1169 = vpack.c.bf16 %v711, %v708
    %v1170 = vpack.c.bf16 %v719, %v716
    %1171 = vmatprep.subr.bf16.mxu0 0
    %1172 = vmatpush1.bf16.msra.mxu0 %v1170
    %1173 = vmatprep.subr.bf16.mxu0 0
    %1174 = vmatpush1.bf16.msra.mxu0 %v1169
    %1175 = vmatprep.subr.bf16.mxu0 0
    %1176 = vmatpush1.bf16.msra.mxu0 %v1168
    %1177 = vmatprep.subr.bf16.mxu0 0
    %1178 = vmatpush1.bf16.msra.mxu0 %v1167
    %1179 = vmatprep.subr.bf16.mxu0 0
    %1180 = vmatpush1.bf16.msra.mxu0 %v1166
    %1181 = vmatprep.subr.bf16.mxu0 0
    %1182 = vmatpush1.bf16.msra.mxu0 %v1165
    %1183 = vmatprep.subr.bf16.mxu0 0
    %1184 = vmatpush1.bf16.msra.mxu0 %v1164
    %1185 = vmatprep.subr.bf16.mxu0 0
    %1186 = vmatpush1.bf16.msra.mxu0 %v1163
    %1187 = vmatprep.subr.bf16.mxu0 0
    %1188 = vmatpush2.bf16.msra.mxu0 0
    %1189 = vmatprep.subr.bf16.mxu0 0
    %1190 = vmatpush2.bf16.msra.mxu0 0
    %1191 = vmatprep.subr.bf16.mxu0 0
    %1192 = vmatpush2.bf16.msra.mxu0 0
    %1193 = vmatprep.subr.bf16.mxu0 0
    %1194 = vmatpush2.bf16.msra.mxu0 0
    %1195 = vmatprep.subr.bf16.mxu0 0
    %1196 = vmatpush2.bf16.msra.mxu0 0
    %1197 = vmatprep.subr.bf16.mxu0 0
    %1198 = vmatpush2.bf16.msra.mxu0 0
    %1199 = vmatprep.subr.bf16.mxu0 0
    %1200 = vmatpush2.bf16.msra.mxu0 0
    %1201 = vmatprep.subr.bf16.mxu0 0
    %1202 = vmatpush2.bf16.msra.mxu0 0
    %1203 = vmatprep.mubr.bf16.mxu0 0
    %1204 = vmatmul.mubr.bf16.gmra.mxu0 %v1155
    %v1205 = vpop.f32.mrf.mxu0
    %v1206 = vadd.f32 0.0, %v1205
    %v1207 = vpop.f32.mrf.mxu0
    %v1208 = vpop.f32.mrf.mxu0
    %v1209 = vadd.f32 0.0, %v1208
    %v1210 = vpop.f32.mrf.mxu0
    %1211 = vmatprep.mubr.bf16.mxu0 0
    %1212 = vmatmul.mubr.bf16.gmra.mxu0 %v1156
    %v1213 = vpop.f32.mrf.mxu0
    %v1214 = vadd.f32 0.0, %v1213
    %v1215 = vpop.f32.mrf.mxu0
    %v1216 = vpop.f32.mrf.mxu0
    %v1217 = vadd.f32 0.0, %v1216
    %v1218 = vpop.f32.mrf.mxu0
    %1219 = vmatprep.mubr.bf16.mxu0 0
    %1220 = vmatmul.mubr.bf16.gmra.mxu0 %v1157
    %v1221 = vpop.f32.mrf.mxu0
    %v1222 = vadd.f32 0.0, %v1221
    %v1223 = vpop.f32.mrf.mxu0
    %v1224 = vpop.f32.mrf.mxu0
    %v1225 = vadd.f32 0.0, %v1224
    %v1226 = vpop.f32.mrf.mxu0
    %1227 = vmatprep.mubr.bf16.mxu0 0
    %1228 = vmatmul.mubr.bf16.gmra.mxu0 %v1158
    %v1229 = vpop.f32.mrf.mxu0
    %v1230 = vadd.f32 0.0, %v1229
    %v1231 = vpop.f32.mrf.mxu0
    %v1232 = vpop.f32.mrf.mxu0
    %v1233 = vadd.f32 0.0, %v1232
    %v1234 = vpop.f32.mrf.mxu0
    %1235 = vmatprep.mubr.bf16.mxu0 0
    %1236 = vmatmul.mubr.bf16.gmra.mxu0 %v1159
    %v1237 = vpop.f32.mrf.mxu0
    %v1238 = vadd.f32 0.0, %v1237
    %v1239 = vpop.f32.mrf.mxu0
    %v1240 = vpop.f32.mrf.mxu0
    %v1241 = vadd.f32 0.0, %v1240
    %v1242 = vpop.f32.mrf.mxu0
    %1243 = vmatprep.mubr.bf16.mxu0 0
    %1244 = vmatmul.mubr.bf16.gmra.mxu0 %v1160
    %v1245 = vpop.f32.mrf.mxu0
    %v1246 = vadd.f32 0.0, %v1245
    %v1247 = vpop.f32.mrf.mxu0
    %v1248 = vpop.f32.mrf.mxu0
    %v1249 = vadd.f32 0.0, %v1248
    %v1250 = vpop.f32.mrf.mxu0
    %1251 = vmatprep.mubr.bf16.mxu0 0
    %1252 = vmatmul.mubr.bf16.gmra.mxu0 %v1161
    %v1253 = vpop.f32.mrf.mxu0
    %v1254 = vadd.f32 0.0, %v1253
    %v1255 = vpop.f32.mrf.mxu0
    %v1256 = vpop.f32.mrf.mxu0
    %v1257 = vadd.f32 0.0, %v1256
    %v1258 = vpop.f32.mrf.mxu0
    %1259 = vmatprep.mubr.bf16.mxu0 0
    %1260 = vmatmul.mubr.bf16.gmra.mxu0 %v1162
    %v1261 = vpop.f32.mrf.mxu0
    %v1262 = vadd.f32 0.0, %v1261
    %v1263 = vpop.f32.mrf.mxu0
    %v1264 = vpop.f32.mrf.mxu0
    %v1265 = vadd.f32 0.0, %v1264
    %v1266 = vpop.f32.mrf.mxu0
    %1267 = vdwg.mxu0
    %v1268 = vrcp.pop %v1124
    %v1269 = vrcp.pop %v1126
    %v1270 = vrcp.pop %v1128
    %v1271 = vrcp.pop %v1130
    %v1272 = vrcp.pop %v1132
    %v1273 = vrcp.pop %v1134
    %v1274 = vrcp.pop %v1136
    %v1275 = vrcp.pop %v1138
    %v1276 = vrcp.pop %v1140
    %v1277 = vrcp.pop %v1142
    %v1278 = vrcp.pop %v1144
    %v1279 = vrcp.pop %v1146
    %v1280 = vrcp.pop %v1148
    %v1281 = vrcp.pop %v1150
    %v1282 = vrcp.pop %v1152
    %v1283 = vrcp.pop %v1154
    %v1284 = vmul.f32 %v1206, %v1268
    %v1285 = vmul.f32 %v1209, %v1269
    %v1286 = vmul.f32 %v1214, %v1270
    %v1287 = vmul.f32 %v1217, %v1271
    %v1288 = vmul.f32 %v1222, %v1272
    %v1289 = vmul.f32 %v1225, %v1273
    %v1290 = vmul.f32 %v1230, %v1274
    %v1291 = vmul.f32 %v1233, %v1275
    %v1292 = vmul.f32 %v1238, %v1276
    %v1293 = vmul.f32 %v1241, %v1277
    %v1294 = vmul.f32 %v1246, %v1278
    %v1295 = vmul.f32 %v1249, %v1279
    %v1296 = vmul.f32 %v1254, %v1280
    %v1297 = vmul.f32 %v1257, %v1281
    %v1298 = vmul.f32 %v1262, %v1282
    %v1299 = vmul.f32 %v1265, %v1283
    %v1300 = vld [vmem:[%s8] sm:$0xf]
    %v1301 = vld [vmem:[%s8 + $0x4] sm:$0xf]
    %v1302 = vld [vmem:[%s8 + $0x8] sm:$0xf]
    %v1303 = vld [vmem:[%s8 + $0xc] sm:$0xf]
    %v1304 = vld [vmem:[%s8 + $0x10] sm:$0xf]
    %v1305 = vld [vmem:[%s8 + $0x14] sm:$0xf]
    %v1306 = vld [vmem:[%s8 + $0x18] sm:$0xf]
    %v1307 = vld [vmem:[%s8 + $0x1c] sm:$0xf]
    %v1308 = vld [vmem:[%s8 + $0x20] sm:$0xf]
    %v1309 = vld [vmem:[%s8 + $0x24] sm:$0xf]
    %v1310 = vld [vmem:[%s8 + $0x28] sm:$0xf]
    %v1311 = vld [vmem:[%s8 + $0x2c] sm:$0xf]
    %v1312 = vld [vmem:[%s8 + $0x30] sm:$0xf]
    %v1313 = vld [vmem:[%s8 + $0x34] sm:$0xf]
    %v1314 = vld [vmem:[%s8 + $0x38] sm:$0xf]
    %v1315 = vld [vmem:[%s8 + $0x3c] sm:$0xf]
    %v1316 = vld [vmem:[%s14 + $0x1] ss:$0 sm:$0xff]
    %v1317 = vpack.c.bf16 %v1285, %v1284
    %v1318 = vpack.c.bf16 %v1287, %v1286
    %v1319 = vpack.c.bf16 %v1289, %v1288
    %v1320 = vpack.c.bf16 %v1291, %v1290
    %v1321 = vpack.c.bf16 %v1293, %v1292
    %v1322 = vpack.c.bf16 %v1295, %v1294
    %v1323 = vpack.c.bf16 %v1297, %v1296
    %v1324 = vpack.c.bf16 %v1299, %v1298
    %v1341 = vunpack.c.l.b16 %v1300
    %v1342 = vunpack.c.l.b16 %v1301
    %v1343 = vunpack.c.l.b16 %v1302
    %v1344 = vunpack.c.l.b16 %v1303
    %v1345 = vunpack.c.l.b16 %v1304
    %v1346 = vunpack.c.l.b16 %v1305
    %v1347 = vunpack.c.l.b16 %v1306
    %v1348 = vunpack.c.l.b16 %v1307
    %v1349 = vunpack.c.l.b16 %v1308
    %v1350 = vunpack.c.l.b16 %v1309
    %v1351 = vunpack.c.l.b16 %v1310
    %v1352 = vunpack.c.l.b16 %v1311
    %v1353 = vunpack.c.l.b16 %v1312
    %v1354 = vunpack.c.l.b16 %v1313
    %v1355 = vunpack.c.l.b16 %v1314
    %v1356 = vunpack.c.l.b16 %v1315
    %v1357 = vpack.c.b16 %v1342, %v1341
    %v1358 = vpack.c.b16 %v1344, %v1343
    %v1359 = vpack.c.b16 %v1346, %v1345
    %v1360 = vpack.c.b16 %v1348, %v1347
    %v1361 = vpack.c.b16 %v1350, %v1349
    %v1362 = vpack.c.b16 %v1352, %v1351
    %v1363 = vpack.c.b16 %v1354, %v1353
    %v1364 = vpack.c.b16 %v1356, %v1355
    %1373 = vmatprep.subr.bf16.mxu0 0
    %1374 = vmatpush1.bf16.msra.mxu0 %v1364
    %1375 = vmatprep.subr.bf16.mxu0 0
    %1376 = vmatpush1.bf16.msra.mxu0 %v1363
    %1377 = vmatprep.subr.bf16.mxu0 0
    %1378 = vmatpush1.bf16.msra.mxu0 %v1362
    %1379 = vmatprep.subr.bf16.mxu0 0
    %1380 = vmatpush1.bf16.msra.mxu0 %v1361
    %1381 = vmatprep.subr.bf16.mxu0 0
    %1382 = vmatpush1.bf16.msra.mxu0 %v1360
    %1383 = vmatprep.subr.bf16.mxu0 0
    %1384 = vmatpush1.bf16.msra.mxu0 %v1359
    %1385 = vmatprep.subr.bf16.mxu0 0
    %1386 = vmatpush1.bf16.msra.mxu0 %v1358
    %1387 = vmatprep.subr.bf16.mxu0 0
    %1388 = vmatpush1.bf16.msra.mxu0 %v1357
    %1389 = vmatprep.subr.bf16.mxu0 0
    %1390 = vmatpush2.bf16.msra.mxu0 0
    %1391 = vmatprep.subr.bf16.mxu0 0
    %1392 = vmatpush2.bf16.msra.mxu0 0
    %1393 = vmatprep.subr.bf16.mxu0 0
    %1394 = vmatpush2.bf16.msra.mxu0 0
    %1395 = vmatprep.subr.bf16.mxu0 0
    %1396 = vmatpush2.bf16.msra.mxu0 0
    %1397 = vmatprep.subr.bf16.mxu0 0
    %1398 = vmatpush2.bf16.msra.mxu0 0
    %1399 = vmatprep.subr.bf16.mxu0 0
    %1400 = vmatpush2.bf16.msra.mxu0 0
    %1401 = vmatprep.subr.bf16.mxu0 0
    %1402 = vmatpush2.bf16.msra.mxu0 0
    %1403 = vmatprep.subr.bf16.mxu0 0
    %1404 = vmatpush2.bf16.msra.mxu0 0
    %1405 = vmatprep.mubr.bf16.mxu0 0
    %1406 = vmatmul.mubr.bf16.gmra.mxu0 %v1317
    %v1407 = vpop.f32.mrf.mxu0
    %v1408 = vadd.f32 %v1316, %v1407
    %v1409 = vpop.f32.mrf.mxu0
    %v1410 = vpop.f32.mrf.mxu0
    %v1411 = vadd.f32 %v1316, %v1410
    %v1412 = vpop.f32.mrf.mxu0
    %1413 = vmatprep.mubr.bf16.mxu0 0
    %1414 = vmatmul.mubr.bf16.gmra.mxu0 %v1318
    %v1415 = vpop.f32.mrf.mxu0
    %v1416 = vadd.f32 %v1316, %v1415
    %v1417 = vpop.f32.mrf.mxu0
    %v1418 = vpop.f32.mrf.mxu0
    %v1419 = vadd.f32 %v1316, %v1418
    %v1420 = vpop.f32.mrf.mxu0
    %1421 = vmatprep.mubr.bf16.mxu0 0
    %1422 = vmatmul.mubr.bf16.gmra.mxu0 %v1319
    %v1423 = vpop.f32.mrf.mxu0
    %v1424 = vadd.f32 %v1316, %v1423
    %v1425 = vpop.f32.mrf.mxu0
    %v1426 = vpop.f32.mrf.mxu0
    %v1427 = vadd.f32 %v1316, %v1426
    %v1428 = vpop.f32.mrf.mxu0
    %1429 = vmatprep.mubr.bf16.mxu0 0
    %1430 = vmatmul.mubr.bf16.gmra.mxu0 %v1320
    %v1431 = vpop.f32.mrf.mxu0
    %v1432 = vadd.f32 %v1316, %v1431
    %v1433 = vpop.f32.mrf.mxu0
    %v1434 = vpop.f32.mrf.mxu0
    %v1435 = vadd.f32 %v1316, %v1434
    %v1436 = vpop.f32.mrf.mxu0
    %1437 = vmatprep.mubr.bf16.mxu0 0
    %1438 = vmatmul.mubr.bf16.gmra.mxu0 %v1321
    %v1439 = vpop.f32.mrf.mxu0
    %v1440 = vadd.f32 %v1316, %v1439
    %v1441 = vpop.f32.mrf.mxu0
    %v1442 = vpop.f32.mrf.mxu0
    %v1443 = vadd.f32 %v1316, %v1442
    %v1444 = vpop.f32.mrf.mxu0
    %1445 = vmatprep.mubr.bf16.mxu0 0
    %1446 = vmatmul.mubr.bf16.gmra.mxu0 %v1322
    %v1447 = vpop.f32.mrf.mxu0
    %v1448 = vadd.f32 %v1316, %v1447
    %v1449 = vpop.f32.mrf.mxu0
    %v1450 = vpop.f32.mrf.mxu0
    %v1451 = vadd.f32 %v1316, %v1450
    %v1452 = vpop.f32.mrf.mxu0
    %1453 = vmatprep.mubr.bf16.mxu0 0
    %1454 = vmatmul.mubr.bf16.gmra.mxu0 %v1323
    %v1455 = vpop.f32.mrf.mxu0
    %v1456 = vadd.f32 %v1316, %v1455
    %v1457 = vpop.f32.mrf.mxu0
    %v1458 = vpop.f32.mrf.mxu0
    %v1459 = vadd.f32 %v1316, %v1458
    %v1460 = vpop.f32.mrf.mxu0
    %1461 = vmatprep.mubr.bf16.mxu0 0
    %1462 = vmatmul.mubr.bf16.gmra.mxu0 %v1324
    %v1463 = vpop.f32.mrf.mxu0
    %v1464 = vadd.f32 %v1316, %v1463
    %v1465 = vpop.f32.mrf.mxu0
    %v1466 = vpop.f32.mrf.mxu0
    %v1467 = vadd.f32 %v1316, %v1466
    %v1468 = vpop.f32.mrf.mxu0
    %1469 = vdwg.mxu0
    %v1470 = vadd.f32 %v100, %v1408
    %v1471 = vadd.f32 %v101, %v1411
    %v1472 = vadd.f32 %v102, %v1416
    %v1473 = vadd.f32 %v103, %v1419
    %v1474 = vadd.f32 %v104, %v1424
    %v1475 = vadd.f32 %v105, %v1427
    %v1476 = vadd.f32 %v106, %v1432
    %v1477 = vadd.f32 %v107, %v1435
    %v1478 = vadd.f32 %v108, %v1440
    %v1479 = vadd.f32 %v109, %v1443
    %v1480 = vadd.f32 %v110, %v1448
    %v1481 = vadd.f32 %v111, %v1451
    %v1482 = vadd.f32 %v112, %v1456
    %v1483 = vadd.f32 %v113, %v1459
    %v1484 = vadd.f32 %v114, %v1464
    %v1485 = vadd.f32 %v115, %v1467
    %v1486 = vld [vmem:[%s14 + $0x19] ss:$0 sm:$0xff]
    %v1487 = vld [vmem:[%s14 + $0x1a] ss:$0 sm:$0xff]
    %1488 = vadd.xlane.f32.xlu0 %v1470
    %v1489 = vpop.xlane.xlu0 %1488
    %1490 = vadd.xlane.f32.xlu0 %v1471
    %v1491 = vpop.xlane.xlu0 %1490
    %1492 = vadd.xlane.f32.xlu0 %v1472
    %v1493 = vpop.xlane.xlu0 %1492
    %1494 = vadd.xlane.f32.xlu0 %v1473
    %v1495 = vpop.xlane.xlu0 %1494
    %1496 = vadd.xlane.f32.xlu0 %v1474
    %v1497 = vpop.xlane.xlu0 %1496
    %1498 = vadd.xlane.f32.xlu0 %v1475
    %v1499 = vpop.xlane.xlu0 %1498
    %1500 = vadd.xlane.f32.xlu0 %v1476
    %v1501 = vpop.xlane.xlu0 %1500
    %1502 = vadd.xlane.f32.xlu0 %v1477
    %v1503 = vpop.xlane.xlu0 %1502
    %1504 = vadd.xlane.f32.xlu0 %v1478
    %v1505 = vpop.xlane.xlu0 %1504
    %1506 = vadd.xlane.f32.xlu0 %v1479
    %v1507 = vpop.xlane.xlu0 %1506
    %1508 = vadd.xlane.f32.xlu0 %v1480
    %v1509 = vpop.xlane.xlu0 %1508
    %1510 = vadd.xlane.f32.xlu0 %v1481
    %v1511 = vpop.xlane.xlu0 %1510
    %1512 = vadd.xlane.f32.xlu0 %v1482
    %v1513 = vpop.xlane.xlu0 %1512
    %1514 = vadd.xlane.f32.xlu0 %v1483
    %v1515 = vpop.xlane.xlu0 %1514
    %1516 = vadd.xlane.f32.xlu0 %v1484
    %v1517 = vpop.xlane.xlu0 %1516
    %1518 = vadd.xlane.f32.xlu0 %v1485
    %v1519 = vpop.xlane.xlu0 %1518
    %v1520 = vmul.f32 %v1489, %v150
    %v1521 = vmul.f32 %v1491, %v150
    %v1522 = vmul.f32 %v1493, %v150
    %v1523 = vmul.f32 %v1495, %v150
    %v1524 = vmul.f32 %v1497, %v150
    %v1525 = vmul.f32 %v1499, %v150
    %v1526 = vmul.f32 %v1501, %v150
    %v1527 = vmul.f32 %v1503, %v150
    %v1528 = vmul.f32 %v1505, %v150
    %v1529 = vmul.f32 %v1507, %v150
    %v1530 = vmul.f32 %v1509, %v150
    %v1531 = vmul.f32 %v1511, %v150
    %v1532 = vmul.f32 %v1513, %v150
    %v1533 = vmul.f32 %v1515, %v150
    %v1534 = vmul.f32 %v1517, %v150
    %v1535 = vmul.f32 %v1519, %v150
    %v1536 = vsub.f32 %v1470, %v1520
    %v1537 = vsub.f32 %v1471, %v1521
    %v1538 = vsub.f32 %v1472, %v1522
    %v1539 = vsub.f32 %v1473, %v1523
    %v1540 = vsub.f32 %v1474, %v1524
    %v1541 = vsub.f32 %v1475, %v1525
    %v1542 = vsub.f32 %v1476, %v1526
    %v1543 = vsub.f32 %v1477, %v1527
    %v1544 = vsub.f32 %v1478, %v1528
    %v1545 = vsub.f32 %v1479, %v1529
    %v1546 = vsub.f32 %v1480, %v1530
    %v1547 = vsub.f32 %v1481, %v1531
    %v1548 = vsub.f32 %v1482, %v1532
    %v1549 = vsub.f32 %v1483, %v1533
    %v1550 = vsub.f32 %v1484, %v1534
    %v1551 = vsub.f32 %v1485, %v1535
    %v1552 = vmul.f32 %v1536, %v1536
    %v1553 = vmul.f32 %v1537, %v1537
    %v1554 = vmul.f32 %v1538, %v1538
    %v1555 = vmul.f32 %v1539, %v1539
    %v1556 = vmul.f32 %v1540, %v1540
    %v1557 = vmul.f32 %v1541, %v1541
    %v1558 = vmul.f32 %v1542, %v1542
    %v1559 = vmul.f32 %v1543, %v1543
    %v1560 = vmul.f32 %v1544, %v1544
    %v1561 = vmul.f32 %v1545, %v1545
    %v1562 = vmul.f32 %v1546, %v1546
    %v1563 = vmul.f32 %v1547, %v1547
    %v1564 = vmul.f32 %v1548, %v1548
    %v1565 = vmul.f32 %v1549, %v1549
    %v1566 = vmul.f32 %v1550, %v1550
    %v1567 = vmul.f32 %v1551, %v1551
    %1568 = vadd.xlane.f32.xlu0 %v1552
    %v1569 = vpop.xlane.xlu0 %1568
    %1570 = vadd.xlane.f32.xlu0 %v1553
    %v1571 = vpop.xlane.xlu0 %1570
    %1572 = vadd.xlane.f32.xlu0 %v1554
    %v1573 = vpop.xlane.xlu0 %1572
    %1574 = vadd.xlane.f32.xlu0 %v1555
    %v1575 = vpop.xlane.xlu0 %1574
    %1576 = vadd.xlane.f32.xlu0 %v1556
    %v1577 = vpop.xlane.xlu0 %1576
    %1578 = vadd.xlane.f32.xlu0 %v1557
    %v1579 = vpop.xlane.xlu0 %1578
    %1580 = vadd.xlane.f32.xlu0 %v1558
    %v1581 = vpop.xlane.xlu0 %1580
    %1582 = vadd.xlane.f32.xlu0 %v1559
    %v1583 = vpop.xlane.xlu0 %1582
    %1584 = vadd.xlane.f32.xlu0 %v1560
    %v1585 = vpop.xlane.xlu0 %1584
    %1586 = vadd.xlane.f32.xlu0 %v1561
    %v1587 = vpop.xlane.xlu0 %1586
    %1588 = vadd.xlane.f32.xlu0 %v1562
    %v1589 = vpop.xlane.xlu0 %1588
    %1590 = vadd.xlane.f32.xlu0 %v1563
    %v1591 = vpop.xlane.xlu0 %1590
    %1592 = vadd.xlane.f32.xlu0 %v1564
    %v1593 = vpop.xlane.xlu0 %1592
    %1594 = vadd.xlane.f32.xlu0 %v1565
    %v1595 = vpop.xlane.xlu0 %1594
    %1596 = vadd.xlane.f32.xlu0 %v1566
    %v1597 = vpop.xlane.xlu0 %1596
    %1598 = vadd.xlane.f32.xlu0 %v1567
    %v1599 = vpop.xlane.xlu0 %1598
    %v1600 = vmul.f32 %v1569, %v150
    %v1601 = vmul.f32 %v1571, %v150
    %v1602 = vmul.f32 %v1573, %v150
    %v1603 = vmul.f32 %v1575, %v150
    %v1604 = vmul.f32 %v1577, %v150
    %v1605 = vmul.f32 %v1579, %v150
    %v1606 = vmul.f32 %v1581, %v150
    %v1607 = vmul.f32 %v1583, %v150
    %v1608 = vmul.f32 %v1585, %v150
    %v1609 = vmul.f32 %v1587, %v150
    %v1610 = vmul.f32 %v1589, %v150
    %v1611 = vmul.f32 %v1591, %v150
    %v1612 = vmul.f32 %v1593, %v150
    %v1613 = vmul.f32 %v1595, %v150
    %v1614 = vmul.f32 %v1597, %v150
    %v1615 = vmul.f32 %v1599, %v150
    %v1616 = vadd.f32 %v1600, 1e-05
    %v1617 = vadd.f32 %v1601, 1e-05
    %v1618 = vadd.f32 %v1602, 1e-05
    %v1619 = vadd.f32 %v1603, 1e-05
    %v1620 = vadd.f32 %v1604, 1e-05
    %v1621 = vadd.f32 %v1605, 1e-05
    %v1622 = vadd.f32 %v1606, 1e-05
    %v1623 = vadd.f32 %v1607, 1e-05
    %v1624 = vadd.f32 %v1608, 1e-05
    %v1625 = vadd.f32 %v1609, 1e-05
    %v1626 = vadd.f32 %v1610, 1e-05
    %v1627 = vadd.f32 %v1611, 1e-05
    %v1628 = vadd.f32 %v1612, 1e-05
    %v1629 = vadd.f32 %v1613, 1e-05
    %v1630 = vadd.f32 %v1614, 1e-05
    %v1631 = vadd.f32 %v1615, 1e-05
    %v1632 = vrsqrt.pop %v1616
    %v1633 = vrsqrt.pop %v1617
    %v1634 = vrsqrt.pop %v1618
    %v1635 = vrsqrt.pop %v1619
    %v1636 = vrsqrt.pop %v1620
    %v1637 = vrsqrt.pop %v1621
    %v1638 = vrsqrt.pop %v1622
    %v1639 = vrsqrt.pop %v1623
    %v1640 = vrsqrt.pop %v1624
    %v1641 = vrsqrt.pop %v1625
    %v1642 = vrsqrt.pop %v1626
    %v1643 = vrsqrt.pop %v1627
    %v1644 = vrsqrt.pop %v1628
    %v1645 = vrsqrt.pop %v1629
    %v1646 = vrsqrt.pop %v1630
    %v1647 = vrsqrt.pop %v1631
    %v1648 = vmul.f32 %v1536, %v1632
    %v1649 = vmul.f32 %v1537, %v1633
    %v1650 = vmul.f32 %v1538, %v1634
    %v1651 = vmul.f32 %v1539, %v1635
    %v1652 = vmul.f32 %v1540, %v1636
    %v1653 = vmul.f32 %v1541, %v1637
    %v1654 = vmul.f32 %v1542, %v1638
    %v1655 = vmul.f32 %v1543, %v1639
    %v1656 = vmul.f32 %v1544, %v1640
    %v1657 = vmul.f32 %v1545, %v1641
    %v1658 = vmul.f32 %v1546, %v1642
    %v1659 = vmul.f32 %v1547, %v1643
    %v1660 = vmul.f32 %v1548, %v1644
    %v1661 = vmul.f32 %v1549, %v1645
    %v1662 = vmul.f32 %v1550, %v1646
    %v1663 = vmul.f32 %v1551, %v1647
    %v1664 = vmul.f32 %v1648, %v1486
    %v1665 = vmul.f32 %v1649, %v1486
    %v1666 = vmul.f32 %v1650, %v1486
    %v1667 = vmul.f32 %v1651, %v1486
    %v1668 = vmul.f32 %v1652, %v1486
    %v1669 = vmul.f32 %v1653, %v1486
    %v1670 = vmul.f32 %v1654, %v1486
    %v1671 = vmul.f32 %v1655, %v1486
    %v1672 = vmul.f32 %v1656, %v1486
    %v1673 = vmul.f32 %v1657, %v1486
    %v1674 = vmul.f32 %v1658, %v1486
    %v1675 = vmul.f32 %v1659, %v1486
    %v1676 = vmul.f32 %v1660, %v1486
    %v1677 = vmul.f32 %v1661, %v1486
    %v1678 = vmul.f32 %v1662, %v1486
    %v1679 = vmul.f32 %v1663, %v1486
    %v1680 = vadd.f32 %v1664, %v1487
    %v1681 = vadd.f32 %v1665, %v1487
    %v1682 = vadd.f32 %v1666, %v1487
    %v1683 = vadd.f32 %v1667, %v1487
    %v1684 = vadd.f32 %v1668, %v1487
    %v1685 = vadd.f32 %v1669, %v1487
    %v1686 = vadd.f32 %v1670, %v1487
    %v1687 = vadd.f32 %v1671, %v1487
    %v1688 = vadd.f32 %v1672, %v1487
    %v1689 = vadd.f32 %v1673, %v1487
    %v1690 = vadd.f32 %v1674, %v1487
    %v1691 = vadd.f32 %v1675, %v1487
    %v1692 = vadd.f32 %v1676, %v1487
    %v1693 = vadd.f32 %v1677, %v1487
    %v1694 = vadd.f32 %v1678, %v1487
    %v1695 = vadd.f32 %v1679, %v1487
    %v1696 = vld [vmem:[%s9] sm:$0xf]
    %v1697 = vld [vmem:[%s9 + $0x4] sm:$0xf]
    %v1698 = vld [vmem:[%s9 + $0x8] sm:$0xf]
    %v1699 = vld [vmem:[%s9 + $0xc] sm:$0xf]
    %v1700 = vld [vmem:[%s9 + $0x10] sm:$0xf]
    %v1701 = vld [vmem:[%s9 + $0x14] sm:$0xf]
    %v1702 = vld [vmem:[%s9 + $0x18] sm:$0xf]
    %v1703 = vld [vmem:[%s9 + $0x1c] sm:$0xf]
    %v1704 = vld [vmem:[%s9 + $0x20] sm:$0xf]
    %v1705 = vld [vmem:[%s9 + $0x24] sm:$0xf]
    %v1706 = vld [vmem:[%s9 + $0x28] sm:$0xf]
    %v1707 = vld [vmem:[%s9 + $0x2c] sm:$0xf]
    %v1708 = vld [vmem:[%s9 + $0x30] sm:$0xf]
    %v1709 = vld [vmem:[%s9 + $0x34] sm:$0xf]
    %v1710 = vld [vmem:[%s9 + $0x38] sm:$0xf]
    %v1711 = vld [vmem:[%s9 + $0x3c] sm:$0xf]
    %v1712 = vld [vmem:[%s14 + $0x2] ss:$0 sm:$0xff]
    %v1713 = vpack.c.bf16 %v1681, %v1680
    %v1714 = vpack.c.bf16 %v1683, %v1682
    %v1715 = vpack.c.bf16 %v1685, %v1684
    %v1716 = vpack.c.bf16 %v1687, %v1686
    %v1717 = vpack.c.bf16 %v1689, %v1688
    %v1718 = vpack.c.bf16 %v1691, %v1690
    %v1719 = vpack.c.bf16 %v1693, %v1692
    %v1720 = vpack.c.bf16 %v1695, %v1694
    %v1737 = vunpack.c.l.b16 %v1696
    %v1738 = vunpack.c.l.b16 %v1697
    %v1739 = vunpack.c.l.b16 %v1698
    %v1740 = vunpack.c.l.b16 %v1699
    %v1741 = vunpack.c.l.b16 %v1700
    %v1742 = vunpack.c.l.b16 %v1701
    %v1743 = vunpack.c.l.b16 %v1702
    %v1744 = vunpack.c.l.b16 %v1703
    %v1745 = vunpack.c.l.b16 %v1704
    %v1746 = vunpack.c.l.b16 %v1705
    %v1747 = vunpack.c.l.b16 %v1706
    %v1748 = vunpack.c.l.b16 %v1707
    %v1749 = vunpack.c.l.b16 %v1708
    %v1750 = vunpack.c.l.b16 %v1709
    %v1751 = vunpack.c.l.b16 %v1710
    %v1752 = vunpack.c.l.b16 %v1711
    %v1753 = vpack.c.b16 %v1738, %v1737
    %v1754 = vpack.c.b16 %v1740, %v1739
    %v1755 = vpack.c.b16 %v1742, %v1741
    %v1756 = vpack.c.b16 %v1744, %v1743
    %v1757 = vpack.c.b16 %v1746, %v1745
    %v1758 = vpack.c.b16 %v1748, %v1747
    %v1759 = vpack.c.b16 %v1750, %v1749
    %v1760 = vpack.c.b16 %v1752, %v1751
    %1769 = vmatprep.subr.bf16.mxu0 0
    %1770 = vmatpush1.bf16.msra.mxu0 %v1760
    %1771 = vmatprep.subr.bf16.mxu0 0
    %1772 = vmatpush1.bf16.msra.mxu0 %v1759
    %1773 = vmatprep.subr.bf16.mxu0 0
    %1774 = vmatpush1.bf16.msra.mxu0 %v1758
    %1775 = vmatprep.subr.bf16.mxu0 0
    %1776 = vmatpush1.bf16.msra.mxu0 %v1757
    %1777 = vmatprep.subr.bf16.mxu0 0
    %1778 = vmatpush1.bf16.msra.mxu0 %v1756
    %1779 = vmatprep.subr.bf16.mxu0 0
    %1780 = vmatpush1.bf16.msra.mxu0 %v1755
    %1781 = vmatprep.subr.bf16.mxu0 0
    %1782 = vmatpush1.bf16.msra.mxu0 %v1754
    %1783 = vmatprep.subr.bf16.mxu0 0
    %1784 = vmatpush1.bf16.msra.mxu0 %v1753
    %1785 = vmatprep.subr.bf16.mxu0 0
    %1786 = vmatpush2.bf16.msra.mxu0 0
    %1787 = vmatprep.subr.bf16.mxu0 0
    %1788 = vmatpush2.bf16.msra.mxu0 0
    %1789 = vmatprep.subr.bf16.mxu0 0
    %1790 = vmatpush2.bf16.msra.mxu0 0
    %1791 = vmatprep.subr.bf16.mxu0 0
    %1792 = vmatpush2.bf16.msra.mxu0 0
    %1793 = vmatprep.subr.bf16.mxu0 0
    %1794 = vmatpush2.bf16.msra.mxu0 0
    %1795 = vmatprep.subr.bf16.mxu0 0
    %1796 = vmatpush2.bf16.msra.mxu0 0
    %1797 = vmatprep.subr.bf16.mxu0 0
    %1798 = vmatpush2.bf16.msra.mxu0 0
    %1799 = vmatprep.subr.bf16.mxu0 0
    %1800 = vmatpush2.bf16.msra.mxu0 0
    %1801 = vmatprep.mubr.bf16.mxu0 0
    %1802 = vmatmul.mubr.bf16.gmra.mxu0 %v1713
    %v1803 = vpop.f32.mrf.mxu0
    %v1804 = vadd.f32 %v1712, %v1803
    %v1805 = vpop.f32.mrf.mxu0
    %v1806 = vpop.f32.mrf.mxu0
    %v1807 = vadd.f32 %v1712, %v1806
    %v1808 = vpop.f32.mrf.mxu0
    %1809 = vmatprep.mubr.bf16.mxu0 0
    %1810 = vmatmul.mubr.bf16.gmra.mxu0 %v1714
    %v1811 = vpop.f32.mrf.mxu0
    %v1812 = vadd.f32 %v1712, %v1811
    %v1813 = vpop.f32.mrf.mxu0
    %v1814 = vpop.f32.mrf.mxu0
    %v1815 = vadd.f32 %v1712, %v1814
    %v1816 = vpop.f32.mrf.mxu0
    %1817 = vmatprep.mubr.bf16.mxu0 0
    %1818 = vmatmul.mubr.bf16.gmra.mxu0 %v1715
    %v1819 = vpop.f32.mrf.mxu0
    %v1820 = vadd.f32 %v1712, %v1819
    %v1821 = vpop.f32.mrf.mxu0
    %v1822 = vpop.f32.mrf.mxu0
    %v1823 = vadd.f32 %v1712, %v1822
    %v1824 = vpop.f32.mrf.mxu0
    %1825 = vmatprep.mubr.bf16.mxu0 0
    %1826 = vmatmul.mubr.bf16.gmra.mxu0 %v1716
    %v1827 = vpop.f32.mrf.mxu0
    %v1828 = vadd.f32 %v1712, %v1827
    %v1829 = vpop.f32.mrf.mxu0
    %v1830 = vpop.f32.mrf.mxu0
    %v1831 = vadd.f32 %v1712, %v1830
    %v1832 = vpop.f32.mrf.mxu0
    %1833 = vmatprep.mubr.bf16.mxu0 0
    %1834 = vmatmul.mubr.bf16.gmra.mxu0 %v1717
    %v1835 = vpop.f32.mrf.mxu0
    %v1836 = vadd.f32 %v1712, %v1835
    %v1837 = vpop.f32.mrf.mxu0
    %v1838 = vpop.f32.mrf.mxu0
    %v1839 = vadd.f32 %v1712, %v1838
    %v1840 = vpop.f32.mrf.mxu0
    %1841 = vmatprep.mubr.bf16.mxu0 0
    %1842 = vmatmul.mubr.bf16.gmra.mxu0 %v1718
    %v1843 = vpop.f32.mrf.mxu0
    %v1844 = vadd.f32 %v1712, %v1843
    %v1845 = vpop.f32.mrf.mxu0
    %v1846 = vpop.f32.mrf.mxu0
    %v1847 = vadd.f32 %v1712, %v1846
    %v1848 = vpop.f32.mrf.mxu0
    %1849 = vmatprep.mubr.bf16.mxu0 0
    %1850 = vmatmul.mubr.bf16.gmra.mxu0 %v1719
    %v1851 = vpop.f32.mrf.mxu0
    %v1852 = vadd.f32 %v1712, %v1851
    %v1853 = vpop.f32.mrf.mxu0
    %v1854 = vpop.f32.mrf.mxu0
    %v1855 = vadd.f32 %v1712, %v1854
    %v1856 = vpop.f32.mrf.mxu0
    %1857 = vmatprep.mubr.bf16.mxu0 0
    %1858 = vmatmul.mubr.bf16.gmra.mxu0 %v1720
    %v1859 = vpop.f32.mrf.mxu0
    %v1860 = vadd.f32 %v1712, %v1859
    %v1861 = vpop.f32.mrf.mxu0
    %v1862 = vpop.f32.mrf.mxu0
    %v1863 = vadd.f32 %v1712, %v1862
    %v1864 = vpop.f32.mrf.mxu0
    %1865 = vdwg.mxu0
    %v1866 = vmul.f32 %v1804, %v722
    %v1867 = vmul.f32 %v1807, %v723
    %v1868 = vmul.f32 %v1812, %v724
    %v1869 = vmul.f32 %v1815, %v725
    %v1870 = vmul.f32 %v1820, %v726
    %v1871 = vmul.f32 %v1823, %v727
    %v1872 = vmul.f32 %v1828, %v728
    %v1873 = vmul.f32 %v1831, %v729
    %v1874 = vmul.f32 %v1836, %v730
    %v1875 = vmul.f32 %v1839, %v731
    %v1876 = vmul.f32 %v1844, %v732
    %v1877 = vmul.f32 %v1847, %v733
    %v1878 = vmul.f32 %v1852, %v734
    %v1879 = vmul.f32 %v1855, %v735
    %v1880 = vmul.f32 %v1860, %v736
    %v1881 = vmul.f32 %v1863, %v737
    %1882 = vrot.lane.b32.xlu0 %v1804, 64
    %v1883 = vpop.permute.xlu0 %1882
    %1884 = vrot.lane.b32.xlu0 %v1807, 64
    %v1885 = vpop.permute.xlu0 %1884
    %1886 = vrot.lane.b32.xlu0 %v1812, 64
    %v1887 = vpop.permute.xlu0 %1886
    %1888 = vrot.lane.b32.xlu0 %v1815, 64
    %v1889 = vpop.permute.xlu0 %1888
    %1890 = vrot.lane.b32.xlu0 %v1820, 64
    %v1891 = vpop.permute.xlu0 %1890
    %1892 = vrot.lane.b32.xlu0 %v1823, 64
    %v1893 = vpop.permute.xlu0 %1892
    %1894 = vrot.lane.b32.xlu0 %v1828, 64
    %v1895 = vpop.permute.xlu0 %1894
    %1896 = vrot.lane.b32.xlu0 %v1831, 64
    %v1897 = vpop.permute.xlu0 %1896
    %1898 = vrot.lane.b32.xlu0 %v1836, 64
    %v1899 = vpop.permute.xlu0 %1898
    %1900 = vrot.lane.b32.xlu0 %v1839, 64
    %v1901 = vpop.permute.xlu0 %1900
    %1902 = vrot.lane.b32.xlu0 %v1844, 64
    %v1903 = vpop.permute.xlu0 %1902
    %1904 = vrot.lane.b32.xlu0 %v1847, 64
    %v1905 = vpop.permute.xlu0 %1904
    %1906 = vrot.lane.b32.xlu0 %v1852, 64
    %v1907 = vpop.permute.xlu0 %1906
    %1908 = vrot.lane.b32.xlu0 %v1855, 64
    %v1909 = vpop.permute.xlu0 %1908
    %1910 = vrot.lane.b32.xlu0 %v1860, 64
    %v1911 = vpop.permute.xlu0 %1910
    %1912 = vrot.lane.b32.xlu0 %v1863, 64
    %v1913 = vpop.permute.xlu0 %1912
    %v1914 = vmul.f32 %v1883, %v786
    %v1915 = vmul.f32 %v1885, %v787
    %v1916 = vmul.f32 %v1887, %v788
    %v1917 = vmul.f32 %v1889, %v789
    %v1918 = vmul.f32 %v1891, %v790
    %v1919 = vmul.f32 %v1893, %v791
    %v1920 = vmul.f32 %v1895, %v792
    %v1921 = vmul.f32 %v1897, %v793
    %v1922 = vmul.f32 %v1899, %v794
    %v1923 = vmul.f32 %v1901, %v795
    %v1924 = vmul.f32 %v1903, %v796
    %v1925 = vmul.f32 %v1905, %v797
    %v1926 = vmul.f32 %v1907, %v798
    %v1927 = vmul.f32 %v1909, %v799
    %v1928 = vmul.f32 %v1911, %v800
    %v1929 = vmul.f32 %v1913, %v801
    %v1930 = vadd.f32 %v1866, %v1914
    %v1931 = vadd.f32 %v1867, %v1915
    %v1932 = vadd.f32 %v1868, %v1916
    %v1933 = vadd.f32 %v1869, %v1917
    %v1934 = vadd.f32 %v1870, %v1918
    %v1935 = vadd.f32 %v1871, %v1919
    %v1936 = vadd.f32 %v1872, %v1920
    %v1937 = vadd.f32 %v1873, %v1921
    %v1938 = vadd.f32 %v1874, %v1922
    %v1939 = vadd.f32 %v1875, %v1923
    %v1940 = vadd.f32 %v1876, %v1924
    %v1941 = vadd.f32 %v1877, %v1925
    %v1942 = vadd.f32 %v1878, %v1926
    %v1943 = vadd.f32 %v1879, %v1927
    %v1944 = vadd.f32 %v1880, %v1928
    %v1945 = vadd.f32 %v1881, %v1929
    %v1946 = vld [vmem:[%s2] sm:$0xff]
    %v1947 = vld [vmem:[%s2 + $0x8] sm:$0xff]
    %v1948 = vld [vmem:[%s2 + $0x10] sm:$0xff]
    %v1949 = vld [vmem:[%s2 + $0x18] sm:$0xff]
    %v1950 = vld [vmem:[%s2 + $0x20] sm:$0xff]
    %v1951 = vld [vmem:[%s2 + $0x28] sm:$0xff]
    %v1952 = vld [vmem:[%s2 + $0x30] sm:$0xff]
    %v1953 = vld [vmem:[%s2 + $0x38] sm:$0xff]
    %v1954 = vld [vmem:[%s2 + $0x40] sm:$0xff]
    %v1955 = vld [vmem:[%s2 + $0x48] sm:$0xff]
    %v1956 = vld [vmem:[%s2 + $0x50] sm:$0xff]
    %v1957 = vld [vmem:[%s2 + $0x58] sm:$0xff]
    %v1958 = vld [vmem:[%s2 + $0x60] sm:$0xff]
    %v1959 = vld [vmem:[%s2 + $0x68] sm:$0xff]
    %v1960 = vld [vmem:[%s2 + $0x70] sm:$0xff]
    %v1961 = vld [vmem:[%s2 + $0x78] sm:$0xff]
    %v1962 = vld [vmem:[%s2 + $0x80] sm:$0xff]
    %v1963 = vld [vmem:[%s2 + $0x88] sm:$0xff]
    %v1964 = vld [vmem:[%s2 + $0x90] sm:$0xff]
    %v1965 = vld [vmem:[%s2 + $0x98] sm:$0xff]
    %v1966 = vld [vmem:[%s2 + $0xa0] sm:$0xff]
    %v1967 = vld [vmem:[%s2 + $0xa8] sm:$0xff]
    %v1968 = vld [vmem:[%s2 + $0xb0] sm:$0xff]
    %v1969 = vld [vmem:[%s2 + $0xb8] sm:$0xff]
    %v1970 = vld [vmem:[%s2 + $0xc0] sm:$0xff]
    %v1971 = vld [vmem:[%s2 + $0xc8] sm:$0xff]
    %v1972 = vld [vmem:[%s2 + $0xd0] sm:$0xff]
    %v1973 = vld [vmem:[%s2 + $0xd8] sm:$0xff]
    %v1974 = vld [vmem:[%s2 + $0xe0] sm:$0xff]
    %v1975 = vld [vmem:[%s2 + $0xe8] sm:$0xff]
    %v1976 = vld [vmem:[%s2 + $0xf0] sm:$0xff]
    %v1977 = vld [vmem:[%s2 + $0xf8] sm:$0xff]
    %v1978 = vld [vmem:[%s2 + $0x100] sm:$0xff]
    %v1979 = vld [vmem:[%s2 + $0x108] sm:$0xff]
    %v1980 = vld [vmem:[%s2 + $0x110] sm:$0xff]
    %v1981 = vld [vmem:[%s2 + $0x118] sm:$0xff]
    %v1982 = vld [vmem:[%s2 + $0x120] sm:$0xff]
    %v1983 = vld [vmem:[%s2 + $0x128] sm:$0xff]
    %v1984 = vld [vmem:[%s2 + $0x130] sm:$0xff]
    %v1985 = vld [vmem:[%s2 + $0x138] sm:$0xff]
    %v1986 = vld [vmem:[%s2 + $0x140] sm:$0xff]
    %v1987 = vld [vmem:[%s2 + $0x148] sm:$0xff]
    %v1988 = vld [vmem:[%s2 + $0x150] sm:$0xff]
    %v1989 = vld [vmem:[%s2 + $0x158] sm:$0xff]
    %v1990 = vld [vmem:[%s2 + $0x160] sm:$0xff]
    %v1991 = vld [vmem:[%s2 + $0x168] sm:$0xff]
    %v1992 = vld [vmem:[%s2 + $0x170] sm:$0xff]
    %v1993 = vld [vmem:[%s2 + $0x178] sm:$0xff]
    %v1994 = vld [vmem:[%s10] sm:$0xff]
    %v1995 = vld [vmem:[%s10 + $0x8] sm:$0xff]
    %v1996 = vld [vmem:[%s10 + $0x10] sm:$0xff]
    %v1997 = vld [vmem:[%s10 + $0x18] sm:$0xff]
    %v1998 = vld [vmem:[%s10 + $0x20] sm:$0xff]
    %v1999 = vld [vmem:[%s10 + $0x28] sm:$0xff]
    %v2000 = vld [vmem:[%s10 + $0x30] sm:$0xff]
    %v2001 = vld [vmem:[%s10 + $0x38] sm:$0xff]
    %v2002 = vld [vmem:[%s10 + $0x40] sm:$0xff]
    %v2003 = vld [vmem:[%s10 + $0x48] sm:$0xff]
    %v2004 = vld [vmem:[%s10 + $0x50] sm:$0xff]
    %v2005 = vld [vmem:[%s10 + $0x58] sm:$0xff]
    %v2006 = vld [vmem:[%s10 + $0x60] sm:$0xff]
    %v2007 = vld [vmem:[%s10 + $0x68] sm:$0xff]
    %v2008 = vld [vmem:[%s10 + $0x70] sm:$0xff]
    %v2009 = vld [vmem:[%s10 + $0x78] sm:$0xff]
    %s2010 = scalar_lea.vmem %s14, 3
    %v2011 = vld [vmem:[%s2010] ss:$8 sm:$0x3]
    %v2012 = vpack.c.bf16 %v1947, %v1946
    %v2013 = vpack.c.bf16 %v1949, %v1948
    %v2014 = vpack.c.bf16 %v1951, %v1950
    %v2015 = vpack.c.bf16 %v1953, %v1952
    %v2016 = vpack.c.bf16 %v1955, %v1954
    %v2017 = vpack.c.bf16 %v1957, %v1956
    %v2018 = vpack.c.bf16 %v1959, %v1958
    %v2019 = vpack.c.bf16 %v1961, %v1960
    %v2020 = vpack.c.bf16 %v1963, %v1962
    %v2021 = vpack.c.bf16 %v1965, %v1964
    %v2022 = vpack.c.bf16 %v1967, %v1966
    %v2023 = vpack.c.bf16 %v1969, %v1968
    %v2024 = vpack.c.bf16 %v1971, %v1970
    %v2025 = vpack.c.bf16 %v1973, %v1972
    %v2026 = vpack.c.bf16 %v1975, %v1974
    %v2027 = vpack.c.bf16 %v1977, %v1976
    %v2028 = vpack.c.bf16 %v1979, %v1978
    %v2029 = vpack.c.bf16 %v1981, %v1980
    %v2030 = vpack.c.bf16 %v1983, %v1982
    %v2031 = vpack.c.bf16 %v1985, %v1984
    %v2032 = vpack.c.bf16 %v1987, %v1986
    %v2033 = vpack.c.bf16 %v1989, %v1988
    %v2034 = vpack.c.bf16 %v1991, %v1990
    %v2035 = vpack.c.bf16 %v1993, %v1992
    %v2037 = vlaneseq
    %v2038 = vshrl.u32 %v2037, 7
    %v2039 = vsub.s32 0, %v2038
    %v2040 = vrot.slane %v2011, %v2039
    %v2041 = vlaneseq
    %v2042 = vshrl.u32 %v2041, 7
    %v2043 = vsub.s32 1, %v2042
    %v2044 = vrot.slane %v2011, %v2043
    %v2063 = vunpack.c.l.b16 %v1994
    %v2064 = vunpack.c.h.b16 %v1994
    %v2065 = vunpack.c.l.b16 %v1995
    %v2066 = vunpack.c.h.b16 %v1995
    %v2067 = vunpack.c.l.b16 %v1996
    %v2068 = vunpack.c.h.b16 %v1996
    %v2069 = vunpack.c.l.b16 %v1997
    %v2070 = vunpack.c.h.b16 %v1997
    %v2071 = vunpack.c.l.b16 %v1998
    %v2072 = vunpack.c.h.b16 %v1998
    %v2073 = vunpack.c.l.b16 %v1999
    %v2074 = vunpack.c.h.b16 %v1999
    %v2075 = vunpack.c.l.b16 %v2000
    %v2076 = vunpack.c.h.b16 %v2000
    %v2077 = vunpack.c.l.b16 %v2001
    %v2078 = vunpack.c.h.b16 %v2001
    %v2079 = vunpack.c.l.b16 %v2002
    %v2080 = vunpack.c.h.b16 %v2002
    %v2081 = vunpack.c.l.b16 %v2003
    %v2082 = vunpack.c.h.b16 %v2003
    %v2083 = vunpack.c.l.b16 %v2004
    %v2084 = vunpack.c.h.b16 %v2004
    %v2085 = vunpack.c.l.b16 %v2005
    %v2086 = vunpack.c.h.b16 %v2005
    %v2087 = vunpack.c.l.b16 %v2006
    %v2088 = vunpack.c.h.b16 %v2006
    %v2089 = vunpack.c.l.b16 %v2007
    %v2090 = vunpack.c.h.b16 %v2007
    %v2091 = vunpack.c.l.b16 %v2008
    %v2092 = vunpack.c.h.b16 %v2008
    %v2093 = vunpack.c.l.b16 %v2009
    %v2094 = vunpack.c.h.b16 %v2009
    %v2095 = vpack.c.b16 %v2065, %v2063
    %v2096 = vpack.c.b16 %v2066, %v2064
    %v2097 = vpack.c.b16 %v2069, %v2067
    %v2098 = vpack.c.b16 %v2070, %v2068
    %v2099 = vpack.c.b16 %v2073, %v2071
    %v2100 = vpack.c.b16 %v2074, %v2072
    %v2101 = vpack.c.b16 %v2077, %v2075
    %v2102 = vpack.c.b16 %v2078, %v2076
    %v2103 = vpack.c.b16 %v2081, %v2079
    %v2104 = vpack.c.b16 %v2082, %v2080
    %v2105 = vpack.c.b16 %v2085, %v2083
    %v2106 = vpack.c.b16 %v2086, %v2084
    %v2107 = vpack.c.b16 %v2089, %v2087
    %v2108 = vpack.c.b16 %v2090, %v2088
    %v2109 = vpack.c.b16 %v2093, %v2091
    %v2110 = vpack.c.b16 %v2094, %v2092
    %2127 = vmatprep.subr.bf16.mxu0 %v2110
    %2128 = vmatpush1.bf16.msra.mxu0 %v2109
    %2129 = vmatprep.subr.bf16.mxu0 %v2108
    %2130 = vmatpush1.bf16.msra.mxu0 %v2107
    %2131 = vmatprep.subr.bf16.mxu0 %v2106
    %2132 = vmatpush1.bf16.msra.mxu0 %v2105
    %2133 = vmatprep.subr.bf16.mxu0 %v2104
    %2134 = vmatpush1.bf16.msra.mxu0 %v2103
    %2135 = vmatprep.subr.bf16.mxu0 %v2102
    %2136 = vmatpush1.bf16.msra.mxu0 %v2101
    %2137 = vmatprep.subr.bf16.mxu0 %v2100
    %2138 = vmatpush1.bf16.msra.mxu0 %v2099
    %2139 = vmatprep.subr.bf16.mxu0 %v2098
    %2140 = vmatpush1.bf16.msra.mxu0 %v2097
    %2141 = vmatprep.subr.bf16.mxu0 %v2096
    %2142 = vmatpush1.bf16.msra.mxu0 %v2095
    %2143 = vmatprep.subr.bf16.mxu0 0
    %2144 = vmatpush2.bf16.msra.mxu0 0
    %2145 = vmatprep.subr.bf16.mxu0 0
    %2146 = vmatpush2.bf16.msra.mxu0 0
    %2147 = vmatprep.subr.bf16.mxu0 0
    %2148 = vmatpush2.bf16.msra.mxu0 0
    %2149 = vmatprep.subr.bf16.mxu0 0
    %2150 = vmatpush2.bf16.msra.mxu0 0
    %2151 = vmatprep.subr.bf16.mxu0 0
    %2152 = vmatpush2.bf16.msra.mxu0 0
    %2153 = vmatprep.subr.bf16.mxu0 0
    %2154 = vmatpush2.bf16.msra.mxu0 0
    %2155 = vmatprep.subr.bf16.mxu0 0
    %2156 = vmatpush2.bf16.msra.mxu0 0
    %2157 = vmatprep.subr.bf16.mxu0 0
    %2158 = vmatpush2.bf16.msra.mxu0 0
    %2159 = vmatprep.mubr.bf16.mxu0 0
    %2160 = vmatmul.mubr.bf16.gmra.mxu0 %v2012
    %v2161 = vpop.f32.mrf.mxu0
    %v2162 = vadd.f32 %v2040, %v2161
    %v2163 = vpop.f32.mrf.mxu0
    %v2164 = vadd.f32 %v2044, %v2163
    %v2165 = vpop.f32.mrf.mxu0
    %v2166 = vadd.f32 %v2040, %v2165
    %v2167 = vpop.f32.mrf.mxu0
    %v2168 = vadd.f32 %v2044, %v2167
    %2169 = vmatprep.mubr.bf16.mxu0 0
    %2170 = vmatmul.mubr.bf16.gmra.mxu0 %v2013
    %v2171 = vpop.f32.mrf.mxu0
    %v2172 = vadd.f32 %v2040, %v2171
    %v2173 = vpop.f32.mrf.mxu0
    %v2174 = vadd.f32 %v2044, %v2173
    %v2175 = vpop.f32.mrf.mxu0
    %v2176 = vadd.f32 %v2040, %v2175
    %v2177 = vpop.f32.mrf.mxu0
    %v2178 = vadd.f32 %v2044, %v2177
    %2179 = vmatprep.mubr.bf16.mxu0 0
    %2180 = vmatmul.mubr.bf16.gmra.mxu0 %v2014
    %v2181 = vpop.f32.mrf.mxu0
    %v2182 = vadd.f32 %v2040, %v2181
    %v2183 = vpop.f32.mrf.mxu0
    %v2184 = vadd.f32 %v2044, %v2183
    %v2185 = vpop.f32.mrf.mxu0
    %v2186 = vadd.f32 %v2040, %v2185
    %v2187 = vpop.f32.mrf.mxu0
    %v2188 = vadd.f32 %v2044, %v2187
    %2189 = vmatprep.mubr.bf16.mxu0 0
    %2190 = vmatmul.mubr.bf16.gmra.mxu0 %v2015
    %v2191 = vpop.f32.mrf.mxu0
    %v2192 = vadd.f32 %v2040, %v2191
    %v2193 = vpop.f32.mrf.mxu0
    %v2194 = vadd.f32 %v2044, %v2193
    %v2195 = vpop.f32.mrf.mxu0
    %v2196 = vadd.f32 %v2040, %v2195
    %v2197 = vpop.f32.mrf.mxu0
    %v2198 = vadd.f32 %v2044, %v2197
    %2199 = vmatprep.mubr.bf16.mxu0 0
    %2200 = vmatmul.mubr.bf16.gmra.mxu0 %v2016
    %v2201 = vpop.f32.mrf.mxu0
    %v2202 = vadd.f32 %v2040, %v2201
    %v2203 = vpop.f32.mrf.mxu0
    %v2204 = vadd.f32 %v2044, %v2203
    %v2205 = vpop.f32.mrf.mxu0
    %v2206 = vadd.f32 %v2040, %v2205
    %v2207 = vpop.f32.mrf.mxu0
    %v2208 = vadd.f32 %v2044, %v2207
    %2209 = vmatprep.mubr.bf16.mxu0 0
    %2210 = vmatmul.mubr.bf16.gmra.mxu0 %v2017
    %v2211 = vpop.f32.mrf.mxu0
    %v2212 = vadd.f32 %v2040, %v2211
    %v2213 = vpop.f32.mrf.mxu0
    %v2214 = vadd.f32 %v2044, %v2213
    %v2215 = vpop.f32.mrf.mxu0
    %v2216 = vadd.f32 %v2040, %v2215
    %v2217 = vpop.f32.mrf.mxu0
    %v2218 = vadd.f32 %v2044, %v2217
    %2219 = vmatprep.mubr.bf16.mxu0 0
    %2220 = vmatmul.mubr.bf16.gmra.mxu0 %v2018
    %v2221 = vpop.f32.mrf.mxu0
    %v2222 = vadd.f32 %v2040, %v2221
    %v2223 = vpop.f32.mrf.mxu0
    %v2224 = vadd.f32 %v2044, %v2223
    %v2225 = vpop.f32.mrf.mxu0
    %v2226 = vadd.f32 %v2040, %v2225
    %v2227 = vpop.f32.mrf.mxu0
    %v2228 = vadd.f32 %v2044, %v2227
    %2229 = vmatprep.mubr.bf16.mxu0 0
    %2230 = vmatmul.mubr.bf16.gmra.mxu0 %v2019
    %v2231 = vpop.f32.mrf.mxu0
    %v2232 = vadd.f32 %v2040, %v2231
    %v2233 = vpop.f32.mrf.mxu0
    %v2234 = vadd.f32 %v2044, %v2233
    %v2235 = vpop.f32.mrf.mxu0
    %v2236 = vadd.f32 %v2040, %v2235
    %v2237 = vpop.f32.mrf.mxu0
    %v2238 = vadd.f32 %v2044, %v2237
    %2239 = vmatprep.mubr.bf16.mxu0 0
    %2240 = vmatmul.mubr.bf16.gmra.mxu0 %v2020
    %v2241 = vpop.f32.mrf.mxu0
    %v2242 = vadd.f32 %v2040, %v2241
    %v2243 = vpop.f32.mrf.mxu0
    %v2244 = vadd.f32 %v2044, %v2243
    %v2245 = vpop.f32.mrf.mxu0
    %v2246 = vadd.f32 %v2040, %v2245
    %v2247 = vpop.f32.mrf.mxu0
    %v2248 = vadd.f32 %v2044, %v2247
    %2249 = vmatprep.mubr.bf16.mxu0 0
    %2250 = vmatmul.mubr.bf16.gmra.mxu0 %v2021
    %v2251 = vpop.f32.mrf.mxu0
    %v2252 = vadd.f32 %v2040, %v2251
    %v2253 = vpop.f32.mrf.mxu0
    %v2254 = vadd.f32 %v2044, %v2253
    %v2255 = vpop.f32.mrf.mxu0
    %v2256 = vadd.f32 %v2040, %v2255
    %v2257 = vpop.f32.mrf.mxu0
    %v2258 = vadd.f32 %v2044, %v2257
    %2259 = vmatprep.mubr.bf16.mxu0 0
    %2260 = vmatmul.mubr.bf16.gmra.mxu0 %v2022
    %v2261 = vpop.f32.mrf.mxu0
    %v2262 = vadd.f32 %v2040, %v2261
    %v2263 = vpop.f32.mrf.mxu0
    %v2264 = vadd.f32 %v2044, %v2263
    %v2265 = vpop.f32.mrf.mxu0
    %v2266 = vadd.f32 %v2040, %v2265
    %v2267 = vpop.f32.mrf.mxu0
    %v2268 = vadd.f32 %v2044, %v2267
    %2269 = vmatprep.mubr.bf16.mxu0 0
    %2270 = vmatmul.mubr.bf16.gmra.mxu0 %v2023
    %v2271 = vpop.f32.mrf.mxu0
    %v2272 = vadd.f32 %v2040, %v2271
    %v2273 = vpop.f32.mrf.mxu0
    %v2274 = vadd.f32 %v2044, %v2273
    %v2275 = vpop.f32.mrf.mxu0
    %v2276 = vadd.f32 %v2040, %v2275
    %v2277 = vpop.f32.mrf.mxu0
    %v2278 = vadd.f32 %v2044, %v2277
    %2279 = vmatprep.mubr.bf16.mxu0 0
    %2280 = vmatmul.mubr.bf16.gmra.mxu0 %v2024
    %v2281 = vpop.f32.mrf.mxu0
    %v2282 = vadd.f32 %v2040, %v2281
    %v2283 = vpop.f32.mrf.mxu0
    %v2284 = vadd.f32 %v2044, %v2283
    %v2285 = vpop.f32.mrf.mxu0
    %v2286 = vadd.f32 %v2040, %v2285
    %v2287 = vpop.f32.mrf.mxu0
    %v2288 = vadd.f32 %v2044, %v2287
    %2289 = vmatprep.mubr.bf16.mxu0 0
    %2290 = vmatmul.mubr.bf16.gmra.mxu0 %v2025
    %v2291 = vpop.f32.mrf.mxu0
    %v2292 = vadd.f32 %v2040, %v2291
    %v2293 = vpop.f32.mrf.mxu0
    %v2294 = vadd.f32 %v2044, %v2293
    %v2295 = vpop.f32.mrf.mxu0
    %v2296 = vadd.f32 %v2040, %v2295
    %v2297 = vpop.f32.mrf.mxu0
    %v2298 = vadd.f32 %v2044, %v2297
    %2299 = vmatprep.mubr.bf16.mxu0 0
    %2300 = vmatmul.mubr.bf16.gmra.mxu0 %v2026
    %v2301 = vpop.f32.mrf.mxu0
    %v2302 = vadd.f32 %v2040, %v2301
    %v2303 = vpop.f32.mrf.mxu0
    %v2304 = vadd.f32 %v2044, %v2303
    %v2305 = vpop.f32.mrf.mxu0
    %v2306 = vadd.f32 %v2040, %v2305
    %v2307 = vpop.f32.mrf.mxu0
    %v2308 = vadd.f32 %v2044, %v2307
    %2309 = vmatprep.mubr.bf16.mxu0 0
    %2310 = vmatmul.mubr.bf16.gmra.mxu0 %v2027
    %v2311 = vpop.f32.mrf.mxu0
    %v2312 = vadd.f32 %v2040, %v2311
    %v2313 = vpop.f32.mrf.mxu0
    %v2314 = vadd.f32 %v2044, %v2313
    %v2315 = vpop.f32.mrf.mxu0
    %v2316 = vadd.f32 %v2040, %v2315
    %v2317 = vpop.f32.mrf.mxu0
    %v2318 = vadd.f32 %v2044, %v2317
    %2319 = vmatprep.mubr.bf16.mxu0 0
    %2320 = vmatmul.mubr.bf16.gmra.mxu0 %v2028
    %v2321 = vpop.f32.mrf.mxu0
    %v2322 = vadd.f32 %v2040, %v2321
    %v2323 = vpop.f32.mrf.mxu0
    %v2324 = vadd.f32 %v2044, %v2323
    %v2325 = vpop.f32.mrf.mxu0
    %v2326 = vadd.f32 %v2040, %v2325
    %v2327 = vpop.f32.mrf.mxu0
    %v2328 = vadd.f32 %v2044, %v2327
    %2329 = vmatprep.mubr.bf16.mxu0 0
    %2330 = vmatmul.mubr.bf16.gmra.mxu0 %v2029
    %v2331 = vpop.f32.mrf.mxu0
    %v2332 = vadd.f32 %v2040, %v2331
    %v2333 = vpop.f32.mrf.mxu0
    %v2334 = vadd.f32 %v2044, %v2333
    %v2335 = vpop.f32.mrf.mxu0
    %v2336 = vadd.f32 %v2040, %v2335
    %v2337 = vpop.f32.mrf.mxu0
    %v2338 = vadd.f32 %v2044, %v2337
    %2339 = vmatprep.mubr.bf16.mxu0 0
    %2340 = vmatmul.mubr.bf16.gmra.mxu0 %v2030
    %v2341 = vpop.f32.mrf.mxu0
    %v2342 = vadd.f32 %v2040, %v2341
    %v2343 = vpop.f32.mrf.mxu0
    %v2344 = vadd.f32 %v2044, %v2343
    %v2345 = vpop.f32.mrf.mxu0
    %v2346 = vadd.f32 %v2040, %v2345
    %v2347 = vpop.f32.mrf.mxu0
    %v2348 = vadd.f32 %v2044, %v2347
    %2349 = vmatprep.mubr.bf16.mxu0 0
    %2350 = vmatmul.mubr.bf16.gmra.mxu0 %v2031
    %v2351 = vpop.f32.mrf.mxu0
    %v2352 = vadd.f32 %v2040, %v2351
    %v2353 = vpop.f32.mrf.mxu0
    %v2354 = vadd.f32 %v2044, %v2353
    %v2355 = vpop.f32.mrf.mxu0
    %v2356 = vadd.f32 %v2040, %v2355
    %v2357 = vpop.f32.mrf.mxu0
    %v2358 = vadd.f32 %v2044, %v2357
    %2359 = vmatprep.mubr.bf16.mxu0 0
    %2360 = vmatmul.mubr.bf16.gmra.mxu0 %v2032
    %v2361 = vpop.f32.mrf.mxu0
    %v2362 = vadd.f32 %v2040, %v2361
    %v2363 = vpop.f32.mrf.mxu0
    %v2364 = vadd.f32 %v2044, %v2363
    %v2365 = vpop.f32.mrf.mxu0
    %v2366 = vadd.f32 %v2040, %v2365
    %v2367 = vpop.f32.mrf.mxu0
    %v2368 = vadd.f32 %v2044, %v2367
    %2369 = vmatprep.mubr.bf16.mxu0 0
    %2370 = vmatmul.mubr.bf16.gmra.mxu0 %v2033
    %v2371 = vpop.f32.mrf.mxu0
    %v2372 = vadd.f32 %v2040, %v2371
    %v2373 = vpop.f32.mrf.mxu0
    %v2374 = vadd.f32 %v2044, %v2373
    %v2375 = vpop.f32.mrf.mxu0
    %v2376 = vadd.f32 %v2040, %v2375
    %v2377 = vpop.f32.mrf.mxu0
    %v2378 = vadd.f32 %v2044, %v2377
    %2379 = vmatprep.mubr.bf16.mxu0 0
    %2380 = vmatmul.mubr.bf16.gmra.mxu0 %v2034
    %v2381 = vpop.f32.mrf.mxu0
    %v2382 = vadd.f32 %v2040, %v2381
    %v2383 = vpop.f32.mrf.mxu0
    %v2384 = vadd.f32 %v2044, %v2383
    %v2385 = vpop.f32.mrf.mxu0
    %v2386 = vadd.f32 %v2040, %v2385
    %v2387 = vpop.f32.mrf.mxu0
    %v2388 = vadd.f32 %v2044, %v2387
    %2389 = vmatprep.mubr.bf16.mxu0 0
    %2390 = vmatmul.mubr.bf16.gmra.mxu0 %v2035
    %v2391 = vpop.f32.mrf.mxu0
    %v2392 = vadd.f32 %v2040, %v2391
    %v2393 = vpop.f32.mrf.mxu0
    %v2394 = vadd.f32 %v2044, %v2393
    %v2395 = vpop.f32.mrf.mxu0
    %v2396 = vadd.f32 %v2040, %v2395
    %v2397 = vpop.f32.mrf.mxu0
    %v2398 = vadd.f32 %v2044, %v2397
    %2399 = vdwg.mxu0
    %v2400 = vld [vmem:[%s4] sm:$0xff]
    %v2401 = vld [vmem:[%s4 + $0x10] sm:$0xff]
    %v2402 = vld [vmem:[%s4 + $0x20] sm:$0xff]
    %v2403 = vld [vmem:[%s4 + $0x30] sm:$0xff]
    %v2404 = vld [vmem:[%s4 + $0x40] sm:$0xff]
    %v2405 = vld [vmem:[%s4 + $0x50] sm:$0xff]
    %v2406 = vld [vmem:[%s4 + $0x60] sm:$0xff]
    %v2407 = vld [vmem:[%s4 + $0x70] sm:$0xff]
    %v2408 = vld [vmem:[%s4 + $0x80] sm:$0xff]
    %v2409 = vld [vmem:[%s4 + $0x90] sm:$0xff]
    %v2410 = vld [vmem:[%s4 + $0xa0] sm:$0xff]
    %v2411 = vld [vmem:[%s4 + $0xb0] sm:$0xff]
    %v2412 = vld [vmem:[%s4 + $0xc0] sm:$0xff]
    %v2413 = vld [vmem:[%s4 + $0xd0] sm:$0xff]
    %v2414 = vld [vmem:[%s4 + $0xe0] sm:$0xff]
    %v2415 = vld [vmem:[%s4 + $0xf0] sm:$0xff]
    %v2416 = vld [vmem:[%s4 + $0x100] sm:$0xff]
    %v2417 = vld [vmem:[%s4 + $0x110] sm:$0xff]
    %v2418 = vld [vmem:[%s4 + $0x120] sm:$0xff]
    %v2419 = vld [vmem:[%s4 + $0x130] sm:$0xff]
    %v2420 = vld [vmem:[%s4 + $0x140] sm:$0xff]
    %v2421 = vld [vmem:[%s4 + $0x150] sm:$0xff]
    %v2422 = vld [vmem:[%s4 + $0x160] sm:$0xff]
    %v2423 = vld [vmem:[%s4 + $0x170] sm:$0xff]
    %v2424 = vld [vmem:[%s4 + $0x180] sm:$0xff]
    %v2425 = vld [vmem:[%s4 + $0x190] sm:$0xff]
    %v2426 = vld [vmem:[%s4 + $0x1a0] sm:$0xff]
    %v2427 = vld [vmem:[%s4 + $0x1b0] sm:$0xff]
    %v2428 = vld [vmem:[%s4 + $0x1c0] sm:$0xff]
    %v2429 = vld [vmem:[%s4 + $0x1d0] sm:$0xff]
    %v2430 = vld [vmem:[%s4 + $0x1e0] sm:$0xff]
    %v2431 = vld [vmem:[%s4 + $0x1f0] sm:$0xff]
    %v2432 = vld [vmem:[%s4 + $0x200] sm:$0xff]
    %v2433 = vld [vmem:[%s4 + $0x210] sm:$0xff]
    %v2434 = vld [vmem:[%s4 + $0x220] sm:$0xff]
    %v2435 = vld [vmem:[%s4 + $0x230] sm:$0xff]
    %v2436 = vld [vmem:[%s4 + $0x240] sm:$0xff]
    %v2437 = vld [vmem:[%s4 + $0x250] sm:$0xff]
    %v2438 = vld [vmem:[%s4 + $0x260] sm:$0xff]
    %v2439 = vld [vmem:[%s4 + $0x270] sm:$0xff]
    %v2440 = vld [vmem:[%s4 + $0x280] sm:$0xff]
    %v2441 = vld [vmem:[%s4 + $0x290] sm:$0xff]
    %v2442 = vld [vmem:[%s4 + $0x2a0] sm:$0xff]
    %v2443 = vld [vmem:[%s4 + $0x2b0] sm:$0xff]
    %v2444 = vld [vmem:[%s4 + $0x2c0] sm:$0xff]
    %v2445 = vld [vmem:[%s4 + $0x2d0] sm:$0xff]
    %v2446 = vld [vmem:[%s4 + $0x2e0] sm:$0xff]
    %v2447 = vld [vmem:[%s4 + $0x2f0] sm:$0xff]
    %v2448 = vmul.f32 %v2162, %v2400
    %v2449 = vmul.f32 %v2166, %v2401
    %v2450 = vmul.f32 %v2172, %v2402
    %v2451 = vmul.f32 %v2176, %v2403
    %v2452 = vmul.f32 %v2182, %v2404
    %v2453 = vmul.f32 %v2186, %v2405
    %v2454 = vmul.f32 %v2192, %v2406
    %v2455 = vmul.f32 %v2196, %v2407
    %v2456 = vmul.f32 %v2202, %v2408
    %v2457 = vmul.f32 %v2206, %v2409
    %v2458 = vmul.f32 %v2212, %v2410
    %v2459 = vmul.f32 %v2216, %v2411
    %v2460 = vmul.f32 %v2222, %v2412
    %v2461 = vmul.f32 %v2226, %v2413
    %v2462 = vmul.f32 %v2232, %v2414
    %v2463 = vmul.f32 %v2236, %v2415
    %v2464 = vmul.f32 %v2242, %v2416
    %v2465 = vmul.f32 %v2246, %v2417
    %v2466 = vmul.f32 %v2252, %v2418
    %v2467 = vmul.f32 %v2256, %v2419
    %v2468 = vmul.f32 %v2262, %v2420
    %v2469 = vmul.f32 %v2266, %v2421
    %v2470 = vmul.f32 %v2272, %v2422
    %v2471 = vmul.f32 %v2276, %v2423
    %v2472 = vmul.f32 %v2282, %v2424
    %v2473 = vmul.f32 %v2286, %v2425
    %v2474 = vmul.f32 %v2292, %v2426
    %v2475 = vmul.f32 %v2296, %v2427
    %v2476 = vmul.f32 %v2302, %v2428
    %v2477 = vmul.f32 %v2306, %v2429
    %v2478 = vmul.f32 %v2312, %v2430
    %v2479 = vmul.f32 %v2316, %v2431
    %v2480 = vmul.f32 %v2322, %v2432
    %v2481 = vmul.f32 %v2326, %v2433
    %v2482 = vmul.f32 %v2332, %v2434
    %v2483 = vmul.f32 %v2336, %v2435
    %v2484 = vmul.f32 %v2342, %v2436
    %v2485 = vmul.f32 %v2346, %v2437
    %v2486 = vmul.f32 %v2352, %v2438
    %v2487 = vmul.f32 %v2356, %v2439
    %v2488 = vmul.f32 %v2362, %v2440
    %v2489 = vmul.f32 %v2366, %v2441
    %v2490 = vmul.f32 %v2372, %v2442
    %v2491 = vmul.f32 %v2376, %v2443
    %v2492 = vmul.f32 %v2382, %v2444
    %v2493 = vmul.f32 %v2386, %v2445
    %v2494 = vmul.f32 %v2392, %v2446
    %v2495 = vmul.f32 %v2396, %v2447
    %2496 = vrot.lane.b32.xlu0 %v2162, 64
    %v2497 = vpop.permute.xlu0 %2496
    %2498 = vrot.lane.b32.xlu0 %v2166, 64
    %v2499 = vpop.permute.xlu0 %2498
    %2500 = vrot.lane.b32.xlu0 %v2172, 64
    %v2501 = vpop.permute.xlu0 %2500
    %2502 = vrot.lane.b32.xlu0 %v2176, 64
    %v2503 = vpop.permute.xlu0 %2502
    %2504 = vrot.lane.b32.xlu0 %v2182, 64
    %v2505 = vpop.permute.xlu0 %2504
    %2506 = vrot.lane.b32.xlu0 %v2186, 64
    %v2507 = vpop.permute.xlu0 %2506
    %2508 = vrot.lane.b32.xlu0 %v2192, 64
    %v2509 = vpop.permute.xlu0 %2508
    %2510 = vrot.lane.b32.xlu0 %v2196, 64
    %v2511 = vpop.permute.xlu0 %2510
    %2512 = vrot.lane.b32.xlu0 %v2202, 64
    %v2513 = vpop.permute.xlu0 %2512
    %2514 = vrot.lane.b32.xlu0 %v2206, 64
    %v2515 = vpop.permute.xlu0 %2514
    %2516 = vrot.lane.b32.xlu0 %v2212, 64
    %v2517 = vpop.permute.xlu0 %2516
    %2518 = vrot.lane.b32.xlu0 %v2216, 64
    %v2519 = vpop.permute.xlu0 %2518
    %2520 = vrot.lane.b32.xlu0 %v2222, 64
    %v2521 = vpop.permute.xlu0 %2520
    %2522 = vrot.lane.b32.xlu0 %v2226, 64
    %v2523 = vpop.permute.xlu0 %2522
    %2524 = vrot.lane.b32.xlu0 %v2232, 64
    %v2525 = vpop.permute.xlu0 %2524
    %2526 = vrot.lane.b32.xlu0 %v2236, 64
    %v2527 = vpop.permute.xlu0 %2526
    %2528 = vrot.lane.b32.xlu0 %v2242, 64
    %v2529 = vpop.permute.xlu0 %2528
    %2530 = vrot.lane.b32.xlu0 %v2246, 64
    %v2531 = vpop.permute.xlu0 %2530
    %2532 = vrot.lane.b32.xlu0 %v2252, 64
    %v2533 = vpop.permute.xlu0 %2532
    %2534 = vrot.lane.b32.xlu0 %v2256, 64
    %v2535 = vpop.permute.xlu0 %2534
    %2536 = vrot.lane.b32.xlu0 %v2262, 64
    %v2537 = vpop.permute.xlu0 %2536
    %2538 = vrot.lane.b32.xlu0 %v2266, 64
    %v2539 = vpop.permute.xlu0 %2538
    %2540 = vrot.lane.b32.xlu0 %v2272, 64
    %v2541 = vpop.permute.xlu0 %2540
    %2542 = vrot.lane.b32.xlu0 %v2276, 64
    %v2543 = vpop.permute.xlu0 %2542
    %2544 = vrot.lane.b32.xlu0 %v2282, 64
    %v2545 = vpop.permute.xlu0 %2544
    %2546 = vrot.lane.b32.xlu0 %v2286, 64
    %v2547 = vpop.permute.xlu0 %2546
    %2548 = vrot.lane.b32.xlu0 %v2292, 64
    %v2549 = vpop.permute.xlu0 %2548
    %2550 = vrot.lane.b32.xlu0 %v2296, 64
    %v2551 = vpop.permute.xlu0 %2550
    %2552 = vrot.lane.b32.xlu0 %v2302, 64
    %v2553 = vpop.permute.xlu0 %2552
    %2554 = vrot.lane.b32.xlu0 %v2306, 64
    %v2555 = vpop.permute.xlu0 %2554
    %2556 = vrot.lane.b32.xlu0 %v2312, 64
    %v2557 = vpop.permute.xlu0 %2556
    %2558 = vrot.lane.b32.xlu0 %v2316, 64
    %v2559 = vpop.permute.xlu0 %2558
    %2560 = vrot.lane.b32.xlu0 %v2322, 64
    %v2561 = vpop.permute.xlu0 %2560
    %2562 = vrot.lane.b32.xlu0 %v2326, 64
    %v2563 = vpop.permute.xlu0 %2562
    %2564 = vrot.lane.b32.xlu0 %v2332, 64
    %v2565 = vpop.permute.xlu0 %2564
    %2566 = vrot.lane.b32.xlu0 %v2336, 64
    %v2567 = vpop.permute.xlu0 %2566
    %2568 = vrot.lane.b32.xlu0 %v2342, 64
    %v2569 = vpop.permute.xlu0 %2568
    %2570 = vrot.lane.b32.xlu0 %v2346, 64
    %v2571 = vpop.permute.xlu0 %2570
    %2572 = vrot.lane.b32.xlu0 %v2352, 64
    %v2573 = vpop.permute.xlu0 %2572
    %2574 = vrot.lane.b32.xlu0 %v2356, 64
    %v2575 = vpop.permute.xlu0 %2574
    %2576 = vrot.lane.b32.xlu0 %v2362, 64
    %v2577 = vpop.permute.xlu0 %2576
    %2578 = vrot.lane.b32.xlu0 %v2366, 64
    %v2579 = vpop.permute.xlu0 %2578
    %2580 = vrot.lane.b32.xlu0 %v2372, 64
    %v2581 = vpop.permute.xlu0 %2580
    %2582 = vrot.lane.b32.xlu0 %v2376, 64
    %v2583 = vpop.permute.xlu0 %2582
    %2584 = vrot.lane.b32.xlu0 %v2382, 64
    %v2585 = vpop.permute.xlu0 %2584
    %2586 = vrot.lane.b32.xlu0 %v2386, 64
    %v2587 = vpop.permute.xlu0 %2586
    %2588 = vrot.lane.b32.xlu0 %v2392, 64
    %v2589 = vpop.permute.xlu0 %2588
    %2590 = vrot.lane.b32.xlu0 %v2396, 64
    %v2591 = vpop.permute.xlu0 %2590
    %v2592 = vld [vmem:[%s4 + $0x8] sm:$0xff]
    %v2593 = vld [vmem:[%s4 + $0x18] sm:$0xff]
    %v2594 = vld [vmem:[%s4 + $0x28] sm:$0xff]
    %v2595 = vld [vmem:[%s4 + $0x38] sm:$0xff]
    %v2596 = vld [vmem:[%s4 + $0x48] sm:$0xff]
    %v2597 = vld [vmem:[%s4 + $0x58] sm:$0xff]
    %v2598 = vld [vmem:[%s4 + $0x68] sm:$0xff]
    %v2599 = vld [vmem:[%s4 + $0x78] sm:$0xff]
    %v2600 = vld [vmem:[%s4 + $0x88] sm:$0xff]
    %v2601 = vld [vmem:[%s4 + $0x98] sm:$0xff]
    %v2602 = vld [vmem:[%s4 + $0xa8] sm:$0xff]
    %v2603 = vld [vmem:[%s4 + $0xb8] sm:$0xff]
    %v2604 = vld [vmem:[%s4 + $0xc8] sm:$0xff]
    %v2605 = vld [vmem:[%s4 + $0xd8] sm:$0xff]
    %v2606 = vld [vmem:[%s4 + $0xe8] sm:$0xff]
    %v2607 = vld [vmem:[%s4 + $0xf8] sm:$0xff]
    %v2608 = vld [vmem:[%s4 + $0x108] sm:$0xff]
    %v2609 = vld [vmem:[%s4 + $0x118] sm:$0xff]
    %v2610 = vld [vmem:[%s4 + $0x128] sm:$0xff]
    %v2611 = vld [vmem:[%s4 + $0x138] sm:$0xff]
    %v2612 = vld [vmem:[%s4 + $0x148] sm:$0xff]
    %v2613 = vld [vmem:[%s4 + $0x158] sm:$0xff]
    %v2614 = vld [vmem:[%s4 + $0x168] sm:$0xff]
    %v2615 = vld [vmem:[%s4 + $0x178] sm:$0xff]
    %v2616 = vld [vmem:[%s4 + $0x188] sm:$0xff]
    %v2617 = vld [vmem:[%s4 + $0x198] sm:$0xff]
    %v2618 = vld [vmem:[%s4 + $0x1a8] sm:$0xff]
    %v2619 = vld [vmem:[%s4 + $0x1b8] sm:$0xff]
    %v2620 = vld [vmem:[%s4 + $0x1c8] sm:$0xff]
    %v2621 = vld [vmem:[%s4 + $0x1d8] sm:$0xff]
    %v2622 = vld [vmem:[%s4 + $0x1e8] sm:$0xff]
    %v2623 = vld [vmem:[%s4 + $0x1f8] sm:$0xff]
    %v2624 = vld [vmem:[%s4 + $0x208] sm:$0xff]
    %v2625 = vld [vmem:[%s4 + $0x218] sm:$0xff]
    %v2626 = vld [vmem:[%s4 + $0x228] sm:$0xff]
    %v2627 = vld [vmem:[%s4 + $0x238] sm:$0xff]
    %v2628 = vld [vmem:[%s4 + $0x248] sm:$0xff]
    %v2629 = vld [vmem:[%s4 + $0x258] sm:$0xff]
    %v2630 = vld [vmem:[%s4 + $0x268] sm:$0xff]
    %v2631 = vld [vmem:[%s4 + $0x278] sm:$0xff]
    %v2632 = vld [vmem:[%s4 + $0x288] sm:$0xff]
    %v2633 = vld [vmem:[%s4 + $0x298] sm:$0xff]
    %v2634 = vld [vmem:[%s4 + $0x2a8] sm:$0xff]
    %v2635 = vld [vmem:[%s4 + $0x2b8] sm:$0xff]
    %v2636 = vld [vmem:[%s4 + $0x2c8] sm:$0xff]
    %v2637 = vld [vmem:[%s4 + $0x2d8] sm:$0xff]
    %v2638 = vld [vmem:[%s4 + $0x2e8] sm:$0xff]
    %v2639 = vld [vmem:[%s4 + $0x2f8] sm:$0xff]
    %v2640 = vmul.f32 %v2497, %v2592
    %v2641 = vmul.f32 %v2499, %v2593
    %v2642 = vmul.f32 %v2501, %v2594
    %v2643 = vmul.f32 %v2503, %v2595
    %v2644 = vmul.f32 %v2505, %v2596
    %v2645 = vmul.f32 %v2507, %v2597
    %v2646 = vmul.f32 %v2509, %v2598
    %v2647 = vmul.f32 %v2511, %v2599
    %v2648 = vmul.f32 %v2513, %v2600
    %v2649 = vmul.f32 %v2515, %v2601
    %v2650 = vmul.f32 %v2517, %v2602
    %v2651 = vmul.f32 %v2519, %v2603
    %v2652 = vmul.f32 %v2521, %v2604
    %v2653 = vmul.f32 %v2523, %v2605
    %v2654 = vmul.f32 %v2525, %v2606
    %v2655 = vmul.f32 %v2527, %v2607
    %v2656 = vmul.f32 %v2529, %v2608
    %v2657 = vmul.f32 %v2531, %v2609
    %v2658 = vmul.f32 %v2533, %v2610
    %v2659 = vmul.f32 %v2535, %v2611
    %v2660 = vmul.f32 %v2537, %v2612
    %v2661 = vmul.f32 %v2539, %v2613
    %v2662 = vmul.f32 %v2541, %v2614
    %v2663 = vmul.f32 %v2543, %v2615
    %v2664 = vmul.f32 %v2545, %v2616
    %v2665 = vmul.f32 %v2547, %v2617
    %v2666 = vmul.f32 %v2549, %v2618
    %v2667 = vmul.f32 %v2551, %v2619
    %v2668 = vmul.f32 %v2553, %v2620
    %v2669 = vmul.f32 %v2555, %v2621
    %v2670 = vmul.f32 %v2557, %v2622
    %v2671 = vmul.f32 %v2559, %v2623
    %v2672 = vmul.f32 %v2561, %v2624
    %v2673 = vmul.f32 %v2563, %v2625
    %v2674 = vmul.f32 %v2565, %v2626
    %v2675 = vmul.f32 %v2567, %v2627
    %v2676 = vmul.f32 %v2569, %v2628
    %v2677 = vmul.f32 %v2571, %v2629
    %v2678 = vmul.f32 %v2573, %v2630
    %v2679 = vmul.f32 %v2575, %v2631
    %v2680 = vmul.f32 %v2577, %v2632
    %v2681 = vmul.f32 %v2579, %v2633
    %v2682 = vmul.f32 %v2581, %v2634
    %v2683 = vmul.f32 %v2583, %v2635
    %v2684 = vmul.f32 %v2585, %v2636
    %v2685 = vmul.f32 %v2587, %v2637
    %v2686 = vmul.f32 %v2589, %v2638
    %v2687 = vmul.f32 %v2591, %v2639
    %v2688 = vadd.f32 %v2448, %v2640
    %v2689 = vadd.f32 %v2449, %v2641
    %v2690 = vadd.f32 %v2450, %v2642
    %v2691 = vadd.f32 %v2451, %v2643
    %v2692 = vadd.f32 %v2452, %v2644
    %v2693 = vadd.f32 %v2453, %v2645
    %v2694 = vadd.f32 %v2454, %v2646
    %v2695 = vadd.f32 %v2455, %v2647
    %v2696 = vadd.f32 %v2456, %v2648
    %v2697 = vadd.f32 %v2457, %v2649
    %v2698 = vadd.f32 %v2458, %v2650
    %v2699 = vadd.f32 %v2459, %v2651
    %v2700 = vadd.f32 %v2460, %v2652
    %v2701 = vadd.f32 %v2461, %v2653
    %v2702 = vadd.f32 %v2462, %v2654
    %v2703 = vadd.f32 %v2463, %v2655
    %v2704 = vadd.f32 %v2464, %v2656
    %v2705 = vadd.f32 %v2465, %v2657
    %v2706 = vadd.f32 %v2466, %v2658
    %v2707 = vadd.f32 %v2467, %v2659
    %v2708 = vadd.f32 %v2468, %v2660
    %v2709 = vadd.f32 %v2469, %v2661
    %v2710 = vadd.f32 %v2470, %v2662
    %v2711 = vadd.f32 %v2471, %v2663
    %v2712 = vadd.f32 %v2472, %v2664
    %v2713 = vadd.f32 %v2473, %v2665
    %v2714 = vadd.f32 %v2474, %v2666
    %v2715 = vadd.f32 %v2475, %v2667
    %v2716 = vadd.f32 %v2476, %v2668
    %v2717 = vadd.f32 %v2477, %v2669
    %v2718 = vadd.f32 %v2478, %v2670
    %v2719 = vadd.f32 %v2479, %v2671
    %v2720 = vadd.f32 %v2480, %v2672
    %v2721 = vadd.f32 %v2481, %v2673
    %v2722 = vadd.f32 %v2482, %v2674
    %v2723 = vadd.f32 %v2483, %v2675
    %v2724 = vadd.f32 %v2484, %v2676
    %v2725 = vadd.f32 %v2485, %v2677
    %v2726 = vadd.f32 %v2486, %v2678
    %v2727 = vadd.f32 %v2487, %v2679
    %v2728 = vadd.f32 %v2488, %v2680
    %v2729 = vadd.f32 %v2489, %v2681
    %v2730 = vadd.f32 %v2490, %v2682
    %v2731 = vadd.f32 %v2491, %v2683
    %v2732 = vadd.f32 %v2492, %v2684
    %v2733 = vadd.f32 %v2493, %v2685
    %v2734 = vadd.f32 %v2494, %v2686
    %v2735 = vadd.f32 %v2495, %v2687
    %v2736 = vpack.c.bf16 %v1931, %v1930
    %v2737 = vpack.c.bf16 %v1933, %v1932
    %v2738 = vpack.c.bf16 %v1935, %v1934
    %v2739 = vpack.c.bf16 %v1937, %v1936
    %v2740 = vpack.c.bf16 %v1939, %v1938
    %v2741 = vpack.c.bf16 %v1941, %v1940
    %v2742 = vpack.c.bf16 %v1943, %v1942
    %v2743 = vpack.c.bf16 %v1945, %v1944
    %v2744 = vpack.c.bf16 %v2689, %v2688
    %v2745 = vpack.c.bf16 %v2691, %v2690
    %v2746 = vpack.c.bf16 %v2693, %v2692
    %v2747 = vpack.c.bf16 %v2695, %v2694
    %v2748 = vpack.c.bf16 %v2697, %v2696
    %v2749 = vpack.c.bf16 %v2699, %v2698
    %v2750 = vpack.c.bf16 %v2701, %v2700
    %v2751 = vpack.c.bf16 %v2703, %v2702
    %v2752 = vpack.c.bf16 %v2705, %v2704
    %v2753 = vpack.c.bf16 %v2707, %v2706
    %v2754 = vpack.c.bf16 %v2709, %v2708
    %v2755 = vpack.c.bf16 %v2711, %v2710
    %v2756 = vpack.c.bf16 %v2713, %v2712
    %v2757 = vpack.c.bf16 %v2715, %v2714
    %v2758 = vpack.c.bf16 %v2717, %v2716
    %v2759 = vpack.c.bf16 %v2719, %v2718
    %v2760 = vpack.c.bf16 %v2721, %v2720
    %v2761 = vpack.c.bf16 %v2723, %v2722
    %v2762 = vpack.c.bf16 %v2725, %v2724
    %v2763 = vpack.c.bf16 %v2727, %v2726
    %v2764 = vpack.c.bf16 %v2729, %v2728
    %v2765 = vpack.c.bf16 %v2731, %v2730
    %v2766 = vpack.c.bf16 %v2733, %v2732
    %v2767 = vpack.c.bf16 %v2735, %v2734
    %v2768 = vld [vmem:[%s6] sm:$0xff]
    %v2769 = vld [vmem:[%s6 + $0x8] sm:$0xff]
    %v2770 = vld [vmem:[%s6 + $0x10] sm:$0xff]
    %v2771 = vld [vmem:[%s6 + $0x18] sm:$0xff]
    %v2772 = vld [vmem:[%s6 + $0x20] sm:$0xff]
    %v2773 = vld [vmem:[%s6 + $0x28] sm:$0xff]
    %v2774 = vld [vmem:[%s6 + $0x30] sm:$0xff]
    %v2775 = vld [vmem:[%s6 + $0x38] sm:$0xff]
    %v2776 = vld [vmem:[%s6 + $0x40] sm:$0xff]
    %v2777 = vld [vmem:[%s6 + $0x48] sm:$0xff]
    %v2778 = vld [vmem:[%s6 + $0x50] sm:$0xff]
    %v2779 = vld [vmem:[%s6 + $0x58] sm:$0xff]
    %v2780 = vld [vmem:[%s6 + $0x60] sm:$0xff]
    %v2781 = vld [vmem:[%s6 + $0x68] sm:$0xff]
    %v2782 = vld [vmem:[%s6 + $0x70] sm:$0xff]
    %v2783 = vld [vmem:[%s6 + $0x78] sm:$0xff]
    %v2784 = vld [vmem:[%s6 + $0x80] sm:$0xff]
    %v2785 = vld [vmem:[%s6 + $0x88] sm:$0xff]
    %v2786 = vld [vmem:[%s6 + $0x90] sm:$0xff]
    %v2787 = vld [vmem:[%s6 + $0x98] sm:$0xff]
    %v2788 = vld [vmem:[%s6 + $0xa0] sm:$0xff]
    %v2789 = vld [vmem:[%s6 + $0xa8] sm:$0xff]
    %v2790 = vld [vmem:[%s6 + $0xb0] sm:$0xff]
    %v2791 = vld [vmem:[%s6 + $0xb8] sm:$0xff]
    %v2792 = vld [vmem:[%s6 + $0xc0] sm:$0xff]
    %v2793 = vld [vmem:[%s6 + $0xc8] sm:$0xff]
    %v2794 = vld [vmem:[%s6 + $0xd0] sm:$0xff]
    %v2795 = vld [vmem:[%s6 + $0xd8] sm:$0xff]
    %v2796 = vld [vmem:[%s6 + $0xe0] sm:$0xff]
    %v2797 = vld [vmem:[%s6 + $0xe8] sm:$0xff]
    %v2798 = vld [vmem:[%s6 + $0xf0] sm:$0xff]
    %v2799 = vld [vmem:[%s6 + $0xf8] sm:$0xff]
    %v2800 = vld [vmem:[%s6 + $0x100] sm:$0xff]
    %v2801 = vld [vmem:[%s6 + $0x108] sm:$0xff]
    %v2802 = vld [vmem:[%s6 + $0x110] sm:$0xff]
    %v2803 = vld [vmem:[%s6 + $0x118] sm:$0xff]
    %v2804 = vld [vmem:[%s6 + $0x120] sm:$0xff]
    %v2805 = vld [vmem:[%s6 + $0x128] sm:$0xff]
    %v2806 = vld [vmem:[%s6 + $0x130] sm:$0xff]
    %v2807 = vld [vmem:[%s6 + $0x138] sm:$0xff]
    %v2808 = vld [vmem:[%s6 + $0x140] sm:$0xff]
    %v2809 = vld [vmem:[%s6 + $0x148] sm:$0xff]
    %v2810 = vld [vmem:[%s6 + $0x150] sm:$0xff]
    %v2811 = vld [vmem:[%s6 + $0x158] sm:$0xff]
    %v2812 = vld [vmem:[%s6 + $0x160] sm:$0xff]
    %v2813 = vld [vmem:[%s6 + $0x168] sm:$0xff]
    %v2814 = vld [vmem:[%s6 + $0x170] sm:$0xff]
    %v2815 = vld [vmem:[%s6 + $0x178] sm:$0xff]
    %2816 = vmatprep.subr.bf16.mxu0 0
    %2817 = vmatpush1.bf16.xpose.msra.mxu0 %v2751
    %2818 = vmatprep.subr.bf16.mxu0 0
    %2819 = vmatpush1.bf16.xpose.msra.mxu0 %v2750
    %2820 = vmatprep.subr.bf16.mxu0 0
    %2821 = vmatpush1.bf16.xpose.msra.mxu0 %v2749
    %2822 = vmatprep.subr.bf16.mxu0 0
    %2823 = vmatpush1.bf16.xpose.msra.mxu0 %v2748
    %2824 = vmatprep.subr.bf16.mxu0 0
    %2825 = vmatpush1.bf16.xpose.msra.mxu0 %v2747
    %2826 = vmatprep.subr.bf16.mxu0 0
    %2827 = vmatpush1.bf16.xpose.msra.mxu0 %v2746
    %2828 = vmatprep.subr.bf16.mxu0 0
    %2829 = vmatpush1.bf16.xpose.msra.mxu0 %v2745
    %2830 = vmatprep.subr.bf16.mxu0 0
    %2831 = vmatpush1.bf16.xpose.msra.mxu0 %v2744
    %2832 = vmatprep.subr.bf16.mxu0 0
    %2833 = vmatpush2.bf16.xpose.msra.mxu0 %v2759
    %2834 = vmatprep.subr.bf16.mxu0 0
    %2835 = vmatpush2.bf16.xpose.msra.mxu0 %v2758
    %2836 = vmatprep.subr.bf16.mxu0 0
    %2837 = vmatpush2.bf16.xpose.msra.mxu0 %v2757
    %2838 = vmatprep.subr.bf16.mxu0 0
    %2839 = vmatpush2.bf16.xpose.msra.mxu0 %v2756
    %2840 = vmatprep.subr.bf16.mxu0 0
    %2841 = vmatpush2.bf16.xpose.msra.mxu0 %v2755
    %2842 = vmatprep.subr.bf16.mxu0 0
    %2843 = vmatpush2.bf16.xpose.msra.mxu0 %v2754
    %2844 = vmatprep.subr.bf16.mxu0 0
    %2845 = vmatpush2.bf16.xpose.msra.mxu0 %v2753
    %2846 = vmatprep.subr.bf16.mxu0 0
    %2847 = vmatpush2.bf16.xpose.msra.mxu0 %v2752
    %2848 = vmatprep.mubr.bf16.mxu0 0
    %2849 = vmatmul.mubr.bf16.gmra.mxu0 %v2736
    %v2850 = vpop.f32.mrf.mxu0
    %v2851 = vadd.f32 %v2768, %v2850
    %v2852 = vpop.f32.mrf.mxu0
    %v2853 = vadd.f32 %v2769, %v2852
    %v2854 = vpop.f32.mrf.mxu0
    %v2855 = vadd.f32 %v2771, %v2854
    %v2856 = vpop.f32.mrf.mxu0
    %v2857 = vadd.f32 %v2772, %v2856
    %2858 = vmatprep.mubr.bf16.mxu0 0
    %2859 = vmatmul.mubr.bf16.gmra.mxu0 %v2737
    %v2860 = vpop.f32.mrf.mxu0
    %v2861 = vadd.f32 %v2774, %v2860
    %v2862 = vpop.f32.mrf.mxu0
    %v2863 = vadd.f32 %v2775, %v2862
    %v2864 = vpop.f32.mrf.mxu0
    %v2865 = vadd.f32 %v2777, %v2864
    %v2866 = vpop.f32.mrf.mxu0
    %v2867 = vadd.f32 %v2778, %v2866
    %2868 = vmatprep.mubr.bf16.mxu0 0
    %2869 = vmatmul.mubr.bf16.gmra.mxu0 %v2738
    %v2870 = vpop.f32.mrf.mxu0
    %v2871 = vadd.f32 %v2780, %v2870
    %v2872 = vpop.f32.mrf.mxu0
    %v2873 = vadd.f32 %v2781, %v2872
    %v2874 = vpop.f32.mrf.mxu0
    %v2875 = vadd.f32 %v2783, %v2874
    %v2876 = vpop.f32.mrf.mxu0
    %v2877 = vadd.f32 %v2784, %v2876
    %2878 = vmatprep.mubr.bf16.mxu0 0
    %2879 = vmatmul.mubr.bf16.gmra.mxu0 %v2739
    %v2880 = vpop.f32.mrf.mxu0
    %v2881 = vadd.f32 %v2786, %v2880
    %v2882 = vpop.f32.mrf.mxu0
    %v2883 = vadd.f32 %v2787, %v2882
    %v2884 = vpop.f32.mrf.mxu0
    %v2885 = vadd.f32 %v2789, %v2884
    %v2886 = vpop.f32.mrf.mxu0
    %v2887 = vadd.f32 %v2790, %v2886
    %2888 = vmatprep.mubr.bf16.mxu0 0
    %2889 = vmatmul.mubr.bf16.gmra.mxu0 %v2740
    %v2890 = vpop.f32.mrf.mxu0
    %v2891 = vadd.f32 %v2792, %v2890
    %v2892 = vpop.f32.mrf.mxu0
    %v2893 = vadd.f32 %v2793, %v2892
    %v2894 = vpop.f32.mrf.mxu0
    %v2895 = vadd.f32 %v2795, %v2894
    %v2896 = vpop.f32.mrf.mxu0
    %v2897 = vadd.f32 %v2796, %v2896
    %2898 = vmatprep.mubr.bf16.mxu0 0
    %2899 = vmatmul.mubr.bf16.gmra.mxu0 %v2741
    %v2900 = vpop.f32.mrf.mxu0
    %v2901 = vadd.f32 %v2798, %v2900
    %v2902 = vpop.f32.mrf.mxu0
    %v2903 = vadd.f32 %v2799, %v2902
    %v2904 = vpop.f32.mrf.mxu0
    %v2905 = vadd.f32 %v2801, %v2904
    %v2906 = vpop.f32.mrf.mxu0
    %v2907 = vadd.f32 %v2802, %v2906
    %2908 = vmatprep.mubr.bf16.mxu0 0
    %2909 = vmatmul.mubr.bf16.gmra.mxu0 %v2742
    %v2910 = vpop.f32.mrf.mxu0
    %v2911 = vadd.f32 %v2804, %v2910
    %v2912 = vpop.f32.mrf.mxu0
    %v2913 = vadd.f32 %v2805, %v2912
    %v2914 = vpop.f32.mrf.mxu0
    %v2915 = vadd.f32 %v2807, %v2914
    %v2916 = vpop.f32.mrf.mxu0
    %v2917 = vadd.f32 %v2808, %v2916
    %2918 = vmatprep.mubr.bf16.mxu0 0
    %2919 = vmatmul.mubr.bf16.gmra.mxu0 %v2743
    %v2920 = vpop.f32.mrf.mxu0
    %v2921 = vadd.f32 %v2810, %v2920
    %v2922 = vpop.f32.mrf.mxu0
    %v2923 = vadd.f32 %v2811, %v2922
    %v2924 = vpop.f32.mrf.mxu0
    %v2925 = vadd.f32 %v2813, %v2924
    %v2926 = vpop.f32.mrf.mxu0
    %v2927 = vadd.f32 %v2814, %v2926
    %2928 = vdwg.mxu0
    %2929 = vmatprep.subr.bf16.mxu0 0
    %2930 = vmatpush1.bf16.xpose.msra.mxu0 %v2767
    %2931 = vmatprep.subr.bf16.mxu0 0
    %2932 = vmatpush1.bf16.xpose.msra.mxu0 %v2766
    %2933 = vmatprep.subr.bf16.mxu0 0
    %2934 = vmatpush1.bf16.xpose.msra.mxu0 %v2765
    %2935 = vmatprep.subr.bf16.mxu0 0
    %2936 = vmatpush1.bf16.xpose.msra.mxu0 %v2764
    %2937 = vmatprep.subr.bf16.mxu0 0
    %2938 = vmatpush1.bf16.xpose.msra.mxu0 %v2763
    %2939 = vmatprep.subr.bf16.mxu0 0
    %2940 = vmatpush1.bf16.xpose.msra.mxu0 %v2762
    %2941 = vmatprep.subr.bf16.mxu0 0
    %2942 = vmatpush1.bf16.xpose.msra.mxu0 %v2761
    %2943 = vmatprep.subr.bf16.mxu0 0
    %2944 = vmatpush1.bf16.xpose.msra.mxu0 %v2760
    %2945 = vmatprep.subr.bf16.mxu0 0
    %2946 = vmatpush2.bf16.xpose.msra.mxu0 0
    %2947 = vmatprep.subr.bf16.mxu0 0
    %2948 = vmatpush2.bf16.xpose.msra.mxu0 0
    %2949 = vmatprep.subr.bf16.mxu0 0
    %2950 = vmatpush2.bf16.xpose.msra.mxu0 0
    %2951 = vmatprep.subr.bf16.mxu0 0
    %2952 = vmatpush2.bf16.xpose.msra.mxu0 0
    %2953 = vmatprep.subr.bf16.mxu0 0
    %2954 = vmatpush2.bf16.xpose.msra.mxu0 0
    %2955 = vmatprep.subr.bf16.mxu0 0
    %2956 = vmatpush2.bf16.xpose.msra.mxu0 0
    %2957 = vmatprep.subr.bf16.mxu0 0
    %2958 = vmatpush2.bf16.xpose.msra.mxu0 0
    %2959 = vmatprep.subr.bf16.mxu0 0
    %2960 = vmatpush2.bf16.xpose.msra.mxu0 0
    %2961 = vmatprep.mubr.bf16.mxu0 0
    %2962 = vmatmul.mubr.bf16.gmra.mxu0 %v2736
    %v2963 = vpop.f32.mrf.mxu0
    %v2964 = vadd.f32 %v2770, %v2963
    %v2965 = vpop.f32.mrf.mxu0
    %v2966 = vpop.f32.mrf.mxu0
    %v2967 = vadd.f32 %v2773, %v2966
    %v2968 = vpop.f32.mrf.mxu0
    %2969 = vmatprep.mubr.bf16.mxu0 0
    %2970 = vmatmul.mubr.bf16.gmra.mxu0 %v2737
    %v2971 = vpop.f32.mrf.mxu0
    %v2972 = vadd.f32 %v2776, %v2971
    %v2973 = vpop.f32.mrf.mxu0
    %v2974 = vpop.f32.mrf.mxu0
    %v2975 = vadd.f32 %v2779, %v2974
    %v2976 = vpop.f32.mrf.mxu0
    %2977 = vmatprep.mubr.bf16.mxu0 0
    %2978 = vmatmul.mubr.bf16.gmra.mxu0 %v2738
    %v2979 = vpop.f32.mrf.mxu0
    %v2980 = vadd.f32 %v2782, %v2979
    %v2981 = vpop.f32.mrf.mxu0
    %v2982 = vpop.f32.mrf.mxu0
    %v2983 = vadd.f32 %v2785, %v2982
    %v2984 = vpop.f32.mrf.mxu0
    %2985 = vmatprep.mubr.bf16.mxu0 0
    %2986 = vmatmul.mubr.bf16.gmra.mxu0 %v2739
    %v2987 = vpop.f32.mrf.mxu0
    %v2988 = vadd.f32 %v2788, %v2987
    %v2989 = vpop.f32.mrf.mxu0
    %v2990 = vpop.f32.mrf.mxu0
    %v2991 = vadd.f32 %v2791, %v2990
    %v2992 = vpop.f32.mrf.mxu0
    %2993 = vmatprep.mubr.bf16.mxu0 0
    %2994 = vmatmul.mubr.bf16.gmra.mxu0 %v2740
    %v2995 = vpop.f32.mrf.mxu0
    %v2996 = vadd.f32 %v2794, %v2995
    %v2997 = vpop.f32.mrf.mxu0
    %v2998 = vpop.f32.mrf.mxu0
    %v2999 = vadd.f32 %v2797, %v2998
    %v3000 = vpop.f32.mrf.mxu0
    %3001 = vmatprep.mubr.bf16.mxu0 0
    %3002 = vmatmul.mubr.bf16.gmra.mxu0 %v2741
    %v3003 = vpop.f32.mrf.mxu0
    %v3004 = vadd.f32 %v2800, %v3003
    %v3005 = vpop.f32.mrf.mxu0
    %v3006 = vpop.f32.mrf.mxu0
    %v3007 = vadd.f32 %v2803, %v3006
    %v3008 = vpop.f32.mrf.mxu0
    %3009 = vmatprep.mubr.bf16.mxu0 0
    %3010 = vmatmul.mubr.bf16.gmra.mxu0 %v2742
    %v3011 = vpop.f32.mrf.mxu0
    %v3012 = vadd.f32 %v2806, %v3011
    %v3013 = vpop.f32.mrf.mxu0
    %v3014 = vpop.f32.mrf.mxu0
    %v3015 = vadd.f32 %v2809, %v3014
    %v3016 = vpop.f32.mrf.mxu0
    %3017 = vmatprep.mubr.bf16.mxu0 0
    %3018 = vmatmul.mubr.bf16.gmra.mxu0 %v2743
    %v3019 = vpop.f32.mrf.mxu0
    %v3020 = vadd.f32 %v2812, %v3019
    %v3021 = vpop.f32.mrf.mxu0
    %v3022 = vpop.f32.mrf.mxu0
    %v3023 = vadd.f32 %v2815, %v3022
    %v3024 = vpop.f32.mrf.mxu0
    %3025 = vdwg.mxu0
    %v3026 = vmax.f32 %v2851, %v2853
    %v3027 = vmax.f32 %v3026, %v2964
    %3028 = vmax.xlane.f32.xlu0 %v3027
    %v3029 = vpop.xlane.xlu0 %3028
    %v3030 = vmax.f32 %v2855, %v2857
    %v3031 = vmax.f32 %v3030, %v2967
    %3032 = vmax.xlane.f32.xlu0 %v3031
    %v3033 = vpop.xlane.xlu0 %3032
    %v3034 = vmax.f32 %v2861, %v2863
    %v3035 = vmax.f32 %v3034, %v2972
    %3036 = vmax.xlane.f32.xlu0 %v3035
    %v3037 = vpop.xlane.xlu0 %3036
    %v3038 = vmax.f32 %v2865, %v2867
    %v3039 = vmax.f32 %v3038, %v2975
    %3040 = vmax.xlane.f32.xlu0 %v3039
    %v3041 = vpop.xlane.xlu0 %3040
    %v3042 = vmax.f32 %v2871, %v2873
    %v3043 = vmax.f32 %v3042, %v2980
    %3044 = vmax.xlane.f32.xlu0 %v3043
    %v3045 = vpop.xlane.xlu0 %3044
    %v3046 = vmax.f32 %v2875, %v2877
    %v3047 = vmax.f32 %v3046, %v2983
    %3048 = vmax.xlane.f32.xlu0 %v3047
    %v3049 = vpop.xlane.xlu0 %3048
    %v3050 = vmax.f32 %v2881, %v2883
    %v3051 = vmax.f32 %v3050, %v2988
    %3052 = vmax.xlane.f32.xlu0 %v3051
    %v3053 = vpop.xlane.xlu0 %3052
    %v3054 = vmax.f32 %v2885, %v2887
    %v3055 = vmax.f32 %v3054, %v2991
    %3056 = vmax.xlane.f32.xlu0 %v3055
    %v3057 = vpop.xlane.xlu0 %3056
    %v3058 = vmax.f32 %v2891, %v2893
    %v3059 = vmax.f32 %v3058, %v2996
    %3060 = vmax.xlane.f32.xlu0 %v3059
    %v3061 = vpop.xlane.xlu0 %3060
    %v3062 = vmax.f32 %v2895, %v2897
    %v3063 = vmax.f32 %v3062, %v2999
    %3064 = vmax.xlane.f32.xlu0 %v3063
    %v3065 = vpop.xlane.xlu0 %3064
    %v3066 = vmax.f32 %v2901, %v2903
    %v3067 = vmax.f32 %v3066, %v3004
    %3068 = vmax.xlane.f32.xlu0 %v3067
    %v3069 = vpop.xlane.xlu0 %3068
    %v3070 = vmax.f32 %v2905, %v2907
    %v3071 = vmax.f32 %v3070, %v3007
    %3072 = vmax.xlane.f32.xlu0 %v3071
    %v3073 = vpop.xlane.xlu0 %3072
    %v3074 = vmax.f32 %v2911, %v2913
    %v3075 = vmax.f32 %v3074, %v3012
    %3076 = vmax.xlane.f32.xlu0 %v3075
    %v3077 = vpop.xlane.xlu0 %3076
    %v3078 = vmax.f32 %v2915, %v2917
    %v3079 = vmax.f32 %v3078, %v3015
    %3080 = vmax.xlane.f32.xlu0 %v3079
    %v3081 = vpop.xlane.xlu0 %3080
    %v3082 = vmax.f32 %v2921, %v2923
    %v3083 = vmax.f32 %v3082, %v3020
    %3084 = vmax.xlane.f32.xlu0 %v3083
    %v3085 = vpop.xlane.xlu0 %3084
    %v3086 = vmax.f32 %v2925, %v2927
    %v3087 = vmax.f32 %v3086, %v3023
    %3088 = vmax.xlane.f32.xlu0 %v3087
    %v3089 = vpop.xlane.xlu0 %3088
    %v3090 = vsub.f32 %v2851, %v3029
    %v3091 = vsub.f32 %v2853, %v3029
    %v3092 = vsub.f32 %v2964, %v3029
    %v3093 = vsub.f32 %v2855, %v3033
    %v3094 = vsub.f32 %v2857, %v3033
    %v3095 = vsub.f32 %v2967, %v3033
    %v3096 = vsub.f32 %v2861, %v3037
    %v3097 = vsub.f32 %v2863, %v3037
    %v3098 = vsub.f32 %v2972, %v3037
    %v3099 = vsub.f32 %v2865, %v3041
    %v3100 = vsub.f32 %v2867, %v3041
    %v3101 = vsub.f32 %v2975, %v3041
    %v3102 = vsub.f32 %v2871, %v3045
    %v3103 = vsub.f32 %v2873, %v3045
    %v3104 = vsub.f32 %v2980, %v3045
    %v3105 = vsub.f32 %v2875, %v3049
    %v3106 = vsub.f32 %v2877, %v3049
    %v3107 = vsub.f32 %v2983, %v3049
    %v3108 = vsub.f32 %v2881, %v3053
    %v3109 = vsub.f32 %v2883, %v3053
    %v3110 = vsub.f32 %v2988, %v3053
    %v3111 = vsub.f32 %v2885, %v3057
    %v3112 = vsub.f32 %v2887, %v3057
    %v3113 = vsub.f32 %v2991, %v3057
    %v3114 = vsub.f32 %v2891, %v3061
    %v3115 = vsub.f32 %v2893, %v3061
    %v3116 = vsub.f32 %v2996, %v3061
    %v3117 = vsub.f32 %v2895, %v3065
    %v3118 = vsub.f32 %v2897, %v3065
    %v3119 = vsub.f32 %v2999, %v3065
    %v3120 = vsub.f32 %v2901, %v3069
    %v3121 = vsub.f32 %v2903, %v3069
    %v3122 = vsub.f32 %v3004, %v3069
    %v3123 = vsub.f32 %v2905, %v3073
    %v3124 = vsub.f32 %v2907, %v3073
    %v3125 = vsub.f32 %v3007, %v3073
    %v3126 = vsub.f32 %v2911, %v3077
    %v3127 = vsub.f32 %v2913, %v3077
    %v3128 = vsub.f32 %v3012, %v3077
    %v3129 = vsub.f32 %v2915, %v3081
    %v3130 = vsub.f32 %v2917, %v3081
    %v3131 = vsub.f32 %v3015, %v3081
    %v3132 = vsub.f32 %v2921, %v3085
    %v3133 = vsub.f32 %v2923, %v3085
    %v3134 = vsub.f32 %v3020, %v3085
    %v3135 = vsub.f32 %v2925, %v3089
    %v3136 = vsub.f32 %v2927, %v3089
    %v3137 = vsub.f32 %v3023, %v3089
    %v3138 = vmul.f32 %v3090, 1.442695
    %v3139 = vpow.pop %v3138
    %v3140 = vmul.f32 %v3091, 1.442695
    %v3141 = vpow.pop %v3140
    %v3142 = vmul.f32 %v3092, 1.442695
    %v3143 = vpow.pop %v3142
    %v3144 = vmul.f32 %v3093, 1.442695
    %v3145 = vpow.pop %v3144
    %v3146 = vmul.f32 %v3094, 1.442695
    %v3147 = vpow.pop %v3146
    %v3148 = vmul.f32 %v3095, 1.442695
    %v3149 = vpow.pop %v3148
    %v3150 = vmul.f32 %v3096, 1.442695
    %v3151 = vpow.pop %v3150
    %v3152 = vmul.f32 %v3097, 1.442695
    %v3153 = vpow.pop %v3152
    %v3154 = vmul.f32 %v3098, 1.442695
    %v3155 = vpow.pop %v3154
    %v3156 = vmul.f32 %v3099, 1.442695
    %v3157 = vpow.pop %v3156
    %v3158 = vmul.f32 %v3100, 1.442695
    %v3159 = vpow.pop %v3158
    %v3160 = vmul.f32 %v3101, 1.442695
    %v3161 = vpow.pop %v3160
    %v3162 = vmul.f32 %v3102, 1.442695
    %v3163 = vpow.pop %v3162
    %v3164 = vmul.f32 %v3103, 1.442695
    %v3165 = vpow.pop %v3164
    %v3166 = vmul.f32 %v3104, 1.442695
    %v3167 = vpow.pop %v3166
    %v3168 = vmul.f32 %v3105, 1.442695
    %v3169 = vpow.pop %v3168
    %v3170 = vmul.f32 %v3106, 1.442695
    %v3171 = vpow.pop %v3170
    %v3172 = vmul.f32 %v3107, 1.442695
    %v3173 = vpow.pop %v3172
    %v3174 = vmul.f32 %v3108, 1.442695
    %v3175 = vpow.pop %v3174
    %v3176 = vmul.f32 %v3109, 1.442695
    %v3177 = vpow.pop %v3176
    %v3178 = vmul.f32 %v3110, 1.442695
    %v3179 = vpow.pop %v3178
    %v3180 = vmul.f32 %v3111, 1.442695
    %v3181 = vpow.pop %v3180
    %v3182 = vmul.f32 %v3112, 1.442695
    %v3183 = vpow.pop %v3182
    %v3184 = vmul.f32 %v3113, 1.442695
    %v3185 = vpow.pop %v3184
    %v3186 = vmul.f32 %v3114, 1.442695
    %v3187 = vpow.pop %v3186
    %v3188 = vmul.f32 %v3115, 1.442695
    %v3189 = vpow.pop %v3188
    %v3190 = vmul.f32 %v3116, 1.442695
    %v3191 = vpow.pop %v3190
    %v3192 = vmul.f32 %v3117, 1.442695
    %v3193 = vpow.pop %v3192
    %v3194 = vmul.f32 %v3118, 1.442695
    %v3195 = vpow.pop %v3194
    %v3196 = vmul.f32 %v3119, 1.442695
    %v3197 = vpow.pop %v3196
    %v3198 = vmul.f32 %v3120, 1.442695
    %v3199 = vpow.pop %v3198
    %v3200 = vmul.f32 %v3121, 1.442695
    %v3201 = vpow.pop %v3200
    %v3202 = vmul.f32 %v3122, 1.442695
    %v3203 = vpow.pop %v3202
    %v3204 = vmul.f32 %v3123, 1.442695
    %v3205 = vpow.pop %v3204
    %v3206 = vmul.f32 %v3124, 1.442695
    %v3207 = vpow.pop %v3206
    %v3208 = vmul.f32 %v3125, 1.442695
    %v3209 = vpow.pop %v3208
    %v3210 = vmul.f32 %v3126, 1.442695
    %v3211 = vpow.pop %v3210
    %v3212 = vmul.f32 %v3127, 1.442695
    %v3213 = vpow.pop %v3212
    %v3214 = vmul.f32 %v3128, 1.442695
    %v3215 = vpow.pop %v3214
    %v3216 = vmul.f32 %v3129, 1.442695
    %v3217 = vpow.pop %v3216
    %v3218 = vmul.f32 %v3130, 1.442695
    %v3219 = vpow.pop %v3218
    %v3220 = vmul.f32 %v3131, 1.442695
    %v3221 = vpow.pop %v3220
    %v3222 = vmul.f32 %v3132, 1.442695
    %v3223 = vpow.pop %v3222
    %v3224 = vmul.f32 %v3133, 1.442695
    %v3225 = vpow.pop %v3224
    %v3226 = vmul.f32 %v3134, 1.442695
    %v3227 = vpow.pop %v3226
    %v3228 = vmul.f32 %v3135, 1.442695
    %v3229 = vpow.pop %v3228
    %v3230 = vmul.f32 %v3136, 1.442695
    %v3231 = vpow.pop %v3230
    %v3232 = vmul.f32 %v3137, 1.442695
    %v3233 = vpow.pop %v3232
    %v3234 = vadd.f32 %v3139, %v3141
    %v3235 = vadd.f32 %v3234, %v3143
    %3236 = vadd.xlane.f32.xlu0 %v3235
    %v3237 = vpop.xlane.xlu0 %3236
    %v3238 = vadd.f32 %v3145, %v3147
    %v3239 = vadd.f32 %v3238, %v3149
    %3240 = vadd.xlane.f32.xlu0 %v3239
    %v3241 = vpop.xlane.xlu0 %3240
    %v3242 = vadd.f32 %v3151, %v3153
    %v3243 = vadd.f32 %v3242, %v3155
    %3244 = vadd.xlane.f32.xlu0 %v3243
    %v3245 = vpop.xlane.xlu0 %3244
    %v3246 = vadd.f32 %v3157, %v3159
    %v3247 = vadd.f32 %v3246, %v3161
    %3248 = vadd.xlane.f32.xlu0 %v3247
    %v3249 = vpop.xlane.xlu0 %3248
    %v3250 = vadd.f32 %v3163, %v3165
    %v3251 = vadd.f32 %v3250, %v3167
    %3252 = vadd.xlane.f32.xlu0 %v3251
    %v3253 = vpop.xlane.xlu0 %3252
    %v3254 = vadd.f32 %v3169, %v3171
    %v3255 = vadd.f32 %v3254, %v3173
    %3256 = vadd.xlane.f32.xlu0 %v3255
    %v3257 = vpop.xlane.xlu0 %3256
    %v3258 = vadd.f32 %v3175, %v3177
    %v3259 = vadd.f32 %v3258, %v3179
    %3260 = vadd.xlane.f32.xlu0 %v3259
    %v3261 = vpop.xlane.xlu0 %3260
    %v3262 = vadd.f32 %v3181, %v3183
    %v3263 = vadd.f32 %v3262, %v3185
    %3264 = vadd.xlane.f32.xlu0 %v3263
    %v3265 = vpop.xlane.xlu0 %3264
    %v3266 = vadd.f32 %v3187, %v3189
    %v3267 = vadd.f32 %v3266, %v3191
    %3268 = vadd.xlane.f32.xlu0 %v3267
    %v3269 = vpop.xlane.xlu0 %3268
    %v3270 = vadd.f32 %v3193, %v3195
    %v3271 = vadd.f32 %v3270, %v3197
    %3272 = vadd.xlane.f32.xlu0 %v3271
    %v3273 = vpop.xlane.xlu0 %3272
    %v3274 = vadd.f32 %v3199, %v3201
    %v3275 = vadd.f32 %v3274, %v3203
    %3276 = vadd.xlane.f32.xlu0 %v3275
    %v3277 = vpop.xlane.xlu0 %3276
    %v3278 = vadd.f32 %v3205, %v3207
    %v3279 = vadd.f32 %v3278, %v3209
    %3280 = vadd.xlane.f32.xlu0 %v3279
    %v3281 = vpop.xlane.xlu0 %3280
    %v3282 = vadd.f32 %v3211, %v3213
    %v3283 = vadd.f32 %v3282, %v3215
    %3284 = vadd.xlane.f32.xlu0 %v3283
    %v3285 = vpop.xlane.xlu0 %3284
    %v3286 = vadd.f32 %v3217, %v3219
    %v3287 = vadd.f32 %v3286, %v3221
    %3288 = vadd.xlane.f32.xlu0 %v3287
    %v3289 = vpop.xlane.xlu0 %3288
    %v3290 = vadd.f32 %v3223, %v3225
    %v3291 = vadd.f32 %v3290, %v3227
    %3292 = vadd.xlane.f32.xlu0 %v3291
    %v3293 = vpop.xlane.xlu0 %3292
    %v3294 = vadd.f32 %v3229, %v3231
    %v3295 = vadd.f32 %v3294, %v3233
    %3296 = vadd.xlane.f32.xlu0 %v3295
    %v3297 = vpop.xlane.xlu0 %3296
    %v3298 = vpack.c.bf16 %v3145, %v3139
    %v3299 = vpack.c.bf16 %v3147, %v3141
    %v3300 = vpack.c.bf16 %v3149, %v3143
    %v3301 = vpack.c.bf16 %v3157, %v3151
    %v3302 = vpack.c.bf16 %v3159, %v3153
    %v3303 = vpack.c.bf16 %v3161, %v3155
    %v3304 = vpack.c.bf16 %v3169, %v3163
    %v3305 = vpack.c.bf16 %v3171, %v3165
    %v3306 = vpack.c.bf16 %v3173, %v3167
    %v3307 = vpack.c.bf16 %v3181, %v3175
    %v3308 = vpack.c.bf16 %v3183, %v3177
    %v3309 = vpack.c.bf16 %v3185, %v3179
    %v3310 = vpack.c.bf16 %v3193, %v3187
    %v3311 = vpack.c.bf16 %v3195, %v3189
    %v3312 = vpack.c.bf16 %v3197, %v3191
    %v3313 = vpack.c.bf16 %v3205, %v3199
    %v3314 = vpack.c.bf16 %v3207, %v3201
    %v3315 = vpack.c.bf16 %v3209, %v3203
    %v3316 = vpack.c.bf16 %v3217, %v3211
    %v3317 = vpack.c.bf16 %v3219, %v3213
    %v3318 = vpack.c.bf16 %v3221, %v3215
    %v3319 = vpack.c.bf16 %v3229, %v3223
    %v3320 = vpack.c.bf16 %v3231, %v3225
    %v3321 = vpack.c.bf16 %v3233, %v3227
    %v3322 = vpack.c.bf16 %v2168, %v2164
    %v3323 = vpack.c.bf16 %v2178, %v2174
    %v3324 = vpack.c.bf16 %v2188, %v2184
    %v3325 = vpack.c.bf16 %v2198, %v2194
    %v3326 = vpack.c.bf16 %v2208, %v2204
    %v3327 = vpack.c.bf16 %v2218, %v2214
    %v3328 = vpack.c.bf16 %v2228, %v2224
    %v3329 = vpack.c.bf16 %v2238, %v2234
    %v3330 = vpack.c.bf16 %v2248, %v2244
    %v3331 = vpack.c.bf16 %v2258, %v2254
    %v3332 = vpack.c.bf16 %v2268, %v2264
    %v3333 = vpack.c.bf16 %v2278, %v2274
    %v3334 = vpack.c.bf16 %v2288, %v2284
    %v3335 = vpack.c.bf16 %v2298, %v2294
    %v3336 = vpack.c.bf16 %v2308, %v2304
    %v3337 = vpack.c.bf16 %v2318, %v2314
    %v3338 = vpack.c.bf16 %v2328, %v2324
    %v3339 = vpack.c.bf16 %v2338, %v2334
    %v3340 = vpack.c.bf16 %v2348, %v2344
    %v3341 = vpack.c.bf16 %v2358, %v2354
    %v3342 = vpack.c.bf16 %v2368, %v2364
    %v3343 = vpack.c.bf16 %v2378, %v2374
    %v3344 = vpack.c.bf16 %v2388, %v2384
    %v3345 = vpack.c.bf16 %v2398, %v2394
    %3346 = vmatprep.subr.bf16.mxu0 0
    %3347 = vmatpush1.bf16.msra.mxu0 %v3329
    %3348 = vmatprep.subr.bf16.mxu0 0
    %3349 = vmatpush1.bf16.msra.mxu0 %v3328
    %3350 = vmatprep.subr.bf16.mxu0 0
    %3351 = vmatpush1.bf16.msra.mxu0 %v3327
    %3352 = vmatprep.subr.bf16.mxu0 0
    %3353 = vmatpush1.bf16.msra.mxu0 %v3326
    %3354 = vmatprep.subr.bf16.mxu0 0
    %3355 = vmatpush1.bf16.msra.mxu0 %v3325
    %3356 = vmatprep.subr.bf16.mxu0 0
    %3357 = vmatpush1.bf16.msra.mxu0 %v3324
    %3358 = vmatprep.subr.bf16.mxu0 0
    %3359 = vmatpush1.bf16.msra.mxu0 %v3323
    %3360 = vmatprep.subr.bf16.mxu0 0
    %3361 = vmatpush1.bf16.msra.mxu0 %v3322
    %3362 = vmatprep.subr.bf16.mxu0 0
    %3363 = vmatpush2.bf16.msra.mxu0 %v3337
    %3364 = vmatprep.subr.bf16.mxu0 0
    %3365 = vmatpush2.bf16.msra.mxu0 %v3336
    %3366 = vmatprep.subr.bf16.mxu0 0
    %3367 = vmatpush2.bf16.msra.mxu0 %v3335
    %3368 = vmatprep.subr.bf16.mxu0 0
    %3369 = vmatpush2.bf16.msra.mxu0 %v3334
    %3370 = vmatprep.subr.bf16.mxu0 0
    %3371 = vmatpush2.bf16.msra.mxu0 %v3333
    %3372 = vmatprep.subr.bf16.mxu0 0
    %3373 = vmatpush2.bf16.msra.mxu0 %v3332
    %3374 = vmatprep.subr.bf16.mxu0 0
    %3375 = vmatpush2.bf16.msra.mxu0 %v3331
    %3376 = vmatprep.subr.bf16.mxu0 0
    %3377 = vmatpush2.bf16.msra.mxu0 %v3330
    %3378 = vmatprep.mubr.bf16.mxu0 %v3299
    %3379 = vmatmul.mubr.bf16.gmra.mxu0 %v3298
    %v3380 = vpop.f32.mrf.mxu0
    %v3381 = vadd.f32 0.0, %v3380
    %v3382 = vpop.f32.mrf.mxu0
    %v3383 = vpop.f32.mrf.mxu0
    %v3384 = vadd.f32 0.0, %v3383
    %v3385 = vpop.f32.mrf.mxu0
    %3386 = vmatprep.mubr.bf16.mxu0 %v3302
    %3387 = vmatmul.mubr.bf16.gmra.mxu0 %v3301
    %v3388 = vpop.f32.mrf.mxu0
    %v3389 = vadd.f32 0.0, %v3388
    %v3390 = vpop.f32.mrf.mxu0
    %v3391 = vpop.f32.mrf.mxu0
    %v3392 = vadd.f32 0.0, %v3391
    %v3393 = vpop.f32.mrf.mxu0
    %3394 = vmatprep.mubr.bf16.mxu0 %v3305
    %3395 = vmatmul.mubr.bf16.gmra.mxu0 %v3304
    %v3396 = vpop.f32.mrf.mxu0
    %v3397 = vadd.f32 0.0, %v3396
    %v3398 = vpop.f32.mrf.mxu0
    %v3399 = vpop.f32.mrf.mxu0
    %v3400 = vadd.f32 0.0, %v3399
    %v3401 = vpop.f32.mrf.mxu0
    %3402 = vmatprep.mubr.bf16.mxu0 %v3308
    %3403 = vmatmul.mubr.bf16.gmra.mxu0 %v3307
    %v3404 = vpop.f32.mrf.mxu0
    %v3405 = vadd.f32 0.0, %v3404
    %v3406 = vpop.f32.mrf.mxu0
    %v3407 = vpop.f32.mrf.mxu0
    %v3408 = vadd.f32 0.0, %v3407
    %v3409 = vpop.f32.mrf.mxu0
    %3410 = vmatprep.mubr.bf16.mxu0 %v3311
    %3411 = vmatmul.mubr.bf16.gmra.mxu0 %v3310
    %v3412 = vpop.f32.mrf.mxu0
    %v3413 = vadd.f32 0.0, %v3412
    %v3414 = vpop.f32.mrf.mxu0
    %v3415 = vpop.f32.mrf.mxu0
    %v3416 = vadd.f32 0.0, %v3415
    %v3417 = vpop.f32.mrf.mxu0
    %3418 = vmatprep.mubr.bf16.mxu0 %v3314
    %3419 = vmatmul.mubr.bf16.gmra.mxu0 %v3313
    %v3420 = vpop.f32.mrf.mxu0
    %v3421 = vadd.f32 0.0, %v3420
    %v3422 = vpop.f32.mrf.mxu0
    %v3423 = vpop.f32.mrf.mxu0
    %v3424 = vadd.f32 0.0, %v3423
    %v3425 = vpop.f32.mrf.mxu0
    %3426 = vmatprep.mubr.bf16.mxu0 %v3317
    %3427 = vmatmul.mubr.bf16.gmra.mxu0 %v3316
    %v3428 = vpop.f32.mrf.mxu0
    %v3429 = vadd.f32 0.0, %v3428
    %v3430 = vpop.f32.mrf.mxu0
    %v3431 = vpop.f32.mrf.mxu0
    %v3432 = vadd.f32 0.0, %v3431
    %v3433 = vpop.f32.mrf.mxu0
    %3434 = vmatprep.mubr.bf16.mxu0 %v3320
    %3435 = vmatmul.mubr.bf16.gmra.mxu0 %v3319
    %v3436 = vpop.f32.mrf.mxu0
    %v3437 = vadd.f32 0.0, %v3436
    %v3438 = vpop.f32.mrf.mxu0
    %v3439 = vpop.f32.mrf.mxu0
    %v3440 = vadd.f32 0.0, %v3439
    %v3441 = vpop.f32.mrf.mxu0
    %3442 = vdwg.mxu0
    %3443 = vmatprep.subr.bf16.mxu0 0
    %3444 = vmatpush1.bf16.msra.mxu0 %v3345
    %3445 = vmatprep.subr.bf16.mxu0 0
    %3446 = vmatpush1.bf16.msra.mxu0 %v3344
    %3447 = vmatprep.subr.bf16.mxu0 0
    %3448 = vmatpush1.bf16.msra.mxu0 %v3343
    %3449 = vmatprep.subr.bf16.mxu0 0
    %3450 = vmatpush1.bf16.msra.mxu0 %v3342
    %3451 = vmatprep.subr.bf16.mxu0 0
    %3452 = vmatpush1.bf16.msra.mxu0 %v3341
    %3453 = vmatprep.subr.bf16.mxu0 0
    %3454 = vmatpush1.bf16.msra.mxu0 %v3340
    %3455 = vmatprep.subr.bf16.mxu0 0
    %3456 = vmatpush1.bf16.msra.mxu0 %v3339
    %3457 = vmatprep.subr.bf16.mxu0 0
    %3458 = vmatpush1.bf16.msra.mxu0 %v3338
    %3459 = vmatprep.subr.bf16.mxu0 0
    %3460 = vmatpush2.bf16.msra.mxu0 0
    %3461 = vmatprep.subr.bf16.mxu0 0
    %3462 = vmatpush2.bf16.msra.mxu0 0
    %3463 = vmatprep.subr.bf16.mxu0 0
    %3464 = vmatpush2.bf16.msra.mxu0 0
    %3465 = vmatprep.subr.bf16.mxu0 0
    %3466 = vmatpush2.bf16.msra.mxu0 0
    %3467 = vmatprep.subr.bf16.mxu0 0
    %3468 = vmatpush2.bf16.msra.mxu0 0
    %3469 = vmatprep.subr.bf16.mxu0 0
    %3470 = vmatpush2.bf16.msra.mxu0 0
    %3471 = vmatprep.subr.bf16.mxu0 0
    %3472 = vmatpush2.bf16.msra.mxu0 0
    %3473 = vmatprep.subr.bf16.mxu0 0
    %3474 = vmatpush2.bf16.msra.mxu0 0
    %3475 = vmatprep.mubr.bf16.mxu0 0
    %3476 = vmatmul.mubr.bf16.gmra.mxu0 %v3300
    %v3477 = vpop.f32.mrf.mxu0
    %v3478 = vadd.f32 %v3381, %v3477
    %v3479 = vpop.f32.mrf.mxu0
    %v3480 = vpop.f32.mrf.mxu0
    %v3481 = vadd.f32 %v3384, %v3480
    %v3482 = vpop.f32.mrf.mxu0
    %3483 = vmatprep.mubr.bf16.mxu0 0
    %3484 = vmatmul.mubr.bf16.gmra.mxu0 %v3303
    %v3485 = vpop.f32.mrf.mxu0
    %v3486 = vadd.f32 %v3389, %v3485
    %v3487 = vpop.f32.mrf.mxu0
    %v3488 = vpop.f32.mrf.mxu0
    %v3489 = vadd.f32 %v3392, %v3488
    %v3490 = vpop.f32.mrf.mxu0
    %3491 = vmatprep.mubr.bf16.mxu0 0
    %3492 = vmatmul.mubr.bf16.gmra.mxu0 %v3306
    %v3493 = vpop.f32.mrf.mxu0
    %v3494 = vadd.f32 %v3397, %v3493
    %v3495 = vpop.f32.mrf.mxu0
    %v3496 = vpop.f32.mrf.mxu0
    %v3497 = vadd.f32 %v3400, %v3496
    %v3498 = vpop.f32.mrf.mxu0
    %3499 = vmatprep.mubr.bf16.mxu0 0
    %3500 = vmatmul.mubr.bf16.gmra.mxu0 %v3309
    %v3501 = vpop.f32.mrf.mxu0
    %v3502 = vadd.f32 %v3405, %v3501
    %v3503 = vpop.f32.mrf.mxu0
    %v3504 = vpop.f32.mrf.mxu0
    %v3505 = vadd.f32 %v3408, %v3504
    %v3506 = vpop.f32.mrf.mxu0
    %3507 = vmatprep.mubr.bf16.mxu0 0
    %3508 = vmatmul.mubr.bf16.gmra.mxu0 %v3312
    %v3509 = vpop.f32.mrf.mxu0
    %v3510 = vadd.f32 %v3413, %v3509
    %v3511 = vpop.f32.mrf.mxu0
    %v3512 = vpop.f32.mrf.mxu0
    %v3513 = vadd.f32 %v3416, %v3512
    %v3514 = vpop.f32.mrf.mxu0
    %3515 = vmatprep.mubr.bf16.mxu0 0
    %3516 = vmatmul.mubr.bf16.gmra.mxu0 %v3315
    %v3517 = vpop.f32.mrf.mxu0
    %v3518 = vadd.f32 %v3421, %v3517
    %v3519 = vpop.f32.mrf.mxu0
    %v3520 = vpop.f32.mrf.mxu0
    %v3521 = vadd.f32 %v3424, %v3520
    %v3522 = vpop.f32.mrf.mxu0
    %3523 = vmatprep.mubr.bf16.mxu0 0
    %3524 = vmatmul.mubr.bf16.gmra.mxu0 %v3318
    %v3525 = vpop.f32.mrf.mxu0
    %v3526 = vadd.f32 %v3429, %v3525
    %v3527 = vpop.f32.mrf.mxu0
    %v3528 = vpop.f32.mrf.mxu0
    %v3529 = vadd.f32 %v3432, %v3528
    %v3530 = vpop.f32.mrf.mxu0
    %3531 = vmatprep.mubr.bf16.mxu0 0
    %3532 = vmatmul.mubr.bf16.gmra.mxu0 %v3321
    %v3533 = vpop.f32.mrf.mxu0
    %v3534 = vadd.f32 %v3437, %v3533
    %v3535 = vpop.f32.mrf.mxu0
    %v3536 = vpop.f32.mrf.mxu0
    %v3537 = vadd.f32 %v3440, %v3536
    %v3538 = vpop.f32.mrf.mxu0
    %3539 = vdwg.mxu0
    %v3540 = vrcp.pop %v3237
    %v3541 = vrcp.pop %v3241
    %v3542 = vrcp.pop %v3245
    %v3543 = vrcp.pop %v3249
    %v3544 = vrcp.pop %v3253
    %v3545 = vrcp.pop %v3257
    %v3546 = vrcp.pop %v3261
    %v3547 = vrcp.pop %v3265
    %v3548 = vrcp.pop %v3269
    %v3549 = vrcp.pop %v3273
    %v3550 = vrcp.pop %v3277
    %v3551 = vrcp.pop %v3281
    %v3552 = vrcp.pop %v3285
    %v3553 = vrcp.pop %v3289
    %v3554 = vrcp.pop %v3293
    %v3555 = vrcp.pop %v3297
    %v3556 = vmul.f32 %v3478, %v3540
    %v3557 = vmul.f32 %v3481, %v3541
    %v3558 = vmul.f32 %v3486, %v3542
    %v3559 = vmul.f32 %v3489, %v3543
    %v3560 = vmul.f32 %v3494, %v3544
    %v3561 = vmul.f32 %v3497, %v3545
    %v3562 = vmul.f32 %v3502, %v3546
    %v3563 = vmul.f32 %v3505, %v3547
    %v3564 = vmul.f32 %v3510, %v3548
    %v3565 = vmul.f32 %v3513, %v3549
    %v3566 = vmul.f32 %v3518, %v3550
    %v3567 = vmul.f32 %v3521, %v3551
    %v3568 = vmul.f32 %v3526, %v3552
    %v3569 = vmul.f32 %v3529, %v3553
    %v3570 = vmul.f32 %v3534, %v3554
    %v3571 = vmul.f32 %v3537, %v3555
    %v3572 = vld [vmem:[%s11] sm:$0xf]
    %v3573 = vld [vmem:[%s11 + $0x4] sm:$0xf]
    %v3574 = vld [vmem:[%s11 + $0x8] sm:$0xf]
    %v3575 = vld [vmem:[%s11 + $0xc] sm:$0xf]
    %v3576 = vld [vmem:[%s11 + $0x10] sm:$0xf]
    %v3577 = vld [vmem:[%s11 + $0x14] sm:$0xf]
    %v3578 = vld [vmem:[%s11 + $0x18] sm:$0xf]
    %v3579 = vld [vmem:[%s11 + $0x1c] sm:$0xf]
    %v3580 = vld [vmem:[%s11 + $0x20] sm:$0xf]
    %v3581 = vld [vmem:[%s11 + $0x24] sm:$0xf]
    %v3582 = vld [vmem:[%s11 + $0x28] sm:$0xf]
    %v3583 = vld [vmem:[%s11 + $0x2c] sm:$0xf]
    %v3584 = vld [vmem:[%s11 + $0x30] sm:$0xf]
    %v3585 = vld [vmem:[%s11 + $0x34] sm:$0xf]
    %v3586 = vld [vmem:[%s11 + $0x38] sm:$0xf]
    %v3587 = vld [vmem:[%s11 + $0x3c] sm:$0xf]
    %v3588 = vld [vmem:[%s14 + $0x4] ss:$0 sm:$0xff]
    %v3589 = vpack.c.bf16 %v3557, %v3556
    %v3590 = vpack.c.bf16 %v3559, %v3558
    %v3591 = vpack.c.bf16 %v3561, %v3560
    %v3592 = vpack.c.bf16 %v3563, %v3562
    %v3593 = vpack.c.bf16 %v3565, %v3564
    %v3594 = vpack.c.bf16 %v3567, %v3566
    %v3595 = vpack.c.bf16 %v3569, %v3568
    %v3596 = vpack.c.bf16 %v3571, %v3570
    %v3613 = vunpack.c.l.b16 %v3572
    %v3614 = vunpack.c.l.b16 %v3573
    %v3615 = vunpack.c.l.b16 %v3574
    %v3616 = vunpack.c.l.b16 %v3575
    %v3617 = vunpack.c.l.b16 %v3576
    %v3618 = vunpack.c.l.b16 %v3577
    %v3619 = vunpack.c.l.b16 %v3578
    %v3620 = vunpack.c.l.b16 %v3579
    %v3621 = vunpack.c.l.b16 %v3580
    %v3622 = vunpack.c.l.b16 %v3581
    %v3623 = vunpack.c.l.b16 %v3582
    %v3624 = vunpack.c.l.b16 %v3583
    %v3625 = vunpack.c.l.b16 %v3584
    %v3626 = vunpack.c.l.b16 %v3585
    %v3627 = vunpack.c.l.b16 %v3586
    %v3628 = vunpack.c.l.b16 %v3587
    %v3629 = vpack.c.b16 %v3614, %v3613
    %v3630 = vpack.c.b16 %v3616, %v3615
    %v3631 = vpack.c.b16 %v3618, %v3617
    %v3632 = vpack.c.b16 %v3620, %v3619
    %v3633 = vpack.c.b16 %v3622, %v3621
    %v3634 = vpack.c.b16 %v3624, %v3623
    %v3635 = vpack.c.b16 %v3626, %v3625
    %v3636 = vpack.c.b16 %v3628, %v3627
    %3645 = vmatprep.subr.bf16.mxu0 0
    %3646 = vmatpush1.bf16.msra.mxu0 %v3636
    %3647 = vmatprep.subr.bf16.mxu0 0
    %3648 = vmatpush1.bf16.msra.mxu0 %v3635
    %3649 = vmatprep.subr.bf16.mxu0 0
    %3650 = vmatpush1.bf16.msra.mxu0 %v3634
    %3651 = vmatprep.subr.bf16.mxu0 0
    %3652 = vmatpush1.bf16.msra.mxu0 %v3633
    %3653 = vmatprep.subr.bf16.mxu0 0
    %3654 = vmatpush1.bf16.msra.mxu0 %v3632
    %3655 = vmatprep.subr.bf16.mxu0 0
    %3656 = vmatpush1.bf16.msra.mxu0 %v3631
    %3657 = vmatprep.subr.bf16.mxu0 0
    %3658 = vmatpush1.bf16.msra.mxu0 %v3630
    %3659 = vmatprep.subr.bf16.mxu0 0
    %3660 = vmatpush1.bf16.msra.mxu0 %v3629
    %3661 = vmatprep.subr.bf16.mxu0 0
    %3662 = vmatpush2.bf16.msra.mxu0 0
    %3663 = vmatprep.subr.bf16.mxu0 0
    %3664 = vmatpush2.bf16.msra.mxu0 0
    %3665 = vmatprep.subr.bf16.mxu0 0
    %3666 = vmatpush2.bf16.msra.mxu0 0
    %3667 = vmatprep.subr.bf16.mxu0 0
    %3668 = vmatpush2.bf16.msra.mxu0 0
    %3669 = vmatprep.subr.bf16.mxu0 0
    %3670 = vmatpush2.bf16.msra.mxu0 0
    %3671 = vmatprep.subr.bf16.mxu0 0
    %3672 = vmatpush2.bf16.msra.mxu0 0
    %3673 = vmatprep.subr.bf16.mxu0 0
    %3674 = vmatpush2.bf16.msra.mxu0 0
    %3675 = vmatprep.subr.bf16.mxu0 0
    %3676 = vmatpush2.bf16.msra.mxu0 0
    %3677 = vmatprep.mubr.bf16.mxu0 0
    %3678 = vmatmul.mubr.bf16.gmra.mxu0 %v3589
    %v3679 = vpop.f32.mrf.mxu0
    %v3680 = vadd.f32 %v3588, %v3679
    %v3681 = vpop.f32.mrf.mxu0
    %v3682 = vpop.f32.mrf.mxu0
    %v3683 = vadd.f32 %v3588, %v3682
    %v3684 = vpop.f32.mrf.mxu0
    %3685 = vmatprep.mubr.bf16.mxu0 0
    %3686 = vmatmul.mubr.bf16.gmra.mxu0 %v3590
    %v3687 = vpop.f32.mrf.mxu0
    %v3688 = vadd.f32 %v3588, %v3687
    %v3689 = vpop.f32.mrf.mxu0
    %v3690 = vpop.f32.mrf.mxu0
    %v3691 = vadd.f32 %v3588, %v3690
    %v3692 = vpop.f32.mrf.mxu0
    %3693 = vmatprep.mubr.bf16.mxu0 0
    %3694 = vmatmul.mubr.bf16.gmra.mxu0 %v3591
    %v3695 = vpop.f32.mrf.mxu0
    %v3696 = vadd.f32 %v3588, %v3695
    %v3697 = vpop.f32.mrf.mxu0
    %v3698 = vpop.f32.mrf.mxu0
    %v3699 = vadd.f32 %v3588, %v3698
    %v3700 = vpop.f32.mrf.mxu0
    %3701 = vmatprep.mubr.bf16.mxu0 0
    %3702 = vmatmul.mubr.bf16.gmra.mxu0 %v3592
    %v3703 = vpop.f32.mrf.mxu0
    %v3704 = vadd.f32 %v3588, %v3703
    %v3705 = vpop.f32.mrf.mxu0
    %v3706 = vpop.f32.mrf.mxu0
    %v3707 = vadd.f32 %v3588, %v3706
    %v3708 = vpop.f32.mrf.mxu0
    %3709 = vmatprep.mubr.bf16.mxu0 0
    %3710 = vmatmul.mubr.bf16.gmra.mxu0 %v3593
    %v3711 = vpop.f32.mrf.mxu0
    %v3712 = vadd.f32 %v3588, %v3711
    %v3713 = vpop.f32.mrf.mxu0
    %v3714 = vpop.f32.mrf.mxu0
    %v3715 = vadd.f32 %v3588, %v3714
    %v3716 = vpop.f32.mrf.mxu0
    %3717 = vmatprep.mubr.bf16.mxu0 0
    %3718 = vmatmul.mubr.bf16.gmra.mxu0 %v3594
    %v3719 = vpop.f32.mrf.mxu0
    %v3720 = vadd.f32 %v3588, %v3719
    %v3721 = vpop.f32.mrf.mxu0
    %v3722 = vpop.f32.mrf.mxu0
    %v3723 = vadd.f32 %v3588, %v3722
    %v3724 = vpop.f32.mrf.mxu0
    %3725 = vmatprep.mubr.bf16.mxu0 0
    %3726 = vmatmul.mubr.bf16.gmra.mxu0 %v3595
    %v3727 = vpop.f32.mrf.mxu0
    %v3728 = vadd.f32 %v3588, %v3727
    %v3729 = vpop.f32.mrf.mxu0
    %v3730 = vpop.f32.mrf.mxu0
    %v3731 = vadd.f32 %v3588, %v3730
    %v3732 = vpop.f32.mrf.mxu0
    %3733 = vmatprep.mubr.bf16.mxu0 0
    %3734 = vmatmul.mubr.bf16.gmra.mxu0 %v3596
    %v3735 = vpop.f32.mrf.mxu0
    %v3736 = vadd.f32 %v3588, %v3735
    %v3737 = vpop.f32.mrf.mxu0
    %v3738 = vpop.f32.mrf.mxu0
    %v3739 = vadd.f32 %v3588, %v3738
    %v3740 = vpop.f32.mrf.mxu0
    %3741 = vdwg.mxu0
    %v3742 = vadd.f32 %v1470, %v3680
    %v3743 = vadd.f32 %v1471, %v3683
    %v3744 = vadd.f32 %v1472, %v3688
    %v3745 = vadd.f32 %v1473, %v3691
    %v3746 = vadd.f32 %v1474, %v3696
    %v3747 = vadd.f32 %v1475, %v3699
    %v3748 = vadd.f32 %v1476, %v3704
    %v3749 = vadd.f32 %v1477, %v3707
    %v3750 = vadd.f32 %v1478, %v3712
    %v3751 = vadd.f32 %v1479, %v3715
    %v3752 = vadd.f32 %v1480, %v3720
    %v3753 = vadd.f32 %v1481, %v3723
    %v3754 = vadd.f32 %v1482, %v3728
    %v3755 = vadd.f32 %v1483, %v3731
    %v3756 = vadd.f32 %v1484, %v3736
    %v3757 = vadd.f32 %v1485, %v3739
    %v3758 = vld [vmem:[%s14 + $0x1b] ss:$0 sm:$0xff]
    %v3759 = vld [vmem:[%s14 + $0x1c] ss:$0 sm:$0xff]
    %3760 = vadd.xlane.f32.xlu0 %v3742
    %v3761 = vpop.xlane.xlu0 %3760
    %3762 = vadd.xlane.f32.xlu0 %v3743
    %v3763 = vpop.xlane.xlu0 %3762
    %3764 = vadd.xlane.f32.xlu0 %v3744
    %v3765 = vpop.xlane.xlu0 %3764
    %3766 = vadd.xlane.f32.xlu0 %v3745
    %v3767 = vpop.xlane.xlu0 %3766
    %3768 = vadd.xlane.f32.xlu0 %v3746
    %v3769 = vpop.xlane.xlu0 %3768
    %3770 = vadd.xlane.f32.xlu0 %v3747
    %v3771 = vpop.xlane.xlu0 %3770
    %3772 = vadd.xlane.f32.xlu0 %v3748
    %v3773 = vpop.xlane.xlu0 %3772
    %3774 = vadd.xlane.f32.xlu0 %v3749
    %v3775 = vpop.xlane.xlu0 %3774
    %3776 = vadd.xlane.f32.xlu0 %v3750
    %v3777 = vpop.xlane.xlu0 %3776
    %3778 = vadd.xlane.f32.xlu0 %v3751
    %v3779 = vpop.xlane.xlu0 %3778
    %3780 = vadd.xlane.f32.xlu0 %v3752
    %v3781 = vpop.xlane.xlu0 %3780
    %3782 = vadd.xlane.f32.xlu0 %v3753
    %v3783 = vpop.xlane.xlu0 %3782
    %3784 = vadd.xlane.f32.xlu0 %v3754
    %v3785 = vpop.xlane.xlu0 %3784
    %3786 = vadd.xlane.f32.xlu0 %v3755
    %v3787 = vpop.xlane.xlu0 %3786
    %3788 = vadd.xlane.f32.xlu0 %v3756
    %v3789 = vpop.xlane.xlu0 %3788
    %3790 = vadd.xlane.f32.xlu0 %v3757
    %v3791 = vpop.xlane.xlu0 %3790
    %v3792 = vmul.f32 %v3761, %v150
    %v3793 = vmul.f32 %v3763, %v150
    %v3794 = vmul.f32 %v3765, %v150
    %v3795 = vmul.f32 %v3767, %v150
    %v3796 = vmul.f32 %v3769, %v150
    %v3797 = vmul.f32 %v3771, %v150
    %v3798 = vmul.f32 %v3773, %v150
    %v3799 = vmul.f32 %v3775, %v150
    %v3800 = vmul.f32 %v3777, %v150
    %v3801 = vmul.f32 %v3779, %v150
    %v3802 = vmul.f32 %v3781, %v150
    %v3803 = vmul.f32 %v3783, %v150
    %v3804 = vmul.f32 %v3785, %v150
    %v3805 = vmul.f32 %v3787, %v150
    %v3806 = vmul.f32 %v3789, %v150
    %v3807 = vmul.f32 %v3791, %v150
    %v3808 = vsub.f32 %v3742, %v3792
    %v3809 = vsub.f32 %v3743, %v3793
    %v3810 = vsub.f32 %v3744, %v3794
    %v3811 = vsub.f32 %v3745, %v3795
    %v3812 = vsub.f32 %v3746, %v3796
    %v3813 = vsub.f32 %v3747, %v3797
    %v3814 = vsub.f32 %v3748, %v3798
    %v3815 = vsub.f32 %v3749, %v3799
    %v3816 = vsub.f32 %v3750, %v3800
    %v3817 = vsub.f32 %v3751, %v3801
    %v3818 = vsub.f32 %v3752, %v3802
    %v3819 = vsub.f32 %v3753, %v3803
    %v3820 = vsub.f32 %v3754, %v3804
    %v3821 = vsub.f32 %v3755, %v3805
    %v3822 = vsub.f32 %v3756, %v3806
    %v3823 = vsub.f32 %v3757, %v3807
    %v3824 = vmul.f32 %v3808, %v3808
    %v3825 = vmul.f32 %v3809, %v3809
    %v3826 = vmul.f32 %v3810, %v3810
    %v3827 = vmul.f32 %v3811, %v3811
    %v3828 = vmul.f32 %v3812, %v3812
    %v3829 = vmul.f32 %v3813, %v3813
    %v3830 = vmul.f32 %v3814, %v3814
    %v3831 = vmul.f32 %v3815, %v3815
    %v3832 = vmul.f32 %v3816, %v3816
    %v3833 = vmul.f32 %v3817, %v3817
    %v3834 = vmul.f32 %v3818, %v3818
    %v3835 = vmul.f32 %v3819, %v3819
    %v3836 = vmul.f32 %v3820, %v3820
    %v3837 = vmul.f32 %v3821, %v3821
    %v3838 = vmul.f32 %v3822, %v3822
    %v3839 = vmul.f32 %v3823, %v3823
    %3840 = vadd.xlane.f32.xlu0 %v3824
    %v3841 = vpop.xlane.xlu0 %3840
    %3842 = vadd.xlane.f32.xlu0 %v3825
    %v3843 = vpop.xlane.xlu0 %3842
    %3844 = vadd.xlane.f32.xlu0 %v3826
    %v3845 = vpop.xlane.xlu0 %3844
    %3846 = vadd.xlane.f32.xlu0 %v3827
    %v3847 = vpop.xlane.xlu0 %3846
    %3848 = vadd.xlane.f32.xlu0 %v3828
    %v3849 = vpop.xlane.xlu0 %3848
    %3850 = vadd.xlane.f32.xlu0 %v3829
    %v3851 = vpop.xlane.xlu0 %3850
    %3852 = vadd.xlane.f32.xlu0 %v3830
    %v3853 = vpop.xlane.xlu0 %3852
    %3854 = vadd.xlane.f32.xlu0 %v3831
    %v3855 = vpop.xlane.xlu0 %3854
    %3856 = vadd.xlane.f32.xlu0 %v3832
    %v3857 = vpop.xlane.xlu0 %3856
    %3858 = vadd.xlane.f32.xlu0 %v3833
    %v3859 = vpop.xlane.xlu0 %3858
    %3860 = vadd.xlane.f32.xlu0 %v3834
    %v3861 = vpop.xlane.xlu0 %3860
    %3862 = vadd.xlane.f32.xlu0 %v3835
    %v3863 = vpop.xlane.xlu0 %3862
    %3864 = vadd.xlane.f32.xlu0 %v3836
    %v3865 = vpop.xlane.xlu0 %3864
    %3866 = vadd.xlane.f32.xlu0 %v3837
    %v3867 = vpop.xlane.xlu0 %3866
    %3868 = vadd.xlane.f32.xlu0 %v3838
    %v3869 = vpop.xlane.xlu0 %3868
    %3870 = vadd.xlane.f32.xlu0 %v3839
    %v3871 = vpop.xlane.xlu0 %3870
    %v3872 = vmul.f32 %v3841, %v150
    %v3873 = vmul.f32 %v3843, %v150
    %v3874 = vmul.f32 %v3845, %v150
    %v3875 = vmul.f32 %v3847, %v150
    %v3876 = vmul.f32 %v3849, %v150
    %v3877 = vmul.f32 %v3851, %v150
    %v3878 = vmul.f32 %v3853, %v150
    %v3879 = vmul.f32 %v3855, %v150
    %v3880 = vmul.f32 %v3857, %v150
    %v3881 = vmul.f32 %v3859, %v150
    %v3882 = vmul.f32 %v3861, %v150
    %v3883 = vmul.f32 %v3863, %v150
    %v3884 = vmul.f32 %v3865, %v150
    %v3885 = vmul.f32 %v3867, %v150
    %v3886 = vmul.f32 %v3869, %v150
    %v3887 = vmul.f32 %v3871, %v150
    %v3888 = vadd.f32 %v3872, 1e-05
    %v3889 = vadd.f32 %v3873, 1e-05
    %v3890 = vadd.f32 %v3874, 1e-05
    %v3891 = vadd.f32 %v3875, 1e-05
    %v3892 = vadd.f32 %v3876, 1e-05
    %v3893 = vadd.f32 %v3877, 1e-05
    %v3894 = vadd.f32 %v3878, 1e-05
    %v3895 = vadd.f32 %v3879, 1e-05
    %v3896 = vadd.f32 %v3880, 1e-05
    %v3897 = vadd.f32 %v3881, 1e-05
    %v3898 = vadd.f32 %v3882, 1e-05
    %v3899 = vadd.f32 %v3883, 1e-05
    %v3900 = vadd.f32 %v3884, 1e-05
    %v3901 = vadd.f32 %v3885, 1e-05
    %v3902 = vadd.f32 %v3886, 1e-05
    %v3903 = vadd.f32 %v3887, 1e-05
    %v3904 = vrsqrt.pop %v3888
    %v3905 = vrsqrt.pop %v3889
    %v3906 = vrsqrt.pop %v3890
    %v3907 = vrsqrt.pop %v3891
    %v3908 = vrsqrt.pop %v3892
    %v3909 = vrsqrt.pop %v3893
    %v3910 = vrsqrt.pop %v3894
    %v3911 = vrsqrt.pop %v3895
    %v3912 = vrsqrt.pop %v3896
    %v3913 = vrsqrt.pop %v3897
    %v3914 = vrsqrt.pop %v3898
    %v3915 = vrsqrt.pop %v3899
    %v3916 = vrsqrt.pop %v3900
    %v3917 = vrsqrt.pop %v3901
    %v3918 = vrsqrt.pop %v3902
    %v3919 = vrsqrt.pop %v3903
    %v3920 = vmul.f32 %v3808, %v3904
    %v3921 = vmul.f32 %v3809, %v3905
    %v3922 = vmul.f32 %v3810, %v3906
    %v3923 = vmul.f32 %v3811, %v3907
    %v3924 = vmul.f32 %v3812, %v3908
    %v3925 = vmul.f32 %v3813, %v3909
    %v3926 = vmul.f32 %v3814, %v3910
    %v3927 = vmul.f32 %v3815, %v3911
    %v3928 = vmul.f32 %v3816, %v3912
    %v3929 = vmul.f32 %v3817, %v3913
    %v3930 = vmul.f32 %v3818, %v3914
    %v3931 = vmul.f32 %v3819, %v3915
    %v3932 = vmul.f32 %v3820, %v3916
    %v3933 = vmul.f32 %v3821, %v3917
    %v3934 = vmul.f32 %v3822, %v3918
    %v3935 = vmul.f32 %v3823, %v3919
    %v3936 = vmul.f32 %v3920, %v3758
    %v3937 = vmul.f32 %v3921, %v3758
    %v3938 = vmul.f32 %v3922, %v3758
    %v3939 = vmul.f32 %v3923, %v3758
    %v3940 = vmul.f32 %v3924, %v3758
    %v3941 = vmul.f32 %v3925, %v3758
    %v3942 = vmul.f32 %v3926, %v3758
    %v3943 = vmul.f32 %v3927, %v3758
    %v3944 = vmul.f32 %v3928, %v3758
    %v3945 = vmul.f32 %v3929, %v3758
    %v3946 = vmul.f32 %v3930, %v3758
    %v3947 = vmul.f32 %v3931, %v3758
    %v3948 = vmul.f32 %v3932, %v3758
    %v3949 = vmul.f32 %v3933, %v3758
    %v3950 = vmul.f32 %v3934, %v3758
    %v3951 = vmul.f32 %v3935, %v3758
    %v3952 = vadd.f32 %v3936, %v3759
    %v3953 = vadd.f32 %v3937, %v3759
    %v3954 = vadd.f32 %v3938, %v3759
    %v3955 = vadd.f32 %v3939, %v3759
    %v3956 = vadd.f32 %v3940, %v3759
    %v3957 = vadd.f32 %v3941, %v3759
    %v3958 = vadd.f32 %v3942, %v3759
    %v3959 = vadd.f32 %v3943, %v3759
    %v3960 = vadd.f32 %v3944, %v3759
    %v3961 = vadd.f32 %v3945, %v3759
    %v3962 = vadd.f32 %v3946, %v3759
    %v3963 = vadd.f32 %v3947, %v3759
    %v3964 = vadd.f32 %v3948, %v3759
    %v3965 = vadd.f32 %v3949, %v3759
    %v3966 = vadd.f32 %v3950, %v3759
    %v3967 = vadd.f32 %v3951, %v3759
    %v3968 = vld [vmem:[%s12] sm:$0xff]
    %v3969 = vld [vmem:[%s12 + $0x8] sm:$0xff]
    %v3970 = vld [vmem:[%s12 + $0x10] sm:$0xff]
    %v3971 = vld [vmem:[%s12 + $0x18] sm:$0xff]
    %v3972 = vld [vmem:[%s12 + $0x20] sm:$0xff]
    %v3973 = vld [vmem:[%s12 + $0x28] sm:$0xff]
    %v3974 = vld [vmem:[%s12 + $0x30] sm:$0xff]
    %v3975 = vld [vmem:[%s12 + $0x38] sm:$0xff]
    %v3976 = vld [vmem:[%s12 + $0x40] sm:$0xff]
    %v3977 = vld [vmem:[%s12 + $0x48] sm:$0xff]
    %v3978 = vld [vmem:[%s12 + $0x50] sm:$0xff]
    %v3979 = vld [vmem:[%s12 + $0x58] sm:$0xff]
    %v3980 = vld [vmem:[%s12 + $0x60] sm:$0xff]
    %v3981 = vld [vmem:[%s12 + $0x68] sm:$0xff]
    %v3982 = vld [vmem:[%s12 + $0x70] sm:$0xff]
    %v3983 = vld [vmem:[%s12 + $0x78] sm:$0xff]
    %s3984 = scalar_lea.vmem %s14, 5
    %v3985 = vld [vmem:[%s3984] ss:$8 sm:$0x3]
    %v3986 = vpack.c.bf16 %v3953, %v3952
    %v3987 = vpack.c.bf16 %v3955, %v3954
    %v3988 = vpack.c.bf16 %v3957, %v3956
    %v3989 = vpack.c.bf16 %v3959, %v3958
    %v3990 = vpack.c.bf16 %v3961, %v3960
    %v3991 = vpack.c.bf16 %v3963, %v3962
    %v3992 = vpack.c.bf16 %v3965, %v3964
    %v3993 = vpack.c.bf16 %v3967, %v3966
    %v3995 = vlaneseq
    %v3996 = vshrl.u32 %v3995, 7
    %v3997 = vsub.s32 0, %v3996
    %v3998 = vrot.slane %v3985, %v3997
    %v3999 = vlaneseq
    %v4000 = vshrl.u32 %v3999, 7
    %v4001 = vsub.s32 1, %v4000
    %v4002 = vrot.slane %v3985, %v4001
    %v4021 = vunpack.c.l.b16 %v3968
    %v4022 = vunpack.c.h.b16 %v3968
    %v4023 = vunpack.c.l.b16 %v3969
    %v4024 = vunpack.c.h.b16 %v3969
    %v4025 = vunpack.c.l.b16 %v3970
    %v4026 = vunpack.c.h.b16 %v3970
    %v4027 = vunpack.c.l.b16 %v3971
    %v4028 = vunpack.c.h.b16 %v3971
    %v4029 = vunpack.c.l.b16 %v3972
    %v4030 = vunpack.c.h.b16 %v3972
    %v4031 = vunpack.c.l.b16 %v3973
    %v4032 = vunpack.c.h.b16 %v3973
    %v4033 = vunpack.c.l.b16 %v3974
    %v4034 = vunpack.c.h.b16 %v3974
    %v4035 = vunpack.c.l.b16 %v3975
    %v4036 = vunpack.c.h.b16 %v3975
    %v4037 = vunpack.c.l.b16 %v3976
    %v4038 = vunpack.c.h.b16 %v3976
    %v4039 = vunpack.c.l.b16 %v3977
    %v4040 = vunpack.c.h.b16 %v3977
    %v4041 = vunpack.c.l.b16 %v3978
    %v4042 = vunpack.c.h.b16 %v3978
    %v4043 = vunpack.c.l.b16 %v3979
    %v4044 = vunpack.c.h.b16 %v3979
    %v4045 = vunpack.c.l.b16 %v3980
    %v4046 = vunpack.c.h.b16 %v3980
    %v4047 = vunpack.c.l.b16 %v3981
    %v4048 = vunpack.c.h.b16 %v3981
    %v4049 = vunpack.c.l.b16 %v3982
    %v4050 = vunpack.c.h.b16 %v3982
    %v4051 = vunpack.c.l.b16 %v3983
    %v4052 = vunpack.c.h.b16 %v3983
    %v4053 = vpack.c.b16 %v4023, %v4021
    %v4054 = vpack.c.b16 %v4024, %v4022
    %v4055 = vpack.c.b16 %v4027, %v4025
    %v4056 = vpack.c.b16 %v4028, %v4026
    %v4057 = vpack.c.b16 %v4031, %v4029
    %v4058 = vpack.c.b16 %v4032, %v4030
    %v4059 = vpack.c.b16 %v4035, %v4033
    %v4060 = vpack.c.b16 %v4036, %v4034
    %v4061 = vpack.c.b16 %v4039, %v4037
    %v4062 = vpack.c.b16 %v4040, %v4038
    %v4063 = vpack.c.b16 %v4043, %v4041
    %v4064 = vpack.c.b16 %v4044, %v4042
    %v4065 = vpack.c.b16 %v4047, %v4045
    %v4066 = vpack.c.b16 %v4048, %v4046
    %v4067 = vpack.c.b16 %v4051, %v4049
    %v4068 = vpack.c.b16 %v4052, %v4050
    %4085 = vmatprep.subr.bf16.mxu0 %v4068
    %4086 = vmatpush1.bf16.msra.mxu0 %v4067
    %4087 = vmatprep.subr.bf16.mxu0 %v4066
    %4088 = vmatpush1.bf16.msra.mxu0 %v4065
    %4089 = vmatprep.subr.bf16.mxu0 %v4064
    %4090 = vmatpush1.bf16.msra.mxu0 %v4063
    %4091 = vmatprep.subr.bf16.mxu0 %v4062
    %4092 = vmatpush1.bf16.msra.mxu0 %v4061
    %4093 = vmatprep.subr.bf16.mxu0 %v4060
    %4094 = vmatpush1.bf16.msra.mxu0 %v4059
    %4095 = vmatprep.subr.bf16.mxu0 %v4058
    %4096 = vmatpush1.bf16.msra.mxu0 %v4057
    %4097 = vmatprep.subr.bf16.mxu0 %v4056
    %4098 = vmatpush1.bf16.msra.mxu0 %v4055
    %4099 = vmatprep.subr.bf16.mxu0 %v4054
    %4100 = vmatpush1.bf16.msra.mxu0 %v4053
    %4101 = vmatprep.subr.bf16.mxu0 0
    %4102 = vmatpush2.bf16.msra.mxu0 0
    %4103 = vmatprep.subr.bf16.mxu0 0
    %4104 = vmatpush2.bf16.msra.mxu0 0
    %4105 = vmatprep.subr.bf16.mxu0 0
    %4106 = vmatpush2.bf16.msra.mxu0 0
    %4107 = vmatprep.subr.bf16.mxu0 0
    %4108 = vmatpush2.bf16.msra.mxu0 0
    %4109 = vmatprep.subr.bf16.mxu0 0
    %4110 = vmatpush2.bf16.msra.mxu0 0
    %4111 = vmatprep.subr.bf16.mxu0 0
    %4112 = vmatpush2.bf16.msra.mxu0 0
    %4113 = vmatprep.subr.bf16.mxu0 0
    %4114 = vmatpush2.bf16.msra.mxu0 0
    %4115 = vmatprep.subr.bf16.mxu0 0
    %4116 = vmatpush2.bf16.msra.mxu0 0
    %4117 = vmatprep.mubr.bf16.mxu0 0
    %4118 = vmatmul.mubr.bf16.gmra.mxu0 %v3986
    %v4119 = vpop.f32.mrf.mxu0
    %v4120 = vadd.f32 %v3998, %v4119
    %v4121 = vpop.f32.mrf.mxu0
    %v4122 = vadd.f32 %v4002, %v4121
    %v4123 = vpop.f32.mrf.mxu0
    %v4124 = vadd.f32 %v3998, %v4123
    %v4125 = vpop.f32.mrf.mxu0
    %v4126 = vadd.f32 %v4002, %v4125
    %4127 = vmatprep.mubr.bf16.mxu0 0
    %4128 = vmatmul.mubr.bf16.gmra.mxu0 %v3987
    %v4129 = vpop.f32.mrf.mxu0
    %v4130 = vadd.f32 %v3998, %v4129
    %v4131 = vpop.f32.mrf.mxu0
    %v4132 = vadd.f32 %v4002, %v4131
    %v4133 = vpop.f32.mrf.mxu0
    %v4134 = vadd.f32 %v3998, %v4133
    %v4135 = vpop.f32.mrf.mxu0
    %v4136 = vadd.f32 %v4002, %v4135
    %4137 = vmatprep.mubr.bf16.mxu0 0
    %4138 = vmatmul.mubr.bf16.gmra.mxu0 %v3988
    %v4139 = vpop.f32.mrf.mxu0
    %v4140 = vadd.f32 %v3998, %v4139
    %v4141 = vpop.f32.mrf.mxu0
    %v4142 = vadd.f32 %v4002, %v4141
    %v4143 = vpop.f32.mrf.mxu0
    %v4144 = vadd.f32 %v3998, %v4143
    %v4145 = vpop.f32.mrf.mxu0
    %v4146 = vadd.f32 %v4002, %v4145
    %4147 = vmatprep.mubr.bf16.mxu0 0
    %4148 = vmatmul.mubr.bf16.gmra.mxu0 %v3989
    %v4149 = vpop.f32.mrf.mxu0
    %v4150 = vadd.f32 %v3998, %v4149
    %v4151 = vpop.f32.mrf.mxu0
    %v4152 = vadd.f32 %v4002, %v4151
    %v4153 = vpop.f32.mrf.mxu0
    %v4154 = vadd.f32 %v3998, %v4153
    %v4155 = vpop.f32.mrf.mxu0
    %v4156 = vadd.f32 %v4002, %v4155
    %4157 = vmatprep.mubr.bf16.mxu0 0
    %4158 = vmatmul.mubr.bf16.gmra.mxu0 %v3990
    %v4159 = vpop.f32.mrf.mxu0
    %v4160 = vadd.f32 %v3998, %v4159
    %v4161 = vpop.f32.mrf.mxu0
    %v4162 = vadd.f32 %v4002, %v4161
    %v4163 = vpop.f32.mrf.mxu0
    %v4164 = vadd.f32 %v3998, %v4163
    %v4165 = vpop.f32.mrf.mxu0
    %v4166 = vadd.f32 %v4002, %v4165
    %4167 = vmatprep.mubr.bf16.mxu0 0
    %4168 = vmatmul.mubr.bf16.gmra.mxu0 %v3991
    %v4169 = vpop.f32.mrf.mxu0
    %v4170 = vadd.f32 %v3998, %v4169
    %v4171 = vpop.f32.mrf.mxu0
    %v4172 = vadd.f32 %v4002, %v4171
    %v4173 = vpop.f32.mrf.mxu0
    %v4174 = vadd.f32 %v3998, %v4173
    %v4175 = vpop.f32.mrf.mxu0
    %v4176 = vadd.f32 %v4002, %v4175
    %4177 = vmatprep.mubr.bf16.mxu0 0
    %4178 = vmatmul.mubr.bf16.gmra.mxu0 %v3992
    %v4179 = vpop.f32.mrf.mxu0
    %v4180 = vadd.f32 %v3998, %v4179
    %v4181 = vpop.f32.mrf.mxu0
    %v4182 = vadd.f32 %v4002, %v4181
    %v4183 = vpop.f32.mrf.mxu0
    %v4184 = vadd.f32 %v3998, %v4183
    %v4185 = vpop.f32.mrf.mxu0
    %v4186 = vadd.f32 %v4002, %v4185
    %4187 = vmatprep.mubr.bf16.mxu0 0
    %4188 = vmatmul.mubr.bf16.gmra.mxu0 %v3993
    %v4189 = vpop.f32.mrf.mxu0
    %v4190 = vadd.f32 %v3998, %v4189
    %v4191 = vpop.f32.mrf.mxu0
    %v4192 = vadd.f32 %v4002, %v4191
    %v4193 = vpop.f32.mrf.mxu0
    %v4194 = vadd.f32 %v3998, %v4193
    %v4195 = vpop.f32.mrf.mxu0
    %v4196 = vadd.f32 %v4002, %v4195
    %4197 = vdwg.mxu0
    %v4198 = vmax.f32 %v4120, 0.0
    %v4199 = vmax.f32 %v4122, 0.0
    %v4200 = vmax.f32 %v4124, 0.0
    %v4201 = vmax.f32 %v4126, 0.0
    %v4202 = vmax.f32 %v4130, 0.0
    %v4203 = vmax.f32 %v4132, 0.0
    %v4204 = vmax.f32 %v4134, 0.0
    %v4205 = vmax.f32 %v4136, 0.0
    %v4206 = vmax.f32 %v4140, 0.0
    %v4207 = vmax.f32 %v4142, 0.0
    %v4208 = vmax.f32 %v4144, 0.0
    %v4209 = vmax.f32 %v4146, 0.0
    %v4210 = vmax.f32 %v4150, 0.0
    %v4211 = vmax.f32 %v4152, 0.0
    %v4212 = vmax.f32 %v4154, 0.0
    %v4213 = vmax.f32 %v4156, 0.0
    %v4214 = vmax.f32 %v4160, 0.0
    %v4215 = vmax.f32 %v4162, 0.0
    %v4216 = vmax.f32 %v4164, 0.0
    %v4217 = vmax.f32 %v4166, 0.0
    %v4218 = vmax.f32 %v4170, 0.0
    %v4219 = vmax.f32 %v4172, 0.0
    %v4220 = vmax.f32 %v4174, 0.0
    %v4221 = vmax.f32 %v4176, 0.0
    %v4222 = vmax.f32 %v4180, 0.0
    %v4223 = vmax.f32 %v4182, 0.0
    %v4224 = vmax.f32 %v4184, 0.0
    %v4225 = vmax.f32 %v4186, 0.0
    %v4226 = vmax.f32 %v4190, 0.0
    %v4227 = vmax.f32 %v4192, 0.0
    %v4228 = vmax.f32 %v4194, 0.0
    %v4229 = vmax.f32 %v4196, 0.0
    %v4230 = vld [vmem:[%s13] sm:$0xf]
    %v4231 = vld [vmem:[%s13 + $0x4] sm:$0xf]
    %v4232 = vld [vmem:[%s13 + $0x8] sm:$0xf]
    %v4233 = vld [vmem:[%s13 + $0xc] sm:$0xf]
    %v4234 = vld [vmem:[%s13 + $0x10] sm:$0xf]
    %v4235 = vld [vmem:[%s13 + $0x14] sm:$0xf]
    %v4236 = vld [vmem:[%s13 + $0x18] sm:$0xf]
    %v4237 = vld [vmem:[%s13 + $0x1c] sm:$0xf]
    %v4238 = vld [vmem:[%s13 + $0x20] sm:$0xf]
    %v4239 = vld [vmem:[%s13 + $0x24] sm:$0xf]
    %v4240 = vld [vmem:[%s13 + $0x28] sm:$0xf]
    %v4241 = vld [vmem:[%s13 + $0x2c] sm:$0xf]
    %v4242 = vld [vmem:[%s13 + $0x30] sm:$0xf]
    %v4243 = vld [vmem:[%s13 + $0x34] sm:$0xf]
    %v4244 = vld [vmem:[%s13 + $0x38] sm:$0xf]
    %v4245 = vld [vmem:[%s13 + $0x3c] sm:$0xf]
    %v4246 = vld [vmem:[%s13 + $0x40] sm:$0xf]
    %v4247 = vld [vmem:[%s13 + $0x44] sm:$0xf]
    %v4248 = vld [vmem:[%s13 + $0x48] sm:$0xf]
    %v4249 = vld [vmem:[%s13 + $0x4c] sm:$0xf]
    %v4250 = vld [vmem:[%s13 + $0x50] sm:$0xf]
    %v4251 = vld [vmem:[%s13 + $0x54] sm:$0xf]
    %v4252 = vld [vmem:[%s13 + $0x58] sm:$0xf]
    %v4253 = vld [vmem:[%s13 + $0x5c] sm:$0xf]
    %v4254 = vld [vmem:[%s13 + $0x60] sm:$0xf]
    %v4255 = vld [vmem:[%s13 + $0x64] sm:$0xf]
    %v4256 = vld [vmem:[%s13 + $0x68] sm:$0xf]
    %v4257 = vld [vmem:[%s13 + $0x6c] sm:$0xf]
    %v4258 = vld [vmem:[%s13 + $0x70] sm:$0xf]
    %v4259 = vld [vmem:[%s13 + $0x74] sm:$0xf]
    %v4260 = vld [vmem:[%s13 + $0x78] sm:$0xf]
    %v4261 = vld [vmem:[%s13 + $0x7c] sm:$0xf]
    %v4262 = vld [vmem:[%s14 + $0x6] ss:$0 sm:$0xff]
    %v4263 = vpack.c.bf16 %v4200, %v4198
    %v4264 = vpack.c.bf16 %v4201, %v4199
    %v4265 = vpack.c.bf16 %v4204, %v4202
    %v4266 = vpack.c.bf16 %v4205, %v4203
    %v4267 = vpack.c.bf16 %v4208, %v4206
    %v4268 = vpack.c.bf16 %v4209, %v4207
    %v4269 = vpack.c.bf16 %v4212, %v4210
    %v4270 = vpack.c.bf16 %v4213, %v4211
    %v4271 = vpack.c.bf16 %v4216, %v4214
    %v4272 = vpack.c.bf16 %v4217, %v4215
    %v4273 = vpack.c.bf16 %v4220, %v4218
    %v4274 = vpack.c.bf16 %v4221, %v4219
    %v4275 = vpack.c.bf16 %v4224, %v4222
    %v4276 = vpack.c.bf16 %v4225, %v4223
    %v4277 = vpack.c.bf16 %v4228, %v4226
    %v4278 = vpack.c.bf16 %v4229, %v4227
    %v4311 = vunpack.c.l.b16 %v4230
    %v4312 = vunpack.c.l.b16 %v4231
    %v4313 = vunpack.c.l.b16 %v4232
    %v4314 = vunpack.c.l.b16 %v4233
    %v4315 = vunpack.c.l.b16 %v4234
    %v4316 = vunpack.c.l.b16 %v4235
    %v4317 = vunpack.c.l.b16 %v4236
    %v4318 = vunpack.c.l.b16 %v4237
    %v4319 = vunpack.c.l.b16 %v4238
    %v4320 = vunpack.c.l.b16 %v4239
    %v4321 = vunpack.c.l.b16 %v4240
    %v4322 = vunpack.c.l.b16 %v4241
    %v4323 = vunpack.c.l.b16 %v4242
    %v4324 = vunpack.c.l.b16 %v4243
    %v4325 = vunpack.c.l.b16 %v4244
    %v4326 = vunpack.c.l.b16 %v4245
    %v4327 = vunpack.c.l.b16 %v4246
    %v4328 = vunpack.c.l.b16 %v4247
    %v4329 = vunpack.c.l.b16 %v4248
    %v4330 = vunpack.c.l.b16 %v4249
    %v4331 = vunpack.c.l.b16 %v4250
    %v4332 = vunpack.c.l.b16 %v4251
    %v4333 = vunpack.c.l.b16 %v4252
    %v4334 = vunpack.c.l.b16 %v4253
    %v4335 = vunpack.c.l.b16 %v4254
    %v4336 = vunpack.c.l.b16 %v4255
    %v4337 = vunpack.c.l.b16 %v4256
    %v4338 = vunpack.c.l.b16 %v4257
    %v4339 = vunpack.c.l.b16 %v4258
    %v4340 = vunpack.c.l.b16 %v4259
    %v4341 = vunpack.c.l.b16 %v4260
    %v4342 = vunpack.c.l.b16 %v4261
    %v4343 = vpack.c.b16 %v4312, %v4311
    %v4344 = vpack.c.b16 %v4314, %v4313
    %v4345 = vpack.c.b16 %v4316, %v4315
    %v4346 = vpack.c.b16 %v4318, %v4317
    %v4347 = vpack.c.b16 %v4320, %v4319
    %v4348 = vpack.c.b16 %v4322, %v4321
    %v4349 = vpack.c.b16 %v4324, %v4323
    %v4350 = vpack.c.b16 %v4326, %v4325
    %v4351 = vpack.c.b16 %v4328, %v4327
    %v4352 = vpack.c.b16 %v4330, %v4329
    %v4353 = vpack.c.b16 %v4332, %v4331
    %v4354 = vpack.c.b16 %v4334, %v4333
    %v4355 = vpack.c.b16 %v4336, %v4335
    %v4356 = vpack.c.b16 %v4338, %v4337
    %v4357 = vpack.c.b16 %v4340, %v4339
    %v4358 = vpack.c.b16 %v4342, %v4341
    %4375 = vmatprep.subr.bf16.mxu0 0
    %4376 = vmatpush1.bf16.msra.mxu0 %v4350
    %4377 = vmatprep.subr.bf16.mxu0 0
    %4378 = vmatpush1.bf16.msra.mxu0 %v4349
    %4379 = vmatprep.subr.bf16.mxu0 0
    %4380 = vmatpush1.bf16.msra.mxu0 %v4348
    %4381 = vmatprep.subr.bf16.mxu0 0
    %4382 = vmatpush1.bf16.msra.mxu0 %v4347
    %4383 = vmatprep.subr.bf16.mxu0 0
    %4384 = vmatpush1.bf16.msra.mxu0 %v4346
    %4385 = vmatprep.subr.bf16.mxu0 0
    %4386 = vmatpush1.bf16.msra.mxu0 %v4345
    %4387 = vmatprep.subr.bf16.mxu0 0
    %4388 = vmatpush1.bf16.msra.mxu0 %v4344
    %4389 = vmatprep.subr.bf16.mxu0 0
    %4390 = vmatpush1.bf16.msra.mxu0 %v4343
    %4391 = vmatprep.subr.bf16.mxu0 0
    %4392 = vmatpush2.bf16.msra.mxu0 %v4358
    %4393 = vmatprep.subr.bf16.mxu0 0
    %4394 = vmatpush2.bf16.msra.mxu0 %v4357
    %4395 = vmatprep.subr.bf16.mxu0 0
    %4396 = vmatpush2.bf16.msra.mxu0 %v4356
    %4397 = vmatprep.subr.bf16.mxu0 0
    %4398 = vmatpush2.bf16.msra.mxu0 %v4355
    %4399 = vmatprep.subr.bf16.mxu0 0
    %4400 = vmatpush2.bf16.msra.mxu0 %v4354
    %4401 = vmatprep.subr.bf16.mxu0 0
    %4402 = vmatpush2.bf16.msra.mxu0 %v4353
    %4403 = vmatprep.subr.bf16.mxu0 0
    %4404 = vmatpush2.bf16.msra.mxu0 %v4352
    %4405 = vmatprep.subr.bf16.mxu0 0
    %4406 = vmatpush2.bf16.msra.mxu0 %v4351
    %4407 = vmatprep.mubr.bf16.mxu0 %v4264
    %4408 = vmatmul.mubr.bf16.gmra.mxu0 %v4263
    %v4409 = vpop.f32.mrf.mxu0
    %v4410 = vadd.f32 %v4262, %v4409
    %v4411 = vpop.f32.mrf.mxu0
    %v4412 = vpop.f32.mrf.mxu0
    %v4413 = vadd.f32 %v4262, %v4412
    %v4414 = vpop.f32.mrf.mxu0
    %4415 = vmatprep.mubr.bf16.mxu0 %v4266
    %4416 = vmatmul.mubr.bf16.gmra.mxu0 %v4265
    %v4417 = vpop.f32.mrf.mxu0
    %v4418 = vadd.f32 %v4262, %v4417
    %v4419 = vpop.f32.mrf.mxu0
    %v4420 = vpop.f32.mrf.mxu0
    %v4421 = vadd.f32 %v4262, %v4420
    %v4422 = vpop.f32.mrf.mxu0
    %4423 = vmatprep.mubr.bf16.mxu0 %v4268
    %4424 = vmatmul.mubr.bf16.gmra.mxu0 %v4267
    %v4425 = vpop.f32.mrf.mxu0
    %v4426 = vadd.f32 %v4262, %v4425
    %v4427 = vpop.f32.mrf.mxu0
    %v4428 = vpop.f32.mrf.mxu0
    %v4429 = vadd.f32 %v4262, %v4428
    %v4430 = vpop.f32.mrf.mxu0
    %4431 = vmatprep.mubr.bf16.mxu0 %v4270
    %4432 = vmatmul.mubr.bf16.gmra.mxu0 %v4269
    %v4433 = vpop.f32.mrf.mxu0
    %v4434 = vadd.f32 %v4262, %v4433
    %v4435 = vpop.f32.mrf.mxu0
    %v4436 = vpop.f32.mrf.mxu0
    %v4437 = vadd.f32 %v4262, %v4436
    %v4438 = vpop.f32.mrf.mxu0
    %4439 = vmatprep.mubr.bf16.mxu0 %v4272
    %4440 = vmatmul.mubr.bf16.gmra.mxu0 %v4271
    %v4441 = vpop.f32.mrf.mxu0
    %v4442 = vadd.f32 %v4262, %v4441
    %v4443 = vpop.f32.mrf.mxu0
    %v4444 = vpop.f32.mrf.mxu0
    %v4445 = vadd.f32 %v4262, %v4444
    %v4446 = vpop.f32.mrf.mxu0
    %4447 = vmatprep.mubr.bf16.mxu0 %v4274
    %4448 = vmatmul.mubr.bf16.gmra.mxu0 %v4273
    %v4449 = vpop.f32.mrf.mxu0
    %v4450 = vadd.f32 %v4262, %v4449
    %v4451 = vpop.f32.mrf.mxu0
    %v4452 = vpop.f32.mrf.mxu0
    %v4453 = vadd.f32 %v4262, %v4452
    %v4454 = vpop.f32.mrf.mxu0
    %4455 = vmatprep.mubr.bf16.mxu0 %v4276
    %4456 = vmatmul.mubr.bf16.gmra.mxu0 %v4275
    %v4457 = vpop.f32.mrf.mxu0
    %v4458 = vadd.f32 %v4262, %v4457
    %v4459 = vpop.f32.mrf.mxu0
    %v4460 = vpop.f32.mrf.mxu0
    %v4461 = vadd.f32 %v4262, %v4460
    %v4462 = vpop.f32.mrf.mxu0
    %4463 = vmatprep.mubr.bf16.mxu0 %v4278
    %4464 = vmatmul.mubr.bf16.gmra.mxu0 %v4277
    %v4465 = vpop.f32.mrf.mxu0
    %v4466 = vadd.f32 %v4262, %v4465
    %v4467 = vpop.f32.mrf.mxu0
    %v4468 = vpop.f32.mrf.mxu0
    %v4469 = vadd.f32 %v4262, %v4468
    %v4470 = vpop.f32.mrf.mxu0
    %4471 = vdwg.mxu0
    %v4472 = vadd.f32 %v3742, %v4410
    %v4473 = vadd.f32 %v3743, %v4413
    %v4474 = vadd.f32 %v3744, %v4418
    %v4475 = vadd.f32 %v3745, %v4421
    %v4476 = vadd.f32 %v3746, %v4426
    %v4477 = vadd.f32 %v3747, %v4429
    %v4478 = vadd.f32 %v3748, %v4434
    %v4479 = vadd.f32 %v3749, %v4437
    %v4480 = vadd.f32 %v3750, %v4442
    %v4481 = vadd.f32 %v3751, %v4445
    %v4482 = vadd.f32 %v3752, %v4450
    %v4483 = vadd.f32 %v3753, %v4453
    %v4484 = vadd.f32 %v3754, %v4458
    %v4485 = vadd.f32 %v3755, %v4461
    %v4486 = vadd.f32 %v3756, %v4466
    %v4487 = vadd.f32 %v3757, %v4469
    %v4488 = vld [vmem:[%s14 + $0x34] ss:$0 sm:$0xff]
    %v4489 = vld [vmem:[%s14 + $0x35] ss:$0 sm:$0xff]
    %4490 = vadd.xlane.f32.xlu0 %v4472
    %v4491 = vpop.xlane.xlu0 %4490
    %4492 = vadd.xlane.f32.xlu0 %v4473
    %v4493 = vpop.xlane.xlu0 %4492
    %4494 = vadd.xlane.f32.xlu0 %v4474
    %v4495 = vpop.xlane.xlu0 %4494
    %4496 = vadd.xlane.f32.xlu0 %v4475
    %v4497 = vpop.xlane.xlu0 %4496
    %4498 = vadd.xlane.f32.xlu0 %v4476
    %v4499 = vpop.xlane.xlu0 %4498
    %4500 = vadd.xlane.f32.xlu0 %v4477
    %v4501 = vpop.xlane.xlu0 %4500
    %4502 = vadd.xlane.f32.xlu0 %v4478
    %v4503 = vpop.xlane.xlu0 %4502
    %4504 = vadd.xlane.f32.xlu0 %v4479
    %v4505 = vpop.xlane.xlu0 %4504
    %4506 = vadd.xlane.f32.xlu0 %v4480
    %v4507 = vpop.xlane.xlu0 %4506
    %4508 = vadd.xlane.f32.xlu0 %v4481
    %v4509 = vpop.xlane.xlu0 %4508
    %4510 = vadd.xlane.f32.xlu0 %v4482
    %v4511 = vpop.xlane.xlu0 %4510
    %4512 = vadd.xlane.f32.xlu0 %v4483
    %v4513 = vpop.xlane.xlu0 %4512
    %4514 = vadd.xlane.f32.xlu0 %v4484
    %v4515 = vpop.xlane.xlu0 %4514
    %4516 = vadd.xlane.f32.xlu0 %v4485
    %v4517 = vpop.xlane.xlu0 %4516
    %4518 = vadd.xlane.f32.xlu0 %v4486
    %v4519 = vpop.xlane.xlu0 %4518
    %4520 = vadd.xlane.f32.xlu0 %v4487
    %v4521 = vpop.xlane.xlu0 %4520
    %v4522 = vmul.f32 %v4491, %v150
    %v4523 = vmul.f32 %v4493, %v150
    %v4524 = vmul.f32 %v4495, %v150
    %v4525 = vmul.f32 %v4497, %v150
    %v4526 = vmul.f32 %v4499, %v150
    %v4527 = vmul.f32 %v4501, %v150
    %v4528 = vmul.f32 %v4503, %v150
    %v4529 = vmul.f32 %v4505, %v150
    %v4530 = vmul.f32 %v4507, %v150
    %v4531 = vmul.f32 %v4509, %v150
    %v4532 = vmul.f32 %v4511, %v150
    %v4533 = vmul.f32 %v4513, %v150
    %v4534 = vmul.f32 %v4515, %v150
    %v4535 = vmul.f32 %v4517, %v150
    %v4536 = vmul.f32 %v4519, %v150
    %v4537 = vmul.f32 %v4521, %v150
    %v4538 = vsub.f32 %v4472, %v4522
    %v4539 = vsub.f32 %v4473, %v4523
    %v4540 = vsub.f32 %v4474, %v4524
    %v4541 = vsub.f32 %v4475, %v4525
    %v4542 = vsub.f32 %v4476, %v4526
    %v4543 = vsub.f32 %v4477, %v4527
    %v4544 = vsub.f32 %v4478, %v4528
    %v4545 = vsub.f32 %v4479, %v4529
    %v4546 = vsub.f32 %v4480, %v4530
    %v4547 = vsub.f32 %v4481, %v4531
    %v4548 = vsub.f32 %v4482, %v4532
    %v4549 = vsub.f32 %v4483, %v4533
    %v4550 = vsub.f32 %v4484, %v4534
    %v4551 = vsub.f32 %v4485, %v4535
    %v4552 = vsub.f32 %v4486, %v4536
    %v4553 = vsub.f32 %v4487, %v4537
    %v4554 = vmul.f32 %v4538, %v4538
    %v4555 = vmul.f32 %v4539, %v4539
    %v4556 = vmul.f32 %v4540, %v4540
    %v4557 = vmul.f32 %v4541, %v4541
    %v4558 = vmul.f32 %v4542, %v4542
    %v4559 = vmul.f32 %v4543, %v4543
    %v4560 = vmul.f32 %v4544, %v4544
    %v4561 = vmul.f32 %v4545, %v4545
    %v4562 = vmul.f32 %v4546, %v4546
    %v4563 = vmul.f32 %v4547, %v4547
    %v4564 = vmul.f32 %v4548, %v4548
    %v4565 = vmul.f32 %v4549, %v4549
    %v4566 = vmul.f32 %v4550, %v4550
    %v4567 = vmul.f32 %v4551, %v4551
    %v4568 = vmul.f32 %v4552, %v4552
    %v4569 = vmul.f32 %v4553, %v4553
    %4570 = vadd.xlane.f32.xlu0 %v4554
    %v4571 = vpop.xlane.xlu0 %4570
    %4572 = vadd.xlane.f32.xlu0 %v4555
    %v4573 = vpop.xlane.xlu0 %4572
    %4574 = vadd.xlane.f32.xlu0 %v4556
    %v4575 = vpop.xlane.xlu0 %4574
    %4576 = vadd.xlane.f32.xlu0 %v4557
    %v4577 = vpop.xlane.xlu0 %4576
    %4578 = vadd.xlane.f32.xlu0 %v4558
    %v4579 = vpop.xlane.xlu0 %4578
    %4580 = vadd.xlane.f32.xlu0 %v4559
    %v4581 = vpop.xlane.xlu0 %4580
    %4582 = vadd.xlane.f32.xlu0 %v4560
    %v4583 = vpop.xlane.xlu0 %4582
    %4584 = vadd.xlane.f32.xlu0 %v4561
    %v4585 = vpop.xlane.xlu0 %4584
    %4586 = vadd.xlane.f32.xlu0 %v4562
    %v4587 = vpop.xlane.xlu0 %4586
    %4588 = vadd.xlane.f32.xlu0 %v4563
    %v4589 = vpop.xlane.xlu0 %4588
    %4590 = vadd.xlane.f32.xlu0 %v4564
    %v4591 = vpop.xlane.xlu0 %4590
    %4592 = vadd.xlane.f32.xlu0 %v4565
    %v4593 = vpop.xlane.xlu0 %4592
    %4594 = vadd.xlane.f32.xlu0 %v4566
    %v4595 = vpop.xlane.xlu0 %4594
    %4596 = vadd.xlane.f32.xlu0 %v4567
    %v4597 = vpop.xlane.xlu0 %4596
    %4598 = vadd.xlane.f32.xlu0 %v4568
    %v4599 = vpop.xlane.xlu0 %4598
    %4600 = vadd.xlane.f32.xlu0 %v4569
    %v4601 = vpop.xlane.xlu0 %4600
    %v4602 = vmul.f32 %v4571, %v150
    %v4603 = vmul.f32 %v4573, %v150
    %v4604 = vmul.f32 %v4575, %v150
    %v4605 = vmul.f32 %v4577, %v150
    %v4606 = vmul.f32 %v4579, %v150
    %v4607 = vmul.f32 %v4581, %v150
    %v4608 = vmul.f32 %v4583, %v150
    %v4609 = vmul.f32 %v4585, %v150
    %v4610 = vmul.f32 %v4587, %v150
    %v4611 = vmul.f32 %v4589, %v150
    %v4612 = vmul.f32 %v4591, %v150
    %v4613 = vmul.f32 %v4593, %v150
    %v4614 = vmul.f32 %v4595, %v150
    %v4615 = vmul.f32 %v4597, %v150
    %v4616 = vmul.f32 %v4599, %v150
    %v4617 = vmul.f32 %v4601, %v150
    %v4618 = vadd.f32 %v4602, 1e-05
    %v4619 = vadd.f32 %v4603, 1e-05
    %v4620 = vadd.f32 %v4604, 1e-05
    %v4621 = vadd.f32 %v4605, 1e-05
    %v4622 = vadd.f32 %v4606, 1e-05
    %v4623 = vadd.f32 %v4607, 1e-05
    %v4624 = vadd.f32 %v4608, 1e-05
    %v4625 = vadd.f32 %v4609, 1e-05
    %v4626 = vadd.f32 %v4610, 1e-05
    %v4627 = vadd.f32 %v4611, 1e-05
    %v4628 = vadd.f32 %v4612, 1e-05
    %v4629 = vadd.f32 %v4613, 1e-05
    %v4630 = vadd.f32 %v4614, 1e-05
    %v4631 = vadd.f32 %v4615, 1e-05
    %v4632 = vadd.f32 %v4616, 1e-05
    %v4633 = vadd.f32 %v4617, 1e-05
    %v4634 = vrsqrt.pop %v4618
    %v4635 = vrsqrt.pop %v4619
    %v4636 = vrsqrt.pop %v4620
    %v4637 = vrsqrt.pop %v4621
    %v4638 = vrsqrt.pop %v4622
    %v4639 = vrsqrt.pop %v4623
    %v4640 = vrsqrt.pop %v4624
    %v4641 = vrsqrt.pop %v4625
    %v4642 = vrsqrt.pop %v4626
    %v4643 = vrsqrt.pop %v4627
    %v4644 = vrsqrt.pop %v4628
    %v4645 = vrsqrt.pop %v4629
    %v4646 = vrsqrt.pop %v4630
    %v4647 = vrsqrt.pop %v4631
    %v4648 = vrsqrt.pop %v4632
    %v4649 = vrsqrt.pop %v4633
    %v4650 = vmul.f32 %v4538, %v4634
    %v4651 = vmul.f32 %v4539, %v4635
    %v4652 = vmul.f32 %v4540, %v4636
    %v4653 = vmul.f32 %v4541, %v4637
    %v4654 = vmul.f32 %v4542, %v4638
    %v4655 = vmul.f32 %v4543, %v4639
    %v4656 = vmul.f32 %v4544, %v4640
    %v4657 = vmul.f32 %v4545, %v4641
    %v4658 = vmul.f32 %v4546, %v4642
    %v4659 = vmul.f32 %v4547, %v4643
    %v4660 = vmul.f32 %v4548, %v4644
    %v4661 = vmul.f32 %v4549, %v4645
    %v4662 = vmul.f32 %v4550, %v4646
    %v4663 = vmul.f32 %v4551, %v4647
    %v4664 = vmul.f32 %v4552, %v4648
    %v4665 = vmul.f32 %v4553, %v4649
    %v4666 = vmul.f32 %v4650, %v4488
    %v4667 = vmul.f32 %v4651, %v4488
    %v4668 = vmul.f32 %v4652, %v4488
    %v4669 = vmul.f32 %v4653, %v4488
    %v4670 = vmul.f32 %v4654, %v4488
    %v4671 = vmul.f32 %v4655, %v4488
    %v4672 = vmul.f32 %v4656, %v4488
    %v4673 = vmul.f32 %v4657, %v4488
    %v4674 = vmul.f32 %v4658, %v4488
    %v4675 = vmul.f32 %v4659, %v4488
    %v4676 = vmul.f32 %v4660, %v4488
    %v4677 = vmul.f32 %v4661, %v4488
    %v4678 = vmul.f32 %v4662, %v4488
    %v4679 = vmul.f32 %v4663, %v4488
    %v4680 = vmul.f32 %v4664, %v4488
    %v4681 = vmul.f32 %v4665, %v4488
    %v4682 = vadd.f32 %v4666, %v4489
    %v4683 = vadd.f32 %v4667, %v4489
    %v4684 = vadd.f32 %v4668, %v4489
    %v4685 = vadd.f32 %v4669, %v4489
    %v4686 = vadd.f32 %v4670, %v4489
    %v4687 = vadd.f32 %v4671, %v4489
    %v4688 = vadd.f32 %v4672, %v4489
    %v4689 = vadd.f32 %v4673, %v4489
    %v4690 = vadd.f32 %v4674, %v4489
    %v4691 = vadd.f32 %v4675, %v4489
    %v4692 = vadd.f32 %v4676, %v4489
    %v4693 = vadd.f32 %v4677, %v4489
    %v4694 = vadd.f32 %v4678, %v4489
    %v4695 = vadd.f32 %v4679, %v4489
    %v4696 = vadd.f32 %v4680, %v4489
    %v4697 = vadd.f32 %v4681, %v4489
    %s4698 = scalar_lea.vmem %s7, 192
    %v4699 = vld [vmem:[%s4698] sm:$0xff]
    %v4700 = vld [vmem:[%s4698 + $0x8] sm:$0xf]
    %v4701 = vld [vmem:[%s4698 + $0xc] sm:$0xff]
    %v4702 = vld [vmem:[%s4698 + $0x14] sm:$0xf]
    %v4703 = vld [vmem:[%s4698 + $0x18] sm:$0xff]
    %v4704 = vld [vmem:[%s4698 + $0x20] sm:$0xf]
    %v4705 = vld [vmem:[%s4698 + $0x24] sm:$0xff]
    %v4706 = vld [vmem:[%s4698 + $0x2c] sm:$0xf]
    %v4707 = vld [vmem:[%s4698 + $0x30] sm:$0xff]
    %v4708 = vld [vmem:[%s4698 + $0x38] sm:$0xf]
    %v4709 = vld [vmem:[%s4698 + $0x3c] sm:$0xff]
    %v4710 = vld [vmem:[%s4698 + $0x44] sm:$0xf]
    %v4711 = vld [vmem:[%s4698 + $0x48] sm:$0xff]
    %v4712 = vld [vmem:[%s4698 + $0x50] sm:$0xf]
    %v4713 = vld [vmem:[%s4698 + $0x54] sm:$0xff]
    %v4714 = vld [vmem:[%s4698 + $0x5c] sm:$0xf]
    %v4715 = vld [vmem:[%s4698 + $0x60] sm:$0xff]
    %v4716 = vld [vmem:[%s4698 + $0x68] sm:$0xf]
    %v4717 = vld [vmem:[%s4698 + $0x6c] sm:$0xff]
    %v4718 = vld [vmem:[%s4698 + $0x74] sm:$0xf]
    %v4719 = vld [vmem:[%s4698 + $0x78] sm:$0xff]
    %v4720 = vld [vmem:[%s4698 + $0x80] sm:$0xf]
    %v4721 = vld [vmem:[%s4698 + $0x84] sm:$0xff]
    %v4722 = vld [vmem:[%s4698 + $0x8c] sm:$0xf]
    %v4723 = vld [vmem:[%s4698 + $0x90] sm:$0xff]
    %v4724 = vld [vmem:[%s4698 + $0x98] sm:$0xf]
    %v4725 = vld [vmem:[%s4698 + $0x9c] sm:$0xff]
    %v4726 = vld [vmem:[%s4698 + $0xa4] sm:$0xf]
    %v4727 = vld [vmem:[%s4698 + $0xa8] sm:$0xff]
    %v4728 = vld [vmem:[%s4698 + $0xb0] sm:$0xf]
    %v4729 = vld [vmem:[%s4698 + $0xb4] sm:$0xff]
    %v4730 = vld [vmem:[%s4698 + $0xbc] sm:$0xf]
    %s4731 = scalar_lea.vmem %s14, 29
    %v4732 = vld [vmem:[%s4731] ss:$8 sm:$0x7]
    %v4733 = vpack.c.bf16 %v4683, %v4682
    %v4734 = vpack.c.bf16 %v4685, %v4684
    %v4735 = vpack.c.bf16 %v4687, %v4686
    %v4736 = vpack.c.bf16 %v4689, %v4688
    %v4737 = vpack.c.bf16 %v4691, %v4690
    %v4738 = vpack.c.bf16 %v4693, %v4692
    %v4739 = vpack.c.bf16 %v4695, %v4694
    %v4740 = vpack.c.bf16 %v4697, %v4696
    %v4742 = vlaneseq
    %v4743 = vshrl.u32 %v4742, 7
    %v4744 = vsub.s32 0, %v4743
    %v4745 = vrot.slane %v4732, %v4744
    %v4746 = vlaneseq
    %v4747 = vshrl.u32 %v4746, 7
    %v4748 = vsub.s32 1, %v4747
    %v4749 = vrot.slane %v4732, %v4748
    %v4750 = vlaneseq
    %v4751 = vshrl.u32 %v4750, 7
    %v4752 = vsub.s32 2, %v4751
    %v4753 = vrot.slane %v4732, %v4752
    %v4789 = vunpack.c.l.b16 %v4699
    %v4790 = vunpack.c.h.b16 %v4699
    %v4791 = vunpack.c.l.b16 %v4700
    %v4792 = vunpack.c.l.b16 %v4701
    %v4793 = vunpack.c.h.b16 %v4701
    %v4794 = vunpack.c.l.b16 %v4702
    %v4795 = vunpack.c.l.b16 %v4703
    %v4796 = vunpack.c.h.b16 %v4703
    %v4797 = vunpack.c.l.b16 %v4704
    %v4798 = vunpack.c.l.b16 %v4705
    %v4799 = vunpack.c.h.b16 %v4705
    %v4800 = vunpack.c.l.b16 %v4706
    %v4801 = vunpack.c.l.b16 %v4707
    %v4802 = vunpack.c.h.b16 %v4707
    %v4803 = vunpack.c.l.b16 %v4708
    %v4804 = vunpack.c.l.b16 %v4709
    %v4805 = vunpack.c.h.b16 %v4709
    %v4806 = vunpack.c.l.b16 %v4710
    %v4807 = vunpack.c.l.b16 %v4711
    %v4808 = vunpack.c.h.b16 %v4711
    %v4809 = vunpack.c.l.b16 %v4712
    %v4810 = vunpack.c.l.b16 %v4713
    %v4811 = vunpack.c.h.b16 %v4713
    %v4812 = vunpack.c.l.b16 %v4714
    %v4813 = vunpack.c.l.b16 %v4715
    %v4814 = vunpack.c.h.b16 %v4715
    %v4815 = vunpack.c.l.b16 %v4716
    %v4816 = vunpack.c.l.b16 %v4717
    %v4817 = vunpack.c.h.b16 %v4717
    %v4818 = vunpack.c.l.b16 %v4718
    %v4819 = vunpack.c.l.b16 %v4719
    %v4820 = vunpack.c.h.b16 %v4719
    %v4821 = vunpack.c.l.b16 %v4720
    %v4822 = vunpack.c.l.b16 %v4721
    %v4823 = vunpack.c.h.b16 %v4721
    %v4824 = vunpack.c.l.b16 %v4722
    %v4825 = vunpack.c.l.b16 %v4723
    %v4826 = vunpack.c.h.b16 %v4723
    %v4827 = vunpack.c.l.b16 %v4724
    %v4828 = vunpack.c.l.b16 %v4725
    %v4829 = vunpack.c.h.b16 %v4725
    %v4830 = vunpack.c.l.b16 %v4726
    %v4831 = vunpack.c.l.b16 %v4727
    %v4832 = vunpack.c.h.b16 %v4727
    %v4833 = vunpack.c.l.b16 %v4728
    %v4834 = vunpack.c.l.b16 %v4729
    %v4835 = vunpack.c.h.b16 %v4729
    %v4836 = vunpack.c.l.b16 %v4730
    %v4837 = vpack.c.b16 %v4792, %v4789
    %v4838 = vpack.c.b16 %v4793, %v4790
    %v4839 = vpack.c.b16 %v4794, %v4791
    %v4840 = vpack.c.b16 %v4798, %v4795
    %v4841 = vpack.c.b16 %v4799, %v4796
    %v4842 = vpack.c.b16 %v4800, %v4797
    %v4843 = vpack.c.b16 %v4804, %v4801
    %v4844 = vpack.c.b16 %v4805, %v4802
    %v4845 = vpack.c.b16 %v4806, %v4803
    %v4846 = vpack.c.b16 %v4810, %v4807
    %v4847 = vpack.c.b16 %v4811, %v4808
    %v4848 = vpack.c.b16 %v4812, %v4809
    %v4849 = vpack.c.b16 %v4816, %v4813
    %v4850 = vpack.c.b16 %v4817, %v4814
    %v4851 = vpack.c.b16 %v4818, %v4815
    %v4852 = vpack.c.b16 %v4822, %v4819
    %v4853 = vpack.c.b16 %v4823, %v4820
    %v4854 = vpack.c.b16 %v4824, %v4821
    %v4855 = vpack.c.b16 %v4828, %v4825
    %v4856 = vpack.c.b16 %v4829, %v4826
    %v4857 = vpack.c.b16 %v4830, %v4827
    %v4858 = vpack.c.b16 %v4834, %v4831
    %v4859 = vpack.c.b16 %v4835, %v4832
    %v4860 = vpack.c.b16 %v4836, %v4833
    %4885 = vmatprep.subr.bf16.mxu0 %v4859
    %4886 = vmatpush1.bf16.msra.mxu0 %v4858
    %4887 = vmatprep.subr.bf16.mxu0 %v4856
    %4888 = vmatpush1.bf16.msra.mxu0 %v4855
    %4889 = vmatprep.subr.bf16.mxu0 %v4853
    %4890 = vmatpush1.bf16.msra.mxu0 %v4852
    %4891 = vmatprep.subr.bf16.mxu0 %v4850
    %4892 = vmatpush1.bf16.msra.mxu0 %v4849
    %4893 = vmatprep.subr.bf16.mxu0 %v4847
    %4894 = vmatpush1.bf16.msra.mxu0 %v4846
    %4895 = vmatprep.subr.bf16.mxu0 %v4844
    %4896 = vmatpush1.bf16.msra.mxu0 %v4843
    %4897 = vmatprep.subr.bf16.mxu0 %v4841
    %4898 = vmatpush1.bf16.msra.mxu0 %v4840
    %4899 = vmatprep.subr.bf16.mxu0 %v4838
    %4900 = vmatpush1.bf16.msra.mxu0 %v4837
    %4901 = vmatprep.subr.bf16.mxu0 0
    %4902 = vmatpush2.bf16.msra.mxu0 0
    %4903 = vmatprep.subr.bf16.mxu0 0
    %4904 = vmatpush2.bf16.msra.mxu0 0
    %4905 = vmatprep.subr.bf16.mxu0 0
    %4906 = vmatpush2.bf16.msra.mxu0 0
    %4907 = vmatprep.subr.bf16.mxu0 0
    %4908 = vmatpush2.bf16.msra.mxu0 0
    %4909 = vmatprep.subr.bf16.mxu0 0
    %4910 = vmatpush2.bf16.msra.mxu0 0
    %4911 = vmatprep.subr.bf16.mxu0 0
    %4912 = vmatpush2.bf16.msra.mxu0 0
    %4913 = vmatprep.subr.bf16.mxu0 0
    %4914 = vmatpush2.bf16.msra.mxu0 0
    %4915 = vmatprep.subr.bf16.mxu0 0
    %4916 = vmatpush2.bf16.msra.mxu0 0
    %4917 = vmatprep.mubr.bf16.mxu0 0
    %4918 = vmatmul.mubr.bf16.gmra.mxu0 %v4733
    %v4919 = vpop.f32.mrf.mxu0
    %v4920 = vadd.f32 %v4745, %v4919
    %v4921 = vpop.f32.mrf.mxu0
    %v4922 = vadd.f32 %v4749, %v4921
    %v4923 = vpop.f32.mrf.mxu0
    %v4924 = vadd.f32 %v4745, %v4923
    %v4925 = vpop.f32.mrf.mxu0
    %v4926 = vadd.f32 %v4749, %v4925
    %4927 = vmatprep.mubr.bf16.mxu0 0
    %4928 = vmatmul.mubr.bf16.gmra.mxu0 %v4734
    %v4929 = vpop.f32.mrf.mxu0
    %v4930 = vadd.f32 %v4745, %v4929
    %v4931 = vpop.f32.mrf.mxu0
    %v4932 = vadd.f32 %v4749, %v4931
    %v4933 = vpop.f32.mrf.mxu0
    %v4934 = vadd.f32 %v4745, %v4933
    %v4935 = vpop.f32.mrf.mxu0
    %v4936 = vadd.f32 %v4749, %v4935
    %4937 = vmatprep.mubr.bf16.mxu0 0
    %4938 = vmatmul.mubr.bf16.gmra.mxu0 %v4735
    %v4939 = vpop.f32.mrf.mxu0
    %v4940 = vadd.f32 %v4745, %v4939
    %v4941 = vpop.f32.mrf.mxu0
    %v4942 = vadd.f32 %v4749, %v4941
    %v4943 = vpop.f32.mrf.mxu0
    %v4944 = vadd.f32 %v4745, %v4943
    %v4945 = vpop.f32.mrf.mxu0
    %v4946 = vadd.f32 %v4749, %v4945
    %4947 = vmatprep.mubr.bf16.mxu0 0
    %4948 = vmatmul.mubr.bf16.gmra.mxu0 %v4736
    %v4949 = vpop.f32.mrf.mxu0
    %v4950 = vadd.f32 %v4745, %v4949
    %v4951 = vpop.f32.mrf.mxu0
    %v4952 = vadd.f32 %v4749, %v4951
    %v4953 = vpop.f32.mrf.mxu0
    %v4954 = vadd.f32 %v4745, %v4953
    %v4955 = vpop.f32.mrf.mxu0
    %v4956 = vadd.f32 %v4749, %v4955
    %4957 = vmatprep.mubr.bf16.mxu0 0
    %4958 = vmatmul.mubr.bf16.gmra.mxu0 %v4737
    %v4959 = vpop.f32.mrf.mxu0
    %v4960 = vadd.f32 %v4745, %v4959
    %v4961 = vpop.f32.mrf.mxu0
    %v4962 = vadd.f32 %v4749, %v4961
    %v4963 = vpop.f32.mrf.mxu0
    %v4964 = vadd.f32 %v4745, %v4963
    %v4965 = vpop.f32.mrf.mxu0
    %v4966 = vadd.f32 %v4749, %v4965
    %4967 = vmatprep.mubr.bf16.mxu0 0
    %4968 = vmatmul.mubr.bf16.gmra.mxu0 %v4738
    %v4969 = vpop.f32.mrf.mxu0
    %v4970 = vadd.f32 %v4745, %v4969
    %v4971 = vpop.f32.mrf.mxu0
    %v4972 = vadd.f32 %v4749, %v4971
    %v4973 = vpop.f32.mrf.mxu0
    %v4974 = vadd.f32 %v4745, %v4973
    %v4975 = vpop.f32.mrf.mxu0
    %v4976 = vadd.f32 %v4749, %v4975
    %4977 = vmatprep.mubr.bf16.mxu0 0
    %4978 = vmatmul.mubr.bf16.gmra.mxu0 %v4739
    %v4979 = vpop.f32.mrf.mxu0
    %v4980 = vadd.f32 %v4745, %v4979
    %v4981 = vpop.f32.mrf.mxu0
    %v4982 = vadd.f32 %v4749, %v4981
    %v4983 = vpop.f32.mrf.mxu0
    %v4984 = vadd.f32 %v4745, %v4983
    %v4985 = vpop.f32.mrf.mxu0
    %v4986 = vadd.f32 %v4749, %v4985
    %4987 = vmatprep.mubr.bf16.mxu0 0
    %4988 = vmatmul.mubr.bf16.gmra.mxu0 %v4740
    %v4989 = vpop.f32.mrf.mxu0
    %v4990 = vadd.f32 %v4745, %v4989
    %v4991 = vpop.f32.mrf.mxu0
    %v4992 = vadd.f32 %v4749, %v4991
    %v4993 = vpop.f32.mrf.mxu0
    %v4994 = vadd.f32 %v4745, %v4993
    %v4995 = vpop.f32.mrf.mxu0
    %v4996 = vadd.f32 %v4749, %v4995
    %4997 = vdwg.mxu0
    %4998 = vmatprep.subr.bf16.mxu0 0
    %4999 = vmatpush1.bf16.msra.mxu0 %v4860
    %5000 = vmatprep.subr.bf16.mxu0 0
    %5001 = vmatpush1.bf16.msra.mxu0 %v4857
    %5002 = vmatprep.subr.bf16.mxu0 0
    %5003 = vmatpush1.bf16.msra.mxu0 %v4854
    %5004 = vmatprep.subr.bf16.mxu0 0
    %5005 = vmatpush1.bf16.msra.mxu0 %v4851
    %5006 = vmatprep.subr.bf16.mxu0 0
    %5007 = vmatpush1.bf16.msra.mxu0 %v4848
    %5008 = vmatprep.subr.bf16.mxu0 0
    %5009 = vmatpush1.bf16.msra.mxu0 %v4845
    %5010 = vmatprep.subr.bf16.mxu0 0
    %5011 = vmatpush1.bf16.msra.mxu0 %v4842
    %5012 = vmatprep.subr.bf16.mxu0 0
    %5013 = vmatpush1.bf16.msra.mxu0 %v4839
    %5014 = vmatprep.subr.bf16.mxu0 0
    %5015 = vmatpush2.bf16.msra.mxu0 0
    %5016 = vmatprep.subr.bf16.mxu0 0
    %5017 = vmatpush2.bf16.msra.mxu0 0
    %5018 = vmatprep.subr.bf16.mxu0 0
    %5019 = vmatpush2.bf16.msra.mxu0 0
    %5020 = vmatprep.subr.bf16.mxu0 0
    %5021 = vmatpush2.bf16.msra.mxu0 0
    %5022 = vmatprep.subr.bf16.mxu0 0
    %5023 = vmatpush2.bf16.msra.mxu0 0
    %5024 = vmatprep.subr.bf16.mxu0 0
    %5025 = vmatpush2.bf16.msra.mxu0 0
    %5026 = vmatprep.subr.bf16.mxu0 0
    %5027 = vmatpush2.bf16.msra.mxu0 0
    %5028 = vmatprep.subr.bf16.mxu0 0
    %5029 = vmatpush2.bf16.msra.mxu0 0
    %5030 = vmatprep.mubr.bf16.mxu0 0
    %5031 = vmatmul.mubr.bf16.gmra.mxu0 %v4733
    %v5032 = vpop.f32.mrf.mxu0
    %v5033 = vadd.f32 %v4753, %v5032
    %v5034 = vpop.f32.mrf.mxu0
    %v5035 = vpop.f32.mrf.mxu0
    %v5036 = vadd.f32 %v4753, %v5035
    %v5037 = vpop.f32.mrf.mxu0
    %5038 = vmatprep.mubr.bf16.mxu0 0
    %5039 = vmatmul.mubr.bf16.gmra.mxu0 %v4734
    %v5040 = vpop.f32.mrf.mxu0
    %v5041 = vadd.f32 %v4753, %v5040
    %v5042 = vpop.f32.mrf.mxu0
    %v5043 = vpop.f32.mrf.mxu0
    %v5044 = vadd.f32 %v4753, %v5043
    %v5045 = vpop.f32.mrf.mxu0
    %5046 = vmatprep.mubr.bf16.mxu0 0
    %5047 = vmatmul.mubr.bf16.gmra.mxu0 %v4735
    %v5048 = vpop.f32.mrf.mxu0
    %v5049 = vadd.f32 %v4753, %v5048
    %v5050 = vpop.f32.mrf.mxu0
    %v5051 = vpop.f32.mrf.mxu0
    %v5052 = vadd.f32 %v4753, %v5051
    %v5053 = vpop.f32.mrf.mxu0
    %5054 = vmatprep.mubr.bf16.mxu0 0
    %5055 = vmatmul.mubr.bf16.gmra.mxu0 %v4736
    %v5056 = vpop.f32.mrf.mxu0
    %v5057 = vadd.f32 %v4753, %v5056
    %v5058 = vpop.f32.mrf.mxu0
    %v5059 = vpop.f32.mrf.mxu0
    %v5060 = vadd.f32 %v4753, %v5059
    %v5061 = vpop.f32.mrf.mxu0
    %5062 = vmatprep.mubr.bf16.mxu0 0
    %5063 = vmatmul.mubr.bf16.gmra.mxu0 %v4737
    %v5064 = vpop.f32.mrf.mxu0
    %v5065 = vadd.f32 %v4753, %v5064
    %v5066 = vpop.f32.mrf.mxu0
    %v5067 = vpop.f32.mrf.mxu0
    %v5068 = vadd.f32 %v4753, %v5067
    %v5069 = vpop.f32.mrf.mxu0
    %5070 = vmatprep.mubr.bf16.mxu0 0
    %5071 = vmatmul.mubr.bf16.gmra.mxu0 %v4738
    %v5072 = vpop.f32.mrf.mxu0
    %v5073 = vadd.f32 %v4753, %v5072
    %v5074 = vpop.f32.mrf.mxu0
    %v5075 = vpop.f32.mrf.mxu0
    %v5076 = vadd.f32 %v4753, %v5075
    %v5077 = vpop.f32.mrf.mxu0
    %5078 = vmatprep.mubr.bf16.mxu0 0
    %5079 = vmatmul.mubr.bf16.gmra.mxu0 %v4739
    %v5080 = vpop.f32.mrf.mxu0
    %v5081 = vadd.f32 %v4753, %v5080
    %v5082 = vpop.f32.mrf.mxu0
    %v5083 = vpop.f32.mrf.mxu0
    %v5084 = vadd.f32 %v4753, %v5083
    %v5085 = vpop.f32.mrf.mxu0
    %5086 = vmatprep.mubr.bf16.mxu0 0
    %5087 = vmatmul.mubr.bf16.gmra.mxu0 %v4740
    %v5088 = vpop.f32.mrf.mxu0
    %v5089 = vadd.f32 %v4753, %v5088
    %v5090 = vpop.f32.mrf.mxu0
    %v5091 = vpop.f32.mrf.mxu0
    %v5092 = vadd.f32 %v4753, %v5091
    %v5093 = vpop.f32.mrf.mxu0
    %5094 = vdwg.mxu0
    %v5095 = vmul.f32 %v4920, %v722
    %v5096 = vmul.f32 %v4924, %v723
    %v5097 = vmul.f32 %v4930, %v724
    %v5098 = vmul.f32 %v4934, %v725
    %v5099 = vmul.f32 %v4940, %v726
    %v5100 = vmul.f32 %v4944, %v727
    %v5101 = vmul.f32 %v4950, %v728
    %v5102 = vmul.f32 %v4954, %v729
    %v5103 = vmul.f32 %v4960, %v730
    %v5104 = vmul.f32 %v4964, %v731
    %v5105 = vmul.f32 %v4970, %v732
    %v5106 = vmul.f32 %v4974, %v733
    %v5107 = vmul.f32 %v4980, %v734
    %v5108 = vmul.f32 %v4984, %v735
    %v5109 = vmul.f32 %v4990, %v736
    %v5110 = vmul.f32 %v4994, %v737
    %5111 = vrot.lane.b32.xlu0 %v4920, 64
    %v5112 = vpop.permute.xlu0 %5111
    %5113 = vrot.lane.b32.xlu0 %v4924, 64
    %v5114 = vpop.permute.xlu0 %5113
    %5115 = vrot.lane.b32.xlu0 %v4930, 64
    %v5116 = vpop.permute.xlu0 %5115
    %5117 = vrot.lane.b32.xlu0 %v4934, 64
    %v5118 = vpop.permute.xlu0 %5117
    %5119 = vrot.lane.b32.xlu0 %v4940, 64
    %v5120 = vpop.permute.xlu0 %5119
    %5121 = vrot.lane.b32.xlu0 %v4944, 64
    %v5122 = vpop.permute.xlu0 %5121
    %5123 = vrot.lane.b32.xlu0 %v4950, 64
    %v5124 = vpop.permute.xlu0 %5123
    %5125 = vrot.lane.b32.xlu0 %v4954, 64
    %v5126 = vpop.permute.xlu0 %5125
    %5127 = vrot.lane.b32.xlu0 %v4960, 64
    %v5128 = vpop.permute.xlu0 %5127
    %5129 = vrot.lane.b32.xlu0 %v4964, 64
    %v5130 = vpop.permute.xlu0 %5129
    %5131 = vrot.lane.b32.xlu0 %v4970, 64
    %v5132 = vpop.permute.xlu0 %5131
    %5133 = vrot.lane.b32.xlu0 %v4974, 64
    %v5134 = vpop.permute.xlu0 %5133
    %5135 = vrot.lane.b32.xlu0 %v4980, 64
    %v5136 = vpop.permute.xlu0 %5135
    %5137 = vrot.lane.b32.xlu0 %v4984, 64
    %v5138 = vpop.permute.xlu0 %5137
    %5139 = vrot.lane.b32.xlu0 %v4990, 64
    %v5140 = vpop.permute.xlu0 %5139
    %5141 = vrot.lane.b32.xlu0 %v4994, 64
    %v5142 = vpop.permute.xlu0 %5141
    %v5143 = vmul.f32 %v5112, %v786
    %v5144 = vmul.f32 %v5114, %v787
    %v5145 = vmul.f32 %v5116, %v788
    %v5146 = vmul.f32 %v5118, %v789
    %v5147 = vmul.f32 %v5120, %v790
    %v5148 = vmul.f32 %v5122, %v791
    %v5149 = vmul.f32 %v5124, %v792
    %v5150 = vmul.f32 %v5126, %v793
    %v5151 = vmul.f32 %v5128, %v794
    %v5152 = vmul.f32 %v5130, %v795
    %v5153 = vmul.f32 %v5132, %v796
    %v5154 = vmul.f32 %v5134, %v797
    %v5155 = vmul.f32 %v5136, %v798
    %v5156 = vmul.f32 %v5138, %v799
    %v5157 = vmul.f32 %v5140, %v800
    %v5158 = vmul.f32 %v5142, %v801
    %v5159 = vadd.f32 %v5095, %v5143
    %v5160 = vadd.f32 %v5096, %v5144
    %v5161 = vadd.f32 %v5097, %v5145
    %v5162 = vadd.f32 %v5098, %v5146
    %v5163 = vadd.f32 %v5099, %v5147
    %v5164 = vadd.f32 %v5100, %v5148
    %v5165 = vadd.f32 %v5101, %v5149
    %v5166 = vadd.f32 %v5102, %v5150
    %v5167 = vadd.f32 %v5103, %v5151
    %v5168 = vadd.f32 %v5104, %v5152
    %v5169 = vadd.f32 %v5105, %v5153
    %v5170 = vadd.f32 %v5106, %v5154
    %v5171 = vadd.f32 %v5107, %v5155
    %v5172 = vadd.f32 %v5108, %v5156
    %v5173 = vadd.f32 %v5109, %v5157
    %v5174 = vadd.f32 %v5110, %v5158
    %v5175 = vmul.f32 %v4922, %v722
    %v5176 = vmul.f32 %v4926, %v723
    %v5177 = vmul.f32 %v4932, %v724
    %v5178 = vmul.f32 %v4936, %v725
    %v5179 = vmul.f32 %v4942, %v726
    %v5180 = vmul.f32 %v4946, %v727
    %v5181 = vmul.f32 %v4952, %v728
    %v5182 = vmul.f32 %v4956, %v729
    %v5183 = vmul.f32 %v4962, %v730
    %v5184 = vmul.f32 %v4966, %v731
    %v5185 = vmul.f32 %v4972, %v732
    %v5186 = vmul.f32 %v4976, %v733
    %v5187 = vmul.f32 %v4982, %v734
    %v5188 = vmul.f32 %v4986, %v735
    %v5189 = vmul.f32 %v4992, %v736
    %v5190 = vmul.f32 %v4996, %v737
    %5191 = vrot.lane.b32.xlu0 %v4922, 64
    %v5192 = vpop.permute.xlu0 %5191
    %5193 = vrot.lane.b32.xlu0 %v4926, 64
    %v5194 = vpop.permute.xlu0 %5193
    %5195 = vrot.lane.b32.xlu0 %v4932, 64
    %v5196 = vpop.permute.xlu0 %5195
    %5197 = vrot.lane.b32.xlu0 %v4936, 64
    %v5198 = vpop.permute.xlu0 %5197
    %5199 = vrot.lane.b32.xlu0 %v4942, 64
    %v5200 = vpop.permute.xlu0 %5199
    %5201 = vrot.lane.b32.xlu0 %v4946, 64
    %v5202 = vpop.permute.xlu0 %5201
    %5203 = vrot.lane.b32.xlu0 %v4952, 64
    %v5204 = vpop.permute.xlu0 %5203
    %5205 = vrot.lane.b32.xlu0 %v4956, 64
    %v5206 = vpop.permute.xlu0 %5205
    %5207 = vrot.lane.b32.xlu0 %v4962, 64
    %v5208 = vpop.permute.xlu0 %5207
    %5209 = vrot.lane.b32.xlu0 %v4966, 64
    %v5210 = vpop.permute.xlu0 %5209
    %5211 = vrot.lane.b32.xlu0 %v4972, 64
    %v5212 = vpop.permute.xlu0 %5211
    %5213 = vrot.lane.b32.xlu0 %v4976, 64
    %v5214 = vpop.permute.xlu0 %5213
    %5215 = vrot.lane.b32.xlu0 %v4982, 64
    %v5216 = vpop.permute.xlu0 %5215
    %5217 = vrot.lane.b32.xlu0 %v4986, 64
    %v5218 = vpop.permute.xlu0 %5217
    %5219 = vrot.lane.b32.xlu0 %v4992, 64
    %v5220 = vpop.permute.xlu0 %5219
    %5221 = vrot.lane.b32.xlu0 %v4996, 64
    %v5222 = vpop.permute.xlu0 %5221
    %v5223 = vmul.f32 %v5192, %v786
    %v5224 = vmul.f32 %v5194, %v787
    %v5225 = vmul.f32 %v5196, %v788
    %v5226 = vmul.f32 %v5198, %v789
    %v5227 = vmul.f32 %v5200, %v790
    %v5228 = vmul.f32 %v5202, %v791
    %v5229 = vmul.f32 %v5204, %v792
    %v5230 = vmul.f32 %v5206, %v793
    %v5231 = vmul.f32 %v5208, %v794
    %v5232 = vmul.f32 %v5210, %v795
    %v5233 = vmul.f32 %v5212, %v796
    %v5234 = vmul.f32 %v5214, %v797
    %v5235 = vmul.f32 %v5216, %v798
    %v5236 = vmul.f32 %v5218, %v799
    %v5237 = vmul.f32 %v5220, %v800
    %v5238 = vmul.f32 %v5222, %v801
    %v5239 = vadd.f32 %v5175, %v5223
    %v5240 = vadd.f32 %v5176, %v5224
    %v5241 = vadd.f32 %v5177, %v5225
    %v5242 = vadd.f32 %v5178, %v5226
    %v5243 = vadd.f32 %v5179, %v5227
    %v5244 = vadd.f32 %v5180, %v5228
    %v5245 = vadd.f32 %v5181, %v5229
    %v5246 = vadd.f32 %v5182, %v5230
    %v5247 = vadd.f32 %v5183, %v5231
    %v5248 = vadd.f32 %v5184, %v5232
    %v5249 = vadd.f32 %v5185, %v5233
    %v5250 = vadd.f32 %v5186, %v5234
    %v5251 = vadd.f32 %v5187, %v5235
    %v5252 = vadd.f32 %v5188, %v5236
    %v5253 = vadd.f32 %v5189, %v5237
    %v5254 = vadd.f32 %v5190, %v5238
    %v5255 = vpack.c.bf16 %v5160, %v5159
    %v5256 = vpack.c.bf16 %v5162, %v5161
    %v5257 = vpack.c.bf16 %v5164, %v5163
    %v5258 = vpack.c.bf16 %v5166, %v5165
    %v5259 = vpack.c.bf16 %v5168, %v5167
    %v5260 = vpack.c.bf16 %v5170, %v5169
    %v5261 = vpack.c.bf16 %v5172, %v5171
    %v5262 = vpack.c.bf16 %v5174, %v5173
    %v5263 = vpack.c.bf16 %v5240, %v5239
    %v5264 = vpack.c.bf16 %v5242, %v5241
    %v5265 = vpack.c.bf16 %v5244, %v5243
    %v5266 = vpack.c.bf16 %v5246, %v5245
    %v5267 = vpack.c.bf16 %v5248, %v5247
    %v5268 = vpack.c.bf16 %v5250, %v5249
    %v5269 = vpack.c.bf16 %v5252, %v5251
    %v5270 = vpack.c.bf16 %v5254, %v5253
    %5271 = vmatprep.subr.bf16.mxu0 0
    %5272 = vmatpush1.bf16.xpose.msra.mxu0 %v5270
    %5273 = vmatprep.subr.bf16.mxu0 0
    %5274 = vmatpush1.bf16.xpose.msra.mxu0 %v5269
    %5275 = vmatprep.subr.bf16.mxu0 0
    %5276 = vmatpush1.bf16.xpose.msra.mxu0 %v5268
    %5277 = vmatprep.subr.bf16.mxu0 0
    %5278 = vmatpush1.bf16.xpose.msra.mxu0 %v5267
    %5279 = vmatprep.subr.bf16.mxu0 0
    %5280 = vmatpush1.bf16.xpose.msra.mxu0 %v5266
    %5281 = vmatprep.subr.bf16.mxu0 0
    %5282 = vmatpush1.bf16.xpose.msra.mxu0 %v5265
    %5283 = vmatprep.subr.bf16.mxu0 0
    %5284 = vmatpush1.bf16.xpose.msra.mxu0 %v5264
    %5285 = vmatprep.subr.bf16.mxu0 0
    %5286 = vmatpush1.bf16.xpose.msra.mxu0 %v5263
    %5287 = vmatprep.subr.bf16.mxu0 0
    %5288 = vmatpush2.bf16.xpose.msra.mxu0 0
    %5289 = vmatprep.subr.bf16.mxu0 0
    %5290 = vmatpush2.bf16.xpose.msra.mxu0 0
    %5291 = vmatprep.subr.bf16.mxu0 0
    %5292 = vmatpush2.bf16.xpose.msra.mxu0 0
    %5293 = vmatprep.subr.bf16.mxu0 0
    %5294 = vmatpush2.bf16.xpose.msra.mxu0 0
    %5295 = vmatprep.subr.bf16.mxu0 0
    %5296 = vmatpush2.bf16.xpose.msra.mxu0 0
    %5297 = vmatprep.subr.bf16.mxu0 0
    %5298 = vmatpush2.bf16.xpose.msra.mxu0 0
    %5299 = vmatprep.subr.bf16.mxu0 0
    %5300 = vmatpush2.bf16.xpose.msra.mxu0 0
    %5301 = vmatprep.subr.bf16.mxu0 0
    %5302 = vmatpush2.bf16.xpose.msra.mxu0 0
    %5303 = vmatprep.mubr.bf16.mxu0 0
    %5304 = vmatmul.mubr.bf16.gmra.mxu0 %v5255
    %v5305 = vpop.f32.mrf.mxu0
    %v5306 = vadd.f32 %v930, %v5305
    %v5307 = vpop.f32.mrf.mxu0
    %v5308 = vpop.f32.mrf.mxu0
    %v5309 = vadd.f32 %v931, %v5308
    %v5310 = vpop.f32.mrf.mxu0
    %5311 = vmatprep.mubr.bf16.mxu0 0
    %5312 = vmatmul.mubr.bf16.gmra.mxu0 %v5256
    %v5313 = vpop.f32.mrf.mxu0
    %v5314 = vadd.f32 %v932, %v5313
    %v5315 = vpop.f32.mrf.mxu0
    %v5316 = vpop.f32.mrf.mxu0
    %v5317 = vadd.f32 %v933, %v5316
    %v5318 = vpop.f32.mrf.mxu0
    %5319 = vmatprep.mubr.bf16.mxu0 0
    %5320 = vmatmul.mubr.bf16.gmra.mxu0 %v5257
    %v5321 = vpop.f32.mrf.mxu0
    %v5322 = vadd.f32 %v934, %v5321
    %v5323 = vpop.f32.mrf.mxu0
    %v5324 = vpop.f32.mrf.mxu0
    %v5325 = vadd.f32 %v935, %v5324
    %v5326 = vpop.f32.mrf.mxu0
    %5327 = vmatprep.mubr.bf16.mxu0 0
    %5328 = vmatmul.mubr.bf16.gmra.mxu0 %v5258
    %v5329 = vpop.f32.mrf.mxu0
    %v5330 = vadd.f32 %v936, %v5329
    %v5331 = vpop.f32.mrf.mxu0
    %v5332 = vpop.f32.mrf.mxu0
    %v5333 = vadd.f32 %v937, %v5332
    %v5334 = vpop.f32.mrf.mxu0
    %5335 = vmatprep.mubr.bf16.mxu0 0
    %5336 = vmatmul.mubr.bf16.gmra.mxu0 %v5259
    %v5337 = vpop.f32.mrf.mxu0
    %v5338 = vadd.f32 %v938, %v5337
    %v5339 = vpop.f32.mrf.mxu0
    %v5340 = vpop.f32.mrf.mxu0
    %v5341 = vadd.f32 %v939, %v5340
    %v5342 = vpop.f32.mrf.mxu0
    %5343 = vmatprep.mubr.bf16.mxu0 0
    %5344 = vmatmul.mubr.bf16.gmra.mxu0 %v5260
    %v5345 = vpop.f32.mrf.mxu0
    %v5346 = vadd.f32 %v940, %v5345
    %v5347 = vpop.f32.mrf.mxu0
    %v5348 = vpop.f32.mrf.mxu0
    %v5349 = vadd.f32 %v941, %v5348
    %v5350 = vpop.f32.mrf.mxu0
    %5351 = vmatprep.mubr.bf16.mxu0 0
    %5352 = vmatmul.mubr.bf16.gmra.mxu0 %v5261
    %v5353 = vpop.f32.mrf.mxu0
    %v5354 = vadd.f32 %v942, %v5353
    %v5355 = vpop.f32.mrf.mxu0
    %v5356 = vpop.f32.mrf.mxu0
    %v5357 = vadd.f32 %v943, %v5356
    %v5358 = vpop.f32.mrf.mxu0
    %5359 = vmatprep.mubr.bf16.mxu0 0
    %5360 = vmatmul.mubr.bf16.gmra.mxu0 %v5262
    %v5361 = vpop.f32.mrf.mxu0
    %v5362 = vadd.f32 %v944, %v5361
    %v5363 = vpop.f32.mrf.mxu0
    %v5364 = vpop.f32.mrf.mxu0
    %v5365 = vadd.f32 %v945, %v5364
    %v5366 = vpop.f32.mrf.mxu0
    %5367 = vdwg.mxu0
    %5368 = vmax.xlane.f32.xlu0 %v5306
    %v5369 = vpop.xlane.xlu0 %5368
    %5370 = vmax.xlane.f32.xlu0 %v5309
    %v5371 = vpop.xlane.xlu0 %5370
    %5372 = vmax.xlane.f32.xlu0 %v5314
    %v5373 = vpop.xlane.xlu0 %5372
    %5374 = vmax.xlane.f32.xlu0 %v5317
    %v5375 = vpop.xlane.xlu0 %5374
    %5376 = vmax.xlane.f32.xlu0 %v5322
    %v5377 = vpop.xlane.xlu0 %5376
    %5378 = vmax.xlane.f32.xlu0 %v5325
    %v5379 = vpop.xlane.xlu0 %5378
    %5380 = vmax.xlane.f32.xlu0 %v5330
    %v5381 = vpop.xlane.xlu0 %5380
    %5382 = vmax.xlane.f32.xlu0 %v5333
    %v5383 = vpop.xlane.xlu0 %5382
    %5384 = vmax.xlane.f32.xlu0 %v5338
    %v5385 = vpop.xlane.xlu0 %5384
    %5386 = vmax.xlane.f32.xlu0 %v5341
    %v5387 = vpop.xlane.xlu0 %5386
    %5388 = vmax.xlane.f32.xlu0 %v5346
    %v5389 = vpop.xlane.xlu0 %5388
    %5390 = vmax.xlane.f32.xlu0 %v5349
    %v5391 = vpop.xlane.xlu0 %5390
    %5392 = vmax.xlane.f32.xlu0 %v5354
    %v5393 = vpop.xlane.xlu0 %5392
    %5394 = vmax.xlane.f32.xlu0 %v5357
    %v5395 = vpop.xlane.xlu0 %5394
    %5396 = vmax.xlane.f32.xlu0 %v5362
    %v5397 = vpop.xlane.xlu0 %5396
    %5398 = vmax.xlane.f32.xlu0 %v5365
    %v5399 = vpop.xlane.xlu0 %5398
    %v5400 = vsub.f32 %v5306, %v5369
    %v5401 = vsub.f32 %v5309, %v5371
    %v5402 = vsub.f32 %v5314, %v5373
    %v5403 = vsub.f32 %v5317, %v5375
    %v5404 = vsub.f32 %v5322, %v5377
    %v5405 = vsub.f32 %v5325, %v5379
    %v5406 = vsub.f32 %v5330, %v5381
    %v5407 = vsub.f32 %v5333, %v5383
    %v5408 = vsub.f32 %v5338, %v5385
    %v5409 = vsub.f32 %v5341, %v5387
    %v5410 = vsub.f32 %v5346, %v5389
    %v5411 = vsub.f32 %v5349, %v5391
    %v5412 = vsub.f32 %v5354, %v5393
    %v5413 = vsub.f32 %v5357, %v5395
    %v5414 = vsub.f32 %v5362, %v5397
    %v5415 = vsub.f32 %v5365, %v5399
    %v5416 = vmul.f32 %v5400, 1.442695
    %v5417 = vpow.pop %v5416
    %v5418 = vmul.f32 %v5401, 1.442695
    %v5419 = vpow.pop %v5418
    %v5420 = vmul.f32 %v5402, 1.442695
    %v5421 = vpow.pop %v5420
    %v5422 = vmul.f32 %v5403, 1.442695
    %v5423 = vpow.pop %v5422
    %v5424 = vmul.f32 %v5404, 1.442695
    %v5425 = vpow.pop %v5424
    %v5426 = vmul.f32 %v5405, 1.442695
    %v5427 = vpow.pop %v5426
    %v5428 = vmul.f32 %v5406, 1.442695
    %v5429 = vpow.pop %v5428
    %v5430 = vmul.f32 %v5407, 1.442695
    %v5431 = vpow.pop %v5430
    %v5432 = vmul.f32 %v5408, 1.442695
    %v5433 = vpow.pop %v5432
    %v5434 = vmul.f32 %v5409, 1.442695
    %v5435 = vpow.pop %v5434
    %v5436 = vmul.f32 %v5410, 1.442695
    %v5437 = vpow.pop %v5436
    %v5438 = vmul.f32 %v5411, 1.442695
    %v5439 = vpow.pop %v5438
    %v5440 = vmul.f32 %v5412, 1.442695
    %v5441 = vpow.pop %v5440
    %v5442 = vmul.f32 %v5413, 1.442695
    %v5443 = vpow.pop %v5442
    %v5444 = vmul.f32 %v5414, 1.442695
    %v5445 = vpow.pop %v5444
    %v5446 = vmul.f32 %v5415, 1.442695
    %v5447 = vpow.pop %v5446
    %5448 = vadd.xlane.f32.xlu0 %v5417
    %v5449 = vpop.xlane.xlu0 %5448
    %5450 = vadd.xlane.f32.xlu0 %v5419
    %v5451 = vpop.xlane.xlu0 %5450
    %5452 = vadd.xlane.f32.xlu0 %v5421
    %v5453 = vpop.xlane.xlu0 %5452
    %5454 = vadd.xlane.f32.xlu0 %v5423
    %v5455 = vpop.xlane.xlu0 %5454
    %5456 = vadd.xlane.f32.xlu0 %v5425
    %v5457 = vpop.xlane.xlu0 %5456
    %5458 = vadd.xlane.f32.xlu0 %v5427
    %v5459 = vpop.xlane.xlu0 %5458
    %5460 = vadd.xlane.f32.xlu0 %v5429
    %v5461 = vpop.xlane.xlu0 %5460
    %5462 = vadd.xlane.f32.xlu0 %v5431
    %v5463 = vpop.xlane.xlu0 %5462
    %5464 = vadd.xlane.f32.xlu0 %v5433
    %v5465 = vpop.xlane.xlu0 %5464
    %5466 = vadd.xlane.f32.xlu0 %v5435
    %v5467 = vpop.xlane.xlu0 %5466
    %5468 = vadd.xlane.f32.xlu0 %v5437
    %v5469 = vpop.xlane.xlu0 %5468
    %5470 = vadd.xlane.f32.xlu0 %v5439
    %v5471 = vpop.xlane.xlu0 %5470
    %5472 = vadd.xlane.f32.xlu0 %v5441
    %v5473 = vpop.xlane.xlu0 %5472
    %5474 = vadd.xlane.f32.xlu0 %v5443
    %v5475 = vpop.xlane.xlu0 %5474
    %5476 = vadd.xlane.f32.xlu0 %v5445
    %v5477 = vpop.xlane.xlu0 %5476
    %5478 = vadd.xlane.f32.xlu0 %v5447
    %v5479 = vpop.xlane.xlu0 %5478
    %v5480 = vpack.c.bf16 %v5419, %v5417
    %v5481 = vpack.c.bf16 %v5423, %v5421
    %v5482 = vpack.c.bf16 %v5427, %v5425
    %v5483 = vpack.c.bf16 %v5431, %v5429
    %v5484 = vpack.c.bf16 %v5435, %v5433
    %v5485 = vpack.c.bf16 %v5439, %v5437
    %v5486 = vpack.c.bf16 %v5443, %v5441
    %v5487 = vpack.c.bf16 %v5447, %v5445
    %v5488 = vpack.c.bf16 %v5036, %v5033
    %v5489 = vpack.c.bf16 %v5044, %v5041
    %v5490 = vpack.c.bf16 %v5052, %v5049
    %v5491 = vpack.c.bf16 %v5060, %v5057
    %v5492 = vpack.c.bf16 %v5068, %v5065
    %v5493 = vpack.c.bf16 %v5076, %v5073
    %v5494 = vpack.c.bf16 %v5084, %v5081
    %v5495 = vpack.c.bf16 %v5092, %v5089
    %5496 = vmatprep.subr.bf16.mxu0 0
    %5497 = vmatpush1.bf16.msra.mxu0 %v5495
    %5498 = vmatprep.subr.bf16.mxu0 0
    %5499 = vmatpush1.bf16.msra.mxu0 %v5494
    %5500 = vmatprep.subr.bf16.mxu0 0
    %5501 = vmatpush1.bf16.msra.mxu0 %v5493
    %5502 = vmatprep.subr.bf16.mxu0 0
    %5503 = vmatpush1.bf16.msra.mxu0 %v5492
    %5504 = vmatprep.subr.bf16.mxu0 0
    %5505 = vmatpush1.bf16.msra.mxu0 %v5491
    %5506 = vmatprep.subr.bf16.mxu0 0
    %5507 = vmatpush1.bf16.msra.mxu0 %v5490
    %5508 = vmatprep.subr.bf16.mxu0 0
    %5509 = vmatpush1.bf16.msra.mxu0 %v5489
    %5510 = vmatprep.subr.bf16.mxu0 0
    %5511 = vmatpush1.bf16.msra.mxu0 %v5488
    %5512 = vmatprep.subr.bf16.mxu0 0
    %5513 = vmatpush2.bf16.msra.mxu0 0
    %5514 = vmatprep.subr.bf16.mxu0 0
    %5515 = vmatpush2.bf16.msra.mxu0 0
    %5516 = vmatprep.subr.bf16.mxu0 0
    %5517 = vmatpush2.bf16.msra.mxu0 0
    %5518 = vmatprep.subr.bf16.mxu0 0
    %5519 = vmatpush2.bf16.msra.mxu0 0
    %5520 = vmatprep.subr.bf16.mxu0 0
    %5521 = vmatpush2.bf16.msra.mxu0 0
    %5522 = vmatprep.subr.bf16.mxu0 0
    %5523 = vmatpush2.bf16.msra.mxu0 0
    %5524 = vmatprep.subr.bf16.mxu0 0
    %5525 = vmatpush2.bf16.msra.mxu0 0
    %5526 = vmatprep.subr.bf16.mxu0 0
    %5527 = vmatpush2.bf16.msra.mxu0 0
    %5528 = vmatprep.mubr.bf16.mxu0 0
    %5529 = vmatmul.mubr.bf16.gmra.mxu0 %v5480
    %v5530 = vpop.f32.mrf.mxu0
    %v5531 = vadd.f32 0.0, %v5530
    %v5532 = vpop.f32.mrf.mxu0
    %v5533 = vpop.f32.mrf.mxu0
    %v5534 = vadd.f32 0.0, %v5533
    %v5535 = vpop.f32.mrf.mxu0
    %5536 = vmatprep.mubr.bf16.mxu0 0
    %5537 = vmatmul.mubr.bf16.gmra.mxu0 %v5481
    %v5538 = vpop.f32.mrf.mxu0
    %v5539 = vadd.f32 0.0, %v5538
    %v5540 = vpop.f32.mrf.mxu0
    %v5541 = vpop.f32.mrf.mxu0
    %v5542 = vadd.f32 0.0, %v5541
    %v5543 = vpop.f32.mrf.mxu0
    %5544 = vmatprep.mubr.bf16.mxu0 0
    %5545 = vmatmul.mubr.bf16.gmra.mxu0 %v5482
    %v5546 = vpop.f32.mrf.mxu0
    %v5547 = vadd.f32 0.0, %v5546
    %v5548 = vpop.f32.mrf.mxu0
    %v5549 = vpop.f32.mrf.mxu0
    %v5550 = vadd.f32 0.0, %v5549
    %v5551 = vpop.f32.mrf.mxu0
    %5552 = vmatprep.mubr.bf16.mxu0 0
    %5553 = vmatmul.mubr.bf16.gmra.mxu0 %v5483
    %v5554 = vpop.f32.mrf.mxu0
    %v5555 = vadd.f32 0.0, %v5554
    %v5556 = vpop.f32.mrf.mxu0
    %v5557 = vpop.f32.mrf.mxu0
    %v5558 = vadd.f32 0.0, %v5557
    %v5559 = vpop.f32.mrf.mxu0
    %5560 = vmatprep.mubr.bf16.mxu0 0
    %5561 = vmatmul.mubr.bf16.gmra.mxu0 %v5484
    %v5562 = vpop.f32.mrf.mxu0
    %v5563 = vadd.f32 0.0, %v5562
    %v5564 = vpop.f32.mrf.mxu0
    %v5565 = vpop.f32.mrf.mxu0
    %v5566 = vadd.f32 0.0, %v5565
    %v5567 = vpop.f32.mrf.mxu0
    %5568 = vmatprep.mubr.bf16.mxu0 0
    %5569 = vmatmul.mubr.bf16.gmra.mxu0 %v5485
    %v5570 = vpop.f32.mrf.mxu0
    %v5571 = vadd.f32 0.0, %v5570
    %v5572 = vpop.f32.mrf.mxu0
    %v5573 = vpop.f32.mrf.mxu0
    %v5574 = vadd.f32 0.0, %v5573
    %v5575 = vpop.f32.mrf.mxu0
    %5576 = vmatprep.mubr.bf16.mxu0 0
    %5577 = vmatmul.mubr.bf16.gmra.mxu0 %v5486
    %v5578 = vpop.f32.mrf.mxu0
    %v5579 = vadd.f32 0.0, %v5578
    %v5580 = vpop.f32.mrf.mxu0
    %v5581 = vpop.f32.mrf.mxu0
    %v5582 = vadd.f32 0.0, %v5581
    %v5583 = vpop.f32.mrf.mxu0
    %5584 = vmatprep.mubr.bf16.mxu0 0
    %5585 = vmatmul.mubr.bf16.gmra.mxu0 %v5487
    %v5586 = vpop.f32.mrf.mxu0
    %v5587 = vadd.f32 0.0, %v5586
    %v5588 = vpop.f32.mrf.mxu0
    %v5589 = vpop.f32.mrf.mxu0
    %v5590 = vadd.f32 0.0, %v5589
    %v5591 = vpop.f32.mrf.mxu0
    %5592 = vdwg.mxu0
    %v5593 = vrcp.pop %v5449
    %v5594 = vrcp.pop %v5451
    %v5595 = vrcp.pop %v5453
    %v5596 = vrcp.pop %v5455
    %v5597 = vrcp.pop %v5457
    %v5598 = vrcp.pop %v5459
    %v5599 = vrcp.pop %v5461
    %v5600 = vrcp.pop %v5463
    %v5601 = vrcp.pop %v5465
    %v5602 = vrcp.pop %v5467
    %v5603 = vrcp.pop %v5469
    %v5604 = vrcp.pop %v5471
    %v5605 = vrcp.pop %v5473
    %v5606 = vrcp.pop %v5475
    %v5607 = vrcp.pop %v5477
    %v5608 = vrcp.pop %v5479
    %v5609 = vmul.f32 %v5531, %v5593
    %v5610 = vmul.f32 %v5534, %v5594
    %v5611 = vmul.f32 %v5539, %v5595
    %v5612 = vmul.f32 %v5542, %v5596
    %v5613 = vmul.f32 %v5547, %v5597
    %v5614 = vmul.f32 %v5550, %v5598
    %v5615 = vmul.f32 %v5555, %v5599
    %v5616 = vmul.f32 %v5558, %v5600
    %v5617 = vmul.f32 %v5563, %v5601
    %v5618 = vmul.f32 %v5566, %v5602
    %v5619 = vmul.f32 %v5571, %v5603
    %v5620 = vmul.f32 %v5574, %v5604
    %v5621 = vmul.f32 %v5579, %v5605
    %v5622 = vmul.f32 %v5582, %v5606
    %v5623 = vmul.f32 %v5587, %v5607
    %v5624 = vmul.f32 %v5590, %v5608
    %s5625 = scalar_lea.vmem %s8, 64
    %v5626 = vld [vmem:[%s5625] sm:$0xf]
    %v5627 = vld [vmem:[%s5625 + $0x4] sm:$0xf]
    %v5628 = vld [vmem:[%s5625 + $0x8] sm:$0xf]
    %v5629 = vld [vmem:[%s5625 + $0xc] sm:$0xf]
    %v5630 = vld [vmem:[%s5625 + $0x10] sm:$0xf]
    %v5631 = vld [vmem:[%s5625 + $0x14] sm:$0xf]
    %v5632 = vld [vmem:[%s5625 + $0x18] sm:$0xf]
    %v5633 = vld [vmem:[%s5625 + $0x1c] sm:$0xf]
    %v5634 = vld [vmem:[%s5625 + $0x20] sm:$0xf]
    %v5635 = vld [vmem:[%s5625 + $0x24] sm:$0xf]
    %v5636 = vld [vmem:[%s5625 + $0x28] sm:$0xf]
    %v5637 = vld [vmem:[%s5625 + $0x2c] sm:$0xf]
    %v5638 = vld [vmem:[%s5625 + $0x30] sm:$0xf]
    %v5639 = vld [vmem:[%s5625 + $0x34] sm:$0xf]
    %v5640 = vld [vmem:[%s5625 + $0x38] sm:$0xf]
    %v5641 = vld [vmem:[%s5625 + $0x3c] sm:$0xf]
    %v5642 = vld [vmem:[%s14 + $0x1e] ss:$0 sm:$0xff]
    %v5643 = vpack.c.bf16 %v5610, %v5609
    %v5644 = vpack.c.bf16 %v5612, %v5611
    %v5645 = vpack.c.bf16 %v5614, %v5613
    %v5646 = vpack.c.bf16 %v5616, %v5615
    %v5647 = vpack.c.bf16 %v5618, %v5617
    %v5648 = vpack.c.bf16 %v5620, %v5619
    %v5649 = vpack.c.bf16 %v5622, %v5621
    %v5650 = vpack.c.bf16 %v5624, %v5623
    %v5667 = vunpack.c.l.b16 %v5626
    %v5668 = vunpack.c.l.b16 %v5627
    %v5669 = vunpack.c.l.b16 %v5628
    %v5670 = vunpack.c.l.b16 %v5629
    %v5671 = vunpack.c.l.b16 %v5630
    %v5672 = vunpack.c.l.b16 %v5631
    %v5673 = vunpack.c.l.b16 %v5632
    %v5674 = vunpack.c.l.b16 %v5633
    %v5675 = vunpack.c.l.b16 %v5634
    %v5676 = vunpack.c.l.b16 %v5635
    %v5677 = vunpack.c.l.b16 %v5636
    %v5678 = vunpack.c.l.b16 %v5637
    %v5679 = vunpack.c.l.b16 %v5638
    %v5680 = vunpack.c.l.b16 %v5639
    %v5681 = vunpack.c.l.b16 %v5640
    %v5682 = vunpack.c.l.b16 %v5641
    %v5683 = vpack.c.b16 %v5668, %v5667
    %v5684 = vpack.c.b16 %v5670, %v5669
    %v5685 = vpack.c.b16 %v5672, %v5671
    %v5686 = vpack.c.b16 %v5674, %v5673
    %v5687 = vpack.c.b16 %v5676, %v5675
    %v5688 = vpack.c.b16 %v5678, %v5677
    %v5689 = vpack.c.b16 %v5680, %v5679
    %v5690 = vpack.c.b16 %v5682, %v5681
    %5699 = vmatprep.subr.bf16.mxu0 0
    %5700 = vmatpush1.bf16.msra.mxu0 %v5690
    %5701 = vmatprep.subr.bf16.mxu0 0
    %5702 = vmatpush1.bf16.msra.mxu0 %v5689
    %5703 = vmatprep.subr.bf16.mxu0 0
    %5704 = vmatpush1.bf16.msra.mxu0 %v5688
    %5705 = vmatprep.subr.bf16.mxu0 0
    %5706 = vmatpush1.bf16.msra.mxu0 %v5687
    %5707 = vmatprep.subr.bf16.mxu0 0
    %5708 = vmatpush1.bf16.msra.mxu0 %v5686
    %5709 = vmatprep.subr.bf16.mxu0 0
    %5710 = vmatpush1.bf16.msra.mxu0 %v5685
    %5711 = vmatprep.subr.bf16.mxu0 0
    %5712 = vmatpush1.bf16.msra.mxu0 %v5684
    %5713 = vmatprep.subr.bf16.mxu0 0
    %5714 = vmatpush1.bf16.msra.mxu0 %v5683
    %5715 = vmatprep.subr.bf16.mxu0 0
    %5716 = vmatpush2.bf16.msra.mxu0 0
    %5717 = vmatprep.subr.bf16.mxu0 0
    %5718 = vmatpush2.bf16.msra.mxu0 0
    %5719 = vmatprep.subr.bf16.mxu0 0
    %5720 = vmatpush2.bf16.msra.mxu0 0
    %5721 = vmatprep.subr.bf16.mxu0 0
    %5722 = vmatpush2.bf16.msra.mxu0 0
    %5723 = vmatprep.subr.bf16.mxu0 0
    %5724 = vmatpush2.bf16.msra.mxu0 0
    %5725 = vmatprep.subr.bf16.mxu0 0
    %5726 = vmatpush2.bf16.msra.mxu0 0
    %5727 = vmatprep.subr.bf16.mxu0 0
    %5728 = vmatpush2.bf16.msra.mxu0 0
    %5729 = vmatprep.subr.bf16.mxu0 0
    %5730 = vmatpush2.bf16.msra.mxu0 0
    %5731 = vmatprep.mubr.bf16.mxu0 0
    %5732 = vmatmul.mubr.bf16.gmra.mxu0 %v5643
    %v5733 = vpop.f32.mrf.mxu0
    %v5734 = vadd.f32 %v5642, %v5733
    %v5735 = vpop.f32.mrf.mxu0
    %v5736 = vpop.f32.mrf.mxu0
    %v5737 = vadd.f32 %v5642, %v5736
    %v5738 = vpop.f32.mrf.mxu0
    %5739 = vmatprep.mubr.bf16.mxu0 0
    %5740 = vmatmul.mubr.bf16.gmra.mxu0 %v5644
    %v5741 = vpop.f32.mrf.mxu0
    %v5742 = vadd.f32 %v5642, %v5741
    %v5743 = vpop.f32.mrf.mxu0
    %v5744 = vpop.f32.mrf.mxu0
    %v5745 = vadd.f32 %v5642, %v5744
    %v5746 = vpop.f32.mrf.mxu0
    %5747 = vmatprep.mubr.bf16.mxu0 0
    %5748 = vmatmul.mubr.bf16.gmra.mxu0 %v5645
    %v5749 = vpop.f32.mrf.mxu0
    %v5750 = vadd.f32 %v5642, %v5749
    %v5751 = vpop.f32.mrf.mxu0
    %v5752 = vpop.f32.mrf.mxu0
    %v5753 = vadd.f32 %v5642, %v5752
    %v5754 = vpop.f32.mrf.mxu0
    %5755 = vmatprep.mubr.bf16.mxu0 0
    %5756 = vmatmul.mubr.bf16.gmra.mxu0 %v5646
    %v5757 = vpop.f32.mrf.mxu0
    %v5758 = vadd.f32 %v5642, %v5757
    %v5759 = vpop.f32.mrf.mxu0
    %v5760 = vpop.f32.mrf.mxu0
    %v5761 = vadd.f32 %v5642, %v5760
    %v5762 = vpop.f32.mrf.mxu0
    %5763 = vmatprep.mubr.bf16.mxu0 0
    %5764 = vmatmul.mubr.bf16.gmra.mxu0 %v5647
    %v5765 = vpop.f32.mrf.mxu0
    %v5766 = vadd.f32 %v5642, %v5765
    %v5767 = vpop.f32.mrf.mxu0
    %v5768 = vpop.f32.mrf.mxu0
    %v5769 = vadd.f32 %v5642, %v5768
    %v5770 = vpop.f32.mrf.mxu0
    %5771 = vmatprep.mubr.bf16.mxu0 0
    %5772 = vmatmul.mubr.bf16.gmra.mxu0 %v5648
    %v5773 = vpop.f32.mrf.mxu0
    %v5774 = vadd.f32 %v5642, %v5773
    %v5775 = vpop.f32.mrf.mxu0
    %v5776 = vpop.f32.mrf.mxu0
    %v5777 = vadd.f32 %v5642, %v5776
    %v5778 = vpop.f32.mrf.mxu0
    %5779 = vmatprep.mubr.bf16.mxu0 0
    %5780 = vmatmul.mubr.bf16.gmra.mxu0 %v5649
    %v5781 = vpop.f32.mrf.mxu0
    %v5782 = vadd.f32 %v5642, %v5781
    %v5783 = vpop.f32.mrf.mxu0
    %v5784 = vpop.f32.mrf.mxu0
    %v5785 = vadd.f32 %v5642, %v5784
    %v5786 = vpop.f32.mrf.mxu0
    %5787 = vmatprep.mubr.bf16.mxu0 0
    %5788 = vmatmul.mubr.bf16.gmra.mxu0 %v5650
    %v5789 = vpop.f32.mrf.mxu0
    %v5790 = vadd.f32 %v5642, %v5789
    %v5791 = vpop.f32.mrf.mxu0
    %v5792 = vpop.f32.mrf.mxu0
    %v5793 = vadd.f32 %v5642, %v5792
    %v5794 = vpop.f32.mrf.mxu0
    %5795 = vdwg.mxu0
    %v5796 = vadd.f32 %v4472, %v5734
    %v5797 = vadd.f32 %v4473, %v5737
    %v5798 = vadd.f32 %v4474, %v5742
    %v5799 = vadd.f32 %v4475, %v5745
    %v5800 = vadd.f32 %v4476, %v5750
    %v5801 = vadd.f32 %v4477, %v5753
    %v5802 = vadd.f32 %v4478, %v5758
    %v5803 = vadd.f32 %v4479, %v5761
    %v5804 = vadd.f32 %v4480, %v5766
    %v5805 = vadd.f32 %v4481, %v5769
    %v5806 = vadd.f32 %v4482, %v5774
    %v5807 = vadd.f32 %v4483, %v5777
    %v5808 = vadd.f32 %v4484, %v5782
    %v5809 = vadd.f32 %v4485, %v5785
    %v5810 = vadd.f32 %v4486, %v5790
    %v5811 = vadd.f32 %v4487, %v5793
    %v5812 = vld [vmem:[%s14 + $0x36] ss:$0 sm:$0xff]
    %v5813 = vld [vmem:[%s14 + $0x37] ss:$0 sm:$0xff]
    %5814 = vadd.xlane.f32.xlu0 %v5796
    %v5815 = vpop.xlane.xlu0 %5814
    %5816 = vadd.xlane.f32.xlu0 %v5797
    %v5817 = vpop.xlane.xlu0 %5816
    %5818 = vadd.xlane.f32.xlu0 %v5798
    %v5819 = vpop.xlane.xlu0 %5818
    %5820 = vadd.xlane.f32.xlu0 %v5799
    %v5821 = vpop.xlane.xlu0 %5820
    %5822 = vadd.xlane.f32.xlu0 %v5800
    %v5823 = vpop.xlane.xlu0 %5822
    %5824 = vadd.xlane.f32.xlu0 %v5801
    %v5825 = vpop.xlane.xlu0 %5824
    %5826 = vadd.xlane.f32.xlu0 %v5802
    %v5827 = vpop.xlane.xlu0 %5826
    %5828 = vadd.xlane.f32.xlu0 %v5803
    %v5829 = vpop.xlane.xlu0 %5828
    %5830 = vadd.xlane.f32.xlu0 %v5804
    %v5831 = vpop.xlane.xlu0 %5830
    %5832 = vadd.xlane.f32.xlu0 %v5805
    %v5833 = vpop.xlane.xlu0 %5832
    %5834 = vadd.xlane.f32.xlu0 %v5806
    %v5835 = vpop.xlane.xlu0 %5834
    %5836 = vadd.xlane.f32.xlu0 %v5807
    %v5837 = vpop.xlane.xlu0 %5836
    %5838 = vadd.xlane.f32.xlu0 %v5808
    %v5839 = vpop.xlane.xlu0 %5838
    %5840 = vadd.xlane.f32.xlu0 %v5809
    %v5841 = vpop.xlane.xlu0 %5840
    %5842 = vadd.xlane.f32.xlu0 %v5810
    %v5843 = vpop.xlane.xlu0 %5842
    %5844 = vadd.xlane.f32.xlu0 %v5811
    %v5845 = vpop.xlane.xlu0 %5844
    %v5846 = vmul.f32 %v5815, %v150
    %v5847 = vmul.f32 %v5817, %v150
    %v5848 = vmul.f32 %v5819, %v150
    %v5849 = vmul.f32 %v5821, %v150
    %v5850 = vmul.f32 %v5823, %v150
    %v5851 = vmul.f32 %v5825, %v150
    %v5852 = vmul.f32 %v5827, %v150
    %v5853 = vmul.f32 %v5829, %v150
    %v5854 = vmul.f32 %v5831, %v150
    %v5855 = vmul.f32 %v5833, %v150
    %v5856 = vmul.f32 %v5835, %v150
    %v5857 = vmul.f32 %v5837, %v150
    %v5858 = vmul.f32 %v5839, %v150
    %v5859 = vmul.f32 %v5841, %v150
    %v5860 = vmul.f32 %v5843, %v150
    %v5861 = vmul.f32 %v5845, %v150
    %v5862 = vsub.f32 %v5796, %v5846
    %v5863 = vsub.f32 %v5797, %v5847
    %v5864 = vsub.f32 %v5798, %v5848
    %v5865 = vsub.f32 %v5799, %v5849
    %v5866 = vsub.f32 %v5800, %v5850
    %v5867 = vsub.f32 %v5801, %v5851
    %v5868 = vsub.f32 %v5802, %v5852
    %v5869 = vsub.f32 %v5803, %v5853
    %v5870 = vsub.f32 %v5804, %v5854
    %v5871 = vsub.f32 %v5805, %v5855
    %v5872 = vsub.f32 %v5806, %v5856
    %v5873 = vsub.f32 %v5807, %v5857
    %v5874 = vsub.f32 %v5808, %v5858
    %v5875 = vsub.f32 %v5809, %v5859
    %v5876 = vsub.f32 %v5810, %v5860
    %v5877 = vsub.f32 %v5811, %v5861
    %v5878 = vmul.f32 %v5862, %v5862
    %v5879 = vmul.f32 %v5863, %v5863
    %v5880 = vmul.f32 %v5864, %v5864
    %v5881 = vmul.f32 %v5865, %v5865
    %v5882 = vmul.f32 %v5866, %v5866
    %v5883 = vmul.f32 %v5867, %v5867
    %v5884 = vmul.f32 %v5868, %v5868
    %v5885 = vmul.f32 %v5869, %v5869
    %v5886 = vmul.f32 %v5870, %v5870
    %v5887 = vmul.f32 %v5871, %v5871
    %v5888 = vmul.f32 %v5872, %v5872
    %v5889 = vmul.f32 %v5873, %v5873
    %v5890 = vmul.f32 %v5874, %v5874
    %v5891 = vmul.f32 %v5875, %v5875
    %v5892 = vmul.f32 %v5876, %v5876
    %v5893 = vmul.f32 %v5877, %v5877
    %5894 = vadd.xlane.f32.xlu0 %v5878
    %v5895 = vpop.xlane.xlu0 %5894
    %5896 = vadd.xlane.f32.xlu0 %v5879
    %v5897 = vpop.xlane.xlu0 %5896
    %5898 = vadd.xlane.f32.xlu0 %v5880
    %v5899 = vpop.xlane.xlu0 %5898
    %5900 = vadd.xlane.f32.xlu0 %v5881
    %v5901 = vpop.xlane.xlu0 %5900
    %5902 = vadd.xlane.f32.xlu0 %v5882
    %v5903 = vpop.xlane.xlu0 %5902
    %5904 = vadd.xlane.f32.xlu0 %v5883
    %v5905 = vpop.xlane.xlu0 %5904
    %5906 = vadd.xlane.f32.xlu0 %v5884
    %v5907 = vpop.xlane.xlu0 %5906
    %5908 = vadd.xlane.f32.xlu0 %v5885
    %v5909 = vpop.xlane.xlu0 %5908
    %5910 = vadd.xlane.f32.xlu0 %v5886
    %v5911 = vpop.xlane.xlu0 %5910
    %5912 = vadd.xlane.f32.xlu0 %v5887
    %v5913 = vpop.xlane.xlu0 %5912
    %5914 = vadd.xlane.f32.xlu0 %v5888
    %v5915 = vpop.xlane.xlu0 %5914
    %5916 = vadd.xlane.f32.xlu0 %v5889
    %v5917 = vpop.xlane.xlu0 %5916
    %5918 = vadd.xlane.f32.xlu0 %v5890
    %v5919 = vpop.xlane.xlu0 %5918
    %5920 = vadd.xlane.f32.xlu0 %v5891
    %v5921 = vpop.xlane.xlu0 %5920
    %5922 = vadd.xlane.f32.xlu0 %v5892
    %v5923 = vpop.xlane.xlu0 %5922
    %5924 = vadd.xlane.f32.xlu0 %v5893
    %v5925 = vpop.xlane.xlu0 %5924
    %v5926 = vmul.f32 %v5895, %v150
    %v5927 = vmul.f32 %v5897, %v150
    %v5928 = vmul.f32 %v5899, %v150
    %v5929 = vmul.f32 %v5901, %v150
    %v5930 = vmul.f32 %v5903, %v150
    %v5931 = vmul.f32 %v5905, %v150
    %v5932 = vmul.f32 %v5907, %v150
    %v5933 = vmul.f32 %v5909, %v150
    %v5934 = vmul.f32 %v5911, %v150
    %v5935 = vmul.f32 %v5913, %v150
    %v5936 = vmul.f32 %v5915, %v150
    %v5937 = vmul.f32 %v5917, %v150
    %v5938 = vmul.f32 %v5919, %v150
    %v5939 = vmul.f32 %v5921, %v150
    %v5940 = vmul.f32 %v5923, %v150
    %v5941 = vmul.f32 %v5925, %v150
    %v5942 = vadd.f32 %v5926, 1e-05
    %v5943 = vadd.f32 %v5927, 1e-05
    %v5944 = vadd.f32 %v5928, 1e-05
    %v5945 = vadd.f32 %v5929, 1e-05
    %v5946 = vadd.f32 %v5930, 1e-05
    %v5947 = vadd.f32 %v5931, 1e-05
    %v5948 = vadd.f32 %v5932, 1e-05
    %v5949 = vadd.f32 %v5933, 1e-05
    %v5950 = vadd.f32 %v5934, 1e-05
    %v5951 = vadd.f32 %v5935, 1e-05
    %v5952 = vadd.f32 %v5936, 1e-05
    %v5953 = vadd.f32 %v5937, 1e-05
    %v5954 = vadd.f32 %v5938, 1e-05
    %v5955 = vadd.f32 %v5939, 1e-05
    %v5956 = vadd.f32 %v5940, 1e-05
    %v5957 = vadd.f32 %v5941, 1e-05
    %v5958 = vrsqrt.pop %v5942
    %v5959 = vrsqrt.pop %v5943
    %v5960 = vrsqrt.pop %v5944
    %v5961 = vrsqrt.pop %v5945
    %v5962 = vrsqrt.pop %v5946
    %v5963 = vrsqrt.pop %v5947
    %v5964 = vrsqrt.pop %v5948
    %v5965 = vrsqrt.pop %v5949
    %v5966 = vrsqrt.pop %v5950
    %v5967 = vrsqrt.pop %v5951
    %v5968 = vrsqrt.pop %v5952
    %v5969 = vrsqrt.pop %v5953
    %v5970 = vrsqrt.pop %v5954
    %v5971 = vrsqrt.pop %v5955
    %v5972 = vrsqrt.pop %v5956
    %v5973 = vrsqrt.pop %v5957
    %v5974 = vmul.f32 %v5862, %v5958
    %v5975 = vmul.f32 %v5863, %v5959
    %v5976 = vmul.f32 %v5864, %v5960
    %v5977 = vmul.f32 %v5865, %v5961
    %v5978 = vmul.f32 %v5866, %v5962
    %v5979 = vmul.f32 %v5867, %v5963
    %v5980 = vmul.f32 %v5868, %v5964
    %v5981 = vmul.f32 %v5869, %v5965
    %v5982 = vmul.f32 %v5870, %v5966
    %v5983 = vmul.f32 %v5871, %v5967
    %v5984 = vmul.f32 %v5872, %v5968
    %v5985 = vmul.f32 %v5873, %v5969
    %v5986 = vmul.f32 %v5874, %v5970
    %v5987 = vmul.f32 %v5875, %v5971
    %v5988 = vmul.f32 %v5876, %v5972
    %v5989 = vmul.f32 %v5877, %v5973
    %v5990 = vmul.f32 %v5974, %v5812
    %v5991 = vmul.f32 %v5975, %v5812
    %v5992 = vmul.f32 %v5976, %v5812
    %v5993 = vmul.f32 %v5977, %v5812
    %v5994 = vmul.f32 %v5978, %v5812
    %v5995 = vmul.f32 %v5979, %v5812
    %v5996 = vmul.f32 %v5980, %v5812
    %v5997 = vmul.f32 %v5981, %v5812
    %v5998 = vmul.f32 %v5982, %v5812
    %v5999 = vmul.f32 %v5983, %v5812
    %v6000 = vmul.f32 %v5984, %v5812
    %v6001 = vmul.f32 %v5985, %v5812
    %v6002 = vmul.f32 %v5986, %v5812
    %v6003 = vmul.f32 %v5987, %v5812
    %v6004 = vmul.f32 %v5988, %v5812
    %v6005 = vmul.f32 %v5989, %v5812
    %v6006 = vadd.f32 %v5990, %v5813
    %v6007 = vadd.f32 %v5991, %v5813
    %v6008 = vadd.f32 %v5992, %v5813
    %v6009 = vadd.f32 %v5993, %v5813
    %v6010 = vadd.f32 %v5994, %v5813
    %v6011 = vadd.f32 %v5995, %v5813
    %v6012 = vadd.f32 %v5996, %v5813
    %v6013 = vadd.f32 %v5997, %v5813
    %v6014 = vadd.f32 %v5998, %v5813
    %v6015 = vadd.f32 %v5999, %v5813
    %v6016 = vadd.f32 %v6000, %v5813
    %v6017 = vadd.f32 %v6001, %v5813
    %v6018 = vadd.f32 %v6002, %v5813
    %v6019 = vadd.f32 %v6003, %v5813
    %v6020 = vadd.f32 %v6004, %v5813
    %v6021 = vadd.f32 %v6005, %v5813
    %s6022 = scalar_lea.vmem %s9, 64
    %v6023 = vld [vmem:[%s6022] sm:$0xf]
    %v6024 = vld [vmem:[%s6022 + $0x4] sm:$0xf]
    %v6025 = vld [vmem:[%s6022 + $0x8] sm:$0xf]
    %v6026 = vld [vmem:[%s6022 + $0xc] sm:$0xf]
    %v6027 = vld [vmem:[%s6022 + $0x10] sm:$0xf]
    %v6028 = vld [vmem:[%s6022 + $0x14] sm:$0xf]
    %v6029 = vld [vmem:[%s6022 + $0x18] sm:$0xf]
    %v6030 = vld [vmem:[%s6022 + $0x1c] sm:$0xf]
    %v6031 = vld [vmem:[%s6022 + $0x20] sm:$0xf]
    %v6032 = vld [vmem:[%s6022 + $0x24] sm:$0xf]
    %v6033 = vld [vmem:[%s6022 + $0x28] sm:$0xf]
    %v6034 = vld [vmem:[%s6022 + $0x2c] sm:$0xf]
    %v6035 = vld [vmem:[%s6022 + $0x30] sm:$0xf]
    %v6036 = vld [vmem:[%s6022 + $0x34] sm:$0xf]
    %v6037 = vld [vmem:[%s6022 + $0x38] sm:$0xf]
    %v6038 = vld [vmem:[%s6022 + $0x3c] sm:$0xf]
    %v6039 = vld [vmem:[%s14 + $0x1f] ss:$0 sm:$0xff]
    %v6040 = vpack.c.bf16 %v6007, %v6006
    %v6041 = vpack.c.bf16 %v6009, %v6008
    %v6042 = vpack.c.bf16 %v6011, %v6010
    %v6043 = vpack.c.bf16 %v6013, %v6012
    %v6044 = vpack.c.bf16 %v6015, %v6014
    %v6045 = vpack.c.bf16 %v6017, %v6016
    %v6046 = vpack.c.bf16 %v6019, %v6018
    %v6047 = vpack.c.bf16 %v6021, %v6020
    %v6064 = vunpack.c.l.b16 %v6023
    %v6065 = vunpack.c.l.b16 %v6024
    %v6066 = vunpack.c.l.b16 %v6025
    %v6067 = vunpack.c.l.b16 %v6026
    %v6068 = vunpack.c.l.b16 %v6027
    %v6069 = vunpack.c.l.b16 %v6028
    %v6070 = vunpack.c.l.b16 %v6029
    %v6071 = vunpack.c.l.b16 %v6030
    %v6072 = vunpack.c.l.b16 %v6031
    %v6073 = vunpack.c.l.b16 %v6032
    %v6074 = vunpack.c.l.b16 %v6033
    %v6075 = vunpack.c.l.b16 %v6034
    %v6076 = vunpack.c.l.b16 %v6035
    %v6077 = vunpack.c.l.b16 %v6036
    %v6078 = vunpack.c.l.b16 %v6037
    %v6079 = vunpack.c.l.b16 %v6038
    %v6080 = vpack.c.b16 %v6065, %v6064
    %v6081 = vpack.c.b16 %v6067, %v6066
    %v6082 = vpack.c.b16 %v6069, %v6068
    %v6083 = vpack.c.b16 %v6071, %v6070
    %v6084 = vpack.c.b16 %v6073, %v6072
    %v6085 = vpack.c.b16 %v6075, %v6074
    %v6086 = vpack.c.b16 %v6077, %v6076
    %v6087 = vpack.c.b16 %v6079, %v6078
    %6096 = vmatprep.subr.bf16.mxu0 0
    %6097 = vmatpush1.bf16.msra.mxu0 %v6087
    %6098 = vmatprep.subr.bf16.mxu0 0
    %6099 = vmatpush1.bf16.msra.mxu0 %v6086
    %6100 = vmatprep.subr.bf16.mxu0 0
    %6101 = vmatpush1.bf16.msra.mxu0 %v6085
    %6102 = vmatprep.subr.bf16.mxu0 0
    %6103 = vmatpush1.bf16.msra.mxu0 %v6084
    %6104 = vmatprep.subr.bf16.mxu0 0
    %6105 = vmatpush1.bf16.msra.mxu0 %v6083
    %6106 = vmatprep.subr.bf16.mxu0 0
    %6107 = vmatpush1.bf16.msra.mxu0 %v6082
    %6108 = vmatprep.subr.bf16.mxu0 0
    %6109 = vmatpush1.bf16.msra.mxu0 %v6081
    %6110 = vmatprep.subr.bf16.mxu0 0
    %6111 = vmatpush1.bf16.msra.mxu0 %v6080
    %6112 = vmatprep.subr.bf16.mxu0 0
    %6113 = vmatpush2.bf16.msra.mxu0 0
    %6114 = vmatprep.subr.bf16.mxu0 0
    %6115 = vmatpush2.bf16.msra.mxu0 0
    %6116 = vmatprep.subr.bf16.mxu0 0
    %6117 = vmatpush2.bf16.msra.mxu0 0
    %6118 = vmatprep.subr.bf16.mxu0 0
    %6119 = vmatpush2.bf16.msra.mxu0 0
    %6120 = vmatprep.subr.bf16.mxu0 0
    %6121 = vmatpush2.bf16.msra.mxu0 0
    %6122 = vmatprep.subr.bf16.mxu0 0
    %6123 = vmatpush2.bf16.msra.mxu0 0
    %6124 = vmatprep.subr.bf16.mxu0 0
    %6125 = vmatpush2.bf16.msra.mxu0 0
    %6126 = vmatprep.subr.bf16.mxu0 0
    %6127 = vmatpush2.bf16.msra.mxu0 0
    %6128 = vmatprep.mubr.bf16.mxu0 0
    %6129 = vmatmul.mubr.bf16.gmra.mxu0 %v6040
    %v6130 = vpop.f32.mrf.mxu0
    %v6131 = vadd.f32 %v6039, %v6130
    %v6132 = vpop.f32.mrf.mxu0
    %v6133 = vpop.f32.mrf.mxu0
    %v6134 = vadd.f32 %v6039, %v6133
    %v6135 = vpop.f32.mrf.mxu0
    %6136 = vmatprep.mubr.bf16.mxu0 0
    %6137 = vmatmul.mubr.bf16.gmra.mxu0 %v6041
    %v6138 = vpop.f32.mrf.mxu0
    %v6139 = vadd.f32 %v6039, %v6138
    %v6140 = vpop.f32.mrf.mxu0
    %v6141 = vpop.f32.mrf.mxu0
    %v6142 = vadd.f32 %v6039, %v6141
    %v6143 = vpop.f32.mrf.mxu0
    %6144 = vmatprep.mubr.bf16.mxu0 0
    %6145 = vmatmul.mubr.bf16.gmra.mxu0 %v6042
    %v6146 = vpop.f32.mrf.mxu0
    %v6147 = vadd.f32 %v6039, %v6146
    %v6148 = vpop.f32.mrf.mxu0
    %v6149 = vpop.f32.mrf.mxu0
    %v6150 = vadd.f32 %v6039, %v6149
    %v6151 = vpop.f32.mrf.mxu0
    %6152 = vmatprep.mubr.bf16.mxu0 0
    %6153 = vmatmul.mubr.bf16.gmra.mxu0 %v6043
    %v6154 = vpop.f32.mrf.mxu0
    %v6155 = vadd.f32 %v6039, %v6154
    %v6156 = vpop.f32.mrf.mxu0
    %v6157 = vpop.f32.mrf.mxu0
    %v6158 = vadd.f32 %v6039, %v6157
    %v6159 = vpop.f32.mrf.mxu0
    %6160 = vmatprep.mubr.bf16.mxu0 0
    %6161 = vmatmul.mubr.bf16.gmra.mxu0 %v6044
    %v6162 = vpop.f32.mrf.mxu0
    %v6163 = vadd.f32 %v6039, %v6162
    %v6164 = vpop.f32.mrf.mxu0
    %v6165 = vpop.f32.mrf.mxu0
    %v6166 = vadd.f32 %v6039, %v6165
    %v6167 = vpop.f32.mrf.mxu0
    %6168 = vmatprep.mubr.bf16.mxu0 0
    %6169 = vmatmul.mubr.bf16.gmra.mxu0 %v6045
    %v6170 = vpop.f32.mrf.mxu0
    %v6171 = vadd.f32 %v6039, %v6170
    %v6172 = vpop.f32.mrf.mxu0
    %v6173 = vpop.f32.mrf.mxu0
    %v6174 = vadd.f32 %v6039, %v6173
    %v6175 = vpop.f32.mrf.mxu0
    %6176 = vmatprep.mubr.bf16.mxu0 0
    %6177 = vmatmul.mubr.bf16.gmra.mxu0 %v6046
    %v6178 = vpop.f32.mrf.mxu0
    %v6179 = vadd.f32 %v6039, %v6178
    %v6180 = vpop.f32.mrf.mxu0
    %v6181 = vpop.f32.mrf.mxu0
    %v6182 = vadd.f32 %v6039, %v6181
    %v6183 = vpop.f32.mrf.mxu0
    %6184 = vmatprep.mubr.bf16.mxu0 0
    %6185 = vmatmul.mubr.bf16.gmra.mxu0 %v6047
    %v6186 = vpop.f32.mrf.mxu0
    %v6187 = vadd.f32 %v6039, %v6186
    %v6188 = vpop.f32.mrf.mxu0
    %v6189 = vpop.f32.mrf.mxu0
    %v6190 = vadd.f32 %v6039, %v6189
    %v6191 = vpop.f32.mrf.mxu0
    %6192 = vdwg.mxu0
    %v6193 = vmul.f32 %v6131, %v722
    %v6194 = vmul.f32 %v6134, %v723
    %v6195 = vmul.f32 %v6139, %v724
    %v6196 = vmul.f32 %v6142, %v725
    %v6197 = vmul.f32 %v6147, %v726
    %v6198 = vmul.f32 %v6150, %v727
    %v6199 = vmul.f32 %v6155, %v728
    %v6200 = vmul.f32 %v6158, %v729
    %v6201 = vmul.f32 %v6163, %v730
    %v6202 = vmul.f32 %v6166, %v731
    %v6203 = vmul.f32 %v6171, %v732
    %v6204 = vmul.f32 %v6174, %v733
    %v6205 = vmul.f32 %v6179, %v734
    %v6206 = vmul.f32 %v6182, %v735
    %v6207 = vmul.f32 %v6187, %v736
    %v6208 = vmul.f32 %v6190, %v737
    %6209 = vrot.lane.b32.xlu0 %v6131, 64
    %v6210 = vpop.permute.xlu0 %6209
    %6211 = vrot.lane.b32.xlu0 %v6134, 64
    %v6212 = vpop.permute.xlu0 %6211
    %6213 = vrot.lane.b32.xlu0 %v6139, 64
    %v6214 = vpop.permute.xlu0 %6213
    %6215 = vrot.lane.b32.xlu0 %v6142, 64
    %v6216 = vpop.permute.xlu0 %6215
    %6217 = vrot.lane.b32.xlu0 %v6147, 64
    %v6218 = vpop.permute.xlu0 %6217
    %6219 = vrot.lane.b32.xlu0 %v6150, 64
    %v6220 = vpop.permute.xlu0 %6219
    %6221 = vrot.lane.b32.xlu0 %v6155, 64
    %v6222 = vpop.permute.xlu0 %6221
    %6223 = vrot.lane.b32.xlu0 %v6158, 64
    %v6224 = vpop.permute.xlu0 %6223
    %6225 = vrot.lane.b32.xlu0 %v6163, 64
    %v6226 = vpop.permute.xlu0 %6225
    %6227 = vrot.lane.b32.xlu0 %v6166, 64
    %v6228 = vpop.permute.xlu0 %6227
    %6229 = vrot.lane.b32.xlu0 %v6171, 64
    %v6230 = vpop.permute.xlu0 %6229
    %6231 = vrot.lane.b32.xlu0 %v6174, 64
    %v6232 = vpop.permute.xlu0 %6231
    %6233 = vrot.lane.b32.xlu0 %v6179, 64
    %v6234 = vpop.permute.xlu0 %6233
    %6235 = vrot.lane.b32.xlu0 %v6182, 64
    %v6236 = vpop.permute.xlu0 %6235
    %6237 = vrot.lane.b32.xlu0 %v6187, 64
    %v6238 = vpop.permute.xlu0 %6237
    %6239 = vrot.lane.b32.xlu0 %v6190, 64
    %v6240 = vpop.permute.xlu0 %6239
    %v6241 = vmul.f32 %v6210, %v786
    %v6242 = vmul.f32 %v6212, %v787
    %v6243 = vmul.f32 %v6214, %v788
    %v6244 = vmul.f32 %v6216, %v789
    %v6245 = vmul.f32 %v6218, %v790
    %v6246 = vmul.f32 %v6220, %v791
    %v6247 = vmul.f32 %v6222, %v792
    %v6248 = vmul.f32 %v6224, %v793
    %v6249 = vmul.f32 %v6226, %v794
    %v6250 = vmul.f32 %v6228, %v795
    %v6251 = vmul.f32 %v6230, %v796
    %v6252 = vmul.f32 %v6232, %v797
    %v6253 = vmul.f32 %v6234, %v798
    %v6254 = vmul.f32 %v6236, %v799
    %v6255 = vmul.f32 %v6238, %v800
    %v6256 = vmul.f32 %v6240, %v801
    %v6257 = vadd.f32 %v6193, %v6241
    %v6258 = vadd.f32 %v6194, %v6242
    %v6259 = vadd.f32 %v6195, %v6243
    %v6260 = vadd.f32 %v6196, %v6244
    %v6261 = vadd.f32 %v6197, %v6245
    %v6262 = vadd.f32 %v6198, %v6246
    %v6263 = vadd.f32 %v6199, %v6247
    %v6264 = vadd.f32 %v6200, %v6248
    %v6265 = vadd.f32 %v6201, %v6249
    %v6266 = vadd.f32 %v6202, %v6250
    %v6267 = vadd.f32 %v6203, %v6251
    %v6268 = vadd.f32 %v6204, %v6252
    %v6269 = vadd.f32 %v6205, %v6253
    %v6270 = vadd.f32 %v6206, %v6254
    %v6271 = vadd.f32 %v6207, %v6255
    %v6272 = vadd.f32 %v6208, %v6256
    %s6273 = scalar_lea.vmem %s10, 128
    %v6274 = vld [vmem:[%s6273] sm:$0xff]
    %v6275 = vld [vmem:[%s6273 + $0x8] sm:$0xff]
    %v6276 = vld [vmem:[%s6273 + $0x10] sm:$0xff]
    %v6277 = vld [vmem:[%s6273 + $0x18] sm:$0xff]
    %v6278 = vld [vmem:[%s6273 + $0x20] sm:$0xff]
    %v6279 = vld [vmem:[%s6273 + $0x28] sm:$0xff]
    %v6280 = vld [vmem:[%s6273 + $0x30] sm:$0xff]
    %v6281 = vld [vmem:[%s6273 + $0x38] sm:$0xff]
    %v6282 = vld [vmem:[%s6273 + $0x40] sm:$0xff]
    %v6283 = vld [vmem:[%s6273 + $0x48] sm:$0xff]
    %v6284 = vld [vmem:[%s6273 + $0x50] sm:$0xff]
    %v6285 = vld [vmem:[%s6273 + $0x58] sm:$0xff]
    %v6286 = vld [vmem:[%s6273 + $0x60] sm:$0xff]
    %v6287 = vld [vmem:[%s6273 + $0x68] sm:$0xff]
    %v6288 = vld [vmem:[%s6273 + $0x70] sm:$0xff]
    %v6289 = vld [vmem:[%s6273 + $0x78] sm:$0xff]
    %s6290 = scalar_lea.vmem %s14, 48
    %v6291 = vld [vmem:[%s6290] ss:$8 sm:$0x3]
    %v6293 = vlaneseq
    %v6294 = vshrl.u32 %v6293, 7
    %v6295 = vsub.s32 0, %v6294
    %v6296 = vrot.slane %v6291, %v6295
    %v6297 = vlaneseq
    %v6298 = vshrl.u32 %v6297, 7
    %v6299 = vsub.s32 1, %v6298
    %v6300 = vrot.slane %v6291, %v6299
    %v6319 = vunpack.c.l.b16 %v6274
    %v6320 = vunpack.c.h.b16 %v6274
    %v6321 = vunpack.c.l.b16 %v6275
    %v6322 = vunpack.c.h.b16 %v6275
    %v6323 = vunpack.c.l.b16 %v6276
    %v6324 = vunpack.c.h.b16 %v6276
    %v6325 = vunpack.c.l.b16 %v6277
    %v6326 = vunpack.c.h.b16 %v6277
    %v6327 = vunpack.c.l.b16 %v6278
    %v6328 = vunpack.c.h.b16 %v6278
    %v6329 = vunpack.c.l.b16 %v6279
    %v6330 = vunpack.c.h.b16 %v6279
    %v6331 = vunpack.c.l.b16 %v6280
    %v6332 = vunpack.c.h.b16 %v6280
    %v6333 = vunpack.c.l.b16 %v6281
    %v6334 = vunpack.c.h.b16 %v6281
    %v6335 = vunpack.c.l.b16 %v6282
    %v6336 = vunpack.c.h.b16 %v6282
    %v6337 = vunpack.c.l.b16 %v6283
    %v6338 = vunpack.c.h.b16 %v6283
    %v6339 = vunpack.c.l.b16 %v6284
    %v6340 = vunpack.c.h.b16 %v6284
    %v6341 = vunpack.c.l.b16 %v6285
    %v6342 = vunpack.c.h.b16 %v6285
    %v6343 = vunpack.c.l.b16 %v6286
    %v6344 = vunpack.c.h.b16 %v6286
    %v6345 = vunpack.c.l.b16 %v6287
    %v6346 = vunpack.c.h.b16 %v6287
    %v6347 = vunpack.c.l.b16 %v6288
    %v6348 = vunpack.c.h.b16 %v6288
    %v6349 = vunpack.c.l.b16 %v6289
    %v6350 = vunpack.c.h.b16 %v6289
    %v6351 = vpack.c.b16 %v6321, %v6319
    %v6352 = vpack.c.b16 %v6322, %v6320
    %v6353 = vpack.c.b16 %v6325, %v6323
    %v6354 = vpack.c.b16 %v6326, %v6324
    %v6355 = vpack.c.b16 %v6329, %v6327
    %v6356 = vpack.c.b16 %v6330, %v6328
    %v6357 = vpack.c.b16 %v6333, %v6331
    %v6358 = vpack.c.b16 %v6334, %v6332
    %v6359 = vpack.c.b16 %v6337, %v6335
    %v6360 = vpack.c.b16 %v6338, %v6336
    %v6361 = vpack.c.b16 %v6341, %v6339
    %v6362 = vpack.c.b16 %v6342, %v6340
    %v6363 = vpack.c.b16 %v6345, %v6343
    %v6364 = vpack.c.b16 %v6346, %v6344
    %v6365 = vpack.c.b16 %v6349, %v6347
    %v6366 = vpack.c.b16 %v6350, %v6348
    %6383 = vmatprep.subr.bf16.mxu0 %v6366
    %6384 = vmatpush1.bf16.msra.mxu0 %v6365
    %6385 = vmatprep.subr.bf16.mxu0 %v6364
    %6386 = vmatpush1.bf16.msra.mxu0 %v6363
    %6387 = vmatprep.subr.bf16.mxu0 %v6362
    %6388 = vmatpush1.bf16.msra.mxu0 %v6361
    %6389 = vmatprep.subr.bf16.mxu0 %v6360
    %6390 = vmatpush1.bf16.msra.mxu0 %v6359
    %6391 = vmatprep.subr.bf16.mxu0 %v6358
    %6392 = vmatpush1.bf16.msra.mxu0 %v6357
    %6393 = vmatprep.subr.bf16.mxu0 %v6356
    %6394 = vmatpush1.bf16.msra.mxu0 %v6355
    %6395 = vmatprep.subr.bf16.mxu0 %v6354
    %6396 = vmatpush1.bf16.msra.mxu0 %v6353
    %6397 = vmatprep.subr.bf16.mxu0 %v6352
    %6398 = vmatpush1.bf16.msra.mxu0 %v6351
    %6399 = vmatprep.subr.bf16.mxu0 0
    %6400 = vmatpush2.bf16.msra.mxu0 0
    %6401 = vmatprep.subr.bf16.mxu0 0
    %6402 = vmatpush2.bf16.msra.mxu0 0
    %6403 = vmatprep.subr.bf16.mxu0 0
    %6404 = vmatpush2.bf16.msra.mxu0 0
    %6405 = vmatprep.subr.bf16.mxu0 0
    %6406 = vmatpush2.bf16.msra.mxu0 0
    %6407 = vmatprep.subr.bf16.mxu0 0
    %6408 = vmatpush2.bf16.msra.mxu0 0
    %6409 = vmatprep.subr.bf16.mxu0 0
    %6410 = vmatpush2.bf16.msra.mxu0 0
    %6411 = vmatprep.subr.bf16.mxu0 0
    %6412 = vmatpush2.bf16.msra.mxu0 0
    %6413 = vmatprep.subr.bf16.mxu0 0
    %6414 = vmatpush2.bf16.msra.mxu0 0
    %6415 = vmatprep.mubr.bf16.mxu0 0
    %6416 = vmatmul.mubr.bf16.gmra.mxu0 %v2012
    %v6417 = vpop.f32.mrf.mxu0
    %v6418 = vadd.f32 %v6296, %v6417
    %v6419 = vpop.f32.mrf.mxu0
    %v6420 = vadd.f32 %v6300, %v6419
    %v6421 = vpop.f32.mrf.mxu0
    %v6422 = vadd.f32 %v6296, %v6421
    %v6423 = vpop.f32.mrf.mxu0
    %v6424 = vadd.f32 %v6300, %v6423
    %6425 = vmatprep.mubr.bf16.mxu0 0
    %6426 = vmatmul.mubr.bf16.gmra.mxu0 %v2013
    %v6427 = vpop.f32.mrf.mxu0
    %v6428 = vadd.f32 %v6296, %v6427
    %v6429 = vpop.f32.mrf.mxu0
    %v6430 = vadd.f32 %v6300, %v6429
    %v6431 = vpop.f32.mrf.mxu0
    %v6432 = vadd.f32 %v6296, %v6431
    %v6433 = vpop.f32.mrf.mxu0
    %v6434 = vadd.f32 %v6300, %v6433
    %6435 = vmatprep.mubr.bf16.mxu0 0
    %6436 = vmatmul.mubr.bf16.gmra.mxu0 %v2014
    %v6437 = vpop.f32.mrf.mxu0
    %v6438 = vadd.f32 %v6296, %v6437
    %v6439 = vpop.f32.mrf.mxu0
    %v6440 = vadd.f32 %v6300, %v6439
    %v6441 = vpop.f32.mrf.mxu0
    %v6442 = vadd.f32 %v6296, %v6441
    %v6443 = vpop.f32.mrf.mxu0
    %v6444 = vadd.f32 %v6300, %v6443
    %6445 = vmatprep.mubr.bf16.mxu0 0
    %6446 = vmatmul.mubr.bf16.gmra.mxu0 %v2015
    %v6447 = vpop.f32.mrf.mxu0
    %v6448 = vadd.f32 %v6296, %v6447
    %v6449 = vpop.f32.mrf.mxu0
    %v6450 = vadd.f32 %v6300, %v6449
    %v6451 = vpop.f32.mrf.mxu0
    %v6452 = vadd.f32 %v6296, %v6451
    %v6453 = vpop.f32.mrf.mxu0
    %v6454 = vadd.f32 %v6300, %v6453
    %6455 = vmatprep.mubr.bf16.mxu0 0
    %6456 = vmatmul.mubr.bf16.gmra.mxu0 %v2016
    %v6457 = vpop.f32.mrf.mxu0
    %v6458 = vadd.f32 %v6296, %v6457
    %v6459 = vpop.f32.mrf.mxu0
    %v6460 = vadd.f32 %v6300, %v6459
    %v6461 = vpop.f32.mrf.mxu0
    %v6462 = vadd.f32 %v6296, %v6461
    %v6463 = vpop.f32.mrf.mxu0
    %v6464 = vadd.f32 %v6300, %v6463
    %6465 = vmatprep.mubr.bf16.mxu0 0
    %6466 = vmatmul.mubr.bf16.gmra.mxu0 %v2017
    %v6467 = vpop.f32.mrf.mxu0
    %v6468 = vadd.f32 %v6296, %v6467
    %v6469 = vpop.f32.mrf.mxu0
    %v6470 = vadd.f32 %v6300, %v6469
    %v6471 = vpop.f32.mrf.mxu0
    %v6472 = vadd.f32 %v6296, %v6471
    %v6473 = vpop.f32.mrf.mxu0
    %v6474 = vadd.f32 %v6300, %v6473
    %6475 = vmatprep.mubr.bf16.mxu0 0
    %6476 = vmatmul.mubr.bf16.gmra.mxu0 %v2018
    %v6477 = vpop.f32.mrf.mxu0
    %v6478 = vadd.f32 %v6296, %v6477
    %v6479 = vpop.f32.mrf.mxu0
    %v6480 = vadd.f32 %v6300, %v6479
    %v6481 = vpop.f32.mrf.mxu0
    %v6482 = vadd.f32 %v6296, %v6481
    %v6483 = vpop.f32.mrf.mxu0
    %v6484 = vadd.f32 %v6300, %v6483
    %6485 = vmatprep.mubr.bf16.mxu0 0
    %6486 = vmatmul.mubr.bf16.gmra.mxu0 %v2019
    %v6487 = vpop.f32.mrf.mxu0
    %v6488 = vadd.f32 %v6296, %v6487
    %v6489 = vpop.f32.mrf.mxu0
    %v6490 = vadd.f32 %v6300, %v6489
    %v6491 = vpop.f32.mrf.mxu0
    %v6492 = vadd.f32 %v6296, %v6491
    %v6493 = vpop.f32.mrf.mxu0
    %v6494 = vadd.f32 %v6300, %v6493
    %6495 = vmatprep.mubr.bf16.mxu0 0
    %6496 = vmatmul.mubr.bf16.gmra.mxu0 %v2020
    %v6497 = vpop.f32.mrf.mxu0
    %v6498 = vadd.f32 %v6296, %v6497
    %v6499 = vpop.f32.mrf.mxu0
    %v6500 = vadd.f32 %v6300, %v6499
    %v6501 = vpop.f32.mrf.mxu0
    %v6502 = vadd.f32 %v6296, %v6501
    %v6503 = vpop.f32.mrf.mxu0
    %v6504 = vadd.f32 %v6300, %v6503
    %6505 = vmatprep.mubr.bf16.mxu0 0
    %6506 = vmatmul.mubr.bf16.gmra.mxu0 %v2021
    %v6507 = vpop.f32.mrf.mxu0
    %v6508 = vadd.f32 %v6296, %v6507
    %v6509 = vpop.f32.mrf.mxu0
    %v6510 = vadd.f32 %v6300, %v6509
    %v6511 = vpop.f32.mrf.mxu0
    %v6512 = vadd.f32 %v6296, %v6511
    %v6513 = vpop.f32.mrf.mxu0
    %v6514 = vadd.f32 %v6300, %v6513
    %6515 = vmatprep.mubr.bf16.mxu0 0
    %6516 = vmatmul.mubr.bf16.gmra.mxu0 %v2022
    %v6517 = vpop.f32.mrf.mxu0
    %v6518 = vadd.f32 %v6296, %v6517
    %v6519 = vpop.f32.mrf.mxu0
    %v6520 = vadd.f32 %v6300, %v6519
    %v6521 = vpop.f32.mrf.mxu0
    %v6522 = vadd.f32 %v6296, %v6521
    %v6523 = vpop.f32.mrf.mxu0
    %v6524 = vadd.f32 %v6300, %v6523
    %6525 = vmatprep.mubr.bf16.mxu0 0
    %6526 = vmatmul.mubr.bf16.gmra.mxu0 %v2023
    %v6527 = vpop.f32.mrf.mxu0
    %v6528 = vadd.f32 %v6296, %v6527
    %v6529 = vpop.f32.mrf.mxu0
    %v6530 = vadd.f32 %v6300, %v6529
    %v6531 = vpop.f32.mrf.mxu0
    %v6532 = vadd.f32 %v6296, %v6531
    %v6533 = vpop.f32.mrf.mxu0
    %v6534 = vadd.f32 %v6300, %v6533
    %6535 = vmatprep.mubr.bf16.mxu0 0
    %6536 = vmatmul.mubr.bf16.gmra.mxu0 %v2024
    %v6537 = vpop.f32.mrf.mxu0
    %v6538 = vadd.f32 %v6296, %v6537
    %v6539 = vpop.f32.mrf.mxu0
    %v6540 = vadd.f32 %v6300, %v6539
    %v6541 = vpop.f32.mrf.mxu0
    %v6542 = vadd.f32 %v6296, %v6541
    %v6543 = vpop.f32.mrf.mxu0
    %v6544 = vadd.f32 %v6300, %v6543
    %6545 = vmatprep.mubr.bf16.mxu0 0
    %6546 = vmatmul.mubr.bf16.gmra.mxu0 %v2025
    %v6547 = vpop.f32.mrf.mxu0
    %v6548 = vadd.f32 %v6296, %v6547
    %v6549 = vpop.f32.mrf.mxu0
    %v6550 = vadd.f32 %v6300, %v6549
    %v6551 = vpop.f32.mrf.mxu0
    %v6552 = vadd.f32 %v6296, %v6551
    %v6553 = vpop.f32.mrf.mxu0
    %v6554 = vadd.f32 %v6300, %v6553
    %6555 = vmatprep.mubr.bf16.mxu0 0
    %6556 = vmatmul.mubr.bf16.gmra.mxu0 %v2026
    %v6557 = vpop.f32.mrf.mxu0
    %v6558 = vadd.f32 %v6296, %v6557
    %v6559 = vpop.f32.mrf.mxu0
    %v6560 = vadd.f32 %v6300, %v6559
    %v6561 = vpop.f32.mrf.mxu0
    %v6562 = vadd.f32 %v6296, %v6561
    %v6563 = vpop.f32.mrf.mxu0
    %v6564 = vadd.f32 %v6300, %v6563
    %6565 = vmatprep.mubr.bf16.mxu0 0
    %6566 = vmatmul.mubr.bf16.gmra.mxu0 %v2027
    %v6567 = vpop.f32.mrf.mxu0
    %v6568 = vadd.f32 %v6296, %v6567
    %v6569 = vpop.f32.mrf.mxu0
    %v6570 = vadd.f32 %v6300, %v6569
    %v6571 = vpop.f32.mrf.mxu0
    %v6572 = vadd.f32 %v6296, %v6571
    %v6573 = vpop.f32.mrf.mxu0
    %v6574 = vadd.f32 %v6300, %v6573
    %6575 = vmatprep.mubr.bf16.mxu0 0
    %6576 = vmatmul.mubr.bf16.gmra.mxu0 %v2028
    %v6577 = vpop.f32.mrf.mxu0
    %v6578 = vadd.f32 %v6296, %v6577
    %v6579 = vpop.f32.mrf.mxu0
    %v6580 = vadd.f32 %v6300, %v6579
    %v6581 = vpop.f32.mrf.mxu0
    %v6582 = vadd.f32 %v6296, %v6581
    %v6583 = vpop.f32.mrf.mxu0
    %v6584 = vadd.f32 %v6300, %v6583
    %6585 = vmatprep.mubr.bf16.mxu0 0
    %6586 = vmatmul.mubr.bf16.gmra.mxu0 %v2029
    %v6587 = vpop.f32.mrf.mxu0
    %v6588 = vadd.f32 %v6296, %v6587
    %v6589 = vpop.f32.mrf.mxu0
    %v6590 = vadd.f32 %v6300, %v6589
    %v6591 = vpop.f32.mrf.mxu0
    %v6592 = vadd.f32 %v6296, %v6591
    %v6593 = vpop.f32.mrf.mxu0
    %v6594 = vadd.f32 %v6300, %v6593
    %6595 = vmatprep.mubr.bf16.mxu0 0
    %6596 = vmatmul.mubr.bf16.gmra.mxu0 %v2030
    %v6597 = vpop.f32.mrf.mxu0
    %v6598 = vadd.f32 %v6296, %v6597
    %v6599 = vpop.f32.mrf.mxu0
    %v6600 = vadd.f32 %v6300, %v6599
    %v6601 = vpop.f32.mrf.mxu0
    %v6602 = vadd.f32 %v6296, %v6601
    %v6603 = vpop.f32.mrf.mxu0
    %v6604 = vadd.f32 %v6300, %v6603
    %6605 = vmatprep.mubr.bf16.mxu0 0
    %6606 = vmatmul.mubr.bf16.gmra.mxu0 %v2031
    %v6607 = vpop.f32.mrf.mxu0
    %v6608 = vadd.f32 %v6296, %v6607
    %v6609 = vpop.f32.mrf.mxu0
    %v6610 = vadd.f32 %v6300, %v6609
    %v6611 = vpop.f32.mrf.mxu0
    %v6612 = vadd.f32 %v6296, %v6611
    %v6613 = vpop.f32.mrf.mxu0
    %v6614 = vadd.f32 %v6300, %v6613
    %6615 = vmatprep.mubr.bf16.mxu0 0
    %6616 = vmatmul.mubr.bf16.gmra.mxu0 %v2032
    %v6617 = vpop.f32.mrf.mxu0
    %v6618 = vadd.f32 %v6296, %v6617
    %v6619 = vpop.f32.mrf.mxu0
    %v6620 = vadd.f32 %v6300, %v6619
    %v6621 = vpop.f32.mrf.mxu0
    %v6622 = vadd.f32 %v6296, %v6621
    %v6623 = vpop.f32.mrf.mxu0
    %v6624 = vadd.f32 %v6300, %v6623
    %6625 = vmatprep.mubr.bf16.mxu0 0
    %6626 = vmatmul.mubr.bf16.gmra.mxu0 %v2033
    %v6627 = vpop.f32.mrf.mxu0
    %v6628 = vadd.f32 %v6296, %v6627
    %v6629 = vpop.f32.mrf.mxu0
    %v6630 = vadd.f32 %v6300, %v6629
    %v6631 = vpop.f32.mrf.mxu0
    %v6632 = vadd.f32 %v6296, %v6631
    %v6633 = vpop.f32.mrf.mxu0
    %v6634 = vadd.f32 %v6300, %v6633
    %6635 = vmatprep.mubr.bf16.mxu0 0
    %6636 = vmatmul.mubr.bf16.gmra.mxu0 %v2034
    %v6637 = vpop.f32.mrf.mxu0
    %v6638 = vadd.f32 %v6296, %v6637
    %v6639 = vpop.f32.mrf.mxu0
    %v6640 = vadd.f32 %v6300, %v6639
    %v6641 = vpop.f32.mrf.mxu0
    %v6642 = vadd.f32 %v6296, %v6641
    %v6643 = vpop.f32.mrf.mxu0
    %v6644 = vadd.f32 %v6300, %v6643
    %6645 = vmatprep.mubr.bf16.mxu0 0
    %6646 = vmatmul.mubr.bf16.gmra.mxu0 %v2035
    %v6647 = vpop.f32.mrf.mxu0
    %v6648 = vadd.f32 %v6296, %v6647
    %v6649 = vpop.f32.mrf.mxu0
    %v6650 = vadd.f32 %v6300, %v6649
    %v6651 = vpop.f32.mrf.mxu0
    %v6652 = vadd.f32 %v6296, %v6651
    %v6653 = vpop.f32.mrf.mxu0
    %v6654 = vadd.f32 %v6300, %v6653
    %6655 = vdwg.mxu0
    %v6656 = vmul.f32 %v6418, %v2400
    %v6657 = vmul.f32 %v6422, %v2401
    %v6658 = vmul.f32 %v6428, %v2402
    %v6659 = vmul.f32 %v6432, %v2403
    %v6660 = vmul.f32 %v6438, %v2404
    %v6661 = vmul.f32 %v6442, %v2405
    %v6662 = vmul.f32 %v6448, %v2406
    %v6663 = vmul.f32 %v6452, %v2407
    %v6664 = vmul.f32 %v6458, %v2408
    %v6665 = vmul.f32 %v6462, %v2409
    %v6666 = vmul.f32 %v6468, %v2410
    %v6667 = vmul.f32 %v6472, %v2411
    %v6668 = vmul.f32 %v6478, %v2412
    %v6669 = vmul.f32 %v6482, %v2413
    %v6670 = vmul.f32 %v6488, %v2414
    %v6671 = vmul.f32 %v6492, %v2415
    %v6672 = vmul.f32 %v6498, %v2416
    %v6673 = vmul.f32 %v6502, %v2417
    %v6674 = vmul.f32 %v6508, %v2418
    %v6675 = vmul.f32 %v6512, %v2419
    %v6676 = vmul.f32 %v6518, %v2420
    %v6677 = vmul.f32 %v6522, %v2421
    %v6678 = vmul.f32 %v6528, %v2422
    %v6679 = vmul.f32 %v6532, %v2423
    %v6680 = vmul.f32 %v6538, %v2424
    %v6681 = vmul.f32 %v6542, %v2425
    %v6682 = vmul.f32 %v6548, %v2426
    %v6683 = vmul.f32 %v6552, %v2427
    %v6684 = vmul.f32 %v6558, %v2428
    %v6685 = vmul.f32 %v6562, %v2429
    %v6686 = vmul.f32 %v6568, %v2430
    %v6687 = vmul.f32 %v6572, %v2431
    %v6688 = vmul.f32 %v6578, %v2432
    %v6689 = vmul.f32 %v6582, %v2433
    %v6690 = vmul.f32 %v6588, %v2434
    %v6691 = vmul.f32 %v6592, %v2435
    %v6692 = vmul.f32 %v6598, %v2436
    %v6693 = vmul.f32 %v6602, %v2437
    %v6694 = vmul.f32 %v6608, %v2438
    %v6695 = vmul.f32 %v6612, %v2439
    %v6696 = vmul.f32 %v6618, %v2440
    %v6697 = vmul.f32 %v6622, %v2441
    %v6698 = vmul.f32 %v6628, %v2442
    %v6699 = vmul.f32 %v6632, %v2443
    %v6700 = vmul.f32 %v6638, %v2444
    %v6701 = vmul.f32 %v6642, %v2445
    %v6702 = vmul.f32 %v6648, %v2446
    %v6703 = vmul.f32 %v6652, %v2447
    %6704 = vrot.lane.b32.xlu0 %v6418, 64
    %v6705 = vpop.permute.xlu0 %6704
    %6706 = vrot.lane.b32.xlu0 %v6422, 64
    %v6707 = vpop.permute.xlu0 %6706
    %6708 = vrot.lane.b32.xlu0 %v6428, 64
    %v6709 = vpop.permute.xlu0 %6708
    %6710 = vrot.lane.b32.xlu0 %v6432, 64
    %v6711 = vpop.permute.xlu0 %6710
    %6712 = vrot.lane.b32.xlu0 %v6438, 64
    %v6713 = vpop.permute.xlu0 %6712
    %6714 = vrot.lane.b32.xlu0 %v6442, 64
    %v6715 = vpop.permute.xlu0 %6714
    %6716 = vrot.lane.b32.xlu0 %v6448, 64
    %v6717 = vpop.permute.xlu0 %6716
    %6718 = vrot.lane.b32.xlu0 %v6452, 64
    %v6719 = vpop.permute.xlu0 %6718
    %6720 = vrot.lane.b32.xlu0 %v6458, 64
    %v6721 = vpop.permute.xlu0 %6720
    %6722 = vrot.lane.b32.xlu0 %v6462, 64
    %v6723 = vpop.permute.xlu0 %6722
    %6724 = vrot.lane.b32.xlu0 %v6468, 64
    %v6725 = vpop.permute.xlu0 %6724
    %6726 = vrot.lane.b32.xlu0 %v6472, 64
    %v6727 = vpop.permute.xlu0 %6726
    %6728 = vrot.lane.b32.xlu0 %v6478, 64
    %v6729 = vpop.permute.xlu0 %6728
    %6730 = vrot.lane.b32.xlu0 %v6482, 64
    %v6731 = vpop.permute.xlu0 %6730
    %6732 = vrot.lane.b32.xlu0 %v6488, 64
    %v6733 = vpop.permute.xlu0 %6732
    %6734 = vrot.lane.b32.xlu0 %v6492, 64
    %v6735 = vpop.permute.xlu0 %6734
    %6736 = vrot.lane.b32.xlu0 %v6498, 64
    %v6737 = vpop.permute.xlu0 %6736
    %6738 = vrot.lane.b32.xlu0 %v6502, 64
    %v6739 = vpop.permute.xlu0 %6738
    %6740 = vrot.lane.b32.xlu0 %v6508, 64
    %v6741 = vpop.permute.xlu0 %6740
    %6742 = vrot.lane.b32.xlu0 %v6512, 64
    %v6743 = vpop.permute.xlu0 %6742
    %6744 = vrot.lane.b32.xlu0 %v6518, 64
    %v6745 = vpop.permute.xlu0 %6744
    %6746 = vrot.lane.b32.xlu0 %v6522, 64
    %v6747 = vpop.permute.xlu0 %6746
    %6748 = vrot.lane.b32.xlu0 %v6528, 64
    %v6749 = vpop.permute.xlu0 %6748
    %6750 = vrot.lane.b32.xlu0 %v6532, 64
    %v6751 = vpop.permute.xlu0 %6750
    %6752 = vrot.lane.b32.xlu0 %v6538, 64
    %v6753 = vpop.permute.xlu0 %6752
    %6754 = vrot.lane.b32.xlu0 %v6542, 64
    %v6755 = vpop.permute.xlu0 %6754
    %6756 = vrot.lane.b32.xlu0 %v6548, 64
    %v6757 = vpop.permute.xlu0 %6756
    %6758 = vrot.lane.b32.xlu0 %v6552, 64
    %v6759 = vpop.permute.xlu0 %6758
    %6760 = vrot.lane.b32.xlu0 %v6558, 64
    %v6761 = vpop.permute.xlu0 %6760
    %6762 = vrot.lane.b32.xlu0 %v6562, 64
    %v6763 = vpop.permute.xlu0 %6762
    %6764 = vrot.lane.b32.xlu0 %v6568, 64
    %v6765 = vpop.permute.xlu0 %6764
    %6766 = vrot.lane.b32.xlu0 %v6572, 64
    %v6767 = vpop.permute.xlu0 %6766
    %6768 = vrot.lane.b32.xlu0 %v6578, 64
    %v6769 = vpop.permute.xlu0 %6768
    %6770 = vrot.lane.b32.xlu0 %v6582, 64
    %v6771 = vpop.permute.xlu0 %6770
    %6772 = vrot.lane.b32.xlu0 %v6588, 64
    %v6773 = vpop.permute.xlu0 %6772
    %6774 = vrot.lane.b32.xlu0 %v6592, 64
    %v6775 = vpop.permute.xlu0 %6774
    %6776 = vrot.lane.b32.xlu0 %v6598, 64
    %v6777 = vpop.permute.xlu0 %6776
    %6778 = vrot.lane.b32.xlu0 %v6602, 64
    %v6779 = vpop.permute.xlu0 %6778
    %6780 = vrot.lane.b32.xlu0 %v6608, 64
    %v6781 = vpop.permute.xlu0 %6780
    %6782 = vrot.lane.b32.xlu0 %v6612, 64
    %v6783 = vpop.permute.xlu0 %6782
    %6784 = vrot.lane.b32.xlu0 %v6618, 64
    %v6785 = vpop.permute.xlu0 %6784
    %6786 = vrot.lane.b32.xlu0 %v6622, 64
    %v6787 = vpop.permute.xlu0 %6786
    %6788 = vrot.lane.b32.xlu0 %v6628, 64
    %v6789 = vpop.permute.xlu0 %6788
    %6790 = vrot.lane.b32.xlu0 %v6632, 64
    %v6791 = vpop.permute.xlu0 %6790
    %6792 = vrot.lane.b32.xlu0 %v6638, 64
    %v6793 = vpop.permute.xlu0 %6792
    %6794 = vrot.lane.b32.xlu0 %v6642, 64
    %v6795 = vpop.permute.xlu0 %6794
    %6796 = vrot.lane.b32.xlu0 %v6648, 64
    %v6797 = vpop.permute.xlu0 %6796
    %6798 = vrot.lane.b32.xlu0 %v6652, 64
    %v6799 = vpop.permute.xlu0 %6798
    %v6800 = vmul.f32 %v6705, %v2592
    %v6801 = vmul.f32 %v6707, %v2593
    %v6802 = vmul.f32 %v6709, %v2594
    %v6803 = vmul.f32 %v6711, %v2595
    %v6804 = vmul.f32 %v6713, %v2596
    %v6805 = vmul.f32 %v6715, %v2597
    %v6806 = vmul.f32 %v6717, %v2598
    %v6807 = vmul.f32 %v6719, %v2599
    %v6808 = vmul.f32 %v6721, %v2600
    %v6809 = vmul.f32 %v6723, %v2601
    %v6810 = vmul.f32 %v6725, %v2602
    %v6811 = vmul.f32 %v6727, %v2603
    %v6812 = vmul.f32 %v6729, %v2604
    %v6813 = vmul.f32 %v6731, %v2605
    %v6814 = vmul.f32 %v6733, %v2606
    %v6815 = vmul.f32 %v6735, %v2607
    %v6816 = vmul.f32 %v6737, %v2608
    %v6817 = vmul.f32 %v6739, %v2609
    %v6818 = vmul.f32 %v6741, %v2610
    %v6819 = vmul.f32 %v6743, %v2611
    %v6820 = vmul.f32 %v6745, %v2612
    %v6821 = vmul.f32 %v6747, %v2613
    %v6822 = vmul.f32 %v6749, %v2614
    %v6823 = vmul.f32 %v6751, %v2615
    %v6824 = vmul.f32 %v6753, %v2616
    %v6825 = vmul.f32 %v6755, %v2617
    %v6826 = vmul.f32 %v6757, %v2618
    %v6827 = vmul.f32 %v6759, %v2619
    %v6828 = vmul.f32 %v6761, %v2620
    %v6829 = vmul.f32 %v6763, %v2621
    %v6830 = vmul.f32 %v6765, %v2622
    %v6831 = vmul.f32 %v6767, %v2623
    %v6832 = vmul.f32 %v6769, %v2624
    %v6833 = vmul.f32 %v6771, %v2625
    %v6834 = vmul.f32 %v6773, %v2626
    %v6835 = vmul.f32 %v6775, %v2627
    %v6836 = vmul.f32 %v6777, %v2628
    %v6837 = vmul.f32 %v6779, %v2629
    %v6838 = vmul.f32 %v6781, %v2630
    %v6839 = vmul.f32 %v6783, %v2631
    %v6840 = vmul.f32 %v6785, %v2632
    %v6841 = vmul.f32 %v6787, %v2633
    %v6842 = vmul.f32 %v6789, %v2634
    %v6843 = vmul.f32 %v6791, %v2635
    %v6844 = vmul.f32 %v6793, %v2636
    %v6845 = vmul.f32 %v6795, %v2637
    %v6846 = vmul.f32 %v6797, %v2638
    %v6847 = vmul.f32 %v6799, %v2639
    %v6848 = vadd.f32 %v6656, %v6800
    %v6849 = vadd.f32 %v6657, %v6801
    %v6850 = vadd.f32 %v6658, %v6802
    %v6851 = vadd.f32 %v6659, %v6803
    %v6852 = vadd.f32 %v6660, %v6804
    %v6853 = vadd.f32 %v6661, %v6805
    %v6854 = vadd.f32 %v6662, %v6806
    %v6855 = vadd.f32 %v6663, %v6807
    %v6856 = vadd.f32 %v6664, %v6808
    %v6857 = vadd.f32 %v6665, %v6809
    %v6858 = vadd.f32 %v6666, %v6810
    %v6859 = vadd.f32 %v6667, %v6811
    %v6860 = vadd.f32 %v6668, %v6812
    %v6861 = vadd.f32 %v6669, %v6813
    %v6862 = vadd.f32 %v6670, %v6814
    %v6863 = vadd.f32 %v6671, %v6815
    %v6864 = vadd.f32 %v6672, %v6816
    %v6865 = vadd.f32 %v6673, %v6817
    %v6866 = vadd.f32 %v6674, %v6818
    %v6867 = vadd.f32 %v6675, %v6819
    %v6868 = vadd.f32 %v6676, %v6820
    %v6869 = vadd.f32 %v6677, %v6821
    %v6870 = vadd.f32 %v6678, %v6822
    %v6871 = vadd.f32 %v6679, %v6823
    %v6872 = vadd.f32 %v6680, %v6824
    %v6873 = vadd.f32 %v6681, %v6825
    %v6874 = vadd.f32 %v6682, %v6826
    %v6875 = vadd.f32 %v6683, %v6827
    %v6876 = vadd.f32 %v6684, %v6828
    %v6877 = vadd.f32 %v6685, %v6829
    %v6878 = vadd.f32 %v6686, %v6830
    %v6879 = vadd.f32 %v6687, %v6831
    %v6880 = vadd.f32 %v6688, %v6832
    %v6881 = vadd.f32 %v6689, %v6833
    %v6882 = vadd.f32 %v6690, %v6834
    %v6883 = vadd.f32 %v6691, %v6835
    %v6884 = vadd.f32 %v6692, %v6836
    %v6885 = vadd.f32 %v6693, %v6837
    %v6886 = vadd.f32 %v6694, %v6838
    %v6887 = vadd.f32 %v6695, %v6839
    %v6888 = vadd.f32 %v6696, %v6840
    %v6889 = vadd.f32 %v6697, %v6841
    %v6890 = vadd.f32 %v6698, %v6842
    %v6891 = vadd.f32 %v6699, %v6843
    %v6892 = vadd.f32 %v6700, %v6844
    %v6893 = vadd.f32 %v6701, %v6845
    %v6894 = vadd.f32 %v6702, %v6846
    %v6895 = vadd.f32 %v6703, %v6847
    %v6896 = vpack.c.bf16 %v6258, %v6257
    %v6897 = vpack.c.bf16 %v6260, %v6259
    %v6898 = vpack.c.bf16 %v6262, %v6261
    %v6899 = vpack.c.bf16 %v6264, %v6263
    %v6900 = vpack.c.bf16 %v6266, %v6265
    %v6901 = vpack.c.bf16 %v6268, %v6267
    %v6902 = vpack.c.bf16 %v6270, %v6269
    %v6903 = vpack.c.bf16 %v6272, %v6271
    %v6904 = vpack.c.bf16 %v6849, %v6848
    %v6905 = vpack.c.bf16 %v6851, %v6850
    %v6906 = vpack.c.bf16 %v6853, %v6852
    %v6907 = vpack.c.bf16 %v6855, %v6854
    %v6908 = vpack.c.bf16 %v6857, %v6856
    %v6909 = vpack.c.bf16 %v6859, %v6858
    %v6910 = vpack.c.bf16 %v6861, %v6860
    %v6911 = vpack.c.bf16 %v6863, %v6862
    %v6912 = vpack.c.bf16 %v6865, %v6864
    %v6913 = vpack.c.bf16 %v6867, %v6866
    %v6914 = vpack.c.bf16 %v6869, %v6868
    %v6915 = vpack.c.bf16 %v6871, %v6870
    %v6916 = vpack.c.bf16 %v6873, %v6872
    %v6917 = vpack.c.bf16 %v6875, %v6874
    %v6918 = vpack.c.bf16 %v6877, %v6876
    %v6919 = vpack.c.bf16 %v6879, %v6878
    %v6920 = vpack.c.bf16 %v6881, %v6880
    %v6921 = vpack.c.bf16 %v6883, %v6882
    %v6922 = vpack.c.bf16 %v6885, %v6884
    %v6923 = vpack.c.bf16 %v6887, %v6886
    %v6924 = vpack.c.bf16 %v6889, %v6888
    %v6925 = vpack.c.bf16 %v6891, %v6890
    %v6926 = vpack.c.bf16 %v6893, %v6892
    %v6927 = vpack.c.bf16 %v6895, %v6894
    %6928 = vmatprep.subr.bf16.mxu0 0
    %6929 = vmatpush1.bf16.xpose.msra.mxu0 %v6911
    %6930 = vmatprep.subr.bf16.mxu0 0
    %6931 = vmatpush1.bf16.xpose.msra.mxu0 %v6910
    %6932 = vmatprep.subr.bf16.mxu0 0
    %6933 = vmatpush1.bf16.xpose.msra.mxu0 %v6909
    %6934 = vmatprep.subr.bf16.mxu0 0
    %6935 = vmatpush1.bf16.xpose.msra.mxu0 %v6908
    %6936 = vmatprep.subr.bf16.mxu0 0
    %6937 = vmatpush1.bf16.xpose.msra.mxu0 %v6907
    %6938 = vmatprep.subr.bf16.mxu0 0
    %6939 = vmatpush1.bf16.xpose.msra.mxu0 %v6906
    %6940 = vmatprep.subr.bf16.mxu0 0
    %6941 = vmatpush1.bf16.xpose.msra.mxu0 %v6905
    %6942 = vmatprep.subr.bf16.mxu0 0
    %6943 = vmatpush1.bf16.xpose.msra.mxu0 %v6904
    %6944 = vmatprep.subr.bf16.mxu0 0
    %6945 = vmatpush2.bf16.xpose.msra.mxu0 %v6919
    %6946 = vmatprep.subr.bf16.mxu0 0
    %6947 = vmatpush2.bf16.xpose.msra.mxu0 %v6918
    %6948 = vmatprep.subr.bf16.mxu0 0
    %6949 = vmatpush2.bf16.xpose.msra.mxu0 %v6917
    %6950 = vmatprep.subr.bf16.mxu0 0
    %6951 = vmatpush2.bf16.xpose.msra.mxu0 %v6916
    %6952 = vmatprep.subr.bf16.mxu0 0
    %6953 = vmatpush2.bf16.xpose.msra.mxu0 %v6915
    %6954 = vmatprep.subr.bf16.mxu0 0
    %6955 = vmatpush2.bf16.xpose.msra.mxu0 %v6914
    %6956 = vmatprep.subr.bf16.mxu0 0
    %6957 = vmatpush2.bf16.xpose.msra.mxu0 %v6913
    %6958 = vmatprep.subr.bf16.mxu0 0
    %6959 = vmatpush2.bf16.xpose.msra.mxu0 %v6912
    %6960 = vmatprep.mubr.bf16.mxu0 0
    %6961 = vmatmul.mubr.bf16.gmra.mxu0 %v6896
    %v6962 = vpop.f32.mrf.mxu0
    %v6963 = vadd.f32 %v2768, %v6962
    %v6964 = vpop.f32.mrf.mxu0
    %v6965 = vadd.f32 %v2769, %v6964
    %v6966 = vpop.f32.mrf.mxu0
    %v6967 = vadd.f32 %v2771, %v6966
    %v6968 = vpop.f32.mrf.mxu0
    %v6969 = vadd.f32 %v2772, %v6968
    %6970 = vmatprep.mubr.bf16.mxu0 0
    %6971 = vmatmul.mubr.bf16.gmra.mxu0 %v6897
    %v6972 = vpop.f32.mrf.mxu0
    %v6973 = vadd.f32 %v2774, %v6972
    %v6974 = vpop.f32.mrf.mxu0
    %v6975 = vadd.f32 %v2775, %v6974
    %v6976 = vpop.f32.mrf.mxu0
    %v6977 = vadd.f32 %v2777, %v6976
    %v6978 = vpop.f32.mrf.mxu0
    %v6979 = vadd.f32 %v2778, %v6978
    %6980 = vmatprep.mubr.bf16.mxu0 0
    %6981 = vmatmul.mubr.bf16.gmra.mxu0 %v6898
    %v6982 = vpop.f32.mrf.mxu0
    %v6983 = vadd.f32 %v2780, %v6982
    %v6984 = vpop.f32.mrf.mxu0
    %v6985 = vadd.f32 %v2781, %v6984
    %v6986 = vpop.f32.mrf.mxu0
    %v6987 = vadd.f32 %v2783, %v6986
    %v6988 = vpop.f32.mrf.mxu0
    %v6989 = vadd.f32 %v2784, %v6988
    %6990 = vmatprep.mubr.bf16.mxu0 0
    %6991 = vmatmul.mubr.bf16.gmra.mxu0 %v6899
    %v6992 = vpop.f32.mrf.mxu0
    %v6993 = vadd.f32 %v2786, %v6992
    %v6994 = vpop.f32.mrf.mxu0
    %v6995 = vadd.f32 %v2787, %v6994
    %v6996 = vpop.f32.mrf.mxu0
    %v6997 = vadd.f32 %v2789, %v6996
    %v6998 = vpop.f32.mrf.mxu0
    %v6999 = vadd.f32 %v2790, %v6998
    %7000 = vmatprep.mubr.bf16.mxu0 0
    %7001 = vmatmul.mubr.bf16.gmra.mxu0 %v6900
    %v7002 = vpop.f32.mrf.mxu0
    %v7003 = vadd.f32 %v2792, %v7002
    %v7004 = vpop.f32.mrf.mxu0
    %v7005 = vadd.f32 %v2793, %v7004
    %v7006 = vpop.f32.mrf.mxu0
    %v7007 = vadd.f32 %v2795, %v7006
    %v7008 = vpop.f32.mrf.mxu0
    %v7009 = vadd.f32 %v2796, %v7008
    %7010 = vmatprep.mubr.bf16.mxu0 0
    %7011 = vmatmul.mubr.bf16.gmra.mxu0 %v6901
    %v7012 = vpop.f32.mrf.mxu0
    %v7013 = vadd.f32 %v2798, %v7012
    %v7014 = vpop.f32.mrf.mxu0
    %v7015 = vadd.f32 %v2799, %v7014
    %v7016 = vpop.f32.mrf.mxu0
    %v7017 = vadd.f32 %v2801, %v7016
    %v7018 = vpop.f32.mrf.mxu0
    %v7019 = vadd.f32 %v2802, %v7018
    %7020 = vmatprep.mubr.bf16.mxu0 0
    %7021 = vmatmul.mubr.bf16.gmra.mxu0 %v6902
    %v7022 = vpop.f32.mrf.mxu0
    %v7023 = vadd.f32 %v2804, %v7022
    %v7024 = vpop.f32.mrf.mxu0
    %v7025 = vadd.f32 %v2805, %v7024
    %v7026 = vpop.f32.mrf.mxu0
    %v7027 = vadd.f32 %v2807, %v7026
    %v7028 = vpop.f32.mrf.mxu0
    %v7029 = vadd.f32 %v2808, %v7028
    %7030 = vmatprep.mubr.bf16.mxu0 0
    %7031 = vmatmul.mubr.bf16.gmra.mxu0 %v6903
    %v7032 = vpop.f32.mrf.mxu0
    %v7033 = vadd.f32 %v2810, %v7032
    %v7034 = vpop.f32.mrf.mxu0
    %v7035 = vadd.f32 %v2811, %v7034
    %v7036 = vpop.f32.mrf.mxu0
    %v7037 = vadd.f32 %v2813, %v7036
    %v7038 = vpop.f32.mrf.mxu0
    %v7039 = vadd.f32 %v2814, %v7038
    %7040 = vdwg.mxu0
    %7041 = vmatprep.subr.bf16.mxu0 0
    %7042 = vmatpush1.bf16.xpose.msra.mxu0 %v6927
    %7043 = vmatprep.subr.bf16.mxu0 0
    %7044 = vmatpush1.bf16.xpose.msra.mxu0 %v6926
    %7045 = vmatprep.subr.bf16.mxu0 0
    %7046 = vmatpush1.bf16.xpose.msra.mxu0 %v6925
    %7047 = vmatprep.subr.bf16.mxu0 0
    %7048 = vmatpush1.bf16.xpose.msra.mxu0 %v6924
    %7049 = vmatprep.subr.bf16.mxu0 0
    %7050 = vmatpush1.bf16.xpose.msra.mxu0 %v6923
    %7051 = vmatprep.subr.bf16.mxu0 0
    %7052 = vmatpush1.bf16.xpose.msra.mxu0 %v6922
    %7053 = vmatprep.subr.bf16.mxu0 0
    %7054 = vmatpush1.bf16.xpose.msra.mxu0 %v6921
    %7055 = vmatprep.subr.bf16.mxu0 0
    %7056 = vmatpush1.bf16.xpose.msra.mxu0 %v6920
    %7057 = vmatprep.subr.bf16.mxu0 0
    %7058 = vmatpush2.bf16.xpose.msra.mxu0 0
    %7059 = vmatprep.subr.bf16.mxu0 0
    %7060 = vmatpush2.bf16.xpose.msra.mxu0 0
    %7061 = vmatprep.subr.bf16.mxu0 0
    %7062 = vmatpush2.bf16.xpose.msra.mxu0 0
    %7063 = vmatprep.subr.bf16.mxu0 0
    %7064 = vmatpush2.bf16.xpose.msra.mxu0 0
    %7065 = vmatprep.subr.bf16.mxu0 0
    %7066 = vmatpush2.bf16.xpose.msra.mxu0 0
    %7067 = vmatprep.subr.bf16.mxu0 0
    %7068 = vmatpush2.bf16.xpose.msra.mxu0 0
    %7069 = vmatprep.subr.bf16.mxu0 0
    %7070 = vmatpush2.bf16.xpose.msra.mxu0 0
    %7071 = vmatprep.subr.bf16.mxu0 0
    %7072 = vmatpush2.bf16.xpose.msra.mxu0 0
    %7073 = vmatprep.mubr.bf16.mxu0 0
    %7074 = vmatmul.mubr.bf16.gmra.mxu0 %v6896
    %v7075 = vpop.f32.mrf.mxu0
    %v7076 = vadd.f32 %v2770, %v7075
    %v7077 = vpop.f32.mrf.mxu0
    %v7078 = vpop.f32.mrf.mxu0
    %v7079 = vadd.f32 %v2773, %v7078
    %v7080 = vpop.f32.mrf.mxu0
    %7081 = vmatprep.mubr.bf16.mxu0 0
    %7082 = vmatmul.mubr.bf16.gmra.mxu0 %v6897
    %v7083 = vpop.f32.mrf.mxu0
    %v7084 = vadd.f32 %v2776, %v7083
    %v7085 = vpop.f32.mrf.mxu0
    %v7086 = vpop.f32.mrf.mxu0
    %v7087 = vadd.f32 %v2779, %v7086
    %v7088 = vpop.f32.mrf.mxu0
    %7089 = vmatprep.mubr.bf16.mxu0 0
    %7090 = vmatmul.mubr.bf16.gmra.mxu0 %v6898
    %v7091 = vpop.f32.mrf.mxu0
    %v7092 = vadd.f32 %v2782, %v7091
    %v7093 = vpop.f32.mrf.mxu0
    %v7094 = vpop.f32.mrf.mxu0
    %v7095 = vadd.f32 %v2785, %v7094
    %v7096 = vpop.f32.mrf.mxu0
    %7097 = vmatprep.mubr.bf16.mxu0 0
    %7098 = vmatmul.mubr.bf16.gmra.mxu0 %v6899
    %v7099 = vpop.f32.mrf.mxu0
    %v7100 = vadd.f32 %v2788, %v7099
    %v7101 = vpop.f32.mrf.mxu0
    %v7102 = vpop.f32.mrf.mxu0
    %v7103 = vadd.f32 %v2791, %v7102
    %v7104 = vpop.f32.mrf.mxu0
    %7105 = vmatprep.mubr.bf16.mxu0 0
    %7106 = vmatmul.mubr.bf16.gmra.mxu0 %v6900
    %v7107 = vpop.f32.mrf.mxu0
    %v7108 = vadd.f32 %v2794, %v7107
    %v7109 = vpop.f32.mrf.mxu0
    %v7110 = vpop.f32.mrf.mxu0
    %v7111 = vadd.f32 %v2797, %v7110
    %v7112 = vpop.f32.mrf.mxu0
    %7113 = vmatprep.mubr.bf16.mxu0 0
    %7114 = vmatmul.mubr.bf16.gmra.mxu0 %v6901
    %v7115 = vpop.f32.mrf.mxu0
    %v7116 = vadd.f32 %v2800, %v7115
    %v7117 = vpop.f32.mrf.mxu0
    %v7118 = vpop.f32.mrf.mxu0
    %v7119 = vadd.f32 %v2803, %v7118
    %v7120 = vpop.f32.mrf.mxu0
    %7121 = vmatprep.mubr.bf16.mxu0 0
    %7122 = vmatmul.mubr.bf16.gmra.mxu0 %v6902
    %v7123 = vpop.f32.mrf.mxu0
    %v7124 = vadd.f32 %v2806, %v7123
    %v7125 = vpop.f32.mrf.mxu0
    %v7126 = vpop.f32.mrf.mxu0
    %v7127 = vadd.f32 %v2809, %v7126
    %v7128 = vpop.f32.mrf.mxu0
    %7129 = vmatprep.mubr.bf16.mxu0 0
    %7130 = vmatmul.mubr.bf16.gmra.mxu0 %v6903
    %v7131 = vpop.f32.mrf.mxu0
    %v7132 = vadd.f32 %v2812, %v7131
    %v7133 = vpop.f32.mrf.mxu0
    %v7134 = vpop.f32.mrf.mxu0
    %v7135 = vadd.f32 %v2815, %v7134
    %v7136 = vpop.f32.mrf.mxu0
    %7137 = vdwg.mxu0
    %v7138 = vmax.f32 %v6963, %v6965
    %v7139 = vmax.f32 %v7138, %v7076
    %7140 = vmax.xlane.f32.xlu0 %v7139
    %v7141 = vpop.xlane.xlu0 %7140
    %v7142 = vmax.f32 %v6967, %v6969
    %v7143 = vmax.f32 %v7142, %v7079
    %7144 = vmax.xlane.f32.xlu0 %v7143
    %v7145 = vpop.xlane.xlu0 %7144
    %v7146 = vmax.f32 %v6973, %v6975
    %v7147 = vmax.f32 %v7146, %v7084
    %7148 = vmax.xlane.f32.xlu0 %v7147
    %v7149 = vpop.xlane.xlu0 %7148
    %v7150 = vmax.f32 %v6977, %v6979
    %v7151 = vmax.f32 %v7150, %v7087
    %7152 = vmax.xlane.f32.xlu0 %v7151
    %v7153 = vpop.xlane.xlu0 %7152
    %v7154 = vmax.f32 %v6983, %v6985
    %v7155 = vmax.f32 %v7154, %v7092
    %7156 = vmax.xlane.f32.xlu0 %v7155
    %v7157 = vpop.xlane.xlu0 %7156
    %v7158 = vmax.f32 %v6987, %v6989
    %v7159 = vmax.f32 %v7158, %v7095
    %7160 = vmax.xlane.f32.xlu0 %v7159
    %v7161 = vpop.xlane.xlu0 %7160
    %v7162 = vmax.f32 %v6993, %v6995
    %v7163 = vmax.f32 %v7162, %v7100
    %7164 = vmax.xlane.f32.xlu0 %v7163
    %v7165 = vpop.xlane.xlu0 %7164
    %v7166 = vmax.f32 %v6997, %v6999
    %v7167 = vmax.f32 %v7166, %v7103
    %7168 = vmax.xlane.f32.xlu0 %v7167
    %v7169 = vpop.xlane.xlu0 %7168
    %v7170 = vmax.f32 %v7003, %v7005
    %v7171 = vmax.f32 %v7170, %v7108
    %7172 = vmax.xlane.f32.xlu0 %v7171
    %v7173 = vpop.xlane.xlu0 %7172
    %v7174 = vmax.f32 %v7007, %v7009
    %v7175 = vmax.f32 %v7174, %v7111
    %7176 = vmax.xlane.f32.xlu0 %v7175
    %v7177 = vpop.xlane.xlu0 %7176
    %v7178 = vmax.f32 %v7013, %v7015
    %v7179 = vmax.f32 %v7178, %v7116
    %7180 = vmax.xlane.f32.xlu0 %v7179
    %v7181 = vpop.xlane.xlu0 %7180
    %v7182 = vmax.f32 %v7017, %v7019
    %v7183 = vmax.f32 %v7182, %v7119
    %7184 = vmax.xlane.f32.xlu0 %v7183
    %v7185 = vpop.xlane.xlu0 %7184
    %v7186 = vmax.f32 %v7023, %v7025
    %v7187 = vmax.f32 %v7186, %v7124
    %7188 = vmax.xlane.f32.xlu0 %v7187
    %v7189 = vpop.xlane.xlu0 %7188
    %v7190 = vmax.f32 %v7027, %v7029
    %v7191 = vmax.f32 %v7190, %v7127
    %7192 = vmax.xlane.f32.xlu0 %v7191
    %v7193 = vpop.xlane.xlu0 %7192
    %v7194 = vmax.f32 %v7033, %v7035
    %v7195 = vmax.f32 %v7194, %v7132
    %7196 = vmax.xlane.f32.xlu0 %v7195
    %v7197 = vpop.xlane.xlu0 %7196
    %v7198 = vmax.f32 %v7037, %v7039
    %v7199 = vmax.f32 %v7198, %v7135
    %7200 = vmax.xlane.f32.xlu0 %v7199
    %v7201 = vpop.xlane.xlu0 %7200
    %v7202 = vsub.f32 %v6963, %v7141
    %v7203 = vsub.f32 %v6965, %v7141
    %v7204 = vsub.f32 %v7076, %v7141
    %v7205 = vsub.f32 %v6967, %v7145
    %v7206 = vsub.f32 %v6969, %v7145
    %v7207 = vsub.f32 %v7079, %v7145
    %v7208 = vsub.f32 %v6973, %v7149
    %v7209 = vsub.f32 %v6975, %v7149
    %v7210 = vsub.f32 %v7084, %v7149
    %v7211 = vsub.f32 %v6977, %v7153
    %v7212 = vsub.f32 %v6979, %v7153
    %v7213 = vsub.f32 %v7087, %v7153
    %v7214 = vsub.f32 %v6983, %v7157
    %v7215 = vsub.f32 %v6985, %v7157
    %v7216 = vsub.f32 %v7092, %v7157
    %v7217 = vsub.f32 %v6987, %v7161
    %v7218 = vsub.f32 %v6989, %v7161
    %v7219 = vsub.f32 %v7095, %v7161
    %v7220 = vsub.f32 %v6993, %v7165
    %v7221 = vsub.f32 %v6995, %v7165
    %v7222 = vsub.f32 %v7100, %v7165
    %v7223 = vsub.f32 %v6997, %v7169
    %v7224 = vsub.f32 %v6999, %v7169
    %v7225 = vsub.f32 %v7103, %v7169
    %v7226 = vsub.f32 %v7003, %v7173
    %v7227 = vsub.f32 %v7005, %v7173
    %v7228 = vsub.f32 %v7108, %v7173
    %v7229 = vsub.f32 %v7007, %v7177
    %v7230 = vsub.f32 %v7009, %v7177
    %v7231 = vsub.f32 %v7111, %v7177
    %v7232 = vsub.f32 %v7013, %v7181
    %v7233 = vsub.f32 %v7015, %v7181
    %v7234 = vsub.f32 %v7116, %v7181
    %v7235 = vsub.f32 %v7017, %v7185
    %v7236 = vsub.f32 %v7019, %v7185
    %v7237 = vsub.f32 %v7119, %v7185
    %v7238 = vsub.f32 %v7023, %v7189
    %v7239 = vsub.f32 %v7025, %v7189
    %v7240 = vsub.f32 %v7124, %v7189
    %v7241 = vsub.f32 %v7027, %v7193
    %v7242 = vsub.f32 %v7029, %v7193
    %v7243 = vsub.f32 %v7127, %v7193
    %v7244 = vsub.f32 %v7033, %v7197
    %v7245 = vsub.f32 %v7035, %v7197
    %v7246 = vsub.f32 %v7132, %v7197
    %v7247 = vsub.f32 %v7037, %v7201
    %v7248 = vsub.f32 %v7039, %v7201
    %v7249 = vsub.f32 %v7135, %v7201
    %v7250 = vmul.f32 %v7202, 1.442695
    %v7251 = vpow.pop %v7250
    %v7252 = vmul.f32 %v7203, 1.442695
    %v7253 = vpow.pop %v7252
    %v7254 = vmul.f32 %v7204, 1.442695
    %v7255 = vpow.pop %v7254
    %v7256 = vmul.f32 %v7205, 1.442695
    %v7257 = vpow.pop %v7256
    %v7258 = vmul.f32 %v7206, 1.442695
    %v7259 = vpow.pop %v7258
    %v7260 = vmul.f32 %v7207, 1.442695
    %v7261 = vpow.pop %v7260
    %v7262 = vmul.f32 %v7208, 1.442695
    %v7263 = vpow.pop %v7262
    %v7264 = vmul.f32 %v7209, 1.442695
    %v7265 = vpow.pop %v7264
    %v7266 = vmul.f32 %v7210, 1.442695
    %v7267 = vpow.pop %v7266
    %v7268 = vmul.f32 %v7211, 1.442695
    %v7269 = vpow.pop %v7268
    %v7270 = vmul.f32 %v7212, 1.442695
    %v7271 = vpow.pop %v7270
    %v7272 = vmul.f32 %v7213, 1.442695
    %v7273 = vpow.pop %v7272
    %v7274 = vmul.f32 %v7214, 1.442695
    %v7275 = vpow.pop %v7274
    %v7276 = vmul.f32 %v7215, 1.442695
    %v7277 = vpow.pop %v7276
    %v7278 = vmul.f32 %v7216, 1.442695
    %v7279 = vpow.pop %v7278
    %v7280 = vmul.f32 %v7217, 1.442695
    %v7281 = vpow.pop %v7280
    %v7282 = vmul.f32 %v7218, 1.442695
    %v7283 = vpow.pop %v7282
    %v7284 = vmul.f32 %v7219, 1.442695
    %v7285 = vpow.pop %v7284
    %v7286 = vmul.f32 %v7220, 1.442695
    %v7287 = vpow.pop %v7286
    %v7288 = vmul.f32 %v7221, 1.442695
    %v7289 = vpow.pop %v7288
    %v7290 = vmul.f32 %v7222, 1.442695
    %v7291 = vpow.pop %v7290
    %v7292 = vmul.f32 %v7223, 1.442695
    %v7293 = vpow.pop %v7292
    %v7294 = vmul.f32 %v7224, 1.442695
    %v7295 = vpow.pop %v7294
    %v7296 = vmul.f32 %v7225, 1.442695
    %v7297 = vpow.pop %v7296
    %v7298 = vmul.f32 %v7226, 1.442695
    %v7299 = vpow.pop %v7298
    %v7300 = vmul.f32 %v7227, 1.442695
    %v7301 = vpow.pop %v7300
    %v7302 = vmul.f32 %v7228, 1.442695
    %v7303 = vpow.pop %v7302
    %v7304 = vmul.f32 %v7229, 1.442695
    %v7305 = vpow.pop %v7304
    %v7306 = vmul.f32 %v7230, 1.442695
    %v7307 = vpow.pop %v7306
    %v7308 = vmul.f32 %v7231, 1.442695
    %v7309 = vpow.pop %v7308
    %v7310 = vmul.f32 %v7232, 1.442695
    %v7311 = vpow.pop %v7310
    %v7312 = vmul.f32 %v7233, 1.442695
    %v7313 = vpow.pop %v7312
    %v7314 = vmul.f32 %v7234, 1.442695
    %v7315 = vpow.pop %v7314
    %v7316 = vmul.f32 %v7235, 1.442695
    %v7317 = vpow.pop %v7316
    %v7318 = vmul.f32 %v7236, 1.442695
    %v7319 = vpow.pop %v7318
    %v7320 = vmul.f32 %v7237, 1.442695
    %v7321 = vpow.pop %v7320
    %v7322 = vmul.f32 %v7238, 1.442695
    %v7323 = vpow.pop %v7322
    %v7324 = vmul.f32 %v7239, 1.442695
    %v7325 = vpow.pop %v7324
    %v7326 = vmul.f32 %v7240, 1.442695
    %v7327 = vpow.pop %v7326
    %v7328 = vmul.f32 %v7241, 1.442695
    %v7329 = vpow.pop %v7328
    %v7330 = vmul.f32 %v7242, 1.442695
    %v7331 = vpow.pop %v7330
    %v7332 = vmul.f32 %v7243, 1.442695
    %v7333 = vpow.pop %v7332
    %v7334 = vmul.f32 %v7244, 1.442695
    %v7335 = vpow.pop %v7334
    %v7336 = vmul.f32 %v7245, 1.442695
    %v7337 = vpow.pop %v7336
    %v7338 = vmul.f32 %v7246, 1.442695
    %v7339 = vpow.pop %v7338
    %v7340 = vmul.f32 %v7247, 1.442695
    %v7341 = vpow.pop %v7340
    %v7342 = vmul.f32 %v7248, 1.442695
    %v7343 = vpow.pop %v7342
    %v7344 = vmul.f32 %v7249, 1.442695
    %v7345 = vpow.pop %v7344
    %v7346 = vadd.f32 %v7251, %v7253
    %v7347 = vadd.f32 %v7346, %v7255
    %7348 = vadd.xlane.f32.xlu0 %v7347
    %v7349 = vpop.xlane.xlu0 %7348
    %v7350 = vadd.f32 %v7257, %v7259
    %v7351 = vadd.f32 %v7350, %v7261
    %7352 = vadd.xlane.f32.xlu0 %v7351
    %v7353 = vpop.xlane.xlu0 %7352
    %v7354 = vadd.f32 %v7263, %v7265
    %v7355 = vadd.f32 %v7354, %v7267
    %7356 = vadd.xlane.f32.xlu0 %v7355
    %v7357 = vpop.xlane.xlu0 %7356
    %v7358 = vadd.f32 %v7269, %v7271
    %v7359 = vadd.f32 %v7358, %v7273
    %7360 = vadd.xlane.f32.xlu0 %v7359
    %v7361 = vpop.xlane.xlu0 %7360
    %v7362 = vadd.f32 %v7275, %v7277
    %v7363 = vadd.f32 %v7362, %v7279
    %7364 = vadd.xlane.f32.xlu0 %v7363
    %v7365 = vpop.xlane.xlu0 %7364
    %v7366 = vadd.f32 %v7281, %v7283
    %v7367 = vadd.f32 %v7366, %v7285
    %7368 = vadd.xlane.f32.xlu0 %v7367
    %v7369 = vpop.xlane.xlu0 %7368
    %v7370 = vadd.f32 %v7287, %v7289
    %v7371 = vadd.f32 %v7370, %v7291
    %7372 = vadd.xlane.f32.xlu0 %v7371
    %v7373 = vpop.xlane.xlu0 %7372
    %v7374 = vadd.f32 %v7293, %v7295
    %v7375 = vadd.f32 %v7374, %v7297
    %7376 = vadd.xlane.f32.xlu0 %v7375
    %v7377 = vpop.xlane.xlu0 %7376
    %v7378 = vadd.f32 %v7299, %v7301
    %v7379 = vadd.f32 %v7378, %v7303
    %7380 = vadd.xlane.f32.xlu0 %v7379
    %v7381 = vpop.xlane.xlu0 %7380
    %v7382 = vadd.f32 %v7305, %v7307
    %v7383 = vadd.f32 %v7382, %v7309
    %7384 = vadd.xlane.f32.xlu0 %v7383
    %v7385 = vpop.xlane.xlu0 %7384
    %v7386 = vadd.f32 %v7311, %v7313
    %v7387 = vadd.f32 %v7386, %v7315
    %7388 = vadd.xlane.f32.xlu0 %v7387
    %v7389 = vpop.xlane.xlu0 %7388
    %v7390 = vadd.f32 %v7317, %v7319
    %v7391 = vadd.f32 %v7390, %v7321
    %7392 = vadd.xlane.f32.xlu0 %v7391
    %v7393 = vpop.xlane.xlu0 %7392
    %v7394 = vadd.f32 %v7323, %v7325
    %v7395 = vadd.f32 %v7394, %v7327
    %7396 = vadd.xlane.f32.xlu0 %v7395
    %v7397 = vpop.xlane.xlu0 %7396
    %v7398 = vadd.f32 %v7329, %v7331
    %v7399 = vadd.f32 %v7398, %v7333
    %7400 = vadd.xlane.f32.xlu0 %v7399
    %v7401 = vpop.xlane.xlu0 %7400
    %v7402 = vadd.f32 %v7335, %v7337
    %v7403 = vadd.f32 %v7402, %v7339
    %7404 = vadd.xlane.f32.xlu0 %v7403
    %v7405 = vpop.xlane.xlu0 %7404
    %v7406 = vadd.f32 %v7341, %v7343
    %v7407 = vadd.f32 %v7406, %v7345
    %7408 = vadd.xlane.f32.xlu0 %v7407
    %v7409 = vpop.xlane.xlu0 %7408
    %v7410 = vpack.c.bf16 %v7257, %v7251
    %v7411 = vpack.c.bf16 %v7259, %v7253
    %v7412 = vpack.c.bf16 %v7261, %v7255
    %v7413 = vpack.c.bf16 %v7269, %v7263
    %v7414 = vpack.c.bf16 %v7271, %v7265
    %v7415 = vpack.c.bf16 %v7273, %v7267
    %v7416 = vpack.c.bf16 %v7281, %v7275
    %v7417 = vpack.c.bf16 %v7283, %v7277
    %v7418 = vpack.c.bf16 %v7285, %v7279
    %v7419 = vpack.c.bf16 %v7293, %v7287
    %v7420 = vpack.c.bf16 %v7295, %v7289
    %v7421 = vpack.c.bf16 %v7297, %v7291
    %v7422 = vpack.c.bf16 %v7305, %v7299
    %v7423 = vpack.c.bf16 %v7307, %v7301
    %v7424 = vpack.c.bf16 %v7309, %v7303
    %v7425 = vpack.c.bf16 %v7317, %v7311
    %v7426 = vpack.c.bf16 %v7319, %v7313
    %v7427 = vpack.c.bf16 %v7321, %v7315
    %v7428 = vpack.c.bf16 %v7329, %v7323
    %v7429 = vpack.c.bf16 %v7331, %v7325
    %v7430 = vpack.c.bf16 %v7333, %v7327
    %v7431 = vpack.c.bf16 %v7341, %v7335
    %v7432 = vpack.c.bf16 %v7343, %v7337
    %v7433 = vpack.c.bf16 %v7345, %v7339
    %v7434 = vpack.c.bf16 %v6424, %v6420
    %v7435 = vpack.c.bf16 %v6434, %v6430
    %v7436 = vpack.c.bf16 %v6444, %v6440
    %v7437 = vpack.c.bf16 %v6454, %v6450
    %v7438 = vpack.c.bf16 %v6464, %v6460
    %v7439 = vpack.c.bf16 %v6474, %v6470
    %v7440 = vpack.c.bf16 %v6484, %v6480
    %v7441 = vpack.c.bf16 %v6494, %v6490
    %v7442 = vpack.c.bf16 %v6504, %v6500
    %v7443 = vpack.c.bf16 %v6514, %v6510
    %v7444 = vpack.c.bf16 %v6524, %v6520
    %v7445 = vpack.c.bf16 %v6534, %v6530
    %v7446 = vpack.c.bf16 %v6544, %v6540
    %v7447 = vpack.c.bf16 %v6554, %v6550
    %v7448 = vpack.c.bf16 %v6564, %v6560
    %v7449 = vpack.c.bf16 %v6574, %v6570
    %v7450 = vpack.c.bf16 %v6584, %v6580
    %v7451 = vpack.c.bf16 %v6594, %v6590
    %v7452 = vpack.c.bf16 %v6604, %v6600
    %v7453 = vpack.c.bf16 %v6614, %v6610
    %v7454 = vpack.c.bf16 %v6624, %v6620
    %v7455 = vpack.c.bf16 %v6634, %v6630
    %v7456 = vpack.c.bf16 %v6644, %v6640
    %v7457 = vpack.c.bf16 %v6654, %v6650
    %7458 = vmatprep.subr.bf16.mxu0 0
    %7459 = vmatpush1.bf16.msra.mxu0 %v7441
    %7460 = vmatprep.subr.bf16.mxu0 0
    %7461 = vmatpush1.bf16.msra.mxu0 %v7440
    %7462 = vmatprep.subr.bf16.mxu0 0
    %7463 = vmatpush1.bf16.msra.mxu0 %v7439
    %7464 = vmatprep.subr.bf16.mxu0 0
    %7465 = vmatpush1.bf16.msra.mxu0 %v7438
    %7466 = vmatprep.subr.bf16.mxu0 0
    %7467 = vmatpush1.bf16.msra.mxu0 %v7437
    %7468 = vmatprep.subr.bf16.mxu0 0
    %7469 = vmatpush1.bf16.msra.mxu0 %v7436
    %7470 = vmatprep.subr.bf16.mxu0 0
    %7471 = vmatpush1.bf16.msra.mxu0 %v7435
    %7472 = vmatprep.subr.bf16.mxu0 0
    %7473 = vmatpush1.bf16.msra.mxu0 %v7434
    %7474 = vmatprep.subr.bf16.mxu0 0
    %7475 = vmatpush2.bf16.msra.mxu0 %v7449
    %7476 = vmatprep.subr.bf16.mxu0 0
    %7477 = vmatpush2.bf16.msra.mxu0 %v7448
    %7478 = vmatprep.subr.bf16.mxu0 0
    %7479 = vmatpush2.bf16.msra.mxu0 %v7447
    %7480 = vmatprep.subr.bf16.mxu0 0
    %7481 = vmatpush2.bf16.msra.mxu0 %v7446
    %7482 = vmatprep.subr.bf16.mxu0 0
    %7483 = vmatpush2.bf16.msra.mxu0 %v7445
    %7484 = vmatprep.subr.bf16.mxu0 0
    %7485 = vmatpush2.bf16.msra.mxu0 %v7444
    %7486 = vmatprep.subr.bf16.mxu0 0
    %7487 = vmatpush2.bf16.msra.mxu0 %v7443
    %7488 = vmatprep.subr.bf16.mxu0 0
    %7489 = vmatpush2.bf16.msra.mxu0 %v7442
    %7490 = vmatprep.mubr.bf16.mxu0 %v7411
    %7491 = vmatmul.mubr.bf16.gmra.mxu0 %v7410
    %v7492 = vpop.f32.mrf.mxu0
    %v7493 = vadd.f32 0.0, %v7492
    %v7494 = vpop.f32.mrf.mxu0
    %v7495 = vpop.f32.mrf.mxu0
    %v7496 = vadd.f32 0.0, %v7495
    %v7497 = vpop.f32.mrf.mxu0
    %7498 = vmatprep.mubr.bf16.mxu0 %v7414
    %7499 = vmatmul.mubr.bf16.gmra.mxu0 %v7413
    %v7500 = vpop.f32.mrf.mxu0
    %v7501 = vadd.f32 0.0, %v7500
    %v7502 = vpop.f32.mrf.mxu0
    %v7503 = vpop.f32.mrf.mxu0
    %v7504 = vadd.f32 0.0, %v7503
    %v7505 = vpop.f32.mrf.mxu0
    %7506 = vmatprep.mubr.bf16.mxu0 %v7417
    %7507 = vmatmul.mubr.bf16.gmra.mxu0 %v7416
    %v7508 = vpop.f32.mrf.mxu0
    %v7509 = vadd.f32 0.0, %v7508
    %v7510 = vpop.f32.mrf.mxu0
    %v7511 = vpop.f32.mrf.mxu0
    %v7512 = vadd.f32 0.0, %v7511
    %v7513 = vpop.f32.mrf.mxu0
    %7514 = vmatprep.mubr.bf16.mxu0 %v7420
    %7515 = vmatmul.mubr.bf16.gmra.mxu0 %v7419
    %v7516 = vpop.f32.mrf.mxu0
    %v7517 = vadd.f32 0.0, %v7516
    %v7518 = vpop.f32.mrf.mxu0
    %v7519 = vpop.f32.mrf.mxu0
    %v7520 = vadd.f32 0.0, %v7519
    %v7521 = vpop.f32.mrf.mxu0
    %7522 = vmatprep.mubr.bf16.mxu0 %v7423
    %7523 = vmatmul.mubr.bf16.gmra.mxu0 %v7422
    %v7524 = vpop.f32.mrf.mxu0
    %v7525 = vadd.f32 0.0, %v7524
    %v7526 = vpop.f32.mrf.mxu0
    %v7527 = vpop.f32.mrf.mxu0
    %v7528 = vadd.f32 0.0, %v7527
    %v7529 = vpop.f32.mrf.mxu0
    %7530 = vmatprep.mubr.bf16.mxu0 %v7426
    %7531 = vmatmul.mubr.bf16.gmra.mxu0 %v7425
    %v7532 = vpop.f32.mrf.mxu0
    %v7533 = vadd.f32 0.0, %v7532
    %v7534 = vpop.f32.mrf.mxu0
    %v7535 = vpop.f32.mrf.mxu0
    %v7536 = vadd.f32 0.0, %v7535
    %v7537 = vpop.f32.mrf.mxu0
    %7538 = vmatprep.mubr.bf16.mxu0 %v7429
    %7539 = vmatmul.mubr.bf16.gmra.mxu0 %v7428
    %v7540 = vpop.f32.mrf.mxu0
    %v7541 = vadd.f32 0.0, %v7540
    %v7542 = vpop.f32.mrf.mxu0
    %v7543 = vpop.f32.mrf.mxu0
    %v7544 = vadd.f32 0.0, %v7543
    %v7545 = vpop.f32.mrf.mxu0
    %7546 = vmatprep.mubr.bf16.mxu0 %v7432
    %7547 = vmatmul.mubr.bf16.gmra.mxu0 %v7431
    %v7548 = vpop.f32.mrf.mxu0
    %v7549 = vadd.f32 0.0, %v7548
    %v7550 = vpop.f32.mrf.mxu0
    %v7551 = vpop.f32.mrf.mxu0
    %v7552 = vadd.f32 0.0, %v7551
    %v7553 = vpop.f32.mrf.mxu0
    %7554 = vdwg.mxu0
    %7555 = vmatprep.subr.bf16.mxu0 0
    %7556 = vmatpush1.bf16.msra.mxu0 %v7457
    %7557 = vmatprep.subr.bf16.mxu0 0
    %7558 = vmatpush1.bf16.msra.mxu0 %v7456
    %7559 = vmatprep.subr.bf16.mxu0 0
    %7560 = vmatpush1.bf16.msra.mxu0 %v7455
    %7561 = vmatprep.subr.bf16.mxu0 0
    %7562 = vmatpush1.bf16.msra.mxu0 %v7454
    %7563 = vmatprep.subr.bf16.mxu0 0
    %7564 = vmatpush1.bf16.msra.mxu0 %v7453
    %7565 = vmatprep.subr.bf16.mxu0 0
    %7566 = vmatpush1.bf16.msra.mxu0 %v7452
    %7567 = vmatprep.subr.bf16.mxu0 0
    %7568 = vmatpush1.bf16.msra.mxu0 %v7451
    %7569 = vmatprep.subr.bf16.mxu0 0
    %7570 = vmatpush1.bf16.msra.mxu0 %v7450
    %7571 = vmatprep.subr.bf16.mxu0 0
    %7572 = vmatpush2.bf16.msra.mxu0 0
    %7573 = vmatprep.subr.bf16.mxu0 0
    %7574 = vmatpush2.bf16.msra.mxu0 0
    %7575 = vmatprep.subr.bf16.mxu0 0
    %7576 = vmatpush2.bf16.msra.mxu0 0
    %7577 = vmatprep.subr.bf16.mxu0 0
    %7578 = vmatpush2.bf16.msra.mxu0 0
    %7579 = vmatprep.subr.bf16.mxu0 0
    %7580 = vmatpush2.bf16.msra.mxu0 0
    %7581 = vmatprep.subr.bf16.mxu0 0
    %7582 = vmatpush2.bf16.msra.mxu0 0
    %7583 = vmatprep.subr.bf16.mxu0 0
    %7584 = vmatpush2.bf16.msra.mxu0 0
    %7585 = vmatprep.subr.bf16.mxu0 0
    %7586 = vmatpush2.bf16.msra.mxu0 0
    %7587 = vmatprep.mubr.bf16.mxu0 0
    %7588 = vmatmul.mubr.bf16.gmra.mxu0 %v7412
    %v7589 = vpop.f32.mrf.mxu0
    %v7590 = vadd.f32 %v7493, %v7589
    %v7591 = vpop.f32.mrf.mxu0
    %v7592 = vpop.f32.mrf.mxu0
    %v7593 = vadd.f32 %v7496, %v7592
    %v7594 = vpop.f32.mrf.mxu0
    %7595 = vmatprep.mubr.bf16.mxu0 0
    %7596 = vmatmul.mubr.bf16.gmra.mxu0 %v7415
    %v7597 = vpop.f32.mrf.mxu0
    %v7598 = vadd.f32 %v7501, %v7597
    %v7599 = vpop.f32.mrf.mxu0
    %v7600 = vpop.f32.mrf.mxu0
    %v7601 = vadd.f32 %v7504, %v7600
    %v7602 = vpop.f32.mrf.mxu0
    %7603 = vmatprep.mubr.bf16.mxu0 0
    %7604 = vmatmul.mubr.bf16.gmra.mxu0 %v7418
    %v7605 = vpop.f32.mrf.mxu0
    %v7606 = vadd.f32 %v7509, %v7605
    %v7607 = vpop.f32.mrf.mxu0
    %v7608 = vpop.f32.mrf.mxu0
    %v7609 = vadd.f32 %v7512, %v7608
    %v7610 = vpop.f32.mrf.mxu0
    %7611 = vmatprep.mubr.bf16.mxu0 0
    %7612 = vmatmul.mubr.bf16.gmra.mxu0 %v7421
    %v7613 = vpop.f32.mrf.mxu0
    %v7614 = vadd.f32 %v7517, %v7613
    %v7615 = vpop.f32.mrf.mxu0
    %v7616 = vpop.f32.mrf.mxu0
    %v7617 = vadd.f32 %v7520, %v7616
    %v7618 = vpop.f32.mrf.mxu0
    %7619 = vmatprep.mubr.bf16.mxu0 0
    %7620 = vmatmul.mubr.bf16.gmra.mxu0 %v7424
    %v7621 = vpop.f32.mrf.mxu0
    %v7622 = vadd.f32 %v7525, %v7621
    %v7623 = vpop.f32.mrf.mxu0
    %v7624 = vpop.f32.mrf.mxu0
    %v7625 = vadd.f32 %v7528, %v7624
    %v7626 = vpop.f32.mrf.mxu0
    %7627 = vmatprep.mubr.bf16.mxu0 0
    %7628 = vmatmul.mubr.bf16.gmra.mxu0 %v7427
    %v7629 = vpop.f32.mrf.mxu0
    %v7630 = vadd.f32 %v7533, %v7629
    %v7631 = vpop.f32.mrf.mxu0
    %v7632 = vpop.f32.mrf.mxu0
    %v7633 = vadd.f32 %v7536, %v7632
    %v7634 = vpop.f32.mrf.mxu0
    %7635 = vmatprep.mubr.bf16.mxu0 0
    %7636 = vmatmul.mubr.bf16.gmra.mxu0 %v7430
    %v7637 = vpop.f32.mrf.mxu0
    %v7638 = vadd.f32 %v7541, %v7637
    %v7639 = vpop.f32.mrf.mxu0
    %v7640 = vpop.f32.mrf.mxu0
    %v7641 = vadd.f32 %v7544, %v7640
    %v7642 = vpop.f32.mrf.mxu0
    %7643 = vmatprep.mubr.bf16.mxu0 0
    %7644 = vmatmul.mubr.bf16.gmra.mxu0 %v7433
    %v7645 = vpop.f32.mrf.mxu0
    %v7646 = vadd.f32 %v7549, %v7645
    %v7647 = vpop.f32.mrf.mxu0
    %v7648 = vpop.f32.mrf.mxu0
    %v7649 = vadd.f32 %v7552, %v7648
    %v7650 = vpop.f32.mrf.mxu0
    %7651 = vdwg.mxu0
    %v7652 = vrcp.pop %v7349
    %v7653 = vrcp.pop %v7353
    %v7654 = vrcp.pop %v7357
    %v7655 = vrcp.pop %v7361
    %v7656 = vrcp.pop %v7365
    %v7657 = vrcp.pop %v7369
    %v7658 = vrcp.pop %v7373
    %v7659 = vrcp.pop %v7377
    %v7660 = vrcp.pop %v7381
    %v7661 = vrcp.pop %v7385
    %v7662 = vrcp.pop %v7389
    %v7663 = vrcp.pop %v7393
    %v7664 = vrcp.pop %v7397
    %v7665 = vrcp.pop %v7401
    %v7666 = vrcp.pop %v7405
    %v7667 = vrcp.pop %v7409
    %v7668 = vmul.f32 %v7590, %v7652
    %v7669 = vmul.f32 %v7593, %v7653
    %v7670 = vmul.f32 %v7598, %v7654
    %v7671 = vmul.f32 %v7601, %v7655
    %v7672 = vmul.f32 %v7606, %v7656
    %v7673 = vmul.f32 %v7609, %v7657
    %v7674 = vmul.f32 %v7614, %v7658
    %v7675 = vmul.f32 %v7617, %v7659
    %v7676 = vmul.f32 %v7622, %v7660
    %v7677 = vmul.f32 %v7625, %v7661
    %v7678 = vmul.f32 %v7630, %v7662
    %v7679 = vmul.f32 %v7633, %v7663
    %v7680 = vmul.f32 %v7638, %v7664
    %v7681 = vmul.f32 %v7641, %v7665
    %v7682 = vmul.f32 %v7646, %v7666
    %v7683 = vmul.f32 %v7649, %v7667
    %s7684 = scalar_lea.vmem %s11, 64
    %v7685 = vld [vmem:[%s7684] sm:$0xf]
    %v7686 = vld [vmem:[%s7684 + $0x4] sm:$0xf]
    %v7687 = vld [vmem:[%s7684 + $0x8] sm:$0xf]
    %v7688 = vld [vmem:[%s7684 + $0xc] sm:$0xf]
    %v7689 = vld [vmem:[%s7684 + $0x10] sm:$0xf]
    %v7690 = vld [vmem:[%s7684 + $0x14] sm:$0xf]
    %v7691 = vld [vmem:[%s7684 + $0x18] sm:$0xf]
    %v7692 = vld [vmem:[%s7684 + $0x1c] sm:$0xf]
    %v7693 = vld [vmem:[%s7684 + $0x20] sm:$0xf]
    %v7694 = vld [vmem:[%s7684 + $0x24] sm:$0xf]
    %v7695 = vld [vmem:[%s7684 + $0x28] sm:$0xf]
    %v7696 = vld [vmem:[%s7684 + $0x2c] sm:$0xf]
    %v7697 = vld [vmem:[%s7684 + $0x30] sm:$0xf]
    %v7698 = vld [vmem:[%s7684 + $0x34] sm:$0xf]
    %v7699 = vld [vmem:[%s7684 + $0x38] sm:$0xf]
    %v7700 = vld [vmem:[%s7684 + $0x3c] sm:$0xf]
    %v7701 = vld [vmem:[%s14 + $0x31] ss:$0 sm:$0xff]
    %v7702 = vpack.c.bf16 %v7669, %v7668
    %v7703 = vpack.c.bf16 %v7671, %v7670
    %v7704 = vpack.c.bf16 %v7673, %v7672
    %v7705 = vpack.c.bf16 %v7675, %v7674
    %v7706 = vpack.c.bf16 %v7677, %v7676
    %v7707 = vpack.c.bf16 %v7679, %v7678
    %v7708 = vpack.c.bf16 %v7681, %v7680
    %v7709 = vpack.c.bf16 %v7683, %v7682
    %v7726 = vunpack.c.l.b16 %v7685
    %v7727 = vunpack.c.l.b16 %v7686
    %v7728 = vunpack.c.l.b16 %v7687
    %v7729 = vunpack.c.l.b16 %v7688
    %v7730 = vunpack.c.l.b16 %v7689
    %v7731 = vunpack.c.l.b16 %v7690
    %v7732 = vunpack.c.l.b16 %v7691
    %v7733 = vunpack.c.l.b16 %v7692
    %v7734 = vunpack.c.l.b16 %v7693
    %v7735 = vunpack.c.l.b16 %v7694
    %v7736 = vunpack.c.l.b16 %v7695
    %v7737 = vunpack.c.l.b16 %v7696
    %v7738 = vunpack.c.l.b16 %v7697
    %v7739 = vunpack.c.l.b16 %v7698
    %v7740 = vunpack.c.l.b16 %v7699
    %v7741 = vunpack.c.l.b16 %v7700
    %v7742 = vpack.c.b16 %v7727, %v7726
    %v7743 = vpack.c.b16 %v7729, %v7728
    %v7744 = vpack.c.b16 %v7731, %v7730
    %v7745 = vpack.c.b16 %v7733, %v7732
    %v7746 = vpack.c.b16 %v7735, %v7734
    %v7747 = vpack.c.b16 %v7737, %v7736
    %v7748 = vpack.c.b16 %v7739, %v7738
    %v7749 = vpack.c.b16 %v7741, %v7740
    %7758 = vmatprep.subr.bf16.mxu0 0
    %7759 = vmatpush1.bf16.msra.mxu0 %v7749
    %7760 = vmatprep.subr.bf16.mxu0 0
    %7761 = vmatpush1.bf16.msra.mxu0 %v7748
    %7762 = vmatprep.subr.bf16.mxu0 0
    %7763 = vmatpush1.bf16.msra.mxu0 %v7747
    %7764 = vmatprep.subr.bf16.mxu0 0
    %7765 = vmatpush1.bf16.msra.mxu0 %v7746
    %7766 = vmatprep.subr.bf16.mxu0 0
    %7767 = vmatpush1.bf16.msra.mxu0 %v7745
    %7768 = vmatprep.subr.bf16.mxu0 0
    %7769 = vmatpush1.bf16.msra.mxu0 %v7744
    %7770 = vmatprep.subr.bf16.mxu0 0
    %7771 = vmatpush1.bf16.msra.mxu0 %v7743
    %7772 = vmatprep.subr.bf16.mxu0 0
    %7773 = vmatpush1.bf16.msra.mxu0 %v7742
    %7774 = vmatprep.subr.bf16.mxu0 0
    %7775 = vmatpush2.bf16.msra.mxu0 0
    %7776 = vmatprep.subr.bf16.mxu0 0
    %7777 = vmatpush2.bf16.msra.mxu0 0
    %7778 = vmatprep.subr.bf16.mxu0 0
    %7779 = vmatpush2.bf16.msra.mxu0 0
    %7780 = vmatprep.subr.bf16.mxu0 0
    %7781 = vmatpush2.bf16.msra.mxu0 0
    %7782 = vmatprep.subr.bf16.mxu0 0
    %7783 = vmatpush2.bf16.msra.mxu0 0
    %7784 = vmatprep.subr.bf16.mxu0 0
    %7785 = vmatpush2.bf16.msra.mxu0 0
    %7786 = vmatprep.subr.bf16.mxu0 0
    %7787 = vmatpush2.bf16.msra.mxu0 0
    %7788 = vmatprep.subr.bf16.mxu0 0
    %7789 = vmatpush2.bf16.msra.mxu0 0
    %7790 = vmatprep.mubr.bf16.mxu0 0
    %7791 = vmatmul.mubr.bf16.gmra.mxu0 %v7702
    %v7792 = vpop.f32.mrf.mxu0
    %v7793 = vadd.f32 %v7701, %v7792
    %v7794 = vpop.f32.mrf.mxu0
    %v7795 = vpop.f32.mrf.mxu0
    %v7796 = vadd.f32 %v7701, %v7795
    %v7797 = vpop.f32.mrf.mxu0
    %7798 = vmatprep.mubr.bf16.mxu0 0
    %7799 = vmatmul.mubr.bf16.gmra.mxu0 %v7703
    %v7800 = vpop.f32.mrf.mxu0
    %v7801 = vadd.f32 %v7701, %v7800
    %v7802 = vpop.f32.mrf.mxu0
    %v7803 = vpop.f32.mrf.mxu0
    %v7804 = vadd.f32 %v7701, %v7803
    %v7805 = vpop.f32.mrf.mxu0
    %7806 = vmatprep.mubr.bf16.mxu0 0
    %7807 = vmatmul.mubr.bf16.gmra.mxu0 %v7704
    %v7808 = vpop.f32.mrf.mxu0
    %v7809 = vadd.f32 %v7701, %v7808
    %v7810 = vpop.f32.mrf.mxu0
    %v7811 = vpop.f32.mrf.mxu0
    %v7812 = vadd.f32 %v7701, %v7811
    %v7813 = vpop.f32.mrf.mxu0
    %7814 = vmatprep.mubr.bf16.mxu0 0
    %7815 = vmatmul.mubr.bf16.gmra.mxu0 %v7705
    %v7816 = vpop.f32.mrf.mxu0
    %v7817 = vadd.f32 %v7701, %v7816
    %v7818 = vpop.f32.mrf.mxu0
    %v7819 = vpop.f32.mrf.mxu0
    %v7820 = vadd.f32 %v7701, %v7819
    %v7821 = vpop.f32.mrf.mxu0
    %7822 = vmatprep.mubr.bf16.mxu0 0
    %7823 = vmatmul.mubr.bf16.gmra.mxu0 %v7706
    %v7824 = vpop.f32.mrf.mxu0
    %v7825 = vadd.f32 %v7701, %v7824
    %v7826 = vpop.f32.mrf.mxu0
    %v7827 = vpop.f32.mrf.mxu0
    %v7828 = vadd.f32 %v7701, %v7827
    %v7829 = vpop.f32.mrf.mxu0
    %7830 = vmatprep.mubr.bf16.mxu0 0
    %7831 = vmatmul.mubr.bf16.gmra.mxu0 %v7707
    %v7832 = vpop.f32.mrf.mxu0
    %v7833 = vadd.f32 %v7701, %v7832
    %v7834 = vpop.f32.mrf.mxu0
    %v7835 = vpop.f32.mrf.mxu0
    %v7836 = vadd.f32 %v7701, %v7835
    %v7837 = vpop.f32.mrf.mxu0
    %7838 = vmatprep.mubr.bf16.mxu0 0
    %7839 = vmatmul.mubr.bf16.gmra.mxu0 %v7708
    %v7840 = vpop.f32.mrf.mxu0
    %v7841 = vadd.f32 %v7701, %v7840
    %v7842 = vpop.f32.mrf.mxu0
    %v7843 = vpop.f32.mrf.mxu0
    %v7844 = vadd.f32 %v7701, %v7843
    %v7845 = vpop.f32.mrf.mxu0
    %7846 = vmatprep.mubr.bf16.mxu0 0
    %7847 = vmatmul.mubr.bf16.gmra.mxu0 %v7709
    %v7848 = vpop.f32.mrf.mxu0
    %v7849 = vadd.f32 %v7701, %v7848
    %v7850 = vpop.f32.mrf.mxu0
    %v7851 = vpop.f32.mrf.mxu0
    %v7852 = vadd.f32 %v7701, %v7851
    %v7853 = vpop.f32.mrf.mxu0
    %7854 = vdwg.mxu0
    %v7855 = vadd.f32 %v5796, %v7793
    %v7856 = vadd.f32 %v5797, %v7796
    %v7857 = vadd.f32 %v5798, %v7801
    %v7858 = vadd.f32 %v5799, %v7804
    %v7859 = vadd.f32 %v5800, %v7809
    %v7860 = vadd.f32 %v5801, %v7812
    %v7861 = vadd.f32 %v5802, %v7817
    %v7862 = vadd.f32 %v5803, %v7820
    %v7863 = vadd.f32 %v5804, %v7825
    %v7864 = vadd.f32 %v5805, %v7828
    %v7865 = vadd.f32 %v5806, %v7833
    %v7866 = vadd.f32 %v5807, %v7836
    %v7867 = vadd.f32 %v5808, %v7841
    %v7868 = vadd.f32 %v5809, %v7844
    %v7869 = vadd.f32 %v5810, %v7849
    %v7870 = vadd.f32 %v5811, %v7852
    %v7871 = vld [vmem:[%s14 + $0x48] ss:$0 sm:$0xff]
    %v7872 = vld [vmem:[%s14 + $0x49] ss:$0 sm:$0xff]
    %7873 = vadd.xlane.f32.xlu0 %v7855
    %v7874 = vpop.xlane.xlu0 %7873
    %7875 = vadd.xlane.f32.xlu0 %v7856
    %v7876 = vpop.xlane.xlu0 %7875
    %7877 = vadd.xlane.f32.xlu0 %v7857
    %v7878 = vpop.xlane.xlu0 %7877
    %7879 = vadd.xlane.f32.xlu0 %v7858
    %v7880 = vpop.xlane.xlu0 %7879
    %7881 = vadd.xlane.f32.xlu0 %v7859
    %v7882 = vpop.xlane.xlu0 %7881
    %7883 = vadd.xlane.f32.xlu0 %v7860
    %v7884 = vpop.xlane.xlu0 %7883
    %7885 = vadd.xlane.f32.xlu0 %v7861
    %v7886 = vpop.xlane.xlu0 %7885
    %7887 = vadd.xlane.f32.xlu0 %v7862
    %v7888 = vpop.xlane.xlu0 %7887
    %7889 = vadd.xlane.f32.xlu0 %v7863
    %v7890 = vpop.xlane.xlu0 %7889
    %7891 = vadd.xlane.f32.xlu0 %v7864
    %v7892 = vpop.xlane.xlu0 %7891
    %7893 = vadd.xlane.f32.xlu0 %v7865
    %v7894 = vpop.xlane.xlu0 %7893
    %7895 = vadd.xlane.f32.xlu0 %v7866
    %v7896 = vpop.xlane.xlu0 %7895
    %7897 = vadd.xlane.f32.xlu0 %v7867
    %v7898 = vpop.xlane.xlu0 %7897
    %7899 = vadd.xlane.f32.xlu0 %v7868
    %v7900 = vpop.xlane.xlu0 %7899
    %7901 = vadd.xlane.f32.xlu0 %v7869
    %v7902 = vpop.xlane.xlu0 %7901
    %7903 = vadd.xlane.f32.xlu0 %v7870
    %v7904 = vpop.xlane.xlu0 %7903
    %v7905 = vmul.f32 %v7874, %v150
    %v7906 = vmul.f32 %v7876, %v150
    %v7907 = vmul.f32 %v7878, %v150
    %v7908 = vmul.f32 %v7880, %v150
    %v7909 = vmul.f32 %v7882, %v150
    %v7910 = vmul.f32 %v7884, %v150
    %v7911 = vmul.f32 %v7886, %v150
    %v7912 = vmul.f32 %v7888, %v150
    %v7913 = vmul.f32 %v7890, %v150
    %v7914 = vmul.f32 %v7892, %v150
    %v7915 = vmul.f32 %v7894, %v150
    %v7916 = vmul.f32 %v7896, %v150
    %v7917 = vmul.f32 %v7898, %v150
    %v7918 = vmul.f32 %v7900, %v150
    %v7919 = vmul.f32 %v7902, %v150
    %v7920 = vmul.f32 %v7904, %v150
    %v7921 = vsub.f32 %v7855, %v7905
    %v7922 = vsub.f32 %v7856, %v7906
    %v7923 = vsub.f32 %v7857, %v7907
    %v7924 = vsub.f32 %v7858, %v7908
    %v7925 = vsub.f32 %v7859, %v7909
    %v7926 = vsub.f32 %v7860, %v7910
    %v7927 = vsub.f32 %v7861, %v7911
    %v7928 = vsub.f32 %v7862, %v7912
    %v7929 = vsub.f32 %v7863, %v7913
    %v7930 = vsub.f32 %v7864, %v7914
    %v7931 = vsub.f32 %v7865, %v7915
    %v7932 = vsub.f32 %v7866, %v7916
    %v7933 = vsub.f32 %v7867, %v7917
    %v7934 = vsub.f32 %v7868, %v7918
    %v7935 = vsub.f32 %v7869, %v7919
    %v7936 = vsub.f32 %v7870, %v7920
    %v7937 = vmul.f32 %v7921, %v7921
    %v7938 = vmul.f32 %v7922, %v7922
    %v7939 = vmul.f32 %v7923, %v7923
    %v7940 = vmul.f32 %v7924, %v7924
    %v7941 = vmul.f32 %v7925, %v7925
    %v7942 = vmul.f32 %v7926, %v7926
    %v7943 = vmul.f32 %v7927, %v7927
    %v7944 = vmul.f32 %v7928, %v7928
    %v7945 = vmul.f32 %v7929, %v7929
    %v7946 = vmul.f32 %v7930, %v7930
    %v7947 = vmul.f32 %v7931, %v7931
    %v7948 = vmul.f32 %v7932, %v7932
    %v7949 = vmul.f32 %v7933, %v7933
    %v7950 = vmul.f32 %v7934, %v7934
    %v7951 = vmul.f32 %v7935, %v7935
    %v7952 = vmul.f32 %v7936, %v7936
    %7953 = vadd.xlane.f32.xlu0 %v7937
    %v7954 = vpop.xlane.xlu0 %7953
    %7955 = vadd.xlane.f32.xlu0 %v7938
    %v7956 = vpop.xlane.xlu0 %7955
    %7957 = vadd.xlane.f32.xlu0 %v7939
    %v7958 = vpop.xlane.xlu0 %7957
    %7959 = vadd.xlane.f32.xlu0 %v7940
    %v7960 = vpop.xlane.xlu0 %7959
    %7961 = vadd.xlane.f32.xlu0 %v7941
    %v7962 = vpop.xlane.xlu0 %7961
    %7963 = vadd.xlane.f32.xlu0 %v7942
    %v7964 = vpop.xlane.xlu0 %7963
    %7965 = vadd.xlane.f32.xlu0 %v7943
    %v7966 = vpop.xlane.xlu0 %7965
    %7967 = vadd.xlane.f32.xlu0 %v7944
    %v7968 = vpop.xlane.xlu0 %7967
    %7969 = vadd.xlane.f32.xlu0 %v7945
    %v7970 = vpop.xlane.xlu0 %7969
    %7971 = vadd.xlane.f32.xlu0 %v7946
    %v7972 = vpop.xlane.xlu0 %7971
    %7973 = vadd.xlane.f32.xlu0 %v7947
    %v7974 = vpop.xlane.xlu0 %7973
    %7975 = vadd.xlane.f32.xlu0 %v7948
    %v7976 = vpop.xlane.xlu0 %7975
    %7977 = vadd.xlane.f32.xlu0 %v7949
    %v7978 = vpop.xlane.xlu0 %7977
    %7979 = vadd.xlane.f32.xlu0 %v7950
    %v7980 = vpop.xlane.xlu0 %7979
    %7981 = vadd.xlane.f32.xlu0 %v7951
    %v7982 = vpop.xlane.xlu0 %7981
    %7983 = vadd.xlane.f32.xlu0 %v7952
    %v7984 = vpop.xlane.xlu0 %7983
    %v7985 = vmul.f32 %v7954, %v150
    %v7986 = vmul.f32 %v7956, %v150
    %v7987 = vmul.f32 %v7958, %v150
    %v7988 = vmul.f32 %v7960, %v150
    %v7989 = vmul.f32 %v7962, %v150
    %v7990 = vmul.f32 %v7964, %v150
    %v7991 = vmul.f32 %v7966, %v150
    %v7992 = vmul.f32 %v7968, %v150
    %v7993 = vmul.f32 %v7970, %v150
    %v7994 = vmul.f32 %v7972, %v150
    %v7995 = vmul.f32 %v7974, %v150
    %v7996 = vmul.f32 %v7976, %v150
    %v7997 = vmul.f32 %v7978, %v150
    %v7998 = vmul.f32 %v7980, %v150
    %v7999 = vmul.f32 %v7982, %v150
    %v8000 = vmul.f32 %v7984, %v150
    %v8001 = vadd.f32 %v7985, 1e-05
    %v8002 = vadd.f32 %v7986, 1e-05
    %v8003 = vadd.f32 %v7987, 1e-05
    %v8004 = vadd.f32 %v7988, 1e-05
    %v8005 = vadd.f32 %v7989, 1e-05
    %v8006 = vadd.f32 %v7990, 1e-05
    %v8007 = vadd.f32 %v7991, 1e-05
    %v8008 = vadd.f32 %v7992, 1e-05
    %v8009 = vadd.f32 %v7993, 1e-05
    %v8010 = vadd.f32 %v7994, 1e-05
    %v8011 = vadd.f32 %v7995, 1e-05
    %v8012 = vadd.f32 %v7996, 1e-05
    %v8013 = vadd.f32 %v7997, 1e-05
    %v8014 = vadd.f32 %v7998, 1e-05
    %v8015 = vadd.f32 %v7999, 1e-05
    %v8016 = vadd.f32 %v8000, 1e-05
    %v8017 = vrsqrt.pop %v8001
    %v8018 = vrsqrt.pop %v8002
    %v8019 = vrsqrt.pop %v8003
    %v8020 = vrsqrt.pop %v8004
    %v8021 = vrsqrt.pop %v8005
    %v8022 = vrsqrt.pop %v8006
    %v8023 = vrsqrt.pop %v8007
    %v8024 = vrsqrt.pop %v8008
    %v8025 = vrsqrt.pop %v8009
    %v8026 = vrsqrt.pop %v8010
    %v8027 = vrsqrt.pop %v8011
    %v8028 = vrsqrt.pop %v8012
    %v8029 = vrsqrt.pop %v8013
    %v8030 = vrsqrt.pop %v8014
    %v8031 = vrsqrt.pop %v8015
    %v8032 = vrsqrt.pop %v8016
    %v8033 = vmul.f32 %v7921, %v8017
    %v8034 = vmul.f32 %v7922, %v8018
    %v8035 = vmul.f32 %v7923, %v8019
    %v8036 = vmul.f32 %v7924, %v8020
    %v8037 = vmul.f32 %v7925, %v8021
    %v8038 = vmul.f32 %v7926, %v8022
    %v8039 = vmul.f32 %v7927, %v8023
    %v8040 = vmul.f32 %v7928, %v8024
    %v8041 = vmul.f32 %v7929, %v8025
    %v8042 = vmul.f32 %v7930, %v8026
    %v8043 = vmul.f32 %v7931, %v8027
    %v8044 = vmul.f32 %v7932, %v8028
    %v8045 = vmul.f32 %v7933, %v8029
    %v8046 = vmul.f32 %v7934, %v8030
    %v8047 = vmul.f32 %v7935, %v8031
    %v8048 = vmul.f32 %v7936, %v8032
    %v8049 = vmul.f32 %v8033, %v7871
    %v8050 = vmul.f32 %v8034, %v7871
    %v8051 = vmul.f32 %v8035, %v7871
    %v8052 = vmul.f32 %v8036, %v7871
    %v8053 = vmul.f32 %v8037, %v7871
    %v8054 = vmul.f32 %v8038, %v7871
    %v8055 = vmul.f32 %v8039, %v7871
    %v8056 = vmul.f32 %v8040, %v7871
    %v8057 = vmul.f32 %v8041, %v7871
    %v8058 = vmul.f32 %v8042, %v7871
    %v8059 = vmul.f32 %v8043, %v7871
    %v8060 = vmul.f32 %v8044, %v7871
    %v8061 = vmul.f32 %v8045, %v7871
    %v8062 = vmul.f32 %v8046, %v7871
    %v8063 = vmul.f32 %v8047, %v7871
    %v8064 = vmul.f32 %v8048, %v7871
    %v8065 = vadd.f32 %v8049, %v7872
    %v8066 = vadd.f32 %v8050, %v7872
    %v8067 = vadd.f32 %v8051, %v7872
    %v8068 = vadd.f32 %v8052, %v7872
    %v8069 = vadd.f32 %v8053, %v7872
    %v8070 = vadd.f32 %v8054, %v7872
    %v8071 = vadd.f32 %v8055, %v7872
    %v8072 = vadd.f32 %v8056, %v7872
    %v8073 = vadd.f32 %v8057, %v7872
    %v8074 = vadd.f32 %v8058, %v7872
    %v8075 = vadd.f32 %v8059, %v7872
    %v8076 = vadd.f32 %v8060, %v7872
    %v8077 = vadd.f32 %v8061, %v7872
    %v8078 = vadd.f32 %v8062, %v7872
    %v8079 = vadd.f32 %v8063, %v7872
    %v8080 = vadd.f32 %v8064, %v7872
    %s8081 = scalar_lea.vmem %s12, 128
    %v8082 = vld [vmem:[%s8081] sm:$0xff]
    %v8083 = vld [vmem:[%s8081 + $0x8] sm:$0xff]
    %v8084 = vld [vmem:[%s8081 + $0x10] sm:$0xff]
    %v8085 = vld [vmem:[%s8081 + $0x18] sm:$0xff]
    %v8086 = vld [vmem:[%s8081 + $0x20] sm:$0xff]
    %v8087 = vld [vmem:[%s8081 + $0x28] sm:$0xff]
    %v8088 = vld [vmem:[%s8081 + $0x30] sm:$0xff]
    %v8089 = vld [vmem:[%s8081 + $0x38] sm:$0xff]
    %v8090 = vld [vmem:[%s8081 + $0x40] sm:$0xff]
    %v8091 = vld [vmem:[%s8081 + $0x48] sm:$0xff]
    %v8092 = vld [vmem:[%s8081 + $0x50] sm:$0xff]
    %v8093 = vld [vmem:[%s8081 + $0x58] sm:$0xff]
    %v8094 = vld [vmem:[%s8081 + $0x60] sm:$0xff]
    %v8095 = vld [vmem:[%s8081 + $0x68] sm:$0xff]
    %v8096 = vld [vmem:[%s8081 + $0x70] sm:$0xff]
    %v8097 = vld [vmem:[%s8081 + $0x78] sm:$0xff]
    %s8098 = scalar_lea.vmem %s14, 50
    %v8099 = vld [vmem:[%s8098] ss:$8 sm:$0x3]
    %v8100 = vpack.c.bf16 %v8066, %v8065
    %v8101 = vpack.c.bf16 %v8068, %v8067
    %v8102 = vpack.c.bf16 %v8070, %v8069
    %v8103 = vpack.c.bf16 %v8072, %v8071
    %v8104 = vpack.c.bf16 %v8074, %v8073
    %v8105 = vpack.c.bf16 %v8076, %v8075
    %v8106 = vpack.c.bf16 %v8078, %v8077
    %v8107 = vpack.c.bf16 %v8080, %v8079
    %v8109 = vlaneseq
    %v8110 = vshrl.u32 %v8109, 7
    %v8111 = vsub.s32 0, %v8110
    %v8112 = vrot.slane %v8099, %v8111
    %v8113 = vlaneseq
    %v8114 = vshrl.u32 %v8113, 7
    %v8115 = vsub.s32 1, %v8114
    %v8116 = vrot.slane %v8099, %v8115
    %v8135 = vunpack.c.l.b16 %v8082
    %v8136 = vunpack.c.h.b16 %v8082
    %v8137 = vunpack.c.l.b16 %v8083
    %v8138 = vunpack.c.h.b16 %v8083
    %v8139 = vunpack.c.l.b16 %v8084
    %v8140 = vunpack.c.h.b16 %v8084
    %v8141 = vunpack.c.l.b16 %v8085
    %v8142 = vunpack.c.h.b16 %v8085
    %v8143 = vunpack.c.l.b16 %v8086
    %v8144 = vunpack.c.h.b16 %v8086
    %v8145 = vunpack.c.l.b16 %v8087
    %v8146 = vunpack.c.h.b16 %v8087
    %v8147 = vunpack.c.l.b16 %v8088
    %v8148 = vunpack.c.h.b16 %v8088
    %v8149 = vunpack.c.l.b16 %v8089
    %v8150 = vunpack.c.h.b16 %v8089
    %v8151 = vunpack.c.l.b16 %v8090
    %v8152 = vunpack.c.h.b16 %v8090
    %v8153 = vunpack.c.l.b16 %v8091
    %v8154 = vunpack.c.h.b16 %v8091
    %v8155 = vunpack.c.l.b16 %v8092
    %v8156 = vunpack.c.h.b16 %v8092
    %v8157 = vunpack.c.l.b16 %v8093
    %v8158 = vunpack.c.h.b16 %v8093
    %v8159 = vunpack.c.l.b16 %v8094
    %v8160 = vunpack.c.h.b16 %v8094
    %v8161 = vunpack.c.l.b16 %v8095
    %v8162 = vunpack.c.h.b16 %v8095
    %v8163 = vunpack.c.l.b16 %v8096
    %v8164 = vunpack.c.h.b16 %v8096
    %v8165 = vunpack.c.l.b16 %v8097
    %v8166 = vunpack.c.h.b16 %v8097
    %v8167 = vpack.c.b16 %v8137, %v8135
    %v8168 = vpack.c.b16 %v8138, %v8136
    %v8169 = vpack.c.b16 %v8141, %v8139
    %v8170 = vpack.c.b16 %v8142, %v8140
    %v8171 = vpack.c.b16 %v8145, %v8143
    %v8172 = vpack.c.b16 %v8146, %v8144
    %v8173 = vpack.c.b16 %v8149, %v8147
    %v8174 = vpack.c.b16 %v8150, %v8148
    %v8175 = vpack.c.b16 %v8153, %v8151
    %v8176 = vpack.c.b16 %v8154, %v8152
    %v8177 = vpack.c.b16 %v8157, %v8155
    %v8178 = vpack.c.b16 %v8158, %v8156
    %v8179 = vpack.c.b16 %v8161, %v8159
    %v8180 = vpack.c.b16 %v8162, %v8160
    %v8181 = vpack.c.b16 %v8165, %v8163
    %v8182 = vpack.c.b16 %v8166, %v8164
    %8199 = vmatprep.subr.bf16.mxu0 %v8182
    %8200 = vmatpush1.bf16.msra.mxu0 %v8181
    %8201 = vmatprep.subr.bf16.mxu0 %v8180
    %8202 = vmatpush1.bf16.msra.mxu0 %v8179
    %8203 = vmatprep.subr.bf16.mxu0 %v8178
    %8204 = vmatpush1.bf16.msra.mxu0 %v8177
    %8205 = vmatprep.subr.bf16.mxu0 %v8176
    %8206 = vmatpush1.bf16.msra.mxu0 %v8175
    %8207 = vmatprep.subr.bf16.mxu0 %v8174
    %8208 = vmatpush1.bf16.msra.mxu0 %v8173
    %8209 = vmatprep.subr.bf16.mxu0 %v8172
    %8210 = vmatpush1.bf16.msra.mxu0 %v8171
    %8211 = vmatprep.subr.bf16.mxu0 %v8170
    %8212 = vmatpush1.bf16.msra.mxu0 %v8169
    %8213 = vmatprep.subr.bf16.mxu0 %v8168
    %8214 = vmatpush1.bf16.msra.mxu0 %v8167
    %8215 = vmatprep.subr.bf16.mxu0 0
    %8216 = vmatpush2.bf16.msra.mxu0 0
    %8217 = vmatprep.subr.bf16.mxu0 0
    %8218 = vmatpush2.bf16.msra.mxu0 0
    %8219 = vmatprep.subr.bf16.mxu0 0
    %8220 = vmatpush2.bf16.msra.mxu0 0
    %8221 = vmatprep.subr.bf16.mxu0 0
    %8222 = vmatpush2.bf16.msra.mxu0 0
    %8223 = vmatprep.subr.bf16.mxu0 0
    %8224 = vmatpush2.bf16.msra.mxu0 0
    %8225 = vmatprep.subr.bf16.mxu0 0
    %8226 = vmatpush2.bf16.msra.mxu0 0
    %8227 = vmatprep.subr.bf16.mxu0 0
    %8228 = vmatpush2.bf16.msra.mxu0 0
    %8229 = vmatprep.subr.bf16.mxu0 0
    %8230 = vmatpush2.bf16.msra.mxu0 0
    %8231 = vmatprep.mubr.bf16.mxu0 0
    %8232 = vmatmul.mubr.bf16.gmra.mxu0 %v8100
    %v8233 = vpop.f32.mrf.mxu0
    %v8234 = vadd.f32 %v8112, %v8233
    %v8235 = vpop.f32.mrf.mxu0
    %v8236 = vadd.f32 %v8116, %v8235
    %v8237 = vpop.f32.mrf.mxu0
    %v8238 = vadd.f32 %v8112, %v8237
    %v8239 = vpop.f32.mrf.mxu0
    %v8240 = vadd.f32 %v8116, %v8239
    %8241 = vmatprep.mubr.bf16.mxu0 0
    %8242 = vmatmul.mubr.bf16.gmra.mxu0 %v8101
    %v8243 = vpop.f32.mrf.mxu0
    %v8244 = vadd.f32 %v8112, %v8243
    %v8245 = vpop.f32.mrf.mxu0
    %v8246 = vadd.f32 %v8116, %v8245
    %v8247 = vpop.f32.mrf.mxu0
    %v8248 = vadd.f32 %v8112, %v8247
    %v8249 = vpop.f32.mrf.mxu0
    %v8250 = vadd.f32 %v8116, %v8249
    %8251 = vmatprep.mubr.bf16.mxu0 0
    %8252 = vmatmul.mubr.bf16.gmra.mxu0 %v8102
    %v8253 = vpop.f32.mrf.mxu0
    %v8254 = vadd.f32 %v8112, %v8253
    %v8255 = vpop.f32.mrf.mxu0
    %v8256 = vadd.f32 %v8116, %v8255
    %v8257 = vpop.f32.mrf.mxu0
    %v8258 = vadd.f32 %v8112, %v8257
    %v8259 = vpop.f32.mrf.mxu0
    %v8260 = vadd.f32 %v8116, %v8259
    %8261 = vmatprep.mubr.bf16.mxu0 0
    %8262 = vmatmul.mubr.bf16.gmra.mxu0 %v8103
    %v8263 = vpop.f32.mrf.mxu0
    %v8264 = vadd.f32 %v8112, %v8263
    %v8265 = vpop.f32.mrf.mxu0
    %v8266 = vadd.f32 %v8116, %v8265
    %v8267 = vpop.f32.mrf.mxu0
    %v8268 = vadd.f32 %v8112, %v8267
    %v8269 = vpop.f32.mrf.mxu0
    %v8270 = vadd.f32 %v8116, %v8269
    %8271 = vmatprep.mubr.bf16.mxu0 0
    %8272 = vmatmul.mubr.bf16.gmra.mxu0 %v8104
    %v8273 = vpop.f32.mrf.mxu0
    %v8274 = vadd.f32 %v8112, %v8273
    %v8275 = vpop.f32.mrf.mxu0
    %v8276 = vadd.f32 %v8116, %v8275
    %v8277 = vpop.f32.mrf.mxu0
    %v8278 = vadd.f32 %v8112, %v8277
    %v8279 = vpop.f32.mrf.mxu0
    %v8280 = vadd.f32 %v8116, %v8279
    %8281 = vmatprep.mubr.bf16.mxu0 0
    %8282 = vmatmul.mubr.bf16.gmra.mxu0 %v8105
    %v8283 = vpop.f32.mrf.mxu0
    %v8284 = vadd.f32 %v8112, %v8283
    %v8285 = vpop.f32.mrf.mxu0
    %v8286 = vadd.f32 %v8116, %v8285
    %v8287 = vpop.f32.mrf.mxu0
    %v8288 = vadd.f32 %v8112, %v8287
    %v8289 = vpop.f32.mrf.mxu0
    %v8290 = vadd.f32 %v8116, %v8289
    %8291 = vmatprep.mubr.bf16.mxu0 0
    %8292 = vmatmul.mubr.bf16.gmra.mxu0 %v8106
    %v8293 = vpop.f32.mrf.mxu0
    %v8294 = vadd.f32 %v8112, %v8293
    %v8295 = vpop.f32.mrf.mxu0
    %v8296 = vadd.f32 %v8116, %v8295
    %v8297 = vpop.f32.mrf.mxu0
    %v8298 = vadd.f32 %v8112, %v8297
    %v8299 = vpop.f32.mrf.mxu0
    %v8300 = vadd.f32 %v8116, %v8299
    %8301 = vmatprep.mubr.bf16.mxu0 0
    %8302 = vmatmul.mubr.bf16.gmra.mxu0 %v8107
    %v8303 = vpop.f32.mrf.mxu0
    %v8304 = vadd.f32 %v8112, %v8303
    %v8305 = vpop.f32.mrf.mxu0
    %v8306 = vadd.f32 %v8116, %v8305
    %v8307 = vpop.f32.mrf.mxu0
    %v8308 = vadd.f32 %v8112, %v8307
    %v8309 = vpop.f32.mrf.mxu0
    %v8310 = vadd.f32 %v8116, %v8309
    %8311 = vdwg.mxu0
    %v8312 = vmax.f32 %v8234, 0.0
    %v8313 = vmax.f32 %v8236, 0.0
    %v8314 = vmax.f32 %v8238, 0.0
    %v8315 = vmax.f32 %v8240, 0.0
    %v8316 = vmax.f32 %v8244, 0.0
    %v8317 = vmax.f32 %v8246, 0.0
    %v8318 = vmax.f32 %v8248, 0.0
    %v8319 = vmax.f32 %v8250, 0.0
    %v8320 = vmax.f32 %v8254, 0.0
    %v8321 = vmax.f32 %v8256, 0.0
    %v8322 = vmax.f32 %v8258, 0.0
    %v8323 = vmax.f32 %v8260, 0.0
    %v8324 = vmax.f32 %v8264, 0.0
    %v8325 = vmax.f32 %v8266, 0.0
    %v8326 = vmax.f32 %v8268, 0.0
    %v8327 = vmax.f32 %v8270, 0.0
    %v8328 = vmax.f32 %v8274, 0.0
    %v8329 = vmax.f32 %v8276, 0.0
    %v8330 = vmax.f32 %v8278, 0.0
    %v8331 = vmax.f32 %v8280, 0.0
    %v8332 = vmax.f32 %v8284, 0.0
    %v8333 = vmax.f32 %v8286, 0.0
    %v8334 = vmax.f32 %v8288, 0.0
    %v8335 = vmax.f32 %v8290, 0.0
    %v8336 = vmax.f32 %v8294, 0.0
    %v8337 = vmax.f32 %v8296, 0.0
    %v8338 = vmax.f32 %v8298, 0.0
    %v8339 = vmax.f32 %v8300, 0.0
    %v8340 = vmax.f32 %v8304, 0.0
    %v8341 = vmax.f32 %v8306, 0.0
    %v8342 = vmax.f32 %v8308, 0.0
    %v8343 = vmax.f32 %v8310, 0.0
    %s8344 = scalar_lea.vmem %s13, 128
    %v8345 = vld [vmem:[%s8344] sm:$0xf]
    %v8346 = vld [vmem:[%s8344 + $0x4] sm:$0xf]
    %v8347 = vld [vmem:[%s8344 + $0x8] sm:$0xf]
    %v8348 = vld [vmem:[%s8344 + $0xc] sm:$0xf]
    %v8349 = vld [vmem:[%s8344 + $0x10] sm:$0xf]
    %v8350 = vld [vmem:[%s8344 + $0x14] sm:$0xf]
    %v8351 = vld [vmem:[%s8344 + $0x18] sm:$0xf]
    %v8352 = vld [vmem:[%s8344 + $0x1c] sm:$0xf]
    %v8353 = vld [vmem:[%s8344 + $0x20] sm:$0xf]
    %v8354 = vld [vmem:[%s8344 + $0x24] sm:$0xf]
    %v8355 = vld [vmem:[%s8344 + $0x28] sm:$0xf]
    %v8356 = vld [vmem:[%s8344 + $0x2c] sm:$0xf]
    %v8357 = vld [vmem:[%s8344 + $0x30] sm:$0xf]
    %v8358 = vld [vmem:[%s8344 + $0x34] sm:$0xf]
    %v8359 = vld [vmem:[%s8344 + $0x38] sm:$0xf]
    %v8360 = vld [vmem:[%s8344 + $0x3c] sm:$0xf]
    %v8361 = vld [vmem:[%s8344 + $0x40] sm:$0xf]
    %v8362 = vld [vmem:[%s8344 + $0x44] sm:$0xf]
    %v8363 = vld [vmem:[%s8344 + $0x48] sm:$0xf]
    %v8364 = vld [vmem:[%s8344 + $0x4c] sm:$0xf]
    %v8365 = vld [vmem:[%s8344 + $0x50] sm:$0xf]
    %v8366 = vld [vmem:[%s8344 + $0x54] sm:$0xf]
    %v8367 = vld [vmem:[%s8344 + $0x58] sm:$0xf]
    %v8368 = vld [vmem:[%s8344 + $0x5c] sm:$0xf]
    %v8369 = vld [vmem:[%s8344 + $0x60] sm:$0xf]
    %v8370 = vld [vmem:[%s8344 + $0x64] sm:$0xf]
    %v8371 = vld [vmem:[%s8344 + $0x68] sm:$0xf]
    %v8372 = vld [vmem:[%s8344 + $0x6c] sm:$0xf]
    %v8373 = vld [vmem:[%s8344 + $0x70] sm:$0xf]
    %v8374 = vld [vmem:[%s8344 + $0x74] sm:$0xf]
    %v8375 = vld [vmem:[%s8344 + $0x78] sm:$0xf]
    %v8376 = vld [vmem:[%s8344 + $0x7c] sm:$0xf]
    %v8377 = vld [vmem:[%s14 + $0x33] ss:$0 sm:$0xff]
    %v8378 = vpack.c.bf16 %v8314, %v8312
    %v8379 = vpack.c.bf16 %v8315, %v8313
    %v8380 = vpack.c.bf16 %v8318, %v8316
    %v8381 = vpack.c.bf16 %v8319, %v8317
    %v8382 = vpack.c.bf16 %v8322, %v8320
    %v8383 = vpack.c.bf16 %v8323, %v8321
    %v8384 = vpack.c.bf16 %v8326, %v8324
    %v8385 = vpack.c.bf16 %v8327, %v8325
    %v8386 = vpack.c.bf16 %v8330, %v8328
    %v8387 = vpack.c.bf16 %v8331, %v8329
    %v8388 = vpack.c.bf16 %v8334, %v8332
    %v8389 = vpack.c.bf16 %v8335, %v8333
    %v8390 = vpack.c.bf16 %v8338, %v8336
    %v8391 = vpack.c.bf16 %v8339, %v8337
    %v8392 = vpack.c.bf16 %v8342, %v8340
    %v8393 = vpack.c.bf16 %v8343, %v8341
    %v8426 = vunpack.c.l.b16 %v8345
    %v8427 = vunpack.c.l.b16 %v8346
    %v8428 = vunpack.c.l.b16 %v8347
    %v8429 = vunpack.c.l.b16 %v8348
    %v8430 = vunpack.c.l.b16 %v8349
    %v8431 = vunpack.c.l.b16 %v8350
    %v8432 = vunpack.c.l.b16 %v8351
    %v8433 = vunpack.c.l.b16 %v8352
    %v8434 = vunpack.c.l.b16 %v8353
    %v8435 = vunpack.c.l.b16 %v8354
    %v8436 = vunpack.c.l.b16 %v8355
    %v8437 = vunpack.c.l.b16 %v8356
    %v8438 = vunpack.c.l.b16 %v8357
    %v8439 = vunpack.c.l.b16 %v8358
    %v8440 = vunpack.c.l.b16 %v8359
    %v8441 = vunpack.c.l.b16 %v8360
    %v8442 = vunpack.c.l.b16 %v8361
    %v8443 = vunpack.c.l.b16 %v8362
    %v8444 = vunpack.c.l.b16 %v8363
    %v8445 = vunpack.c.l.b16 %v8364
    %v8446 = vunpack.c.l.b16 %v8365
    %v8447 = vunpack.c.l.b16 %v8366
    %v8448 = vunpack.c.l.b16 %v8367
    %v8449 = vunpack.c.l.b16 %v8368
    %v8450 = vunpack.c.l.b16 %v8369
    %v8451 = vunpack.c.l.b16 %v8370
    %v8452 = vunpack.c.l.b16 %v8371
    %v8453 = vunpack.c.l.b16 %v8372
    %v8454 = vunpack.c.l.b16 %v8373
    %v8455 = vunpack.c.l.b16 %v8374
    %v8456 = vunpack.c.l.b16 %v8375
    %v8457 = vunpack.c.l.b16 %v8376
    %v8458 = vpack.c.b16 %v8427, %v8426
    %v8459 = vpack.c.b16 %v8429, %v8428
    %v8460 = vpack.c.b16 %v8431, %v8430
    %v8461 = vpack.c.b16 %v8433, %v8432
    %v8462 = vpack.c.b16 %v8435, %v8434
    %v8463 = vpack.c.b16 %v8437, %v8436
    %v8464 = vpack.c.b16 %v8439, %v8438
    %v8465 = vpack.c.b16 %v8441, %v8440
    %v8466 = vpack.c.b16 %v8443, %v8442
    %v8467 = vpack.c.b16 %v8445, %v8444
    %v8468 = vpack.c.b16 %v8447, %v8446
    %v8469 = vpack.c.b16 %v8449, %v8448
    %v8470 = vpack.c.b16 %v8451, %v8450
    %v8471 = vpack.c.b16 %v8453, %v8452
    %v8472 = vpack.c.b16 %v8455, %v8454
    %v8473 = vpack.c.b16 %v8457, %v8456
    %8490 = vmatprep.subr.bf16.mxu0 0
    %8491 = vmatpush1.bf16.msra.mxu0 %v8465
    %8492 = vmatprep.subr.bf16.mxu0 0
    %8493 = vmatpush1.bf16.msra.mxu0 %v8464
    %8494 = vmatprep.subr.bf16.mxu0 0
    %8495 = vmatpush1.bf16.msra.mxu0 %v8463
    %8496 = vmatprep.subr.bf16.mxu0 0
    %8497 = vmatpush1.bf16.msra.mxu0 %v8462
    %8498 = vmatprep.subr.bf16.mxu0 0
    %8499 = vmatpush1.bf16.msra.mxu0 %v8461
    %8500 = vmatprep.subr.bf16.mxu0 0
    %8501 = vmatpush1.bf16.msra.mxu0 %v8460
    %8502 = vmatprep.subr.bf16.mxu0 0
    %8503 = vmatpush1.bf16.msra.mxu0 %v8459
    %8504 = vmatprep.subr.bf16.mxu0 0
    %8505 = vmatpush1.bf16.msra.mxu0 %v8458
    %8506 = vmatprep.subr.bf16.mxu0 0
    %8507 = vmatpush2.bf16.msra.mxu0 %v8473
    %8508 = vmatprep.subr.bf16.mxu0 0
    %8509 = vmatpush2.bf16.msra.mxu0 %v8472
    %8510 = vmatprep.subr.bf16.mxu0 0
    %8511 = vmatpush2.bf16.msra.mxu0 %v8471
    %8512 = vmatprep.subr.bf16.mxu0 0
    %8513 = vmatpush2.bf16.msra.mxu0 %v8470
    %8514 = vmatprep.subr.bf16.mxu0 0
    %8515 = vmatpush2.bf16.msra.mxu0 %v8469
    %8516 = vmatprep.subr.bf16.mxu0 0
    %8517 = vmatpush2.bf16.msra.mxu0 %v8468
    %8518 = vmatprep.subr.bf16.mxu0 0
    %8519 = vmatpush2.bf16.msra.mxu0 %v8467
    %8520 = vmatprep.subr.bf16.mxu0 0
    %8521 = vmatpush2.bf16.msra.mxu0 %v8466
    %8522 = vmatprep.mubr.bf16.mxu0 %v8379
    %8523 = vmatmul.mubr.bf16.gmra.mxu0 %v8378
    %v8524 = vpop.f32.mrf.mxu0
    %v8525 = vadd.f32 %v8377, %v8524
    %v8526 = vpop.f32.mrf.mxu0
    %v8527 = vpop.f32.mrf.mxu0
    %v8528 = vadd.f32 %v8377, %v8527
    %v8529 = vpop.f32.mrf.mxu0
    %8530 = vmatprep.mubr.bf16.mxu0 %v8381
    %8531 = vmatmul.mubr.bf16.gmra.mxu0 %v8380
    %v8532 = vpop.f32.mrf.mxu0
    %v8533 = vadd.f32 %v8377, %v8532
    %v8534 = vpop.f32.mrf.mxu0
    %v8535 = vpop.f32.mrf.mxu0
    %v8536 = vadd.f32 %v8377, %v8535
    %v8537 = vpop.f32.mrf.mxu0
    %8538 = vmatprep.mubr.bf16.mxu0 %v8383
    %8539 = vmatmul.mubr.bf16.gmra.mxu0 %v8382
    %v8540 = vpop.f32.mrf.mxu0
    %v8541 = vadd.f32 %v8377, %v8540
    %v8542 = vpop.f32.mrf.mxu0
    %v8543 = vpop.f32.mrf.mxu0
    %v8544 = vadd.f32 %v8377, %v8543
    %v8545 = vpop.f32.mrf.mxu0
    %8546 = vmatprep.mubr.bf16.mxu0 %v8385
    %8547 = vmatmul.mubr.bf16.gmra.mxu0 %v8384
    %v8548 = vpop.f32.mrf.mxu0
    %v8549 = vadd.f32 %v8377, %v8548
    %v8550 = vpop.f32.mrf.mxu0
    %v8551 = vpop.f32.mrf.mxu0
    %v8552 = vadd.f32 %v8377, %v8551
    %v8553 = vpop.f32.mrf.mxu0
    %8554 = vmatprep.mubr.bf16.mxu0 %v8387
    %8555 = vmatmul.mubr.bf16.gmra.mxu0 %v8386
    %v8556 = vpop.f32.mrf.mxu0
    %v8557 = vadd.f32 %v8377, %v8556
    %v8558 = vpop.f32.mrf.mxu0
    %v8559 = vpop.f32.mrf.mxu0
    %v8560 = vadd.f32 %v8377, %v8559
    %v8561 = vpop.f32.mrf.mxu0
    %8562 = vmatprep.mubr.bf16.mxu0 %v8389
    %8563 = vmatmul.mubr.bf16.gmra.mxu0 %v8388
    %v8564 = vpop.f32.mrf.mxu0
    %v8565 = vadd.f32 %v8377, %v8564
    %v8566 = vpop.f32.mrf.mxu0
    %v8567 = vpop.f32.mrf.mxu0
    %v8568 = vadd.f32 %v8377, %v8567
    %v8569 = vpop.f32.mrf.mxu0
    %8570 = vmatprep.mubr.bf16.mxu0 %v8391
    %8571 = vmatmul.mubr.bf16.gmra.mxu0 %v8390
    %v8572 = vpop.f32.mrf.mxu0
    %v8573 = vadd.f32 %v8377, %v8572
    %v8574 = vpop.f32.mrf.mxu0
    %v8575 = vpop.f32.mrf.mxu0
    %v8576 = vadd.f32 %v8377, %v8575
    %v8577 = vpop.f32.mrf.mxu0
    %8578 = vmatprep.mubr.bf16.mxu0 %v8393
    %8579 = vmatmul.mubr.bf16.gmra.mxu0 %v8392
    %v8580 = vpop.f32.mrf.mxu0
    %v8581 = vadd.f32 %v8377, %v8580
    %v8582 = vpop.f32.mrf.mxu0
    %v8583 = vpop.f32.mrf.mxu0
    %v8584 = vadd.f32 %v8377, %v8583
    %v8585 = vpop.f32.mrf.mxu0
    %8586 = vdwg.mxu0
    %v8587 = vadd.f32 %v7855, %v8525
    %v8588 = vadd.f32 %v7856, %v8528
    %v8589 = vadd.f32 %v7857, %v8533
    %v8590 = vadd.f32 %v7858, %v8536
    %v8591 = vadd.f32 %v7859, %v8541
    %v8592 = vadd.f32 %v7860, %v8544
    %v8593 = vadd.f32 %v7861, %v8549
    %v8594 = vadd.f32 %v7862, %v8552
    %v8595 = vadd.f32 %v7863, %v8557
    %v8596 = vadd.f32 %v7864, %v8560
    %v8597 = vadd.f32 %v7865, %v8565
    %v8598 = vadd.f32 %v7866, %v8568
    %v8599 = vadd.f32 %v7867, %v8573
    %v8600 = vadd.f32 %v7868, %v8576
    %v8601 = vadd.f32 %v7869, %v8581
    %v8602 = vadd.f32 %v7870, %v8584
    %v8603 = vld [vmem:[%s14 + $0x4a] ss:$0 sm:$0xff]
    %v8604 = vld [vmem:[%s14 + $0x4b] ss:$0 sm:$0xff]
    %8605 = vadd.xlane.f32.xlu0 %v8587
    %v8606 = vpop.xlane.xlu0 %8605
    %8607 = vadd.xlane.f32.xlu0 %v8588
    %v8608 = vpop.xlane.xlu0 %8607
    %8609 = vadd.xlane.f32.xlu0 %v8589
    %v8610 = vpop.xlane.xlu0 %8609
    %8611 = vadd.xlane.f32.xlu0 %v8590
    %v8612 = vpop.xlane.xlu0 %8611
    %8613 = vadd.xlane.f32.xlu0 %v8591
    %v8614 = vpop.xlane.xlu0 %8613
    %8615 = vadd.xlane.f32.xlu0 %v8592
    %v8616 = vpop.xlane.xlu0 %8615
    %8617 = vadd.xlane.f32.xlu0 %v8593
    %v8618 = vpop.xlane.xlu0 %8617
    %8619 = vadd.xlane.f32.xlu0 %v8594
    %v8620 = vpop.xlane.xlu0 %8619
    %8621 = vadd.xlane.f32.xlu0 %v8595
    %v8622 = vpop.xlane.xlu0 %8621
    %8623 = vadd.xlane.f32.xlu0 %v8596
    %v8624 = vpop.xlane.xlu0 %8623
    %8625 = vadd.xlane.f32.xlu0 %v8597
    %v8626 = vpop.xlane.xlu0 %8625
    %8627 = vadd.xlane.f32.xlu0 %v8598
    %v8628 = vpop.xlane.xlu0 %8627
    %8629 = vadd.xlane.f32.xlu0 %v8599
    %v8630 = vpop.xlane.xlu0 %8629
    %8631 = vadd.xlane.f32.xlu0 %v8600
    %v8632 = vpop.xlane.xlu0 %8631
    %8633 = vadd.xlane.f32.xlu0 %v8601
    %v8634 = vpop.xlane.xlu0 %8633
    %8635 = vadd.xlane.f32.xlu0 %v8602
    %v8636 = vpop.xlane.xlu0 %8635
    %v8637 = vmul.f32 %v8606, %v150
    %v8638 = vmul.f32 %v8608, %v150
    %v8639 = vmul.f32 %v8610, %v150
    %v8640 = vmul.f32 %v8612, %v150
    %v8641 = vmul.f32 %v8614, %v150
    %v8642 = vmul.f32 %v8616, %v150
    %v8643 = vmul.f32 %v8618, %v150
    %v8644 = vmul.f32 %v8620, %v150
    %v8645 = vmul.f32 %v8622, %v150
    %v8646 = vmul.f32 %v8624, %v150
    %v8647 = vmul.f32 %v8626, %v150
    %v8648 = vmul.f32 %v8628, %v150
    %v8649 = vmul.f32 %v8630, %v150
    %v8650 = vmul.f32 %v8632, %v150
    %v8651 = vmul.f32 %v8634, %v150
    %v8652 = vmul.f32 %v8636, %v150
    %v8653 = vsub.f32 %v8587, %v8637
    %v8654 = vsub.f32 %v8588, %v8638
    %v8655 = vsub.f32 %v8589, %v8639
    %v8656 = vsub.f32 %v8590, %v8640
    %v8657 = vsub.f32 %v8591, %v8641
    %v8658 = vsub.f32 %v8592, %v8642
    %v8659 = vsub.f32 %v8593, %v8643
    %v8660 = vsub.f32 %v8594, %v8644
    %v8661 = vsub.f32 %v8595, %v8645
    %v8662 = vsub.f32 %v8596, %v8646
    %v8663 = vsub.f32 %v8597, %v8647
    %v8664 = vsub.f32 %v8598, %v8648
    %v8665 = vsub.f32 %v8599, %v8649
    %v8666 = vsub.f32 %v8600, %v8650
    %v8667 = vsub.f32 %v8601, %v8651
    %v8668 = vsub.f32 %v8602, %v8652
    %v8669 = vmul.f32 %v8653, %v8653
    %v8670 = vmul.f32 %v8654, %v8654
    %v8671 = vmul.f32 %v8655, %v8655
    %v8672 = vmul.f32 %v8656, %v8656
    %v8673 = vmul.f32 %v8657, %v8657
    %v8674 = vmul.f32 %v8658, %v8658
    %v8675 = vmul.f32 %v8659, %v8659
    %v8676 = vmul.f32 %v8660, %v8660
    %v8677 = vmul.f32 %v8661, %v8661
    %v8678 = vmul.f32 %v8662, %v8662
    %v8679 = vmul.f32 %v8663, %v8663
    %v8680 = vmul.f32 %v8664, %v8664
    %v8681 = vmul.f32 %v8665, %v8665
    %v8682 = vmul.f32 %v8666, %v8666
    %v8683 = vmul.f32 %v8667, %v8667
    %v8684 = vmul.f32 %v8668, %v8668
    %8685 = vadd.xlane.f32.xlu0 %v8669
    %v8686 = vpop.xlane.xlu0 %8685
    %8687 = vadd.xlane.f32.xlu0 %v8670
    %v8688 = vpop.xlane.xlu0 %8687
    %8689 = vadd.xlane.f32.xlu0 %v8671
    %v8690 = vpop.xlane.xlu0 %8689
    %8691 = vadd.xlane.f32.xlu0 %v8672
    %v8692 = vpop.xlane.xlu0 %8691
    %8693 = vadd.xlane.f32.xlu0 %v8673
    %v8694 = vpop.xlane.xlu0 %8693
    %8695 = vadd.xlane.f32.xlu0 %v8674
    %v8696 = vpop.xlane.xlu0 %8695
    %8697 = vadd.xlane.f32.xlu0 %v8675
    %v8698 = vpop.xlane.xlu0 %8697
    %8699 = vadd.xlane.f32.xlu0 %v8676
    %v8700 = vpop.xlane.xlu0 %8699
    %8701 = vadd.xlane.f32.xlu0 %v8677
    %v8702 = vpop.xlane.xlu0 %8701
    %8703 = vadd.xlane.f32.xlu0 %v8678
    %v8704 = vpop.xlane.xlu0 %8703
    %8705 = vadd.xlane.f32.xlu0 %v8679
    %v8706 = vpop.xlane.xlu0 %8705
    %8707 = vadd.xlane.f32.xlu0 %v8680
    %v8708 = vpop.xlane.xlu0 %8707
    %8709 = vadd.xlane.f32.xlu0 %v8681
    %v8710 = vpop.xlane.xlu0 %8709
    %8711 = vadd.xlane.f32.xlu0 %v8682
    %v8712 = vpop.xlane.xlu0 %8711
    %8713 = vadd.xlane.f32.xlu0 %v8683
    %v8714 = vpop.xlane.xlu0 %8713
    %8715 = vadd.xlane.f32.xlu0 %v8684
    %v8716 = vpop.xlane.xlu0 %8715
    %v8717 = vmul.f32 %v8686, %v150
    %v8718 = vmul.f32 %v8688, %v150
    %v8719 = vmul.f32 %v8690, %v150
    %v8720 = vmul.f32 %v8692, %v150
    %v8721 = vmul.f32 %v8694, %v150
    %v8722 = vmul.f32 %v8696, %v150
    %v8723 = vmul.f32 %v8698, %v150
    %v8724 = vmul.f32 %v8700, %v150
    %v8725 = vmul.f32 %v8702, %v150
    %v8726 = vmul.f32 %v8704, %v150
    %v8727 = vmul.f32 %v8706, %v150
    %v8728 = vmul.f32 %v8708, %v150
    %v8729 = vmul.f32 %v8710, %v150
    %v8730 = vmul.f32 %v8712, %v150
    %v8731 = vmul.f32 %v8714, %v150
    %v8732 = vmul.f32 %v8716, %v150
    %v8733 = vadd.f32 %v8717, 1e-05
    %v8734 = vadd.f32 %v8718, 1e-05
    %v8735 = vadd.f32 %v8719, 1e-05
    %v8736 = vadd.f32 %v8720, 1e-05
    %v8737 = vadd.f32 %v8721, 1e-05
    %v8738 = vadd.f32 %v8722, 1e-05
    %v8739 = vadd.f32 %v8723, 1e-05
    %v8740 = vadd.f32 %v8724, 1e-05
    %v8741 = vadd.f32 %v8725, 1e-05
    %v8742 = vadd.f32 %v8726, 1e-05
    %v8743 = vadd.f32 %v8727, 1e-05
    %v8744 = vadd.f32 %v8728, 1e-05
    %v8745 = vadd.f32 %v8729, 1e-05
    %v8746 = vadd.f32 %v8730, 1e-05
    %v8747 = vadd.f32 %v8731, 1e-05
    %v8748 = vadd.f32 %v8732, 1e-05
    %v8749 = vrsqrt.pop %v8733
    %v8750 = vrsqrt.pop %v8734
    %v8751 = vrsqrt.pop %v8735
    %v8752 = vrsqrt.pop %v8736
    %v8753 = vrsqrt.pop %v8737
    %v8754 = vrsqrt.pop %v8738
    %v8755 = vrsqrt.pop %v8739
    %v8756 = vrsqrt.pop %v8740
    %v8757 = vrsqrt.pop %v8741
    %v8758 = vrsqrt.pop %v8742
    %v8759 = vrsqrt.pop %v8743
    %v8760 = vrsqrt.pop %v8744
    %v8761 = vrsqrt.pop %v8745
    %v8762 = vrsqrt.pop %v8746
    %v8763 = vrsqrt.pop %v8747
    %v8764 = vrsqrt.pop %v8748
    %v8765 = vmul.f32 %v8653, %v8749
    %v8766 = vmul.f32 %v8654, %v8750
    %v8767 = vmul.f32 %v8655, %v8751
    %v8768 = vmul.f32 %v8656, %v8752
    %v8769 = vmul.f32 %v8657, %v8753
    %v8770 = vmul.f32 %v8658, %v8754
    %v8771 = vmul.f32 %v8659, %v8755
    %v8772 = vmul.f32 %v8660, %v8756
    %v8773 = vmul.f32 %v8661, %v8757
    %v8774 = vmul.f32 %v8662, %v8758
    %v8775 = vmul.f32 %v8663, %v8759
    %v8776 = vmul.f32 %v8664, %v8760
    %v8777 = vmul.f32 %v8665, %v8761
    %v8778 = vmul.f32 %v8666, %v8762
    %v8779 = vmul.f32 %v8667, %v8763
    %v8780 = vmul.f32 %v8668, %v8764
    %v8781 = vmul.f32 %v8765, %v8603
    %v8782 = vmul.f32 %v8766, %v8603
    %v8783 = vmul.f32 %v8767, %v8603
    %v8784 = vmul.f32 %v8768, %v8603
    %v8785 = vmul.f32 %v8769, %v8603
    %v8786 = vmul.f32 %v8770, %v8603
    %v8787 = vmul.f32 %v8771, %v8603
    %v8788 = vmul.f32 %v8772, %v8603
    %v8789 = vmul.f32 %v8773, %v8603
    %v8790 = vmul.f32 %v8774, %v8603
    %v8791 = vmul.f32 %v8775, %v8603
    %v8792 = vmul.f32 %v8776, %v8603
    %v8793 = vmul.f32 %v8777, %v8603
    %v8794 = vmul.f32 %v8778, %v8603
    %v8795 = vmul.f32 %v8779, %v8603
    %v8796 = vmul.f32 %v8780, %v8603
    %v8797 = vadd.f32 %v8781, %v8604
    %v8798 = vadd.f32 %v8782, %v8604
    %v8799 = vadd.f32 %v8783, %v8604
    %v8800 = vadd.f32 %v8784, %v8604
    %v8801 = vadd.f32 %v8785, %v8604
    %v8802 = vadd.f32 %v8786, %v8604
    %v8803 = vadd.f32 %v8787, %v8604
    %v8804 = vadd.f32 %v8788, %v8604
    %v8805 = vadd.f32 %v8789, %v8604
    %v8806 = vadd.f32 %v8790, %v8604
    %v8807 = vadd.f32 %v8791, %v8604
    %v8808 = vadd.f32 %v8792, %v8604
    %v8809 = vadd.f32 %v8793, %v8604
    %v8810 = vadd.f32 %v8794, %v8604
    %v8811 = vadd.f32 %v8795, %v8604
    %v8812 = vadd.f32 %v8796, %v8604
    %8813 = vst [vmem:[#allocation2] sm:$0xff] %v8797
    %8814 = vst [vmem:[#allocation2 + $0x8] sm:$0xff] %v8798
    %8815 = vst [vmem:[#allocation2 + $0x10] sm:$0xff] %v8799
    %8816 = vst [vmem:[#allocation2 + $0x18] sm:$0xff] %v8800
    %8817 = vst [vmem:[#allocation2 + $0x20] sm:$0xff] %v8801
    %8818 = vst [vmem:[#allocation2 + $0x28] sm:$0xff] %v8802
    %8819 = vst [vmem:[#allocation2 + $0x30] sm:$0xff] %v8803
    %8820 = vst [vmem:[#allocation2 + $0x38] sm:$0xff] %v8804
    %8821 = vst [vmem:[#allocation2 + $0x40] sm:$0xff] %v8805
    %8822 = vst [vmem:[#allocation2 + $0x48] sm:$0xff] %v8806
    %8823 = vst [vmem:[#allocation2 + $0x50] sm:$0xff] %v8807
    %8824 = vst [vmem:[#allocation2 + $0x58] sm:$0xff] %v8808
    %8825 = vst [vmem:[#allocation2 + $0x60] sm:$0xff] %v8809
    %8826 = vst [vmem:[#allocation2 + $0x68] sm:$0xff] %v8810
    %8827 = vst [vmem:[#allocation2 + $0x70] sm:$0xff] %v8811
    %8828 = vst [vmem:[#allocation2 + $0x78] sm:$0xff] %v8812
    // Predicated region
    $region62: #{memory_attention_forward.1} parent=1 // pred_check
      _
    $region63: #{memory_attention_forward.1} parent=1 // pred_check_branch
      %8830 = sbr.rel (0) target = $region65
    $region64: #{memory_attention_forward.1} parent=1 // pred_region
      %s8832 = ssub.s32 2048, 2048
      %8833 = vsyncadd [#allocation3], %s8832
      %s8834 = sshll.u32 [#allocation2], 4
      %s8835 = int_to_ptr.vmem [resolvable:$true] %s8834
      %8840 = dma.vmem_to_hbm [thread:$0]  %s8835, 2048, %s15, [#allocation3], 128, 128, 8
    $region65: #{memory_attention_forward.1} parent=1 // pred_fallthru
      _
    // Predicated region
    $region66: #{memory_attention_forward.1} parent=1 // pred_check
      _
    $region67: #{memory_attention_forward.1} parent=1 // pred_check_branch
      %8842 = sbr.rel (0) target = $region69
    $region68: #{memory_attention_forward.1} parent=1 // pred_region
      %8843 = dma.done [#allocation3], 2048
    $region69: #{memory_attention_forward.1} parent=1 // pred_fallthru
      _
    %8844 = vsyncpa [#allocation3], 1

</llo_original>
